<compile_context>
chip_gen: v5e
topology: v5e:2x2
jax: 0.10.0
libtpu: 0.0.40
codegen_flags: <defaults>
</compile_context>

<pallas_src>
import jax
import jax.numpy as jnp
from jax.experimental import pallas as pl
from jax.experimental.pallas import tpu as pltpu

C = 64            # hidden channels of the network
TAP_PAD = 128     # conv1 im2col tap axis, zero-padded to one full lane tile
MXU_DTYPE = jnp.bfloat16   # conv2/conv3 matmul operand dtype (f32 accumulate).
                           # Set to jnp.float32 for bit-faithful f32 numerics.


def _round_up(v, m):
    return -(-v // m) * m


# ---------------------------------------------------------------------------
# Parameter construction (deterministic, PyTorch-like uniform init)
# ---------------------------------------------------------------------------

def _init_conv(key, cin, cout):
    kw, kb = jax.random.split(key)
    fan_in = cin * 3 * 3
    bound = 1.0 / jnp.sqrt(jnp.float32(fan_in))
    w = jax.random.uniform(kw, (3, 3, cin, cout), jnp.float32, -bound, bound)
    b = jax.random.uniform(kb, (cout,), jnp.float32, -bound, bound)
    return w, b


def _init_bn(key, c):
    k1, k2, k3, k4 = jax.random.split(key, 4)
    gamma = 1.0 + 0.1 * jax.random.normal(k1, (c,), jnp.float32)
    beta = 0.1 * jax.random.normal(k2, (c,), jnp.float32)
    mean = 0.1 * jax.random.normal(k3, (c,), jnp.float32)
    var = jax.random.uniform(k4, (c,), jnp.float32, 0.5, 1.5)
    return gamma, beta, mean, var


def make_params(key):
    keys = jax.random.split(key, 7)
    return {
        "conv1": _init_conv(keys[0], 1, C),
        "bn1": _init_bn(keys[1], C),
        "conv2": _init_conv(keys[2], C, C),
        "bn2": _init_bn(keys[3], C),
        "conv3": _init_conv(keys[4], C, C),
        "bn3": _init_bn(keys[5], C),
        "conv_out": _init_conv(keys[6], C, 1),
    }


def _fold_bn(conv_b, gamma, beta, mean, var, eps=1e-5):
    inv = gamma / jnp.sqrt(var + eps)
    return inv, (conv_b - mean) * inv + beta


# ---------------------------------------------------------------------------
# Forward pass (matches ThermalEnhancementNet.forward, eval-mode BN)
# ---------------------------------------------------------------------------

def thermal_enhancement_net(x_nchw, params, *, batch_block=None):
    N, cin, H, W = x_nchw.shape
    assert cin == 1
    Wp = W + 2                       # padded row width
    M = H * Wp                       # flat conv positions / image (incl. 2 junk cols per row)
    L = (-(Wp + 1)) % 8              # lead rows so the interior canvas store is sublane aligned
    store_off = L + Wp + 1           # canvas row of output pixel (0, 0)
    Pc = _round_up(L + M + 2 * Wp + 2, 8)   # canvas rows / image (covers widest tap read)
    KC = 9 * C

    if batch_block is None:          # keep >= 2 grid steps so megacore still splits work
        batch_block = 1 if N < 4 else (2 if N < 8 else 4)
    NB = batch_block
    n_steps = -(-N // NB)
    Npad = n_steps * NB
    NBM = NB * M

    # ---- wrapper-side prep (only the tiny 1-channel input is touched) ------
    x = x_nchw.reshape(N, H, W).astype(jnp.float32)
    xp = jnp.pad(x, ((0, Npad - N), (1, 1), (1, 3)))          # (Npad, H+2, W+4)
    taps = [xp[:, dy:dy + H, dx:dx + Wp].reshape(Npad, M)
            for dy in range(3) for dx in range(3)]
    x_taps = jnp.stack(taps, axis=-1)                         # (Npad, M, 9) im2col
    x_taps = jnp.pad(x_taps, ((0, 0), (0, 0), (0, TAP_PAD - 9)))

    w1 = jnp.pad(params["conv1"][0].reshape(9, C), ((0, TAP_PAD - 9), (0, 0)))
    w2 = params["conv2"][0].reshape(KC, C).astype(MXU_DTYPE)  # rows = tap*64 + cin
    w3 = params["conv3"][0].reshape(KC, C).astype(MXU_DTYPE)
    w4 = params["conv_out"][0].reshape(1, KC)                 # conv_out as one 576-lane row
    b4 = params["conv_out"][1].reshape(1, 1)

    scales, biases = [], []
    for i in (1, 2, 3):
        s, b = _fold_bn(params[f"conv{i}"][1], *params[f"bn{i}"])
        scales.append(s)
        biases.append(b)
    scale = jnp.stack(scales).reshape(3, 1, C)
    bias = jnp.stack(biases).reshape(3, 1, C)

    offs = tuple(dy * Wp + dx for dy in range(3) for dx in range(3))

    def kernel(xt_ref, w1_ref, w2_ref, w3_ref, w4_ref, sc_ref, bi_ref,
               b4_ref, o_ref, canvas_ref):
        # xt_ref  : (NB, M, 128)  conv1 im2col taps (zero padded to 128)
        # w1_ref  : (128, C)      conv1 weights (tap rows zero padded)
        # w2/w3   : (9C, C)       conv2/conv3 weights, tap-major rows, MXU dtype
        # w4_ref  : (1, 9C)       conv_out weights as one row
        # sc/bi   : (3, 1, C)     folded BN scale / (conv bias + BN shift)
        # b4_ref  : (1, 1)        conv_out bias
        # o_ref   : (1, NB, M)    lane-dense flat output
        # canvas  : (NB, Pc, C)   flat padded-activation canvas (VMEM)

        # Zero only the margin strips the tap windows read; the interior is
        # fully overwritten (with junk columns masked) by every layer.
        canvas_ref[:, 0:store_off, :] = jnp.zeros((NB, store_off, C), jnp.float32)
        canvas_ref[:, store_off + M:, :] = jnp.zeros(
            (NB, Pc - store_off - M, C), jnp.float32)

        # Flat columns W, W+1 of each padded row are out-of-image positions;
        # zeroing them on store makes them the conv zero padding.
        col = jax.lax.broadcasted_iota(jnp.int32, (NBM, C), 0) % Wp
        valid = col < W

        def bn_relu_store(acc, layer):
            y = jnp.maximum(acc * sc_ref[layer] + bi_ref[layer], 0.0)
            y = jnp.where(valid, y, 0.0)
            canvas_ref[:, store_off:store_off + M, :] = y.reshape(NB, M, C)

        def conv_lhs():
            # Tap-concatenated activation (NB*M, 9C); canvas margins supply
            # the zero padding, so this is the full im2col of the layer.
            views = [canvas_ref[:, L + off:L + off + M, :].reshape(NBM, C)
                     for off in offs]
            return jnp.concatenate(views, axis=-1)

        # conv1 + bn1 + relu : one (NB*M, 128) x (128, 64) matmul (Cin = 1)
        acc = jnp.dot(xt_ref[...].reshape(NBM, TAP_PAD), w1_ref[...],
                      preferred_element_type=jnp.float32)
        bn_relu_store(acc, 0)

        # conv2 / conv3 + bn + relu : one concatenated-K (NB*M, 576) x (576, 64)
        # MXU matmul each (bf16 operands, f32 accumulation).
        for layer, w_ref in ((1, w2_ref), (2, w3_ref)):
            lhs = conv_lhs().astype(w_ref.dtype)
            acc = jnp.dot(lhs, w_ref[...], preferred_element_type=jnp.float32)
            bn_relu_store(acc, layer)

        # conv_out : 64 -> 1 as a lane-dense 576-wide multiply + lane reduce.
        prod = conv_lhs() * w4_ref[...]
        out = jnp.sum(prod.reshape(NB, M, KC), axis=-1) + b4_ref[...]
        o_ref[...] = out.reshape(1, NB, M)

    out_flat = pl.pallas_call(
        kernel,
        out_shape=jax.ShapeDtypeStruct((n_steps, NB, M), jnp.float32),
        grid_spec=pltpu.PrefetchScalarGridSpec(
            num_scalar_prefetch=0,
            grid=(n_steps,),
            in_specs=[
                pl.BlockSpec((NB, M, TAP_PAD), lambda i: (i, 0, 0)),
                pl.BlockSpec((TAP_PAD, C), lambda i: (0, 0)),
                pl.BlockSpec((KC, C), lambda i: (0, 0)),
                pl.BlockSpec((KC, C), lambda i: (0, 0)),
                pl.BlockSpec((1, KC), lambda i: (0, 0)),
                pl.BlockSpec((3, 1, C), lambda i: (0, 0, 0)),
                pl.BlockSpec((3, 1, C), lambda i: (0, 0, 0)),
                pl.BlockSpec((1, 1), lambda i: (0, 0)),
            ],
            out_specs=pl.BlockSpec((1, NB, M), lambda i: (i, 0, 0)),
            scratch_shapes=[pltpu.VMEM((NB, Pc, C), jnp.float32)],
        ),
        compiler_params=pltpu.CompilerParams(
            dimension_semantics=("parallel",),
            vmem_limit_bytes=32 * 1024 * 1024),
    )(x_taps, w1, w2, w3, w4, scale, bias, b4)

    # Drop the 2 out-of-image columns per row and the batch padding -> NCHW.
    out = out_flat.reshape(Npad, M)[:N].reshape(N, H, Wp)[:, :, :W]
    return out.reshape(N, 1, H, W)


if __name__ == "__main__":
    key = jax.random.PRNGKey(0)
    k_x, k_p = jax.random.split(key)

    # Thermal image input: batch=2, 1 channel, 16x16 spatial (NCHW).
    x = jax.random.normal(k_x, (2, 1, 16, 16), jnp.float32)
    params = make_params(k_p)

    out = jax.jit(thermal_enhancement_net)(x, params)
    out = jax.block_until_ready(out)
    assert out.shape == (2, 1, 16, 16), out.shape
    print("KERNEL_OK")
</pallas_src>

<mosaic_0001>
module attributes {stable_mosaic.version = 11 : i64} {
  func.func @kernel(%arg0: i32, %arg1: memref<1x288x128xf32, #tpu.memory_space<vmem>>, %arg2: memref<128x64xf32, #tpu.memory_space<vmem>>, %arg3: memref<576x64xbf16, #tpu.memory_space<vmem>>, %arg4: memref<576x64xbf16, #tpu.memory_space<vmem>>, %arg5: memref<1x576xf32, #tpu.memory_space<vmem>>, %arg6: memref<3x1x64xf32, #tpu.memory_space<vmem>>, %arg7: memref<3x1x64xf32, #tpu.memory_space<vmem>>, %arg8: memref<1x1xf32, #tpu.memory_space<vmem>>, %arg9: memref<1x1x288xf32, #tpu.memory_space<vmem>>, %arg10: memref<1x336x64xf32, #tpu.memory_space<vmem>>) attributes {dimension_semantics = [#tpu.dimension_semantics<parallel>], iteration_bounds = array<i64: 2>, scalar_prefetch = 0 : i64, scratch_operands = 1 : i64, tpu.core_type = #tpu.core_type<tc>, window_params = [{transform_indices = @transform_0, window_bounds = array<i64: 1, 288, 128>}, {pipeline_mode = #tpu.pipeline_mode<synchronous>, transform_indices = @transform_1, window_bounds = array<i64: 128, 64>}, {pipeline_mode = #tpu.pipeline_mode<synchronous>, transform_indices = @transform_2, window_bounds = array<i64: 576, 64>}, {pipeline_mode = #tpu.pipeline_mode<synchronous>, transform_indices = @transform_3, window_bounds = array<i64: 576, 64>}, {pipeline_mode = #tpu.pipeline_mode<synchronous>, transform_indices = @transform_4, window_bounds = array<i64: 1, 576>}, {pipeline_mode = #tpu.pipeline_mode<synchronous>, transform_indices = @transform_5, window_bounds = array<i64: 3, 1, 64>}, {pipeline_mode = #tpu.pipeline_mode<synchronous>, transform_indices = @transform_6, window_bounds = array<i64: 3, 1, 64>}, {pipeline_mode = #tpu.pipeline_mode<synchronous>, transform_indices = @transform_7, window_bounds = array<i64: 1, 1>}, {transform_indices = @transform_8, window_bounds = array<i64: 1, 1, 288>}]} {
    %cst = arith.constant 0.000000e+00 : f32
    %0 = vector.broadcast %cst : f32 to vector<1x24x64xf32>
    %c0 = arith.constant 0 : index
    %c0_0 = arith.constant 0 : index
    %c0_1 = arith.constant 0 : index
    %1 = vector.load %arg10[%c0, %c0_0, %c0_1] : memref<1x336x64xf32, #tpu.memory_space<vmem>>, vector<1x24x64xf32>
    tpu.vector_store %arg10[%c0, %c0_0, %c0_1], %0 {strides = array<i32>} : memref<1x336x64xf32, #tpu.memory_space<vmem>>, vector<1x24x64xf32>,
    %cst_2 = arith.constant 0.000000e+00 : f32
    %2 = vector.broadcast %cst_2 : f32 to vector<1x24x64xf32>
    %c0_3 = arith.constant 0 : index
    %c312 = arith.constant 312 : index
    %c0_4 = arith.constant 0 : index
    %3 = vector.load %arg10[%c0_3, %c312, %c0_4] : memref<1x336x64xf32, #tpu.memory_space<vmem>>, vector<1x24x64xf32>
    tpu.vector_store %arg10[%c0_3, %c312, %c0_4], %2 {strides = array<i32>} : memref<1x336x64xf32, #tpu.memory_space<vmem>>, vector<1x24x64xf32>,
    %4 = tpu.iota {dimensions = array<i32: 0>} : vector<288x64xi32>
    %c18_i32 = arith.constant 18 : i32
    %c0_i32 = arith.constant 0 : i32
    %5 = arith.cmpi eq, %c18_i32, %c0_i32 : i32
    %c1_i32 = arith.constant 1 : i32
    %6 = arith.select %5, %c1_i32, %c18_i32 : i32
    %7 = vector.broadcast %6 : i32 to vector<288x64xi32>
    %8 = arith.remsi %4, %7 : vector<288x64xi32>
    %c0_i32_5 = arith.constant 0 : i32
    %9 = vector.broadcast %c0_i32_5 : i32 to vector<288x64xi32>
    %10 = arith.cmpi ne, %8, %9 : vector<288x64xi32>
    %c0_i32_6 = arith.constant 0 : i32
    %11 = vector.broadcast %c0_i32_6 : i32 to vector<288x64xi32>
    %12 = arith.cmpi slt, %8, %11 : vector<288x64xi32>
    %c0_i32_7 = arith.constant 0 : i32
    %13 = arith.cmpi slt, %6, %c0_i32_7 : i32
    %14 = vector.broadcast %13 : i1 to vector<288x64xi1>
    %15 = vector.broadcast %14 : vector<288x64xi1> to vector<288x64xi1>
    %16 = arith.xori %12, %15 : vector<288x64xi1>
    %17 = arith.andi %16, %10 : vector<288x64xi1>
    %18 = vector.broadcast %6 : i32 to vector<288x64xi32>
    %19 = arith.addi %8, %18 : vector<288x64xi32>
    %20 = arith.select %17, %19, %8 : vector<288x64xi1>, vector<288x64xi32>
    %c16_i32 = arith.constant 16 : i32
    %21 = vector.broadcast %c16_i32 : i32 to vector<288x64xi32>
    %22 = arith.cmpi slt, %20, %21 : vector<288x64xi32>
    %c0_8 = arith.constant 0 : index
    %c0_9 = arith.constant 0 : index
    %c0_10 = arith.constant 0 : index
    %23 = vector.load %arg1[%c0_8, %c0_9, %c0_10] : memref<1x288x128xf32, #tpu.memory_space<vmem>>, vector<1x288x128xf32>
    %24 = vector.shape_cast %23 : vector<1x288x128xf32> to vector<288x128xf32>
    %c0_11 = arith.constant 0 : index
    %c0_12 = arith.constant 0 : index
    %25 = vector.load %arg2[%c0_11, %c0_12] : memref<128x64xf32, #tpu.memory_space<vmem>>, vector<128x64xf32>
    %cst_13 = arith.constant dense<0.000000e+00> : vector<288x64xf32>
    %26 = tpu.matmul %24, %25, %cst_13 {dimension_numbers = #tpu.dot_dimension_numbers<[1], [0], [0], [1], [0, 0, 1, 1], [], []>} : vector<288x128xf32>, vector<128x64xf32>, vector<288x64xf32> -> vector<288x64xf32>
    %c0_14 = arith.constant 0 : index
    %c0_15 = arith.constant 0 : index
    %c0_16 = arith.constant 0 : index
    %27 = vector.load %arg6[%c0_14, %c0_15, %c0_16] : memref<3x1x64xf32, #tpu.memory_space<vmem>>, vector<1x1x64xf32>
    %28 = vector.shape_cast %27 : vector<1x1x64xf32> to vector<1x64xf32>
    %29 = vector.broadcast %28 : vector<1x64xf32> to vector<288x64xf32>
    %30 = arith.mulf %26, %29 : vector<288x64xf32>
    %c0_17 = arith.constant 0 : index
    %c0_18 = arith.constant 0 : index
    %c0_19 = arith.constant 0 : index
    %31 = vector.load %arg7[%c0_17, %c0_18, %c0_19] : memref<3x1x64xf32, #tpu.memory_space<vmem>>, vector<1x1x64xf32>
    %32 = vector.shape_cast %31 : vector<1x1x64xf32> to vector<1x64xf32>
    %33 = vector.broadcast %32 : vector<1x64xf32> to vector<288x64xf32>
    %34 = arith.addf %30, %33 : vector<288x64xf32>
    %cst_20 = arith.constant 0.000000e+00 : f32
    %35 = vector.broadcast %cst_20 : f32 to vector<288x64xf32>
    %36 = arith.maximumf %34, %35 : vector<288x64xf32>
    %cst_21 = arith.constant 0.000000e+00 : f32
    %37 = vector.broadcast %cst_21 : f32 to vector<288x64xf32>
    %38 = arith.select %22, %36, %37 : vector<288x64xi1>, vector<288x64xf32>
    %39 = vector.shape_cast %38 : vector<288x64xf32> to vector<1x288x64xf32>
    %c0_22 = arith.constant 0 : index
    %c24 = arith.constant 24 : index
    %c0_23 = arith.constant 0 : index
    %40 = vector.load %arg10[%c0_22, %c24, %c0_23] : memref<1x336x64xf32, #tpu.memory_space<vmem>>, vector<1x288x64xf32>
    tpu.vector_store %arg10[%c0_22, %c24, %c0_23], %39 {strides = array<i32>} : memref<1x336x64xf32, #tpu.memory_space<vmem>>, vector<1x288x64xf32>,
    %c0_24 = arith.constant 0 : index
    %c5 = arith.constant 5 : index
    %c0_25 = arith.constant 0 : index
    %41 = vector.load %arg10[%c0_24, %c5, %c0_25] : memref<1x336x64xf32, #tpu.memory_space<vmem>>, vector<1x288x64xf32>
    %42 = vector.shape_cast %41 : vector<1x288x64xf32> to vector<288x64xf32>
    %c0_26 = arith.constant 0 : index
    %c6 = arith.constant 6 : index
    %c0_27 = arith.constant 0 : index
    %43 = vector.load %arg10[%c0_26, %c6, %c0_27] : memref<1x336x64xf32, #tpu.memory_space<vmem>>, vector<1x288x64xf32>
    %44 = vector.shape_cast %43 : vector<1x288x64xf32> to vector<288x64xf32>
    %c0_28 = arith.constant 0 : index
    %c7 = arith.constant 7 : index
    %c0_29 = arith.constant 0 : index
    %45 = vector.load %arg10[%c0_28, %c7, %c0_29] : memref<1x336x64xf32, #tpu.memory_space<vmem>>, vector<1x288x64xf32>
    %46 = vector.shape_cast %45 : vector<1x288x64xf32> to vector<288x64xf32>
    %c0_30 = arith.constant 0 : index
    %c23 = arith.constant 23 : index
    %c0_31 = arith.constant 0 : index
    %47 = vector.load %arg10[%c0_30, %c23, %c0_31] : memref<1x336x64xf32, #tpu.memory_space<vmem>>, vector<1x288x64xf32>
    %48 = vector.shape_cast %47 : vector<1x288x64xf32> to vector<288x64xf32>
    %c0_32 = arith.constant 0 : index
    %c24_33 = arith.constant 24 : index
    %c0_34 = arith.constant 0 : index
    %49 = vector.load %arg10[%c0_32, %c24_33, %c0_34] : memref<1x336x64xf32, #tpu.memory_space<vmem>>, vector<1x288x64xf32>
    %50 = vector.shape_cast %49 : vector<1x288x64xf32> to vector<288x64xf32>
    %c0_35 = arith.constant 0 : index
    %c25 = arith.constant 25 : index
    %c0_36 = arith.constant 0 : index
    %51 = vector.load %arg10[%c0_35, %c25, %c0_36] : memref<1x336x64xf32, #tpu.memory_space<vmem>>, vector<1x288x64xf32>
    %52 = vector.shape_cast %51 : vector<1x288x64xf32> to vector<288x64xf32>
    %c0_37 = arith.constant 0 : index
    %c41 = arith.constant 41 : index
    %c0_38 = arith.constant 0 : index
    %53 = vector.load %arg10[%c0_37, %c41, %c0_38] : memref<1x336x64xf32, #tpu.memory_space<vmem>>, vector<1x288x64xf32>
    %54 = vector.shape_cast %53 : vector<1x288x64xf32> to vector<288x64xf32>
    %c0_39 = arith.constant 0 : index
    %c42 = arith.constant 42 : index
    %c0_40 = arith.constant 0 : index
    %55 = vector.load %arg10[%c0_39, %c42, %c0_40] : memref<1x336x64xf32, #tpu.memory_space<vmem>>, vector<1x288x64xf32>
    %56 = vector.shape_cast %55 : vector<1x288x64xf32> to vector<288x64xf32>
    %c0_41 = arith.constant 0 : index
    %c43 = arith.constant 43 : index
    %c0_42 = arith.constant 0 : index
    %57 = vector.load %arg10[%c0_41, %c43, %c0_42] : memref<1x336x64xf32, #tpu.memory_space<vmem>>, vector<1x288x64xf32>
    %58 = vector.shape_cast %57 : vector<1x288x64xf32> to vector<288x64xf32>
    %59 = tpu.concatenate %42, %44, %46, %48, %50, %52, %54, %56, %58 in 1 : vector<288x64xf32>, vector<288x64xf32>, vector<288x64xf32>, vector<288x64xf32>, vector<288x64xf32>, vector<288x64xf32>, vector<288x64xf32>, vector<288x64xf32>, vector<288x64xf32> -> vector<288x576xf32>
    %60 = arith.truncf %59 : vector<288x576xf32> to vector<288x576xbf16>
    %c0_43 = arith.constant 0 : index
    %c0_44 = arith.constant 0 : index
    %61 = vector.load %arg3[%c0_43, %c0_44] : memref<576x64xbf16, #tpu.memory_space<vmem>>, vector<576x64xbf16>
    %cst_45 = arith.constant dense<0.000000e+00> : vector<288x64xf32>
    %62 = tpu.matmul %60, %61, %cst_45 {dimension_numbers = #tpu.dot_dimension_numbers<[1], [0], [0], [1], [0, 0, 1, 1], [], []>} : vector<288x576xbf16>, vector<576x64xbf16>, vector<288x64xf32> -> vector<288x64xf32>
    %c1 = arith.constant 1 : index
    %c0_46 = arith.constant 0 : index
    %c0_47 = arith.constant 0 : index
    %63 = vector.load %arg6[%c1, %c0_46, %c0_47] : memref<3x1x64xf32, #tpu.memory_space<vmem>>, vector<1x1x64xf32>
    %64 = vector.shape_cast %63 : vector<1x1x64xf32> to vector<1x64xf32>
    %65 = vector.broadcast %64 : vector<1x64xf32> to vector<288x64xf32>
    %66 = arith.mulf %62, %65 : vector<288x64xf32>
    %c1_48 = arith.constant 1 : index
    %c0_49 = arith.constant 0 : index
    %c0_50 = arith.constant 0 : index
    %67 = vector.load %arg7[%c1_48, %c0_49, %c0_50] : memref<3x1x64xf32, #tpu.memory_space<vmem>>, vector<1x1x64xf32>
    %68 = vector.shape_cast %67 : vector<1x1x64xf32> to vector<1x64xf32>
    %69 = vector.broadcast %68 : vector<1x64xf32> to vector<288x64xf32>
    %70 = arith.addf %66, %69 : vector<288x64xf32>
    %cst_51 = arith.constant 0.000000e+00 : f32
    %71 = vector.broadcast %cst_51 : f32 to vector<288x64xf32>
    %72 = arith.maximumf %70, %71 : vector<288x64xf32>
    %cst_52 = arith.constant 0.000000e+00 : f32
    %73 = vector.broadcast %cst_52 : f32 to vector<288x64xf32>
    %74 = arith.select %22, %72, %73 : vector<288x64xi1>, vector<288x64xf32>
    %75 = vector.shape_cast %74 : vector<288x64xf32> to vector<1x288x64xf32>
    %c0_53 = arith.constant 0 : index
    %c24_54 = arith.constant 24 : index
    %c0_55 = arith.constant 0 : index
    %76 = vector.load %arg10[%c0_53, %c24_54, %c0_55] : memref<1x336x64xf32, #tpu.memory_space<vmem>>, vector<1x288x64xf32>
    tpu.vector_store %arg10[%c0_53, %c24_54, %c0_55], %75 {strides = array<i32>} : memref<1x336x64xf32, #tpu.memory_space<vmem>>, vector<1x288x64xf32>,
    %c0_56 = arith.constant 0 : index
    %c5_57 = arith.constant 5 : index
    %c0_58 = arith.constant 0 : index
    %77 = vector.load %arg10[%c0_56, %c5_57, %c0_58] : memref<1x336x64xf32, #tpu.memory_space<vmem>>, vector<1x288x64xf32>
    %78 = vector.shape_cast %77 : vector<1x288x64xf32> to vector<288x64xf32>
    %c0_59 = arith.constant 0 : index
    %c6_60 = arith.constant 6 : index
    %c0_61 = arith.constant 0 : index
    %79 = vector.load %arg10[%c0_59, %c6_60, %c0_61] : memref<1x336x64xf32, #tpu.memory_space<vmem>>, vector<1x288x64xf32>
    %80 = vector.shape_cast %79 : vector<1x288x64xf32> to vector<288x64xf32>
    %c0_62 = arith.constant 0 : index
    %c7_63 = arith.constant 7 : index
    %c0_64 = arith.constant 0 : index
    %81 = vector.load %arg10[%c0_62, %c7_63, %c0_64] : memref<1x336x64xf32, #tpu.memory_space<vmem>>, vector<1x288x64xf32>
    %82 = vector.shape_cast %81 : vector<1x288x64xf32> to vector<288x64xf32>
    %c0_65 = arith.constant 0 : index
    %c23_66 = arith.constant 23 : index
    %c0_67 = arith.constant 0 : index
    %83 = vector.load %arg10[%c0_65, %c23_66, %c0_67] : memref<1x336x64xf32, #tpu.memory_space<vmem>>, vector<1x288x64xf32>
    %84 = vector.shape_cast %83 : vector<1x288x64xf32> to vector<288x64xf32>
    %c0_68 = arith.constant 0 : index
    %c24_69 = arith.constant 24 : index
    %c0_70 = arith.constant 0 : index
    %85 = vector.load %arg10[%c0_68, %c24_69, %c0_70] : memref<1x336x64xf32, #tpu.memory_space<vmem>>, vector<1x288x64xf32>
    %86 = vector.shape_cast %85 : vector<1x288x64xf32> to vector<288x64xf32>
    %c0_71 = arith.constant 0 : index
    %c25_72 = arith.constant 25 : index
    %c0_73 = arith.constant 0 : index
    %87 = vector.load %arg10[%c0_71, %c25_72, %c0_73] : memref<1x336x64xf32, #tpu.memory_space<vmem>>, vector<1x288x64xf32>
    %88 = vector.shape_cast %87 : vector<1x288x64xf32> to vector<288x64xf32>
    %c0_74 = arith.constant 0 : index
    %c41_75 = arith.constant 41 : index
    %c0_76 = arith.constant 0 : index
    %89 = vector.load %arg10[%c0_74, %c41_75, %c0_76] : memref<1x336x64xf32, #tpu.memory_space<vmem>>, vector<1x288x64xf32>
    %90 = vector.shape_cast %89 : vector<1x288x64xf32> to vector<288x64xf32>
    %c0_77 = arith.constant 0 : index
    %c42_78 = arith.constant 42 : index
    %c0_79 = arith.constant 0 : index
    %91 = vector.load %arg10[%c0_77, %c42_78, %c0_79] : memref<1x336x64xf32, #tpu.memory_space<vmem>>, vector<1x288x64xf32>
    %92 = vector.shape_cast %91 : vector<1x288x64xf32> to vector<288x64xf32>
    %c0_80 = arith.constant 0 : index
    %c43_81 = arith.constant 43 : index
    %c0_82 = arith.constant 0 : index
    %93 = vector.load %arg10[%c0_80, %c43_81, %c0_82] : memref<1x336x64xf32, #tpu.memory_space<vmem>>, vector<1x288x64xf32>
    %94 = vector.shape_cast %93 : vector<1x288x64xf32> to vector<288x64xf32>
    %95 = tpu.concatenate %78, %80, %82, %84, %86, %88, %90, %92, %94 in 1 : vector<288x64xf32>, vector<288x64xf32>, vector<288x64xf32>, vector<288x64xf32>, vector<288x64xf32>, vector<288x64xf32>, vector<288x64xf32>, vector<288x64xf32>, vector<288x64xf32> -> vector<288x576xf32>
    %96 = arith.truncf %95 : vector<288x576xf32> to vector<288x576xbf16>
    %c0_83 = arith.constant 0 : index
    %c0_84 = arith.constant 0 : index
    %97 = vector.load %arg4[%c0_83, %c0_84] : memref<576x64xbf16, #tpu.memory_space<vmem>>, vector<576x64xbf16>
    %cst_85 = arith.constant dense<0.000000e+00> : vector<288x64xf32>
    %98 = tpu.matmul %96, %97, %cst_85 {dimension_numbers = #tpu.dot_dimension_numbers<[1], [0], [0], [1], [0, 0, 1, 1], [], []>} : vector<288x576xbf16>, vector<576x64xbf16>, vector<288x64xf32> -> vector<288x64xf32>
    %c2 = arith.constant 2 : index
    %c0_86 = arith.constant 0 : index
    %c0_87 = arith.constant 0 : index
    %99 = vector.load %arg6[%c2, %c0_86, %c0_87] : memref<3x1x64xf32, #tpu.memory_space<vmem>>, vector<1x1x64xf32>
    %100 = vector.shape_cast %99 : vector<1x1x64xf32> to vector<1x64xf32>
    %101 = vector.broadcast %100 : vector<1x64xf32> to vector<288x64xf32>
    %102 = arith.mulf %98, %101 : vector<288x64xf32>
    %c2_88 = arith.constant 2 : index
    %c0_89 = arith.constant 0 : index
    %c0_90 = arith.constant 0 : index
    %103 = vector.load %arg7[%c2_88, %c0_89, %c0_90] : memref<3x1x64xf32, #tpu.memory_space<vmem>>, vector<1x1x64xf32>
    %104 = vector.shape_cast %103 : vector<1x1x64xf32> to vector<1x64xf32>
    %105 = vector.broadcast %104 : vector<1x64xf32> to vector<288x64xf32>
    %106 = arith.addf %102, %105 : vector<288x64xf32>
    %cst_91 = arith.constant 0.000000e+00 : f32
    %107 = vector.broadcast %cst_91 : f32 to vector<288x64xf32>
    %108 = arith.maximumf %106, %107 : vector<288x64xf32>
    %cst_92 = arith.constant 0.000000e+00 : f32
    %109 = vector.broadcast %cst_92 : f32 to vector<288x64xf32>
    %110 = arith.select %22, %108, %109 : vector<288x64xi1>, vector<288x64xf32>
    %111 = vector.shape_cast %110 : vector<288x64xf32> to vector<1x288x64xf32>
    %c0_93 = arith.constant 0 : index
    %c24_94 = arith.constant 24 : index
    %c0_95 = arith.constant 0 : index
    %112 = vector.load %arg10[%c0_93, %c24_94, %c0_95] : memref<1x336x64xf32, #tpu.memory_space<vmem>>, vector<1x288x64xf32>
    tpu.vector_store %arg10[%c0_93, %c24_94, %c0_95], %111 {strides = array<i32>} : memref<1x336x64xf32, #tpu.memory_space<vmem>>, vector<1x288x64xf32>,
    %c0_96 = arith.constant 0 : index
    %c5_97 = arith.constant 5 : index
    %c0_98 = arith.constant 0 : index
    %113 = vector.load %arg10[%c0_96, %c5_97, %c0_98] : memref<1x336x64xf32, #tpu.memory_space<vmem>>, vector<1x288x64xf32>
    %114 = vector.shape_cast %113 : vector<1x288x64xf32> to vector<288x64xf32>
    %c0_99 = arith.constant 0 : index
    %c6_100 = arith.constant 6 : index
    %c0_101 = arith.constant 0 : index
    %115 = vector.load %arg10[%c0_99, %c6_100, %c0_101] : memref<1x336x64xf32, #tpu.memory_space<vmem>>, vector<1x288x64xf32>
    %116 = vector.shape_cast %115 : vector<1x288x64xf32> to vector<288x64xf32>
    %c0_102 = arith.constant 0 : index
    %c7_103 = arith.constant 7 : index
    %c0_104 = arith.constant 0 : index
    %117 = vector.load %arg10[%c0_102, %c7_103, %c0_104] : memref<1x336x64xf32, #tpu.memory_space<vmem>>, vector<1x288x64xf32>
    %118 = vector.shape_cast %117 : vector<1x288x64xf32> to vector<288x64xf32>
    %c0_105 = arith.constant 0 : index
    %c23_106 = arith.constant 23 : index
    %c0_107 = arith.constant 0 : index
    %119 = vector.load %arg10[%c0_105, %c23_106, %c0_107] : memref<1x336x64xf32, #tpu.memory_space<vmem>>, vector<1x288x64xf32>
    %120 = vector.shape_cast %119 : vector<1x288x64xf32> to vector<288x64xf32>
    %c0_108 = arith.constant 0 : index
    %c24_109 = arith.constant 24 : index
    %c0_110 = arith.constant 0 : index
    %121 = vector.load %arg10[%c0_108, %c24_109, %c0_110] : memref<1x336x64xf32, #tpu.memory_space<vmem>>, vector<1x288x64xf32>
    %122 = vector.shape_cast %121 : vector<1x288x64xf32> to vector<288x64xf32>
    %c0_111 = arith.constant 0 : index
    %c25_112 = arith.constant 25 : index
    %c0_113 = arith.constant 0 : index
    %123 = vector.load %arg10[%c0_111, %c25_112, %c0_113] : memref<1x336x64xf32, #tpu.memory_space<vmem>>, vector<1x288x64xf32>
    %124 = vector.shape_cast %123 : vector<1x288x64xf32> to vector<288x64xf32>
    %c0_114 = arith.constant 0 : index
    %c41_115 = arith.constant 41 : index
    %c0_116 = arith.constant 0 : index
    %125 = vector.load %arg10[%c0_114, %c41_115, %c0_116] : memref<1x336x64xf32, #tpu.memory_space<vmem>>, vector<1x288x64xf32>
    %126 = vector.shape_cast %125 : vector<1x288x64xf32> to vector<288x64xf32>
    %c0_117 = arith.constant 0 : index
    %c42_118 = arith.constant 42 : index
    %c0_119 = arith.constant 0 : index
    %127 = vector.load %arg10[%c0_117, %c42_118, %c0_119] : memref<1x336x64xf32, #tpu.memory_space<vmem>>, vector<1x288x64xf32>
    %128 = vector.shape_cast %127 : vector<1x288x64xf32> to vector<288x64xf32>
    %c0_120 = arith.constant 0 : index
    %c43_121 = arith.constant 43 : index
    %c0_122 = arith.constant 0 : index
    %129 = vector.load %arg10[%c0_120, %c43_121, %c0_122] : memref<1x336x64xf32, #tpu.memory_space<vmem>>, vector<1x288x64xf32>
    %130 = vector.shape_cast %129 : vector<1x288x64xf32> to vector<288x64xf32>
    %131 = tpu.concatenate %114, %116, %118, %120, %122, %124, %126, %128, %130 in 1 : vector<288x64xf32>, vector<288x64xf32>, vector<288x64xf32>, vector<288x64xf32>, vector<288x64xf32>, vector<288x64xf32>, vector<288x64xf32>, vector<288x64xf32>, vector<288x64xf32> -> vector<288x576xf32>
    %c0_123 = arith.constant 0 : index
    %c0_124 = arith.constant 0 : index
    %132 = vector.load %arg5[%c0_123, %c0_124] : memref<1x576xf32, #tpu.memory_space<vmem>>, vector<1x576xf32>
    %133 = vector.broadcast %132 : vector<1x576xf32> to vector<288x576xf32>
    %134 = arith.mulf %131, %133 : vector<288x576xf32>
    %135 = vector.shape_cast %134 : vector<288x576xf32> to vector<1x288x576xf32>
    %cst_125 = arith.constant dense<0.000000e+00> : vector<1x288xf32>
    %136 = vector.multi_reduction <add>, %135, %cst_125 [2] : vector<1x288x576xf32> to vector<1x288xf32>
    %c0_126 = arith.constant 0 : index
    %c0_127 = arith.constant 0 : index
    %137 = vector.load %arg8[%c0_126, %c0_127] : memref<1x1xf32, #tpu.memory_space<vmem>>, vector<1x1xf32>
    %138 = vector.broadcast %137 : vector<1x1xf32> to vector<1x288xf32>
    %139 = arith.addf %136, %138 : vector<1x288xf32>
    %140 = vector.shape_cast %139 : vector<1x288xf32> to vector<1x1x288xf32>
    %c0_128 = arith.constant 0 : index
    %c0_129 = arith.constant 0 : index
    %c0_130 = arith.constant 0 : index
    %141 = vector.load %arg9[%c0_128, %c0_129, %c0_130] : memref<1x1x288xf32, #tpu.memory_space<vmem>>, vector<1x1x288xf32>
    tpu.vector_store %arg9[%c0_128, %c0_129, %c0_130], %140 {strides = array<i32>} : memref<1x1x288xf32, #tpu.memory_space<vmem>>, vector<1x1x288xf32>,
    return
  }
  func.func @transform_0(%arg0: i32) -> (i32, i32, i32) {
    %c0_i32 = arith.constant 0 : i32
    %c0_i32_0 = arith.constant 0 : i32
    %c0_i32_1 = arith.constant 0 : i32
    return %arg0, %c0_i32, %c0_i32_0 : i32, i32, i32
  }
  func.func @transform_1(%arg0: i32) -> (i32, i32) {
    %c0_i32 = arith.constant 0 : i32
    %c0_i32_0 = arith.constant 0 : i32
    %c0_i32_1 = arith.constant 0 : i32
    return %c0_i32, %c0_i32_0 : i32, i32
  }
  func.func @transform_2(%arg0: i32) -> (i32, i32) {
    %c0_i32 = arith.constant 0 : i32
    %c0_i32_0 = arith.constant 0 : i32
    %c0_i32_1 = arith.constant 0 : i32
    return %c0_i32, %c0_i32_0 : i32, i32
  }
  func.func @transform_3(%arg0: i32) -> (i32, i32) {
    %c0_i32 = arith.constant 0 : i32
    %c0_i32_0 = arith.constant 0 : i32
    %c0_i32_1 = arith.constant 0 : i32
    return %c0_i32, %c0_i32_0 : i32, i32
  }
  func.func @transform_4(%arg0: i32) -> (i32, i32) {
    %c0_i32 = arith.constant 0 : i32
    %c0_i32_0 = arith.constant 0 : i32
    %c0_i32_1 = arith.constant 0 : i32
    return %c0_i32, %c0_i32_0 : i32, i32
  }
  func.func @transform_5(%arg0: i32) -> (i32, i32, i32) {
    %c0_i32 = arith.constant 0 : i32
    %c0_i32_0 = arith.constant 0 : i32
    %c0_i32_1 = arith.constant 0 : i32
    %c0_i32_2 = arith.constant 0 : i32
    return %c0_i32, %c0_i32_0, %c0_i32_1 : i32, i32, i32
  }
  func.func @transform_6(%arg0: i32) -> (i32, i32, i32) {
    %c0_i32 = arith.constant 0 : i32
    %c0_i32_0 = arith.constant 0 : i32
    %c0_i32_1 = arith.constant 0 : i32
    %c0_i32_2 = arith.constant 0 : i32
    return %c0_i32, %c0_i32_0, %c0_i32_1 : i32, i32, i32
  }
  func.func @transform_7(%arg0: i32) -> (i32, i32) {
    %c0_i32 = arith.constant 0 : i32
    %c0_i32_0 = arith.constant 0 : i32
    %c0_i32_1 = arith.constant 0 : i32
    return %c0_i32, %c0_i32_0 : i32, i32
  }
  func.func @transform_8(%arg0: i32) -> (i32, i32, i32) {
    %c0_i32 = arith.constant 0 : i32
    %c0_i32_0 = arith.constant 0 : i32
    %c0_i32_1 = arith.constant 0 : i32
    return %arg0, %c0_i32, %c0_i32_0 : i32, i32, i32
  }
}

</mosaic_0001>

<llo_original>
// kernel: thermal_enhancement_net.1
$region0: #{thermal_enhancement_net.1}
  #allocation0 [shape = 'u32[]', space=smem, size = 0x4, offset = 0x4, fixed_abs, tag = 'smem constant byte address 0x4 - core index']
  #allocation1 [shape = 'u32[72,128]{1,0:T(1,128)}', space=vmem, size = 0x9000, scoped, tag = 'internal scratch']
  #allocation2 [shape = 'f32[1,336,64]{2,1,0:T(8,128)}', space=vmem, size = 0x2a000, scoped, tag = 'scratch operand']
  #allocation3 [shape = 'f32[1,1]{1,0:T(1,128)S(1)}', space=vmem, size = 0x200, scoped, tag = 'scoped memory for thermal_enhancement_net.1']
  %s0 = inlined_call_operand.vmem [shape: f32[2,288,128], index: 0, kind: input, shape index: {}]
  %s1 = inlined_call_operand.vmem [shape: f32[128,64], index: 1, kind: input, shape index: {}]
  %s2 = inlined_call_operand.vmem [shape: bf16[576,64], index: 2, kind: input, shape index: {}]
  %s3 = inlined_call_operand.vmem [shape: bf16[576,64], index: 3, kind: input, shape index: {}]
  %s4 = inlined_call_operand.vmem [shape: f32[1,576], index: 4, kind: input, shape index: {}]
  %s5 = inlined_call_operand.vmem [shape: f32[3,1,64], index: 5, kind: input, shape index: {}]
  %s6 = inlined_call_operand.vmem [shape: f32[3,1,64], index: 6, kind: input, shape index: {}]
  %s7 = inlined_call_operand.<no memory space> [shape: f32[1,1], index: 7, kind: input, shape index: {}]
  %s8 = inlined_call_operand.vmem [shape: f32[2,1,288], index: 8, kind: output, shape index: {}]
  %s9 = sld [smem:[#allocation0]]
  $region65: #{thermal_enhancement_net.1} parent=0
    _
  %s11 = ssub.s32 1, %s9
  %s12 = scalar_select 0, %s11, %s9
  %v13 = vstv %s7
  %14 = vst [vmem:[#allocation3] sm:$0x1] %v13
  loop: start=0, step=1, limit=4
  $region2: #{thermal_enhancement_net.1} parent=0 // loop_pre_header
    _
  $region3: #{thermal_enhancement_net.1} parent=0 // loop_header
    %s16 = sphi 0, %s20
    %p17 = scmp.ge.s32.totalorder %s16, 4
    %s26 = sphi 0, %s28
    %s29 = sphi 0, %s26
    %s30 = sphi 0, %s29
    %s46 = sphi 0, %s30
    %s50 = sphi 0, %s50
    %s52 = sphi 0, %s50
    %s53 = sphi 0, %s52
    %s67 = sphi 0, %s53
    %s71 = sphi 0, %s71
    %s73 = sphi 0, %s71
    %s74 = sphi 0, %s73
    %s88 = sphi 0, %s74
    %s92 = sphi 0, %s92
    %s94 = sphi 0, %s92
    %s95 = sphi 0, %s94
    %s109 = sphi 0, %s95
    %s113 = sphi 0, %s113
    %s115 = sphi 0, %s113
    %s116 = sphi 0, %s115
    %s130 = sphi 0, %s116
    %s134 = sphi 0, %s134
    %s136 = sphi 0, %s134
    %s137 = sphi 0, %s136
    %s151 = sphi 0, %s137
    %s155 = sphi 0, %s155
    %s157 = sphi 0, %s155
    %s158 = sphi 0, %s157
    %s172 = sphi 0, %s158
    %s176 = sphi 0, %s176
    %s178 = sphi 0, %s176
    %s179 = sphi 0, %s178
    %s193 = sphi 0, %s179
    %s199 = sphi 0, %s201
    %s202 = sphi 0, %s199
    %s203 = sphi 0, %s202
    %s219 = sphi 0, %s203
  $region4: #{thermal_enhancement_net.1} parent=0 // loop_header_branch
    %19 = sbr.rel (%p17) target = $region8
  $region5: #{thermal_enhancement_net.1} parent=0 // loop_body
    %s21 = ssub.s32 %s16, 1
    %s22 = ssub.s32 %s16, 2
    %s23 = sadd.s32 %s16, 1
    %s24 = ssub.s32 %s16, %s23
    %p25 = scmp.eq.s32.totalorder %s24, 0
    %s27 = sadd.s32 %s26, 1
    %s28 = scalar_select %p25, %s26, %s27
    %p31 = pneg %p25
    %p32 = scmp.eq.s32.totalorder %s16, 1
    %p33 = por %p31, %p32
    %p34 = scmp.ne.s32.totalorder %s26, %s29
    %p35 = scmp.eq.s32.totalorder %s16, 0
    %p36 = por %p34, %p35
    %p37 = scmp.ne.s32.totalorder %s26, %s29
    %p38 = scmp.eq.s32.totalorder %s21, 1
    %p39 = por %p37, %p38
    %p40 = scmp.ne.s32.totalorder %s29, %s30
    %p41 = scmp.eq.s32.totalorder %s21, 0
    %p42 = por %p40, %p41
    %p43 = scmp.ne.s32.totalorder %s29, %s30
    %p44 = scmp.eq.s32.totalorder %s22, 1
    %p45 = por %p43, %p44
    %p47 = scmp.ne.s32.totalorder %s30, %s46
    %p48 = scmp.eq.s32.totalorder %s22, 0
    %p49 = por %p47, %p48
    %s51 = sadd.s32 %s50, 1
    %p54 = scmp.eq.s32.totalorder %s16, 1
    %p55 = scmp.ne.s32.totalorder %s50, %s52
    %p56 = scmp.eq.s32.totalorder %s16, 0
    %p57 = por %p55, %p56
    %p58 = scmp.ne.s32.totalorder %s50, %s52
    %p59 = scmp.eq.s32.totalorder %s21, 1
    %p60 = por %p58, %p59
    %p61 = scmp.ne.s32.totalorder %s52, %s53
    %p62 = scmp.eq.s32.totalorder %s21, 0
    %p63 = por %p61, %p62
    %p64 = scmp.ne.s32.totalorder %s52, %s53
    %p65 = scmp.eq.s32.totalorder %s22, 1
    %p66 = por %p64, %p65
    %p68 = scmp.ne.s32.totalorder %s53, %s67
    %p69 = scmp.eq.s32.totalorder %s22, 0
    %p70 = por %p68, %p69
    %s72 = sadd.s32 %s71, 1
    %p75 = scmp.eq.s32.totalorder %s16, 1
    %p76 = scmp.ne.s32.totalorder %s71, %s73
    %p77 = scmp.eq.s32.totalorder %s16, 0
    %p78 = por %p76, %p77
    %p79 = scmp.ne.s32.totalorder %s71, %s73
    %p80 = scmp.eq.s32.totalorder %s21, 1
    %p81 = por %p79, %p80
    %p82 = scmp.ne.s32.totalorder %s73, %s74
    %p83 = scmp.eq.s32.totalorder %s21, 0
    %p84 = por %p82, %p83
    %p85 = scmp.ne.s32.totalorder %s73, %s74
    %p86 = scmp.eq.s32.totalorder %s22, 1
    %p87 = por %p85, %p86
    %p89 = scmp.ne.s32.totalorder %s74, %s88
    %p90 = scmp.eq.s32.totalorder %s22, 0
    %p91 = por %p89, %p90
    %s93 = sadd.s32 %s92, 1
    %p96 = scmp.eq.s32.totalorder %s16, 1
    %p97 = scmp.ne.s32.totalorder %s92, %s94
    %p98 = scmp.eq.s32.totalorder %s16, 0
    %p99 = por %p97, %p98
    %p100 = scmp.ne.s32.totalorder %s92, %s94
    %p101 = scmp.eq.s32.totalorder %s21, 1
    %p102 = por %p100, %p101
    %p103 = scmp.ne.s32.totalorder %s94, %s95
    %p104 = scmp.eq.s32.totalorder %s21, 0
    %p105 = por %p103, %p104
    %p106 = scmp.ne.s32.totalorder %s94, %s95
    %p107 = scmp.eq.s32.totalorder %s22, 1
    %p108 = por %p106, %p107
    %p110 = scmp.ne.s32.totalorder %s95, %s109
    %p111 = scmp.eq.s32.totalorder %s22, 0
    %p112 = por %p110, %p111
    %s114 = sadd.s32 %s113, 1
    %p117 = scmp.eq.s32.totalorder %s16, 1
    %p118 = scmp.ne.s32.totalorder %s113, %s115
    %p119 = scmp.eq.s32.totalorder %s16, 0
    %p120 = por %p118, %p119
    %p121 = scmp.ne.s32.totalorder %s113, %s115
    %p122 = scmp.eq.s32.totalorder %s21, 1
    %p123 = por %p121, %p122
    %p124 = scmp.ne.s32.totalorder %s115, %s116
    %p125 = scmp.eq.s32.totalorder %s21, 0
    %p126 = por %p124, %p125
    %p127 = scmp.ne.s32.totalorder %s115, %s116
    %p128 = scmp.eq.s32.totalorder %s22, 1
    %p129 = por %p127, %p128
    %p131 = scmp.ne.s32.totalorder %s116, %s130
    %p132 = scmp.eq.s32.totalorder %s22, 0
    %p133 = por %p131, %p132
    %s135 = sadd.s32 %s134, 1
    %p138 = scmp.eq.s32.totalorder %s16, 1
    %p139 = scmp.ne.s32.totalorder %s134, %s136
    %p140 = scmp.eq.s32.totalorder %s16, 0
    %p141 = por %p139, %p140
    %p142 = scmp.ne.s32.totalorder %s134, %s136
    %p143 = scmp.eq.s32.totalorder %s21, 1
    %p144 = por %p142, %p143
    %p145 = scmp.ne.s32.totalorder %s136, %s137
    %p146 = scmp.eq.s32.totalorder %s21, 0
    %p147 = por %p145, %p146
    %p148 = scmp.ne.s32.totalorder %s136, %s137
    %p149 = scmp.eq.s32.totalorder %s22, 1
    %p150 = por %p148, %p149
    %p152 = scmp.ne.s32.totalorder %s137, %s151
    %p153 = scmp.eq.s32.totalorder %s22, 0
    %p154 = por %p152, %p153
    %s156 = sadd.s32 %s155, 1
    %p159 = scmp.eq.s32.totalorder %s16, 1
    %p160 = scmp.ne.s32.totalorder %s155, %s157
    %p161 = scmp.eq.s32.totalorder %s16, 0
    %p162 = por %p160, %p161
    %p163 = scmp.ne.s32.totalorder %s155, %s157
    %p164 = scmp.eq.s32.totalorder %s21, 1
    %p165 = por %p163, %p164
    %p166 = scmp.ne.s32.totalorder %s157, %s158
    %p167 = scmp.eq.s32.totalorder %s21, 0
    %p168 = por %p166, %p167
    %p169 = scmp.ne.s32.totalorder %s157, %s158
    %p170 = scmp.eq.s32.totalorder %s22, 1
    %p171 = por %p169, %p170
    %p173 = scmp.ne.s32.totalorder %s158, %s172
    %p174 = scmp.eq.s32.totalorder %s22, 0
    %p175 = por %p173, %p174
    %s177 = sadd.s32 %s176, 1
    %p180 = scmp.eq.s32.totalorder %s16, 1
    %p181 = scmp.ne.s32.totalorder %s176, %s178
    %p182 = scmp.eq.s32.totalorder %s16, 0
    %p183 = por %p181, %p182
    %p184 = scmp.ne.s32.totalorder %s176, %s178
    %p185 = scmp.eq.s32.totalorder %s21, 1
    %p186 = por %p184, %p185
    %p187 = scmp.ne.s32.totalorder %s178, %s179
    %p188 = scmp.eq.s32.totalorder %s21, 0
    %p189 = por %p187, %p188
    %p190 = scmp.ne.s32.totalorder %s178, %s179
    %p191 = scmp.eq.s32.totalorder %s22, 1
    %p192 = por %p190, %p191
    %p194 = scmp.ne.s32.totalorder %s179, %s193
    %p195 = scmp.eq.s32.totalorder %s22, 0
    %p196 = por %p194, %p195
    %s197 = ssub.s32 %s16, %s23
    %p198 = scmp.eq.s32.totalorder %s197, 0
    %s200 = sadd.s32 %s199, 1
    %s201 = scalar_select %p198, %s199, %s200
    %p204 = pneg %p198
    %p205 = scmp.eq.s32.totalorder %s16, 1
    %p206 = por %p204, %p205
    %p207 = scmp.ne.s32.totalorder %s199, %s202
    %p208 = scmp.eq.s32.totalorder %s16, 0
    %p209 = por %p207, %p208
    %p210 = scmp.ne.s32.totalorder %s199, %s202
    %p211 = scmp.eq.s32.totalorder %s21, 1
    %p212 = por %p210, %p211
    %p213 = scmp.ne.s32.totalorder %s202, %s203
    %p214 = scmp.eq.s32.totalorder %s21, 0
    %p215 = por %p213, %p214
    %p216 = scmp.ne.s32.totalorder %s202, %s203
    %p217 = scmp.eq.s32.totalorder %s22, 1
    %p218 = por %p216, %p217
    %p220 = scmp.ne.s32.totalorder %s203, %s219
    %p221 = scmp.eq.s32.totalorder %s22, 0
    %p222 = por %p220, %p221
    %p223 = scmp.le.s32.totalorder 1, %s16
    %p224 = scmp.lt.s32.totalorder %s16, 3
    %p225 = pnand %p223, %p224
    %p226 = pneg %p225
    // Predicated region
    $region9: #{thermal_enhancement_net.1} parent=5 // pred_check
      _
    $region10: #{thermal_enhancement_net.1} parent=5 // pred_check_branch
      %228 = sbr.rel (%p225) target = $region12
    $region11: #{thermal_enhancement_net.1} parent=5 // pred_region
      %s229 = ssub.s32 %s16, 1
      // Predicated region
      $region13: #{thermal_enhancement_net.1} parent=11 // pred_check
        %p230 = pneg %p63
      $region14: #{thermal_enhancement_net.1} parent=11 // pred_check_branch
        %232 = sbr.rel (%p230) target = $region16
      $region15: #{thermal_enhancement_net.1} parent=11 // pred_region
        _
      $region16: #{thermal_enhancement_net.1} parent=11 // pred_fallthru
        _
      // Predicated region
      $region17: #{thermal_enhancement_net.1} parent=11 // pred_check
        %p233 = pneg %p84
      $region18: #{thermal_enhancement_net.1} parent=11 // pred_check_branch
        %235 = sbr.rel (%p233) target = $region20
      $region19: #{thermal_enhancement_net.1} parent=11 // pred_region
        _
      $region20: #{thermal_enhancement_net.1} parent=11 // pred_fallthru
        _
      // Predicated region
      $region21: #{thermal_enhancement_net.1} parent=11 // pred_check
        %p236 = pneg %p105
      $region22: #{thermal_enhancement_net.1} parent=11 // pred_check_branch
        %238 = sbr.rel (%p236) target = $region24
      $region23: #{thermal_enhancement_net.1} parent=11 // pred_region
        _
      $region24: #{thermal_enhancement_net.1} parent=11 // pred_fallthru
        _
      // Predicated region
      $region25: #{thermal_enhancement_net.1} parent=11 // pred_check
        %p239 = pneg %p126
      $region26: #{thermal_enhancement_net.1} parent=11 // pred_check_branch
        %241 = sbr.rel (%p239) target = $region28
      $region27: #{thermal_enhancement_net.1} parent=11 // pred_region
        _
      $region28: #{thermal_enhancement_net.1} parent=11 // pred_fallthru
        _
      // Predicated region
      $region29: #{thermal_enhancement_net.1} parent=11 // pred_check
        %p242 = pneg %p147
      $region30: #{thermal_enhancement_net.1} parent=11 // pred_check_branch
        %244 = sbr.rel (%p242) target = $region32
      $region31: #{thermal_enhancement_net.1} parent=11 // pred_region
        _
      $region32: #{thermal_enhancement_net.1} parent=11 // pred_fallthru
        _
      // Predicated region
      $region33: #{thermal_enhancement_net.1} parent=11 // pred_check
        %p245 = pneg %p168
      $region34: #{thermal_enhancement_net.1} parent=11 // pred_check_branch
        %247 = sbr.rel (%p245) target = $region36
      $region35: #{thermal_enhancement_net.1} parent=11 // pred_region
        _
      $region36: #{thermal_enhancement_net.1} parent=11 // pred_fallthru
        _
      // Predicated region
      $region37: #{thermal_enhancement_net.1} parent=11 // pred_check
        %p248 = pneg %p189
      $region38: #{thermal_enhancement_net.1} parent=11 // pred_check_branch
        %250 = sbr.rel (%p248) target = $region40
      $region39: #{thermal_enhancement_net.1} parent=11 // pred_region
        _
      $region40: #{thermal_enhancement_net.1} parent=11 // pred_fallthru
        _
    $region12: #{thermal_enhancement_net.1} parent=5 // pred_fallthru
      _
    %p251 = scmp.lt.s32.totalorder %s16, 2
    // Predicated region
    $region41: #{thermal_enhancement_net.1} parent=5 // pred_check
      %p252 = pneg %p251
    $region42: #{thermal_enhancement_net.1} parent=5 // pred_check_branch
      %254 = sbr.rel (%p252) target = $region44
    $region43: #{thermal_enhancement_net.1} parent=5 // pred_region
      // Predicated region
      $region45: #{thermal_enhancement_net.1} parent=43 // pred_check
        %p255 = pneg %p36
      $region46: #{thermal_enhancement_net.1} parent=43 // pred_check_branch
        %257 = sbr.rel (%p255) target = $region48
      $region47: #{thermal_enhancement_net.1} parent=43 // pred_region
        %p258 = scmp.lt.s32.totalorder %s16, 1
        %s259 = scalar_select %p258, %s16, 1
        %s260 = smul.addr %s259, 36
        %s261 = smul.addr %s260, 8
        %s262 = scalar_lea.vmem %s0, %s261
      $region48: #{thermal_enhancement_net.1} parent=43 // pred_fallthru
        _
    $region44: #{thermal_enhancement_net.1} parent=5 // pred_fallthru
      _
    %p263 = scmp.le.s32.totalorder 1, %s16
    %p264 = scmp.lt.s32.totalorder %s16, 3
    %p265 = pnand %p263, %p264
    %p266 = pneg %p265
    // Predicated region
    $region49: #{thermal_enhancement_net.1} parent=5 // pred_check
      _
    $region50: #{thermal_enhancement_net.1} parent=5 // pred_check_branch
      %268 = sbr.rel (%p265) target = $region52
    $region51: #{thermal_enhancement_net.1} parent=5 // pred_region
      %s269 = ssub.s32 %s16, 1
      %p270 = scmp.lt.s32.totalorder %s21, 1
      %s271 = scalar_select %p270, %s21, 1
      %s272 = smul.addr %s271, 36
      %s273 = smul.addr %s272, 8
      %s274 = scalar_lea.vmem %s0, %s273
      %p275 = pneg %p42
      %p276 = pneg %p39
      %p277 = pneg %p63
      %p278 = pneg %p60
      %p279 = pneg %p84
      %p280 = pneg %p81
      %p281 = pneg %p105
      %p282 = pneg %p102
      %p283 = pneg %p126
      %p284 = pneg %p123
      %p285 = pneg %p147
      %p286 = pneg %p144
      %p287 = pneg %p168
      %p288 = pneg %p165
      %p289 = pneg %p189
      %p290 = pneg %p186
      %p291 = pneg %p215
      %p292 = pneg %p212
      %p293 = scmp.lt.s32.totalorder %s21, 1
      %s294 = scalar_select %p293, %s21, 1
      %s295 = smul.addr %s294, 3
      %s296 = scalar_lea.vmem %s8, %s295
      %p297 = scmp.lt.s32.totalorder %s21, 1
      %s298 = scalar_select %p297, %s21, 1
      %s299 = smul.addr %s298, 36
      %s300 = smul.addr %s299, 8
      %s301 = scalar_lea.vmem %s0, %s300
      %p302 = scmp.lt.s32.totalorder %s21, 1
      %s303 = scalar_select %p302, %s21, 1
      %s304 = smul.addr %s303, 3
      %s305 = scalar_lea.vmem %s8, %s304
      %vm307 = vcmask 523264
      %308 = vst.msk [vmem:[#allocation2] sm:$0xff] %vm307, 0.0
      %309 = vst.msk [vmem:[#allocation2 + $0x8] sm:$0xff] %vm307, 0.0
      %310 = vst.msk [vmem:[#allocation2 + $0x10] sm:$0xff] %vm307, 0.0
      %311 = vst.msk [vmem:[#allocation2 + $0x138] sm:$0xff] %vm307, 0.0
      %312 = vst.msk [vmem:[#allocation2 + $0x140] sm:$0xff] %vm307, 0.0
      %313 = vst.msk [vmem:[#allocation2 + $0x148] sm:$0xff] %vm307, 0.0
      %v314 = vlaneseq
      %v315 = vshrl.u32 %v314, 7
      %v316 = vadd.s32 %v315, 8
      %v317 = vadd.s32 %v315, 16
      %v318 = vadd.s32 %v315, 24
      %v319 = vadd.s32 %v315, 32
      %v320 = vadd.s32 %v315, 40
      %v321 = vadd.s32 %v315, 48
      %v322 = vadd.s32 %v315, 56
      %v323 = vadd.s32 %v315, 64
      %v324 = vadd.s32 %v315, 72
      %v325 = vadd.s32 %v315, 80
      %v326 = vadd.s32 %v315, 88
      %v327 = vadd.s32 %v315, 96
      %v328 = vadd.s32 %v315, 104
      %v329 = vadd.s32 %v315, 112
      %v330 = vadd.s32 %v315, 120
      %v331 = vadd.s32 %v315, 128
      %v332 = vadd.s32 %v315, 136
      %v333 = vadd.s32 %v315, 144
      %v334 = vadd.s32 %v315, 152
      %v335 = vadd.s32 %v315, 160
      %v336 = vadd.s32 %v315, 168
      %v337 = vadd.s32 %v315, 176
      %v338 = vadd.s32 %v315, 184
      %v339 = vadd.s32 %v315, 192
      %v340 = vadd.s32 %v315, 200
      %v341 = vadd.s32 %v315, 208
      %v342 = vadd.s32 %v315, 216
      %v343 = vadd.s32 %v315, 224
      %v344 = vadd.s32 %v315, 232
      %v345 = vadd.s32 %v315, 240
      %v346 = vadd.s32 %v315, 248
      %v347 = vadd.s32 %v315, 256
      %v348 = vadd.s32 %v315, 264
      %v349 = vadd.s32 %v315, 272
      %v350 = vadd.s32 %v315, 280
      %vm351 = vcmp.lt.s32.totalorder %v315, 0
      %v352 = vsub.s32 0, %v315
      %v353 = vsel %vm351, %v352, %v315
      %v354 = vand.u32 %v353, 65535
      %v355 = vshrl.u32 %v353, 16
      %v357 = vmul.u32 %v354, 14564
      %v358 = vmul.u32 %v354, 58254
      %v359 = vmul.u32 %v355, 14564
      %v360 = vmul.u32 %v355, 58254
      %v361 = vshll.u32 %v358, 16
      %v362 = vshrl.u32 %v358, 16
      %v363 = vshll.u32 %v359, 16
      %v364 = vshrl.u32 %v359, 16
      %vm365 = vc.u32 %v357, %v361
      %v366 = vsel %vm365, 1, 0
      %v367 = vadd.s32 %v357, %v361
      %v368 = vadd.s32 %v360, %v366
      %vm369 = vc.u32 %v367, %v363
      %v370 = vsel %vm369, 1, 0
      %v371 = vadd.s32 %v367, %v363
      %v372 = vadd.s32 %v368, %v370
      %v373 = vadd.s32 %v372, %v362
      %v374 = vadd.s32 %v373, %v364
      %v375 = vshrl.u32 %v374, 4
      %v376 = vmul.u32 %v375, 18
      %v377 = vsub.s32 %v353, %v376
      %v378 = vsub.s32 0, %v377
      %v379 = vsel %vm351, %v378, %v377
      %vm380 = vcmp.lt.s32.totalorder %v316, 0
      %v381 = vsub.s32 0, %v316
      %v382 = vsel %vm380, %v381, %v316
      %v383 = vand.u32 %v382, 65535
      %v384 = vshrl.u32 %v382, 16
      %v386 = vmul.u32 %v383, 14564
      %v387 = vmul.u32 %v383, 58254
      %v388 = vmul.u32 %v384, 14564
      %v389 = vmul.u32 %v384, 58254
      %v390 = vshll.u32 %v387, 16
      %v391 = vshrl.u32 %v387, 16
      %v392 = vshll.u32 %v388, 16
      %v393 = vshrl.u32 %v388, 16
      %vm394 = vc.u32 %v386, %v390
      %v395 = vsel %vm394, 1, 0
      %v396 = vadd.s32 %v386, %v390
      %v397 = vadd.s32 %v389, %v395
      %vm398 = vc.u32 %v396, %v392
      %v399 = vsel %vm398, 1, 0
      %v400 = vadd.s32 %v396, %v392
      %v401 = vadd.s32 %v397, %v399
      %v402 = vadd.s32 %v401, %v391
      %v403 = vadd.s32 %v402, %v393
      %v404 = vshrl.u32 %v403, 4
      %v405 = vmul.u32 %v404, 18
      %v406 = vsub.s32 %v382, %v405
      %v407 = vsub.s32 0, %v406
      %v408 = vsel %vm380, %v407, %v406
      %vm409 = vcmp.lt.s32.totalorder %v317, 0
      %v410 = vsub.s32 0, %v317
      %v411 = vsel %vm409, %v410, %v317
      %v412 = vand.u32 %v411, 65535
      %v413 = vshrl.u32 %v411, 16
      %v415 = vmul.u32 %v412, 14564
      %v416 = vmul.u32 %v412, 58254
      %v417 = vmul.u32 %v413, 14564
      %v418 = vmul.u32 %v413, 58254
      %v419 = vshll.u32 %v416, 16
      %v420 = vshrl.u32 %v416, 16
      %v421 = vshll.u32 %v417, 16
      %v422 = vshrl.u32 %v417, 16
      %vm423 = vc.u32 %v415, %v419
      %v424 = vsel %vm423, 1, 0
      %v425 = vadd.s32 %v415, %v419
      %v426 = vadd.s32 %v418, %v424
      %vm427 = vc.u32 %v425, %v421
      %v428 = vsel %vm427, 1, 0
      %v429 = vadd.s32 %v425, %v421
      %v430 = vadd.s32 %v426, %v428
      %v431 = vadd.s32 %v430, %v420
      %v432 = vadd.s32 %v431, %v422
      %v433 = vshrl.u32 %v432, 4
      %v434 = vmul.u32 %v433, 18
      %v435 = vsub.s32 %v411, %v434
      %v436 = vsub.s32 0, %v435
      %v437 = vsel %vm409, %v436, %v435
      %vm438 = vcmp.lt.s32.totalorder %v318, 0
      %v439 = vsub.s32 0, %v318
      %v440 = vsel %vm438, %v439, %v318
      %v441 = vand.u32 %v440, 65535
      %v442 = vshrl.u32 %v440, 16
      %v444 = vmul.u32 %v441, 14564
      %v445 = vmul.u32 %v441, 58254
      %v446 = vmul.u32 %v442, 14564
      %v447 = vmul.u32 %v442, 58254
      %v448 = vshll.u32 %v445, 16
      %v449 = vshrl.u32 %v445, 16
      %v450 = vshll.u32 %v446, 16
      %v451 = vshrl.u32 %v446, 16
      %vm452 = vc.u32 %v444, %v448
      %v453 = vsel %vm452, 1, 0
      %v454 = vadd.s32 %v444, %v448
      %v455 = vadd.s32 %v447, %v453
      %vm456 = vc.u32 %v454, %v450
      %v457 = vsel %vm456, 1, 0
      %v458 = vadd.s32 %v454, %v450
      %v459 = vadd.s32 %v455, %v457
      %v460 = vadd.s32 %v459, %v449
      %v461 = vadd.s32 %v460, %v451
      %v462 = vshrl.u32 %v461, 4
      %v463 = vmul.u32 %v462, 18
      %v464 = vsub.s32 %v440, %v463
      %v465 = vsub.s32 0, %v464
      %v466 = vsel %vm438, %v465, %v464
      %vm467 = vcmp.lt.s32.totalorder %v319, 0
      %v468 = vsub.s32 0, %v319
      %v469 = vsel %vm467, %v468, %v319
      %v470 = vand.u32 %v469, 65535
      %v471 = vshrl.u32 %v469, 16
      %v473 = vmul.u32 %v470, 14564
      %v474 = vmul.u32 %v470, 58254
      %v475 = vmul.u32 %v471, 14564
      %v476 = vmul.u32 %v471, 58254
      %v477 = vshll.u32 %v474, 16
      %v478 = vshrl.u32 %v474, 16
      %v479 = vshll.u32 %v475, 16
      %v480 = vshrl.u32 %v475, 16
      %vm481 = vc.u32 %v473, %v477
      %v482 = vsel %vm481, 1, 0
      %v483 = vadd.s32 %v473, %v477
      %v484 = vadd.s32 %v476, %v482
      %vm485 = vc.u32 %v483, %v479
      %v486 = vsel %vm485, 1, 0
      %v487 = vadd.s32 %v483, %v479
      %v488 = vadd.s32 %v484, %v486
      %v489 = vadd.s32 %v488, %v478
      %v490 = vadd.s32 %v489, %v480
      %v491 = vshrl.u32 %v490, 4
      %v492 = vmul.u32 %v491, 18
      %v493 = vsub.s32 %v469, %v492
      %v494 = vsub.s32 0, %v493
      %v495 = vsel %vm467, %v494, %v493
      %vm496 = vcmp.lt.s32.totalorder %v320, 0
      %v497 = vsub.s32 0, %v320
      %v498 = vsel %vm496, %v497, %v320
      %v499 = vand.u32 %v498, 65535
      %v500 = vshrl.u32 %v498, 16
      %v502 = vmul.u32 %v499, 14564
      %v503 = vmul.u32 %v499, 58254
      %v504 = vmul.u32 %v500, 14564
      %v505 = vmul.u32 %v500, 58254
      %v506 = vshll.u32 %v503, 16
      %v507 = vshrl.u32 %v503, 16
      %v508 = vshll.u32 %v504, 16
      %v509 = vshrl.u32 %v504, 16
      %vm510 = vc.u32 %v502, %v506
      %v511 = vsel %vm510, 1, 0
      %v512 = vadd.s32 %v502, %v506
      %v513 = vadd.s32 %v505, %v511
      %vm514 = vc.u32 %v512, %v508
      %v515 = vsel %vm514, 1, 0
      %v516 = vadd.s32 %v512, %v508
      %v517 = vadd.s32 %v513, %v515
      %v518 = vadd.s32 %v517, %v507
      %v519 = vadd.s32 %v518, %v509
      %v520 = vshrl.u32 %v519, 4
      %v521 = vmul.u32 %v520, 18
      %v522 = vsub.s32 %v498, %v521
      %v523 = vsub.s32 0, %v522
      %v524 = vsel %vm496, %v523, %v522
      %vm525 = vcmp.lt.s32.totalorder %v321, 0
      %v526 = vsub.s32 0, %v321
      %v527 = vsel %vm525, %v526, %v321
      %v528 = vand.u32 %v527, 65535
      %v529 = vshrl.u32 %v527, 16
      %v531 = vmul.u32 %v528, 14564
      %v532 = vmul.u32 %v528, 58254
      %v533 = vmul.u32 %v529, 14564
      %v534 = vmul.u32 %v529, 58254
      %v535 = vshll.u32 %v532, 16
      %v536 = vshrl.u32 %v532, 16
      %v537 = vshll.u32 %v533, 16
      %v538 = vshrl.u32 %v533, 16
      %vm539 = vc.u32 %v531, %v535
      %v540 = vsel %vm539, 1, 0
      %v541 = vadd.s32 %v531, %v535
      %v542 = vadd.s32 %v534, %v540
      %vm543 = vc.u32 %v541, %v537
      %v544 = vsel %vm543, 1, 0
      %v545 = vadd.s32 %v541, %v537
      %v546 = vadd.s32 %v542, %v544
      %v547 = vadd.s32 %v546, %v536
      %v548 = vadd.s32 %v547, %v538
      %v549 = vshrl.u32 %v548, 4
      %v550 = vmul.u32 %v549, 18
      %v551 = vsub.s32 %v527, %v550
      %v552 = vsub.s32 0, %v551
      %v553 = vsel %vm525, %v552, %v551
      %vm554 = vcmp.lt.s32.totalorder %v322, 0
      %v555 = vsub.s32 0, %v322
      %v556 = vsel %vm554, %v555, %v322
      %v557 = vand.u32 %v556, 65535
      %v558 = vshrl.u32 %v556, 16
      %v560 = vmul.u32 %v557, 14564
      %v561 = vmul.u32 %v557, 58254
      %v562 = vmul.u32 %v558, 14564
      %v563 = vmul.u32 %v558, 58254
      %v564 = vshll.u32 %v561, 16
      %v565 = vshrl.u32 %v561, 16
      %v566 = vshll.u32 %v562, 16
      %v567 = vshrl.u32 %v562, 16
      %vm568 = vc.u32 %v560, %v564
      %v569 = vsel %vm568, 1, 0
      %v570 = vadd.s32 %v560, %v564
      %v571 = vadd.s32 %v563, %v569
      %vm572 = vc.u32 %v570, %v566
      %v573 = vsel %vm572, 1, 0
      %v574 = vadd.s32 %v570, %v566
      %v575 = vadd.s32 %v571, %v573
      %v576 = vadd.s32 %v575, %v565
      %v577 = vadd.s32 %v576, %v567
      %v578 = vshrl.u32 %v577, 4
      %v579 = vmul.u32 %v578, 18
      %v580 = vsub.s32 %v556, %v579
      %v581 = vsub.s32 0, %v580
      %v582 = vsel %vm554, %v581, %v580
      %vm583 = vcmp.lt.s32.totalorder %v323, 0
      %v584 = vsub.s32 0, %v323
      %v585 = vsel %vm583, %v584, %v323
      %v586 = vand.u32 %v585, 65535
      %v587 = vshrl.u32 %v585, 16
      %v589 = vmul.u32 %v586, 14564
      %v590 = vmul.u32 %v586, 58254
      %v591 = vmul.u32 %v587, 14564
      %v592 = vmul.u32 %v587, 58254
      %v593 = vshll.u32 %v590, 16
      %v594 = vshrl.u32 %v590, 16
      %v595 = vshll.u32 %v591, 16
      %v596 = vshrl.u32 %v591, 16
      %vm597 = vc.u32 %v589, %v593
      %v598 = vsel %vm597, 1, 0
      %v599 = vadd.s32 %v589, %v593
      %v600 = vadd.s32 %v592, %v598
      %vm601 = vc.u32 %v599, %v595
      %v602 = vsel %vm601, 1, 0
      %v603 = vadd.s32 %v599, %v595
      %v604 = vadd.s32 %v600, %v602
      %v605 = vadd.s32 %v604, %v594
      %v606 = vadd.s32 %v605, %v596
      %v607 = vshrl.u32 %v606, 4
      %v608 = vmul.u32 %v607, 18
      %v609 = vsub.s32 %v585, %v608
      %v610 = vsub.s32 0, %v609
      %v611 = vsel %vm583, %v610, %v609
      %vm612 = vcmp.lt.s32.totalorder %v324, 0
      %v613 = vsub.s32 0, %v324
      %v614 = vsel %vm612, %v613, %v324
      %v615 = vand.u32 %v614, 65535
      %v616 = vshrl.u32 %v614, 16
      %v618 = vmul.u32 %v615, 14564
      %v619 = vmul.u32 %v615, 58254
      %v620 = vmul.u32 %v616, 14564
      %v621 = vmul.u32 %v616, 58254
      %v622 = vshll.u32 %v619, 16
      %v623 = vshrl.u32 %v619, 16
      %v624 = vshll.u32 %v620, 16
      %v625 = vshrl.u32 %v620, 16
      %vm626 = vc.u32 %v618, %v622
      %v627 = vsel %vm626, 1, 0
      %v628 = vadd.s32 %v618, %v622
      %v629 = vadd.s32 %v621, %v627
      %vm630 = vc.u32 %v628, %v624
      %v631 = vsel %vm630, 1, 0
      %v632 = vadd.s32 %v628, %v624
      %v633 = vadd.s32 %v629, %v631
      %v634 = vadd.s32 %v633, %v623
      %v635 = vadd.s32 %v634, %v625
      %v636 = vshrl.u32 %v635, 4
      %v637 = vmul.u32 %v636, 18
      %v638 = vsub.s32 %v614, %v637
      %v639 = vsub.s32 0, %v638
      %v640 = vsel %vm612, %v639, %v638
      %vm641 = vcmp.lt.s32.totalorder %v325, 0
      %v642 = vsub.s32 0, %v325
      %v643 = vsel %vm641, %v642, %v325
      %v644 = vand.u32 %v643, 65535
      %v645 = vshrl.u32 %v643, 16
      %v647 = vmul.u32 %v644, 14564
      %v648 = vmul.u32 %v644, 58254
      %v649 = vmul.u32 %v645, 14564
      %v650 = vmul.u32 %v645, 58254
      %v651 = vshll.u32 %v648, 16
      %v652 = vshrl.u32 %v648, 16
      %v653 = vshll.u32 %v649, 16
      %v654 = vshrl.u32 %v649, 16
      %vm655 = vc.u32 %v647, %v651
      %v656 = vsel %vm655, 1, 0
      %v657 = vadd.s32 %v647, %v651
      %v658 = vadd.s32 %v650, %v656
      %vm659 = vc.u32 %v657, %v653
      %v660 = vsel %vm659, 1, 0
      %v661 = vadd.s32 %v657, %v653
      %v662 = vadd.s32 %v658, %v660
      %v663 = vadd.s32 %v662, %v652
      %v664 = vadd.s32 %v663, %v654
      %v665 = vshrl.u32 %v664, 4
      %v666 = vmul.u32 %v665, 18
      %v667 = vsub.s32 %v643, %v666
      %v668 = vsub.s32 0, %v667
      %v669 = vsel %vm641, %v668, %v667
      %vm670 = vcmp.lt.s32.totalorder %v326, 0
      %v671 = vsub.s32 0, %v326
      %v672 = vsel %vm670, %v671, %v326
      %v673 = vand.u32 %v672, 65535
      %v674 = vshrl.u32 %v672, 16
      %v676 = vmul.u32 %v673, 14564
      %v677 = vmul.u32 %v673, 58254
      %v678 = vmul.u32 %v674, 14564
      %v679 = vmul.u32 %v674, 58254
      %v680 = vshll.u32 %v677, 16
      %v681 = vshrl.u32 %v677, 16
      %v682 = vshll.u32 %v678, 16
      %v683 = vshrl.u32 %v678, 16
      %vm684 = vc.u32 %v676, %v680
      %v685 = vsel %vm684, 1, 0
      %v686 = vadd.s32 %v676, %v680
      %v687 = vadd.s32 %v679, %v685
      %vm688 = vc.u32 %v686, %v682
      %v689 = vsel %vm688, 1, 0
      %v690 = vadd.s32 %v686, %v682
      %v691 = vadd.s32 %v687, %v689
      %v692 = vadd.s32 %v691, %v681
      %v693 = vadd.s32 %v692, %v683
      %v694 = vshrl.u32 %v693, 4
      %v695 = vmul.u32 %v694, 18
      %v696 = vsub.s32 %v672, %v695
      %v697 = vsub.s32 0, %v696
      %v698 = vsel %vm670, %v697, %v696
      %vm699 = vcmp.lt.s32.totalorder %v327, 0
      %v700 = vsub.s32 0, %v327
      %v701 = vsel %vm699, %v700, %v327
      %v702 = vand.u32 %v701, 65535
      %v703 = vshrl.u32 %v701, 16
      %v705 = vmul.u32 %v702, 14564
      %v706 = vmul.u32 %v702, 58254
      %v707 = vmul.u32 %v703, 14564
      %v708 = vmul.u32 %v703, 58254
      %v709 = vshll.u32 %v706, 16
      %v710 = vshrl.u32 %v706, 16
      %v711 = vshll.u32 %v707, 16
      %v712 = vshrl.u32 %v707, 16
      %vm713 = vc.u32 %v705, %v709
      %v714 = vsel %vm713, 1, 0
      %v715 = vadd.s32 %v705, %v709
      %v716 = vadd.s32 %v708, %v714
      %vm717 = vc.u32 %v715, %v711
      %v718 = vsel %vm717, 1, 0
      %v719 = vadd.s32 %v715, %v711
      %v720 = vadd.s32 %v716, %v718
      %v721 = vadd.s32 %v720, %v710
      %v722 = vadd.s32 %v721, %v712
      %v723 = vshrl.u32 %v722, 4
      %v724 = vmul.u32 %v723, 18
      %v725 = vsub.s32 %v701, %v724
      %v726 = vsub.s32 0, %v725
      %v727 = vsel %vm699, %v726, %v725
      %vm728 = vcmp.lt.s32.totalorder %v328, 0
      %v729 = vsub.s32 0, %v328
      %v730 = vsel %vm728, %v729, %v328
      %v731 = vand.u32 %v730, 65535
      %v732 = vshrl.u32 %v730, 16
      %v734 = vmul.u32 %v731, 14564
      %v735 = vmul.u32 %v731, 58254
      %v736 = vmul.u32 %v732, 14564
      %v737 = vmul.u32 %v732, 58254
      %v738 = vshll.u32 %v735, 16
      %v739 = vshrl.u32 %v735, 16
      %v740 = vshll.u32 %v736, 16
      %v741 = vshrl.u32 %v736, 16
      %vm742 = vc.u32 %v734, %v738
      %v743 = vsel %vm742, 1, 0
      %v744 = vadd.s32 %v734, %v738
      %v745 = vadd.s32 %v737, %v743
      %vm746 = vc.u32 %v744, %v740
      %v747 = vsel %vm746, 1, 0
      %v748 = vadd.s32 %v744, %v740
      %v749 = vadd.s32 %v745, %v747
      %v750 = vadd.s32 %v749, %v739
      %v751 = vadd.s32 %v750, %v741
      %v752 = vshrl.u32 %v751, 4
      %v753 = vmul.u32 %v752, 18
      %v754 = vsub.s32 %v730, %v753
      %v755 = vsub.s32 0, %v754
      %v756 = vsel %vm728, %v755, %v754
      %vm757 = vcmp.lt.s32.totalorder %v329, 0
      %v758 = vsub.s32 0, %v329
      %v759 = vsel %vm757, %v758, %v329
      %v760 = vand.u32 %v759, 65535
      %v761 = vshrl.u32 %v759, 16
      %v763 = vmul.u32 %v760, 14564
      %v764 = vmul.u32 %v760, 58254
      %v765 = vmul.u32 %v761, 14564
      %v766 = vmul.u32 %v761, 58254
      %v767 = vshll.u32 %v764, 16
      %v768 = vshrl.u32 %v764, 16
      %v769 = vshll.u32 %v765, 16
      %v770 = vshrl.u32 %v765, 16
      %vm771 = vc.u32 %v763, %v767
      %v772 = vsel %vm771, 1, 0
      %v773 = vadd.s32 %v763, %v767
      %v774 = vadd.s32 %v766, %v772
      %vm775 = vc.u32 %v773, %v769
      %v776 = vsel %vm775, 1, 0
      %v777 = vadd.s32 %v773, %v769
      %v778 = vadd.s32 %v774, %v776
      %v779 = vadd.s32 %v778, %v768
      %v780 = vadd.s32 %v779, %v770
      %v781 = vshrl.u32 %v780, 4
      %v782 = vmul.u32 %v781, 18
      %v783 = vsub.s32 %v759, %v782
      %v784 = vsub.s32 0, %v783
      %v785 = vsel %vm757, %v784, %v783
      %vm786 = vcmp.lt.s32.totalorder %v330, 0
      %v787 = vsub.s32 0, %v330
      %v788 = vsel %vm786, %v787, %v330
      %v789 = vand.u32 %v788, 65535
      %v790 = vshrl.u32 %v788, 16
      %v792 = vmul.u32 %v789, 14564
      %v793 = vmul.u32 %v789, 58254
      %v794 = vmul.u32 %v790, 14564
      %v795 = vmul.u32 %v790, 58254
      %v796 = vshll.u32 %v793, 16
      %v797 = vshrl.u32 %v793, 16
      %v798 = vshll.u32 %v794, 16
      %v799 = vshrl.u32 %v794, 16
      %vm800 = vc.u32 %v792, %v796
      %v801 = vsel %vm800, 1, 0
      %v802 = vadd.s32 %v792, %v796
      %v803 = vadd.s32 %v795, %v801
      %vm804 = vc.u32 %v802, %v798
      %v805 = vsel %vm804, 1, 0
      %v806 = vadd.s32 %v802, %v798
      %v807 = vadd.s32 %v803, %v805
      %v808 = vadd.s32 %v807, %v797
      %v809 = vadd.s32 %v808, %v799
      %v810 = vshrl.u32 %v809, 4
      %v811 = vmul.u32 %v810, 18
      %v812 = vsub.s32 %v788, %v811
      %v813 = vsub.s32 0, %v812
      %v814 = vsel %vm786, %v813, %v812
      %vm815 = vcmp.lt.s32.totalorder %v331, 0
      %v816 = vsub.s32 0, %v331
      %v817 = vsel %vm815, %v816, %v331
      %v818 = vand.u32 %v817, 65535
      %v819 = vshrl.u32 %v817, 16
      %v821 = vmul.u32 %v818, 14564
      %v822 = vmul.u32 %v818, 58254
      %v823 = vmul.u32 %v819, 14564
      %v824 = vmul.u32 %v819, 58254
      %v825 = vshll.u32 %v822, 16
      %v826 = vshrl.u32 %v822, 16
      %v827 = vshll.u32 %v823, 16
      %v828 = vshrl.u32 %v823, 16
      %vm829 = vc.u32 %v821, %v825
      %v830 = vsel %vm829, 1, 0
      %v831 = vadd.s32 %v821, %v825
      %v832 = vadd.s32 %v824, %v830
      %vm833 = vc.u32 %v831, %v827
      %v834 = vsel %vm833, 1, 0
      %v835 = vadd.s32 %v831, %v827
      %v836 = vadd.s32 %v832, %v834
      %v837 = vadd.s32 %v836, %v826
      %v838 = vadd.s32 %v837, %v828
      %v839 = vshrl.u32 %v838, 4
      %v840 = vmul.u32 %v839, 18
      %v841 = vsub.s32 %v817, %v840
      %v842 = vsub.s32 0, %v841
      %v843 = vsel %vm815, %v842, %v841
      %vm844 = vcmp.lt.s32.totalorder %v332, 0
      %v845 = vsub.s32 0, %v332
      %v846 = vsel %vm844, %v845, %v332
      %v847 = vand.u32 %v846, 65535
      %v848 = vshrl.u32 %v846, 16
      %v850 = vmul.u32 %v847, 14564
      %v851 = vmul.u32 %v847, 58254
      %v852 = vmul.u32 %v848, 14564
      %v853 = vmul.u32 %v848, 58254
      %v854 = vshll.u32 %v851, 16
      %v855 = vshrl.u32 %v851, 16
      %v856 = vshll.u32 %v852, 16
      %v857 = vshrl.u32 %v852, 16
      %vm858 = vc.u32 %v850, %v854
      %v859 = vsel %vm858, 1, 0
      %v860 = vadd.s32 %v850, %v854
      %v861 = vadd.s32 %v853, %v859
      %vm862 = vc.u32 %v860, %v856
      %v863 = vsel %vm862, 1, 0
      %v864 = vadd.s32 %v860, %v856
      %v865 = vadd.s32 %v861, %v863
      %v866 = vadd.s32 %v865, %v855
      %v867 = vadd.s32 %v866, %v857
      %v868 = vshrl.u32 %v867, 4
      %v869 = vmul.u32 %v868, 18
      %v870 = vsub.s32 %v846, %v869
      %v871 = vsub.s32 0, %v870
      %v872 = vsel %vm844, %v871, %v870
      %vm873 = vcmp.lt.s32.totalorder %v333, 0
      %v874 = vsub.s32 0, %v333
      %v875 = vsel %vm873, %v874, %v333
      %v876 = vand.u32 %v875, 65535
      %v877 = vshrl.u32 %v875, 16
      %v879 = vmul.u32 %v876, 14564
      %v880 = vmul.u32 %v876, 58254
      %v881 = vmul.u32 %v877, 14564
      %v882 = vmul.u32 %v877, 58254
      %v883 = vshll.u32 %v880, 16
      %v884 = vshrl.u32 %v880, 16
      %v885 = vshll.u32 %v881, 16
      %v886 = vshrl.u32 %v881, 16
      %vm887 = vc.u32 %v879, %v883
      %v888 = vsel %vm887, 1, 0
      %v889 = vadd.s32 %v879, %v883
      %v890 = vadd.s32 %v882, %v888
      %vm891 = vc.u32 %v889, %v885
      %v892 = vsel %vm891, 1, 0
      %v893 = vadd.s32 %v889, %v885
      %v894 = vadd.s32 %v890, %v892
      %v895 = vadd.s32 %v894, %v884
      %v896 = vadd.s32 %v895, %v886
      %v897 = vshrl.u32 %v896, 4
      %v898 = vmul.u32 %v897, 18
      %v899 = vsub.s32 %v875, %v898
      %v900 = vsub.s32 0, %v899
      %v901 = vsel %vm873, %v900, %v899
      %vm902 = vcmp.lt.s32.totalorder %v334, 0
      %v903 = vsub.s32 0, %v334
      %v904 = vsel %vm902, %v903, %v334
      %v905 = vand.u32 %v904, 65535
      %v906 = vshrl.u32 %v904, 16
      %v908 = vmul.u32 %v905, 14564
      %v909 = vmul.u32 %v905, 58254
      %v910 = vmul.u32 %v906, 14564
      %v911 = vmul.u32 %v906, 58254
      %v912 = vshll.u32 %v909, 16
      %v913 = vshrl.u32 %v909, 16
      %v914 = vshll.u32 %v910, 16
      %v915 = vshrl.u32 %v910, 16
      %vm916 = vc.u32 %v908, %v912
      %v917 = vsel %vm916, 1, 0
      %v918 = vadd.s32 %v908, %v912
      %v919 = vadd.s32 %v911, %v917
      %vm920 = vc.u32 %v918, %v914
      %v921 = vsel %vm920, 1, 0
      %v922 = vadd.s32 %v918, %v914
      %v923 = vadd.s32 %v919, %v921
      %v924 = vadd.s32 %v923, %v913
      %v925 = vadd.s32 %v924, %v915
      %v926 = vshrl.u32 %v925, 4
      %v927 = vmul.u32 %v926, 18
      %v928 = vsub.s32 %v904, %v927
      %v929 = vsub.s32 0, %v928
      %v930 = vsel %vm902, %v929, %v928
      %vm931 = vcmp.lt.s32.totalorder %v335, 0
      %v932 = vsub.s32 0, %v335
      %v933 = vsel %vm931, %v932, %v335
      %v934 = vand.u32 %v933, 65535
      %v935 = vshrl.u32 %v933, 16
      %v937 = vmul.u32 %v934, 14564
      %v938 = vmul.u32 %v934, 58254
      %v939 = vmul.u32 %v935, 14564
      %v940 = vmul.u32 %v935, 58254
      %v941 = vshll.u32 %v938, 16
      %v942 = vshrl.u32 %v938, 16
      %v943 = vshll.u32 %v939, 16
      %v944 = vshrl.u32 %v939, 16
      %vm945 = vc.u32 %v937, %v941
      %v946 = vsel %vm945, 1, 0
      %v947 = vadd.s32 %v937, %v941
      %v948 = vadd.s32 %v940, %v946
      %vm949 = vc.u32 %v947, %v943
      %v950 = vsel %vm949, 1, 0
      %v951 = vadd.s32 %v947, %v943
      %v952 = vadd.s32 %v948, %v950
      %v953 = vadd.s32 %v952, %v942
      %v954 = vadd.s32 %v953, %v944
      %v955 = vshrl.u32 %v954, 4
      %v956 = vmul.u32 %v955, 18
      %v957 = vsub.s32 %v933, %v956
      %v958 = vsub.s32 0, %v957
      %v959 = vsel %vm931, %v958, %v957
      %vm960 = vcmp.lt.s32.totalorder %v336, 0
      %v961 = vsub.s32 0, %v336
      %v962 = vsel %vm960, %v961, %v336
      %v963 = vand.u32 %v962, 65535
      %v964 = vshrl.u32 %v962, 16
      %v966 = vmul.u32 %v963, 14564
      %v967 = vmul.u32 %v963, 58254
      %v968 = vmul.u32 %v964, 14564
      %v969 = vmul.u32 %v964, 58254
      %v970 = vshll.u32 %v967, 16
      %v971 = vshrl.u32 %v967, 16
      %v972 = vshll.u32 %v968, 16
      %v973 = vshrl.u32 %v968, 16
      %vm974 = vc.u32 %v966, %v970
      %v975 = vsel %vm974, 1, 0
      %v976 = vadd.s32 %v966, %v970
      %v977 = vadd.s32 %v969, %v975
      %vm978 = vc.u32 %v976, %v972
      %v979 = vsel %vm978, 1, 0
      %v980 = vadd.s32 %v976, %v972
      %v981 = vadd.s32 %v977, %v979
      %v982 = vadd.s32 %v981, %v971
      %v983 = vadd.s32 %v982, %v973
      %v984 = vshrl.u32 %v983, 4
      %v985 = vmul.u32 %v984, 18
      %v986 = vsub.s32 %v962, %v985
      %v987 = vsub.s32 0, %v986
      %v988 = vsel %vm960, %v987, %v986
      %vm989 = vcmp.lt.s32.totalorder %v337, 0
      %v990 = vsub.s32 0, %v337
      %v991 = vsel %vm989, %v990, %v337
      %v992 = vand.u32 %v991, 65535
      %v993 = vshrl.u32 %v991, 16
      %v995 = vmul.u32 %v992, 14564
      %v996 = vmul.u32 %v992, 58254
      %v997 = vmul.u32 %v993, 14564
      %v998 = vmul.u32 %v993, 58254
      %v999 = vshll.u32 %v996, 16
      %v1000 = vshrl.u32 %v996, 16
      %v1001 = vshll.u32 %v997, 16
      %v1002 = vshrl.u32 %v997, 16
      %vm1003 = vc.u32 %v995, %v999
      %v1004 = vsel %vm1003, 1, 0
      %v1005 = vadd.s32 %v995, %v999
      %v1006 = vadd.s32 %v998, %v1004
      %vm1007 = vc.u32 %v1005, %v1001
      %v1008 = vsel %vm1007, 1, 0
      %v1009 = vadd.s32 %v1005, %v1001
      %v1010 = vadd.s32 %v1006, %v1008
      %v1011 = vadd.s32 %v1010, %v1000
      %v1012 = vadd.s32 %v1011, %v1002
      %v1013 = vshrl.u32 %v1012, 4
      %v1014 = vmul.u32 %v1013, 18
      %v1015 = vsub.s32 %v991, %v1014
      %v1016 = vsub.s32 0, %v1015
      %v1017 = vsel %vm989, %v1016, %v1015
      %vm1018 = vcmp.lt.s32.totalorder %v338, 0
      %v1019 = vsub.s32 0, %v338
      %v1020 = vsel %vm1018, %v1019, %v338
      %v1021 = vand.u32 %v1020, 65535
      %v1022 = vshrl.u32 %v1020, 16
      %v1024 = vmul.u32 %v1021, 14564
      %v1025 = vmul.u32 %v1021, 58254
      %v1026 = vmul.u32 %v1022, 14564
      %v1027 = vmul.u32 %v1022, 58254
      %v1028 = vshll.u32 %v1025, 16
      %v1029 = vshrl.u32 %v1025, 16
      %v1030 = vshll.u32 %v1026, 16
      %v1031 = vshrl.u32 %v1026, 16
      %vm1032 = vc.u32 %v1024, %v1028
      %v1033 = vsel %vm1032, 1, 0
      %v1034 = vadd.s32 %v1024, %v1028
      %v1035 = vadd.s32 %v1027, %v1033
      %vm1036 = vc.u32 %v1034, %v1030
      %v1037 = vsel %vm1036, 1, 0
      %v1038 = vadd.s32 %v1034, %v1030
      %v1039 = vadd.s32 %v1035, %v1037
      %v1040 = vadd.s32 %v1039, %v1029
      %v1041 = vadd.s32 %v1040, %v1031
      %v1042 = vshrl.u32 %v1041, 4
      %v1043 = vmul.u32 %v1042, 18
      %v1044 = vsub.s32 %v1020, %v1043
      %v1045 = vsub.s32 0, %v1044
      %v1046 = vsel %vm1018, %v1045, %v1044
      %vm1047 = vcmp.lt.s32.totalorder %v339, 0
      %v1048 = vsub.s32 0, %v339
      %v1049 = vsel %vm1047, %v1048, %v339
      %v1050 = vand.u32 %v1049, 65535
      %v1051 = vshrl.u32 %v1049, 16
      %v1053 = vmul.u32 %v1050, 14564
      %v1054 = vmul.u32 %v1050, 58254
      %v1055 = vmul.u32 %v1051, 14564
      %v1056 = vmul.u32 %v1051, 58254
      %v1057 = vshll.u32 %v1054, 16
      %v1058 = vshrl.u32 %v1054, 16
      %v1059 = vshll.u32 %v1055, 16
      %v1060 = vshrl.u32 %v1055, 16
      %vm1061 = vc.u32 %v1053, %v1057
      %v1062 = vsel %vm1061, 1, 0
      %v1063 = vadd.s32 %v1053, %v1057
      %v1064 = vadd.s32 %v1056, %v1062
      %vm1065 = vc.u32 %v1063, %v1059
      %v1066 = vsel %vm1065, 1, 0
      %v1067 = vadd.s32 %v1063, %v1059
      %v1068 = vadd.s32 %v1064, %v1066
      %v1069 = vadd.s32 %v1068, %v1058
      %v1070 = vadd.s32 %v1069, %v1060
      %v1071 = vshrl.u32 %v1070, 4
      %v1072 = vmul.u32 %v1071, 18
      %v1073 = vsub.s32 %v1049, %v1072
      %v1074 = vsub.s32 0, %v1073
      %v1075 = vsel %vm1047, %v1074, %v1073
      %vm1076 = vcmp.lt.s32.totalorder %v340, 0
      %v1077 = vsub.s32 0, %v340
      %v1078 = vsel %vm1076, %v1077, %v340
      %v1079 = vand.u32 %v1078, 65535
      %v1080 = vshrl.u32 %v1078, 16
      %v1082 = vmul.u32 %v1079, 14564
      %v1083 = vmul.u32 %v1079, 58254
      %v1084 = vmul.u32 %v1080, 14564
      %v1085 = vmul.u32 %v1080, 58254
      %v1086 = vshll.u32 %v1083, 16
      %v1087 = vshrl.u32 %v1083, 16
      %v1088 = vshll.u32 %v1084, 16
      %v1089 = vshrl.u32 %v1084, 16
      %vm1090 = vc.u32 %v1082, %v1086
      %v1091 = vsel %vm1090, 1, 0
      %v1092 = vadd.s32 %v1082, %v1086
      %v1093 = vadd.s32 %v1085, %v1091
      %vm1094 = vc.u32 %v1092, %v1088
      %v1095 = vsel %vm1094, 1, 0
      %v1096 = vadd.s32 %v1092, %v1088
      %v1097 = vadd.s32 %v1093, %v1095
      %v1098 = vadd.s32 %v1097, %v1087
      %v1099 = vadd.s32 %v1098, %v1089
      %v1100 = vshrl.u32 %v1099, 4
      %v1101 = vmul.u32 %v1100, 18
      %v1102 = vsub.s32 %v1078, %v1101
      %v1103 = vsub.s32 0, %v1102
      %v1104 = vsel %vm1076, %v1103, %v1102
      %vm1105 = vcmp.lt.s32.totalorder %v341, 0
      %v1106 = vsub.s32 0, %v341
      %v1107 = vsel %vm1105, %v1106, %v341
      %v1108 = vand.u32 %v1107, 65535
      %v1109 = vshrl.u32 %v1107, 16
      %v1111 = vmul.u32 %v1108, 14564
      %v1112 = vmul.u32 %v1108, 58254
      %v1113 = vmul.u32 %v1109, 14564
      %v1114 = vmul.u32 %v1109, 58254
      %v1115 = vshll.u32 %v1112, 16
      %v1116 = vshrl.u32 %v1112, 16
      %v1117 = vshll.u32 %v1113, 16
      %v1118 = vshrl.u32 %v1113, 16
      %vm1119 = vc.u32 %v1111, %v1115
      %v1120 = vsel %vm1119, 1, 0
      %v1121 = vadd.s32 %v1111, %v1115
      %v1122 = vadd.s32 %v1114, %v1120
      %vm1123 = vc.u32 %v1121, %v1117
      %v1124 = vsel %vm1123, 1, 0
      %v1125 = vadd.s32 %v1121, %v1117
      %v1126 = vadd.s32 %v1122, %v1124
      %v1127 = vadd.s32 %v1126, %v1116
      %v1128 = vadd.s32 %v1127, %v1118
      %v1129 = vshrl.u32 %v1128, 4
      %v1130 = vmul.u32 %v1129, 18
      %v1131 = vsub.s32 %v1107, %v1130
      %v1132 = vsub.s32 0, %v1131
      %v1133 = vsel %vm1105, %v1132, %v1131
      %vm1134 = vcmp.lt.s32.totalorder %v342, 0
      %v1135 = vsub.s32 0, %v342
      %v1136 = vsel %vm1134, %v1135, %v342
      %v1137 = vand.u32 %v1136, 65535
      %v1138 = vshrl.u32 %v1136, 16
      %v1140 = vmul.u32 %v1137, 14564
      %v1141 = vmul.u32 %v1137, 58254
      %v1142 = vmul.u32 %v1138, 14564
      %v1143 = vmul.u32 %v1138, 58254
      %v1144 = vshll.u32 %v1141, 16
      %v1145 = vshrl.u32 %v1141, 16
      %v1146 = vshll.u32 %v1142, 16
      %v1147 = vshrl.u32 %v1142, 16
      %vm1148 = vc.u32 %v1140, %v1144
      %v1149 = vsel %vm1148, 1, 0
      %v1150 = vadd.s32 %v1140, %v1144
      %v1151 = vadd.s32 %v1143, %v1149
      %vm1152 = vc.u32 %v1150, %v1146
      %v1153 = vsel %vm1152, 1, 0
      %v1154 = vadd.s32 %v1150, %v1146
      %v1155 = vadd.s32 %v1151, %v1153
      %v1156 = vadd.s32 %v1155, %v1145
      %v1157 = vadd.s32 %v1156, %v1147
      %v1158 = vshrl.u32 %v1157, 4
      %v1159 = vmul.u32 %v1158, 18
      %v1160 = vsub.s32 %v1136, %v1159
      %v1161 = vsub.s32 0, %v1160
      %v1162 = vsel %vm1134, %v1161, %v1160
      %vm1163 = vcmp.lt.s32.totalorder %v343, 0
      %v1164 = vsub.s32 0, %v343
      %v1165 = vsel %vm1163, %v1164, %v343
      %v1166 = vand.u32 %v1165, 65535
      %v1167 = vshrl.u32 %v1165, 16
      %v1169 = vmul.u32 %v1166, 14564
      %v1170 = vmul.u32 %v1166, 58254
      %v1171 = vmul.u32 %v1167, 14564
      %v1172 = vmul.u32 %v1167, 58254
      %v1173 = vshll.u32 %v1170, 16
      %v1174 = vshrl.u32 %v1170, 16
      %v1175 = vshll.u32 %v1171, 16
      %v1176 = vshrl.u32 %v1171, 16
      %vm1177 = vc.u32 %v1169, %v1173
      %v1178 = vsel %vm1177, 1, 0
      %v1179 = vadd.s32 %v1169, %v1173
      %v1180 = vadd.s32 %v1172, %v1178
      %vm1181 = vc.u32 %v1179, %v1175
      %v1182 = vsel %vm1181, 1, 0
      %v1183 = vadd.s32 %v1179, %v1175
      %v1184 = vadd.s32 %v1180, %v1182
      %v1185 = vadd.s32 %v1184, %v1174
      %v1186 = vadd.s32 %v1185, %v1176
      %v1187 = vshrl.u32 %v1186, 4
      %v1188 = vmul.u32 %v1187, 18
      %v1189 = vsub.s32 %v1165, %v1188
      %v1190 = vsub.s32 0, %v1189
      %v1191 = vsel %vm1163, %v1190, %v1189
      %vm1192 = vcmp.lt.s32.totalorder %v344, 0
      %v1193 = vsub.s32 0, %v344
      %v1194 = vsel %vm1192, %v1193, %v344
      %v1195 = vand.u32 %v1194, 65535
      %v1196 = vshrl.u32 %v1194, 16
      %v1198 = vmul.u32 %v1195, 14564
      %v1199 = vmul.u32 %v1195, 58254
      %v1200 = vmul.u32 %v1196, 14564
      %v1201 = vmul.u32 %v1196, 58254
      %v1202 = vshll.u32 %v1199, 16
      %v1203 = vshrl.u32 %v1199, 16
      %v1204 = vshll.u32 %v1200, 16
      %v1205 = vshrl.u32 %v1200, 16
      %vm1206 = vc.u32 %v1198, %v1202
      %v1207 = vsel %vm1206, 1, 0
      %v1208 = vadd.s32 %v1198, %v1202
      %v1209 = vadd.s32 %v1201, %v1207
      %vm1210 = vc.u32 %v1208, %v1204
      %v1211 = vsel %vm1210, 1, 0
      %v1212 = vadd.s32 %v1208, %v1204
      %v1213 = vadd.s32 %v1209, %v1211
      %v1214 = vadd.s32 %v1213, %v1203
      %v1215 = vadd.s32 %v1214, %v1205
      %v1216 = vshrl.u32 %v1215, 4
      %v1217 = vmul.u32 %v1216, 18
      %v1218 = vsub.s32 %v1194, %v1217
      %v1219 = vsub.s32 0, %v1218
      %v1220 = vsel %vm1192, %v1219, %v1218
      %vm1221 = vcmp.lt.s32.totalorder %v345, 0
      %v1222 = vsub.s32 0, %v345
      %v1223 = vsel %vm1221, %v1222, %v345
      %v1224 = vand.u32 %v1223, 65535
      %v1225 = vshrl.u32 %v1223, 16
      %v1227 = vmul.u32 %v1224, 14564
      %v1228 = vmul.u32 %v1224, 58254
      %v1229 = vmul.u32 %v1225, 14564
      %v1230 = vmul.u32 %v1225, 58254
      %v1231 = vshll.u32 %v1228, 16
      %v1232 = vshrl.u32 %v1228, 16
      %v1233 = vshll.u32 %v1229, 16
      %v1234 = vshrl.u32 %v1229, 16
      %vm1235 = vc.u32 %v1227, %v1231
      %v1236 = vsel %vm1235, 1, 0
      %v1237 = vadd.s32 %v1227, %v1231
      %v1238 = vadd.s32 %v1230, %v1236
      %vm1239 = vc.u32 %v1237, %v1233
      %v1240 = vsel %vm1239, 1, 0
      %v1241 = vadd.s32 %v1237, %v1233
      %v1242 = vadd.s32 %v1238, %v1240
      %v1243 = vadd.s32 %v1242, %v1232
      %v1244 = vadd.s32 %v1243, %v1234
      %v1245 = vshrl.u32 %v1244, 4
      %v1246 = vmul.u32 %v1245, 18
      %v1247 = vsub.s32 %v1223, %v1246
      %v1248 = vsub.s32 0, %v1247
      %v1249 = vsel %vm1221, %v1248, %v1247
      %vm1250 = vcmp.lt.s32.totalorder %v346, 0
      %v1251 = vsub.s32 0, %v346
      %v1252 = vsel %vm1250, %v1251, %v346
      %v1253 = vand.u32 %v1252, 65535
      %v1254 = vshrl.u32 %v1252, 16
      %v1256 = vmul.u32 %v1253, 14564
      %v1257 = vmul.u32 %v1253, 58254
      %v1258 = vmul.u32 %v1254, 14564
      %v1259 = vmul.u32 %v1254, 58254
      %v1260 = vshll.u32 %v1257, 16
      %v1261 = vshrl.u32 %v1257, 16
      %v1262 = vshll.u32 %v1258, 16
      %v1263 = vshrl.u32 %v1258, 16
      %vm1264 = vc.u32 %v1256, %v1260
      %v1265 = vsel %vm1264, 1, 0
      %v1266 = vadd.s32 %v1256, %v1260
      %v1267 = vadd.s32 %v1259, %v1265
      %vm1268 = vc.u32 %v1266, %v1262
      %v1269 = vsel %vm1268, 1, 0
      %v1270 = vadd.s32 %v1266, %v1262
      %v1271 = vadd.s32 %v1267, %v1269
      %v1272 = vadd.s32 %v1271, %v1261
      %v1273 = vadd.s32 %v1272, %v1263
      %v1274 = vshrl.u32 %v1273, 4
      %v1275 = vmul.u32 %v1274, 18
      %v1276 = vsub.s32 %v1252, %v1275
      %v1277 = vsub.s32 0, %v1276
      %v1278 = vsel %vm1250, %v1277, %v1276
      %vm1279 = vcmp.lt.s32.totalorder %v347, 0
      %v1280 = vsub.s32 0, %v347
      %v1281 = vsel %vm1279, %v1280, %v347
      %v1282 = vand.u32 %v1281, 65535
      %v1283 = vshrl.u32 %v1281, 16
      %v1285 = vmul.u32 %v1282, 14564
      %v1286 = vmul.u32 %v1282, 58254
      %v1287 = vmul.u32 %v1283, 14564
      %v1288 = vmul.u32 %v1283, 58254
      %v1289 = vshll.u32 %v1286, 16
      %v1290 = vshrl.u32 %v1286, 16
      %v1291 = vshll.u32 %v1287, 16
      %v1292 = vshrl.u32 %v1287, 16
      %vm1293 = vc.u32 %v1285, %v1289
      %v1294 = vsel %vm1293, 1, 0
      %v1295 = vadd.s32 %v1285, %v1289
      %v1296 = vadd.s32 %v1288, %v1294
      %vm1297 = vc.u32 %v1295, %v1291
      %v1298 = vsel %vm1297, 1, 0
      %v1299 = vadd.s32 %v1295, %v1291
      %v1300 = vadd.s32 %v1296, %v1298
      %v1301 = vadd.s32 %v1300, %v1290
      %v1302 = vadd.s32 %v1301, %v1292
      %v1303 = vshrl.u32 %v1302, 4
      %v1304 = vmul.u32 %v1303, 18
      %v1305 = vsub.s32 %v1281, %v1304
      %v1306 = vsub.s32 0, %v1305
      %v1307 = vsel %vm1279, %v1306, %v1305
      %vm1308 = vcmp.lt.s32.totalorder %v348, 0
      %v1309 = vsub.s32 0, %v348
      %v1310 = vsel %vm1308, %v1309, %v348
      %v1311 = vand.u32 %v1310, 65535
      %v1312 = vshrl.u32 %v1310, 16
      %v1314 = vmul.u32 %v1311, 14564
      %v1315 = vmul.u32 %v1311, 58254
      %v1316 = vmul.u32 %v1312, 14564
      %v1317 = vmul.u32 %v1312, 58254
      %v1318 = vshll.u32 %v1315, 16
      %v1319 = vshrl.u32 %v1315, 16
      %v1320 = vshll.u32 %v1316, 16
      %v1321 = vshrl.u32 %v1316, 16
      %vm1322 = vc.u32 %v1314, %v1318
      %v1323 = vsel %vm1322, 1, 0
      %v1324 = vadd.s32 %v1314, %v1318
      %v1325 = vadd.s32 %v1317, %v1323
      %vm1326 = vc.u32 %v1324, %v1320
      %v1327 = vsel %vm1326, 1, 0
      %v1328 = vadd.s32 %v1324, %v1320
      %v1329 = vadd.s32 %v1325, %v1327
      %v1330 = vadd.s32 %v1329, %v1319
      %v1331 = vadd.s32 %v1330, %v1321
      %v1332 = vshrl.u32 %v1331, 4
      %v1333 = vmul.u32 %v1332, 18
      %v1334 = vsub.s32 %v1310, %v1333
      %v1335 = vsub.s32 0, %v1334
      %v1336 = vsel %vm1308, %v1335, %v1334
      %vm1337 = vcmp.lt.s32.totalorder %v349, 0
      %v1338 = vsub.s32 0, %v349
      %v1339 = vsel %vm1337, %v1338, %v349
      %v1340 = vand.u32 %v1339, 65535
      %v1341 = vshrl.u32 %v1339, 16
      %v1343 = vmul.u32 %v1340, 14564
      %v1344 = vmul.u32 %v1340, 58254
      %v1345 = vmul.u32 %v1341, 14564
      %v1346 = vmul.u32 %v1341, 58254
      %v1347 = vshll.u32 %v1344, 16
      %v1348 = vshrl.u32 %v1344, 16
      %v1349 = vshll.u32 %v1345, 16
      %v1350 = vshrl.u32 %v1345, 16
      %vm1351 = vc.u32 %v1343, %v1347
      %v1352 = vsel %vm1351, 1, 0
      %v1353 = vadd.s32 %v1343, %v1347
      %v1354 = vadd.s32 %v1346, %v1352
      %vm1355 = vc.u32 %v1353, %v1349
      %v1356 = vsel %vm1355, 1, 0
      %v1357 = vadd.s32 %v1353, %v1349
      %v1358 = vadd.s32 %v1354, %v1356
      %v1359 = vadd.s32 %v1358, %v1348
      %v1360 = vadd.s32 %v1359, %v1350
      %v1361 = vshrl.u32 %v1360, 4
      %v1362 = vmul.u32 %v1361, 18
      %v1363 = vsub.s32 %v1339, %v1362
      %v1364 = vsub.s32 0, %v1363
      %v1365 = vsel %vm1337, %v1364, %v1363
      %vm1366 = vcmp.lt.s32.totalorder %v350, 0
      %v1367 = vsub.s32 0, %v350
      %v1368 = vsel %vm1366, %v1367, %v350
      %v1369 = vand.u32 %v1368, 65535
      %v1370 = vshrl.u32 %v1368, 16
      %v1372 = vmul.u32 %v1369, 14564
      %v1373 = vmul.u32 %v1369, 58254
      %v1374 = vmul.u32 %v1370, 14564
      %v1375 = vmul.u32 %v1370, 58254
      %v1376 = vshll.u32 %v1373, 16
      %v1377 = vshrl.u32 %v1373, 16
      %v1378 = vshll.u32 %v1374, 16
      %v1379 = vshrl.u32 %v1374, 16
      %vm1380 = vc.u32 %v1372, %v1376
      %v1381 = vsel %vm1380, 1, 0
      %v1382 = vadd.s32 %v1372, %v1376
      %v1383 = vadd.s32 %v1375, %v1381
      %vm1384 = vc.u32 %v1382, %v1378
      %v1385 = vsel %vm1384, 1, 0
      %v1386 = vadd.s32 %v1382, %v1378
      %v1387 = vadd.s32 %v1383, %v1385
      %v1388 = vadd.s32 %v1387, %v1377
      %v1389 = vadd.s32 %v1388, %v1379
      %v1390 = vshrl.u32 %v1389, 4
      %v1391 = vmul.u32 %v1390, 18
      %v1392 = vsub.s32 %v1368, %v1391
      %v1393 = vsub.s32 0, %v1392
      %v1394 = vsel %vm1366, %v1393, %v1392
      %vm1395 = vcmp.ne.s32.totalorder %v379, 0
      %vm1396 = vcmp.ne.s32.totalorder %v408, 0
      %vm1397 = vcmp.ne.s32.totalorder %v437, 0
      %vm1398 = vcmp.ne.s32.totalorder %v466, 0
      %vm1399 = vcmp.ne.s32.totalorder %v495, 0
      %vm1400 = vcmp.ne.s32.totalorder %v524, 0
      %vm1401 = vcmp.ne.s32.totalorder %v553, 0
      %vm1402 = vcmp.ne.s32.totalorder %v582, 0
      %vm1403 = vcmp.ne.s32.totalorder %v611, 0
      %vm1404 = vcmp.ne.s32.totalorder %v640, 0
      %vm1405 = vcmp.ne.s32.totalorder %v669, 0
      %vm1406 = vcmp.ne.s32.totalorder %v698, 0
      %vm1407 = vcmp.ne.s32.totalorder %v727, 0
      %vm1408 = vcmp.ne.s32.totalorder %v756, 0
      %vm1409 = vcmp.ne.s32.totalorder %v785, 0
      %vm1410 = vcmp.ne.s32.totalorder %v814, 0
      %vm1411 = vcmp.ne.s32.totalorder %v843, 0
      %vm1412 = vcmp.ne.s32.totalorder %v872, 0
      %vm1413 = vcmp.ne.s32.totalorder %v901, 0
      %vm1414 = vcmp.ne.s32.totalorder %v930, 0
      %vm1415 = vcmp.ne.s32.totalorder %v959, 0
      %vm1416 = vcmp.ne.s32.totalorder %v988, 0
      %vm1417 = vcmp.ne.s32.totalorder %v1017, 0
      %vm1418 = vcmp.ne.s32.totalorder %v1046, 0
      %vm1419 = vcmp.ne.s32.totalorder %v1075, 0
      %vm1420 = vcmp.ne.s32.totalorder %v1104, 0
      %vm1421 = vcmp.ne.s32.totalorder %v1133, 0
      %vm1422 = vcmp.ne.s32.totalorder %v1162, 0
      %vm1423 = vcmp.ne.s32.totalorder %v1191, 0
      %vm1424 = vcmp.ne.s32.totalorder %v1220, 0
      %vm1425 = vcmp.ne.s32.totalorder %v1249, 0
      %vm1426 = vcmp.ne.s32.totalorder %v1278, 0
      %vm1427 = vcmp.ne.s32.totalorder %v1307, 0
      %vm1428 = vcmp.ne.s32.totalorder %v1336, 0
      %vm1429 = vcmp.ne.s32.totalorder %v1365, 0
      %vm1430 = vcmp.ne.s32.totalorder %v1394, 0
      %vm1431 = vcmp.lt.s32.totalorder %v379, 0
      %vm1432 = vcmp.lt.s32.totalorder %v408, 0
      %vm1433 = vcmp.lt.s32.totalorder %v437, 0
      %vm1434 = vcmp.lt.s32.totalorder %v466, 0
      %vm1435 = vcmp.lt.s32.totalorder %v495, 0
      %vm1436 = vcmp.lt.s32.totalorder %v524, 0
      %vm1437 = vcmp.lt.s32.totalorder %v553, 0
      %vm1438 = vcmp.lt.s32.totalorder %v582, 0
      %vm1439 = vcmp.lt.s32.totalorder %v611, 0
      %vm1440 = vcmp.lt.s32.totalorder %v640, 0
      %vm1441 = vcmp.lt.s32.totalorder %v669, 0
      %vm1442 = vcmp.lt.s32.totalorder %v698, 0
      %vm1443 = vcmp.lt.s32.totalorder %v727, 0
      %vm1444 = vcmp.lt.s32.totalorder %v756, 0
      %vm1445 = vcmp.lt.s32.totalorder %v785, 0
      %vm1446 = vcmp.lt.s32.totalorder %v814, 0
      %vm1447 = vcmp.lt.s32.totalorder %v843, 0
      %vm1448 = vcmp.lt.s32.totalorder %v872, 0
      %vm1449 = vcmp.lt.s32.totalorder %v901, 0
      %vm1450 = vcmp.lt.s32.totalorder %v930, 0
      %vm1451 = vcmp.lt.s32.totalorder %v959, 0
      %vm1452 = vcmp.lt.s32.totalorder %v988, 0
      %vm1453 = vcmp.lt.s32.totalorder %v1017, 0
      %vm1454 = vcmp.lt.s32.totalorder %v1046, 0
      %vm1455 = vcmp.lt.s32.totalorder %v1075, 0
      %vm1456 = vcmp.lt.s32.totalorder %v1104, 0
      %vm1457 = vcmp.lt.s32.totalorder %v1133, 0
      %vm1458 = vcmp.lt.s32.totalorder %v1162, 0
      %vm1459 = vcmp.lt.s32.totalorder %v1191, 0
      %vm1460 = vcmp.lt.s32.totalorder %v1220, 0
      %vm1461 = vcmp.lt.s32.totalorder %v1249, 0
      %vm1462 = vcmp.lt.s32.totalorder %v1278, 0
      %vm1463 = vcmp.lt.s32.totalorder %v1307, 0
      %vm1464 = vcmp.lt.s32.totalorder %v1336, 0
      %vm1465 = vcmp.lt.s32.totalorder %v1365, 0
      %vm1466 = vcmp.lt.s32.totalorder %v1394, 0
      %vm1467 = vmand %vm1431, %vm1395
      %vm1468 = vmand %vm1432, %vm1396
      %vm1469 = vmand %vm1433, %vm1397
      %vm1470 = vmand %vm1434, %vm1398
      %vm1471 = vmand %vm1435, %vm1399
      %vm1472 = vmand %vm1436, %vm1400
      %vm1473 = vmand %vm1437, %vm1401
      %vm1474 = vmand %vm1438, %vm1402
      %vm1475 = vmand %vm1439, %vm1403
      %vm1476 = vmand %vm1440, %vm1404
      %vm1477 = vmand %vm1441, %vm1405
      %vm1478 = vmand %vm1442, %vm1406
      %vm1479 = vmand %vm1443, %vm1407
      %vm1480 = vmand %vm1444, %vm1408
      %vm1481 = vmand %vm1445, %vm1409
      %vm1482 = vmand %vm1446, %vm1410
      %vm1483 = vmand %vm1447, %vm1411
      %vm1484 = vmand %vm1448, %vm1412
      %vm1485 = vmand %vm1449, %vm1413
      %vm1486 = vmand %vm1450, %vm1414
      %vm1487 = vmand %vm1451, %vm1415
      %vm1488 = vmand %vm1452, %vm1416
      %vm1489 = vmand %vm1453, %vm1417
      %vm1490 = vmand %vm1454, %vm1418
      %vm1491 = vmand %vm1455, %vm1419
      %vm1492 = vmand %vm1456, %vm1420
      %vm1493 = vmand %vm1457, %vm1421
      %vm1494 = vmand %vm1458, %vm1422
      %vm1495 = vmand %vm1459, %vm1423
      %vm1496 = vmand %vm1460, %vm1424
      %vm1497 = vmand %vm1461, %vm1425
      %vm1498 = vmand %vm1462, %vm1426
      %vm1499 = vmand %vm1463, %vm1427
      %vm1500 = vmand %vm1464, %vm1428
      %vm1501 = vmand %vm1465, %vm1429
      %vm1502 = vmand %vm1466, %vm1430
      %v1503 = vadd.s32 %v379, 18
      %v1504 = vadd.s32 %v408, 18
      %v1505 = vadd.s32 %v437, 18
      %v1506 = vadd.s32 %v466, 18
      %v1507 = vadd.s32 %v495, 18
      %v1508 = vadd.s32 %v524, 18
      %v1509 = vadd.s32 %v553, 18
      %v1510 = vadd.s32 %v582, 18
      %v1511 = vadd.s32 %v611, 18
      %v1512 = vadd.s32 %v640, 18
      %v1513 = vadd.s32 %v669, 18
      %v1514 = vadd.s32 %v698, 18
      %v1515 = vadd.s32 %v727, 18
      %v1516 = vadd.s32 %v756, 18
      %v1517 = vadd.s32 %v785, 18
      %v1518 = vadd.s32 %v814, 18
      %v1519 = vadd.s32 %v843, 18
      %v1520 = vadd.s32 %v872, 18
      %v1521 = vadd.s32 %v901, 18
      %v1522 = vadd.s32 %v930, 18
      %v1523 = vadd.s32 %v959, 18
      %v1524 = vadd.s32 %v988, 18
      %v1525 = vadd.s32 %v1017, 18
      %v1526 = vadd.s32 %v1046, 18
      %v1527 = vadd.s32 %v1075, 18
      %v1528 = vadd.s32 %v1104, 18
      %v1529 = vadd.s32 %v1133, 18
      %v1530 = vadd.s32 %v1162, 18
      %v1531 = vadd.s32 %v1191, 18
      %v1532 = vadd.s32 %v1220, 18
      %v1533 = vadd.s32 %v1249, 18
      %v1534 = vadd.s32 %v1278, 18
      %v1535 = vadd.s32 %v1307, 18
      %v1536 = vadd.s32 %v1336, 18
      %v1537 = vadd.s32 %v1365, 18
      %v1538 = vadd.s32 %v1394, 18
      %v1539 = vsel %vm1467, %v1503, %v379
      %v1540 = vsel %vm1468, %v1504, %v408
      %v1541 = vsel %vm1469, %v1505, %v437
      %v1542 = vsel %vm1470, %v1506, %v466
      %v1543 = vsel %vm1471, %v1507, %v495
      %v1544 = vsel %vm1472, %v1508, %v524
      %v1545 = vsel %vm1473, %v1509, %v553
      %v1546 = vsel %vm1474, %v1510, %v582
      %v1547 = vsel %vm1475, %v1511, %v611
      %v1548 = vsel %vm1476, %v1512, %v640
      %v1549 = vsel %vm1477, %v1513, %v669
      %v1550 = vsel %vm1478, %v1514, %v698
      %v1551 = vsel %vm1479, %v1515, %v727
      %v1552 = vsel %vm1480, %v1516, %v756
      %v1553 = vsel %vm1481, %v1517, %v785
      %v1554 = vsel %vm1482, %v1518, %v814
      %v1555 = vsel %vm1483, %v1519, %v843
      %v1556 = vsel %vm1484, %v1520, %v872
      %v1557 = vsel %vm1485, %v1521, %v901
      %v1558 = vsel %vm1486, %v1522, %v930
      %v1559 = vsel %vm1487, %v1523, %v959
      %v1560 = vsel %vm1488, %v1524, %v988
      %v1561 = vsel %vm1489, %v1525, %v1017
      %v1562 = vsel %vm1490, %v1526, %v1046
      %v1563 = vsel %vm1491, %v1527, %v1075
      %v1564 = vsel %vm1492, %v1528, %v1104
      %v1565 = vsel %vm1493, %v1529, %v1133
      %v1566 = vsel %vm1494, %v1530, %v1162
      %v1567 = vsel %vm1495, %v1531, %v1191
      %v1568 = vsel %vm1496, %v1532, %v1220
      %v1569 = vsel %vm1497, %v1533, %v1249
      %v1570 = vsel %vm1498, %v1534, %v1278
      %v1571 = vsel %vm1499, %v1535, %v1307
      %v1572 = vsel %vm1500, %v1536, %v1336
      %v1573 = vsel %vm1501, %v1537, %v1365
      %v1574 = vsel %vm1502, %v1538, %v1394
      %vm1575 = vcmp.lt.s32.totalorder %v1539, 16
      %vm1576 = vcmp.lt.s32.totalorder %v1540, 16
      %vm1577 = vcmp.lt.s32.totalorder %v1541, 16
      %vm1578 = vcmp.lt.s32.totalorder %v1542, 16
      %vm1579 = vcmp.lt.s32.totalorder %v1543, 16
      %vm1580 = vcmp.lt.s32.totalorder %v1544, 16
      %vm1581 = vcmp.lt.s32.totalorder %v1545, 16
      %vm1582 = vcmp.lt.s32.totalorder %v1546, 16
      %vm1583 = vcmp.lt.s32.totalorder %v1547, 16
      %vm1584 = vcmp.lt.s32.totalorder %v1548, 16
      %vm1585 = vcmp.lt.s32.totalorder %v1549, 16
      %vm1586 = vcmp.lt.s32.totalorder %v1550, 16
      %vm1587 = vcmp.lt.s32.totalorder %v1551, 16
      %vm1588 = vcmp.lt.s32.totalorder %v1552, 16
      %vm1589 = vcmp.lt.s32.totalorder %v1553, 16
      %vm1590 = vcmp.lt.s32.totalorder %v1554, 16
      %vm1591 = vcmp.lt.s32.totalorder %v1555, 16
      %vm1592 = vcmp.lt.s32.totalorder %v1556, 16
      %vm1593 = vcmp.lt.s32.totalorder %v1557, 16
      %vm1594 = vcmp.lt.s32.totalorder %v1558, 16
      %vm1595 = vcmp.lt.s32.totalorder %v1559, 16
      %vm1596 = vcmp.lt.s32.totalorder %v1560, 16
      %vm1597 = vcmp.lt.s32.totalorder %v1561, 16
      %vm1598 = vcmp.lt.s32.totalorder %v1562, 16
      %vm1599 = vcmp.lt.s32.totalorder %v1563, 16
      %vm1600 = vcmp.lt.s32.totalorder %v1564, 16
      %vm1601 = vcmp.lt.s32.totalorder %v1565, 16
      %vm1602 = vcmp.lt.s32.totalorder %v1566, 16
      %vm1603 = vcmp.lt.s32.totalorder %v1567, 16
      %vm1604 = vcmp.lt.s32.totalorder %v1568, 16
      %vm1605 = vcmp.lt.s32.totalorder %v1569, 16
      %vm1606 = vcmp.lt.s32.totalorder %v1570, 16
      %vm1607 = vcmp.lt.s32.totalorder %v1571, 16
      %vm1608 = vcmp.lt.s32.totalorder %v1572, 16
      %vm1609 = vcmp.lt.s32.totalorder %v1573, 16
      %vm1610 = vcmp.lt.s32.totalorder %v1574, 16
      %v1611 = vld [vmem:[%s301] sm:$0xff]
      %v1612 = vld [vmem:[%s301 + $0x8] sm:$0xff]
      %v1613 = vld [vmem:[%s301 + $0x10] sm:$0xff]
      %v1614 = vld [vmem:[%s301 + $0x18] sm:$0xff]
      %v1615 = vld [vmem:[%s301 + $0x20] sm:$0xff]
      %v1616 = vld [vmem:[%s301 + $0x28] sm:$0xff]
      %v1617 = vld [vmem:[%s301 + $0x30] sm:$0xff]
      %v1618 = vld [vmem:[%s301 + $0x38] sm:$0xff]
      %v1619 = vld [vmem:[%s301 + $0x40] sm:$0xff]
      %v1620 = vld [vmem:[%s301 + $0x48] sm:$0xff]
      %v1621 = vld [vmem:[%s301 + $0x50] sm:$0xff]
      %v1622 = vld [vmem:[%s301 + $0x58] sm:$0xff]
      %v1623 = vld [vmem:[%s301 + $0x60] sm:$0xff]
      %v1624 = vld [vmem:[%s301 + $0x68] sm:$0xff]
      %v1625 = vld [vmem:[%s301 + $0x70] sm:$0xff]
      %v1626 = vld [vmem:[%s301 + $0x78] sm:$0xff]
      %v1627 = vld [vmem:[%s301 + $0x80] sm:$0xff]
      %v1628 = vld [vmem:[%s301 + $0x88] sm:$0xff]
      %v1629 = vld [vmem:[%s301 + $0x90] sm:$0xff]
      %v1630 = vld [vmem:[%s301 + $0x98] sm:$0xff]
      %v1631 = vld [vmem:[%s301 + $0xa0] sm:$0xff]
      %v1632 = vld [vmem:[%s301 + $0xa8] sm:$0xff]
      %v1633 = vld [vmem:[%s301 + $0xb0] sm:$0xff]
      %v1634 = vld [vmem:[%s301 + $0xb8] sm:$0xff]
      %v1635 = vld [vmem:[%s301 + $0xc0] sm:$0xff]
      %v1636 = vld [vmem:[%s301 + $0xc8] sm:$0xff]
      %v1637 = vld [vmem:[%s301 + $0xd0] sm:$0xff]
      %v1638 = vld [vmem:[%s301 + $0xd8] sm:$0xff]
      %v1639 = vld [vmem:[%s301 + $0xe0] sm:$0xff]
      %v1640 = vld [vmem:[%s301 + $0xe8] sm:$0xff]
      %v1641 = vld [vmem:[%s301 + $0xf0] sm:$0xff]
      %v1642 = vld [vmem:[%s301 + $0xf8] sm:$0xff]
      %v1643 = vld [vmem:[%s301 + $0x100] sm:$0xff]
      %v1644 = vld [vmem:[%s301 + $0x108] sm:$0xff]
      %v1645 = vld [vmem:[%s301 + $0x110] sm:$0xff]
      %v1646 = vld [vmem:[%s301 + $0x118] sm:$0xff]
      %v1647 = vld [vmem:[%s1] sm:$0xff]
      %v1648 = vld [vmem:[%s1 + $0x8] sm:$0xff]
      %v1649 = vld [vmem:[%s1 + $0x10] sm:$0xff]
      %v1650 = vld [vmem:[%s1 + $0x18] sm:$0xff]
      %v1651 = vld [vmem:[%s1 + $0x20] sm:$0xff]
      %v1652 = vld [vmem:[%s1 + $0x28] sm:$0xff]
      %v1653 = vld [vmem:[%s1 + $0x30] sm:$0xff]
      %v1654 = vld [vmem:[%s1 + $0x38] sm:$0xff]
      %v1655 = vld [vmem:[%s1 + $0x40] sm:$0xff]
      %v1656 = vld [vmem:[%s1 + $0x48] sm:$0xff]
      %v1657 = vld [vmem:[%s1 + $0x50] sm:$0xff]
      %v1658 = vld [vmem:[%s1 + $0x58] sm:$0xff]
      %v1659 = vld [vmem:[%s1 + $0x60] sm:$0xff]
      %v1660 = vld [vmem:[%s1 + $0x68] sm:$0xff]
      %v1661 = vld [vmem:[%s1 + $0x70] sm:$0xff]
      %v1662 = vld [vmem:[%s1 + $0x78] sm:$0xff]
      %1663 = vmatpush.msra.mxu0 %v1662
      %1664 = vmatpush.msra.mxu0 %v1661
      %1665 = vmatpush.msra.mxu0 %v1660
      %1666 = vmatpush.msra.mxu0 %v1659
      %1667 = vmatpush.msra.mxu0 %v1658
      %1668 = vmatpush.msra.mxu0 %v1657
      %1669 = vmatpush.msra.mxu0 %v1656
      %1670 = vmatpush.msra.mxu0 %v1655
      %1671 = vmatpush.msra.mxu0 %v1654
      %1672 = vmatpush.msra.mxu0 %v1653
      %1673 = vmatpush.msra.mxu0 %v1652
      %1674 = vmatpush.msra.mxu0 %v1651
      %1675 = vmatpush.msra.mxu0 %v1650
      %1676 = vmatpush.msra.mxu0 %v1649
      %1677 = vmatpush.msra.mxu0 %v1648
      %1678 = vmatpush.msra.mxu0 %v1647
      %1679 = vmatmul.f32.gmra.mxu0 %v1611
      %v1680 = vpop.f32.mrf.mxu0
      %v1681 = vadd.f32 0.0, %v1680
      %1682 = vmatmul.f32.gmra.mxu0 %v1612
      %v1683 = vpop.f32.mrf.mxu0
      %v1684 = vadd.f32 0.0, %v1683
      %1685 = vmatmul.f32.gmra.mxu0 %v1613
      %v1686 = vpop.f32.mrf.mxu0
      %v1687 = vadd.f32 0.0, %v1686
      %1688 = vmatmul.f32.gmra.mxu0 %v1614
      %v1689 = vpop.f32.mrf.mxu0
      %v1690 = vadd.f32 0.0, %v1689
      %1691 = vmatmul.f32.gmra.mxu0 %v1615
      %v1692 = vpop.f32.mrf.mxu0
      %v1693 = vadd.f32 0.0, %v1692
      %1694 = vmatmul.f32.gmra.mxu0 %v1616
      %v1695 = vpop.f32.mrf.mxu0
      %v1696 = vadd.f32 0.0, %v1695
      %1697 = vmatmul.f32.gmra.mxu0 %v1617
      %v1698 = vpop.f32.mrf.mxu0
      %v1699 = vadd.f32 0.0, %v1698
      %1700 = vmatmul.f32.gmra.mxu0 %v1618
      %v1701 = vpop.f32.mrf.mxu0
      %v1702 = vadd.f32 0.0, %v1701
      %1703 = vmatmul.f32.gmra.mxu0 %v1619
      %v1704 = vpop.f32.mrf.mxu0
      %v1705 = vadd.f32 0.0, %v1704
      %1706 = vmatmul.f32.gmra.mxu0 %v1620
      %v1707 = vpop.f32.mrf.mxu0
      %v1708 = vadd.f32 0.0, %v1707
      %1709 = vmatmul.f32.gmra.mxu0 %v1621
      %v1710 = vpop.f32.mrf.mxu0
      %v1711 = vadd.f32 0.0, %v1710
      %1712 = vmatmul.f32.gmra.mxu0 %v1622
      %v1713 = vpop.f32.mrf.mxu0
      %v1714 = vadd.f32 0.0, %v1713
      %1715 = vmatmul.f32.gmra.mxu0 %v1623
      %v1716 = vpop.f32.mrf.mxu0
      %v1717 = vadd.f32 0.0, %v1716
      %1718 = vmatmul.f32.gmra.mxu0 %v1624
      %v1719 = vpop.f32.mrf.mxu0
      %v1720 = vadd.f32 0.0, %v1719
      %1721 = vmatmul.f32.gmra.mxu0 %v1625
      %v1722 = vpop.f32.mrf.mxu0
      %v1723 = vadd.f32 0.0, %v1722
      %1724 = vmatmul.f32.gmra.mxu0 %v1626
      %v1725 = vpop.f32.mrf.mxu0
      %v1726 = vadd.f32 0.0, %v1725
      %1727 = vmatmul.f32.gmra.mxu0 %v1627
      %v1728 = vpop.f32.mrf.mxu0
      %v1729 = vadd.f32 0.0, %v1728
      %1730 = vmatmul.f32.gmra.mxu0 %v1628
      %v1731 = vpop.f32.mrf.mxu0
      %v1732 = vadd.f32 0.0, %v1731
      %1733 = vmatmul.f32.gmra.mxu0 %v1629
      %v1734 = vpop.f32.mrf.mxu0
      %v1735 = vadd.f32 0.0, %v1734
      %1736 = vmatmul.f32.gmra.mxu0 %v1630
      %v1737 = vpop.f32.mrf.mxu0
      %v1738 = vadd.f32 0.0, %v1737
      %1739 = vmatmul.f32.gmra.mxu0 %v1631
      %v1740 = vpop.f32.mrf.mxu0
      %v1741 = vadd.f32 0.0, %v1740
      %1742 = vmatmul.f32.gmra.mxu0 %v1632
      %v1743 = vpop.f32.mrf.mxu0
      %v1744 = vadd.f32 0.0, %v1743
      %1745 = vmatmul.f32.gmra.mxu0 %v1633
      %v1746 = vpop.f32.mrf.mxu0
      %v1747 = vadd.f32 0.0, %v1746
      %1748 = vmatmul.f32.gmra.mxu0 %v1634
      %v1749 = vpop.f32.mrf.mxu0
      %v1750 = vadd.f32 0.0, %v1749
      %1751 = vmatmul.f32.gmra.mxu0 %v1635
      %v1752 = vpop.f32.mrf.mxu0
      %v1753 = vadd.f32 0.0, %v1752
      %1754 = vmatmul.f32.gmra.mxu0 %v1636
      %v1755 = vpop.f32.mrf.mxu0
      %v1756 = vadd.f32 0.0, %v1755
      %1757 = vmatmul.f32.gmra.mxu0 %v1637
      %v1758 = vpop.f32.mrf.mxu0
      %v1759 = vadd.f32 0.0, %v1758
      %1760 = vmatmul.f32.gmra.mxu0 %v1638
      %v1761 = vpop.f32.mrf.mxu0
      %v1762 = vadd.f32 0.0, %v1761
      %1763 = vmatmul.f32.gmra.mxu0 %v1639
      %v1764 = vpop.f32.mrf.mxu0
      %v1765 = vadd.f32 0.0, %v1764
      %1766 = vmatmul.f32.gmra.mxu0 %v1640
      %v1767 = vpop.f32.mrf.mxu0
      %v1768 = vadd.f32 0.0, %v1767
      %1769 = vmatmul.f32.gmra.mxu0 %v1641
      %v1770 = vpop.f32.mrf.mxu0
      %v1771 = vadd.f32 0.0, %v1770
      %1772 = vmatmul.f32.gmra.mxu0 %v1642
      %v1773 = vpop.f32.mrf.mxu0
      %v1774 = vadd.f32 0.0, %v1773
      %1775 = vmatmul.f32.gmra.mxu0 %v1643
      %v1776 = vpop.f32.mrf.mxu0
      %v1777 = vadd.f32 0.0, %v1776
      %1778 = vmatmul.f32.gmra.mxu0 %v1644
      %v1779 = vpop.f32.mrf.mxu0
      %v1780 = vadd.f32 0.0, %v1779
      %1781 = vmatmul.f32.gmra.mxu0 %v1645
      %v1782 = vpop.f32.mrf.mxu0
      %v1783 = vadd.f32 0.0, %v1782
      %1784 = vmatmul.f32.gmra.mxu0 %v1646
      %v1785 = vpop.f32.mrf.mxu0
      %v1786 = vadd.f32 0.0, %v1785
      %1787 = vdwg.mxu0
      %v1788 = vld [vmem:[%s5] sm:$0x1]
      %v1790 = vperm.slane %v1788, 0
      %v1792 = vmul.f32 %v1681, %v1790
      %v1793 = vmul.f32 %v1684, %v1790
      %v1794 = vmul.f32 %v1687, %v1790
      %v1795 = vmul.f32 %v1690, %v1790
      %v1796 = vmul.f32 %v1693, %v1790
      %v1797 = vmul.f32 %v1696, %v1790
      %v1798 = vmul.f32 %v1699, %v1790
      %v1799 = vmul.f32 %v1702, %v1790
      %v1800 = vmul.f32 %v1705, %v1790
      %v1801 = vmul.f32 %v1708, %v1790
      %v1802 = vmul.f32 %v1711, %v1790
      %v1803 = vmul.f32 %v1714, %v1790
      %v1804 = vmul.f32 %v1717, %v1790
      %v1805 = vmul.f32 %v1720, %v1790
      %v1806 = vmul.f32 %v1723, %v1790
      %v1807 = vmul.f32 %v1726, %v1790
      %v1808 = vmul.f32 %v1729, %v1790
      %v1809 = vmul.f32 %v1732, %v1790
      %v1810 = vmul.f32 %v1735, %v1790
      %v1811 = vmul.f32 %v1738, %v1790
      %v1812 = vmul.f32 %v1741, %v1790
      %v1813 = vmul.f32 %v1744, %v1790
      %v1814 = vmul.f32 %v1747, %v1790
      %v1815 = vmul.f32 %v1750, %v1790
      %v1816 = vmul.f32 %v1753, %v1790
      %v1817 = vmul.f32 %v1756, %v1790
      %v1818 = vmul.f32 %v1759, %v1790
      %v1819 = vmul.f32 %v1762, %v1790
      %v1820 = vmul.f32 %v1765, %v1790
      %v1821 = vmul.f32 %v1768, %v1790
      %v1822 = vmul.f32 %v1771, %v1790
      %v1823 = vmul.f32 %v1774, %v1790
      %v1824 = vmul.f32 %v1777, %v1790
      %v1825 = vmul.f32 %v1780, %v1790
      %v1826 = vmul.f32 %v1783, %v1790
      %v1827 = vmul.f32 %v1786, %v1790
      %v1828 = vld [vmem:[%s6] sm:$0x1]
      %v1830 = vperm.slane %v1828, 0
      %v1832 = vadd.f32 %v1792, %v1830
      %v1833 = vadd.f32 %v1793, %v1830
      %v1834 = vadd.f32 %v1794, %v1830
      %v1835 = vadd.f32 %v1795, %v1830
      %v1836 = vadd.f32 %v1796, %v1830
      %v1837 = vadd.f32 %v1797, %v1830
      %v1838 = vadd.f32 %v1798, %v1830
      %v1839 = vadd.f32 %v1799, %v1830
      %v1840 = vadd.f32 %v1800, %v1830
      %v1841 = vadd.f32 %v1801, %v1830
      %v1842 = vadd.f32 %v1802, %v1830
      %v1843 = vadd.f32 %v1803, %v1830
      %v1844 = vadd.f32 %v1804, %v1830
      %v1845 = vadd.f32 %v1805, %v1830
      %v1846 = vadd.f32 %v1806, %v1830
      %v1847 = vadd.f32 %v1807, %v1830
      %v1848 = vadd.f32 %v1808, %v1830
      %v1849 = vadd.f32 %v1809, %v1830
      %v1850 = vadd.f32 %v1810, %v1830
      %v1851 = vadd.f32 %v1811, %v1830
      %v1852 = vadd.f32 %v1812, %v1830
      %v1853 = vadd.f32 %v1813, %v1830
      %v1854 = vadd.f32 %v1814, %v1830
      %v1855 = vadd.f32 %v1815, %v1830
      %v1856 = vadd.f32 %v1816, %v1830
      %v1857 = vadd.f32 %v1817, %v1830
      %v1858 = vadd.f32 %v1818, %v1830
      %v1859 = vadd.f32 %v1819, %v1830
      %v1860 = vadd.f32 %v1820, %v1830
      %v1861 = vadd.f32 %v1821, %v1830
      %v1862 = vadd.f32 %v1822, %v1830
      %v1863 = vadd.f32 %v1823, %v1830
      %v1864 = vadd.f32 %v1824, %v1830
      %v1865 = vadd.f32 %v1825, %v1830
      %v1866 = vadd.f32 %v1826, %v1830
      %v1867 = vadd.f32 %v1827, %v1830
      %v1868 = vmax.f32 %v1832, 0.0
      %v1869 = vmax.f32 %v1833, 0.0
      %v1870 = vmax.f32 %v1834, 0.0
      %v1871 = vmax.f32 %v1835, 0.0
      %v1872 = vmax.f32 %v1836, 0.0
      %v1873 = vmax.f32 %v1837, 0.0
      %v1874 = vmax.f32 %v1838, 0.0
      %v1875 = vmax.f32 %v1839, 0.0
      %v1876 = vmax.f32 %v1840, 0.0
      %v1877 = vmax.f32 %v1841, 0.0
      %v1878 = vmax.f32 %v1842, 0.0
      %v1879 = vmax.f32 %v1843, 0.0
      %v1880 = vmax.f32 %v1844, 0.0
      %v1881 = vmax.f32 %v1845, 0.0
      %v1882 = vmax.f32 %v1846, 0.0
      %v1883 = vmax.f32 %v1847, 0.0
      %v1884 = vmax.f32 %v1848, 0.0
      %v1885 = vmax.f32 %v1849, 0.0
      %v1886 = vmax.f32 %v1850, 0.0
      %v1887 = vmax.f32 %v1851, 0.0
      %v1888 = vmax.f32 %v1852, 0.0
      %v1889 = vmax.f32 %v1853, 0.0
      %v1890 = vmax.f32 %v1854, 0.0
      %v1891 = vmax.f32 %v1855, 0.0
      %v1892 = vmax.f32 %v1856, 0.0
      %v1893 = vmax.f32 %v1857, 0.0
      %v1894 = vmax.f32 %v1858, 0.0
      %v1895 = vmax.f32 %v1859, 0.0
      %v1896 = vmax.f32 %v1860, 0.0
      %v1897 = vmax.f32 %v1861, 0.0
      %v1898 = vmax.f32 %v1862, 0.0
      %v1899 = vmax.f32 %v1863, 0.0
      %v1900 = vmax.f32 %v1864, 0.0
      %v1901 = vmax.f32 %v1865, 0.0
      %v1902 = vmax.f32 %v1866, 0.0
      %v1903 = vmax.f32 %v1867, 0.0
      %v1904 = vsel %vm1575, %v1868, 0.0
      %v1905 = vsel %vm1576, %v1869, 0.0
      %v1906 = vsel %vm1577, %v1870, 0.0
      %v1907 = vsel %vm1578, %v1871, 0.0
      %v1908 = vsel %vm1579, %v1872, 0.0
      %v1909 = vsel %vm1580, %v1873, 0.0
      %v1910 = vsel %vm1581, %v1874, 0.0
      %v1911 = vsel %vm1582, %v1875, 0.0
      %v1912 = vsel %vm1583, %v1876, 0.0
      %v1913 = vsel %vm1584, %v1877, 0.0
      %v1914 = vsel %vm1585, %v1878, 0.0
      %v1915 = vsel %vm1586, %v1879, 0.0
      %v1916 = vsel %vm1587, %v1880, 0.0
      %v1917 = vsel %vm1588, %v1881, 0.0
      %v1918 = vsel %vm1589, %v1882, 0.0
      %v1919 = vsel %vm1590, %v1883, 0.0
      %v1920 = vsel %vm1591, %v1884, 0.0
      %v1921 = vsel %vm1592, %v1885, 0.0
      %v1922 = vsel %vm1593, %v1886, 0.0
      %v1923 = vsel %vm1594, %v1887, 0.0
      %v1924 = vsel %vm1595, %v1888, 0.0
      %v1925 = vsel %vm1596, %v1889, 0.0
      %v1926 = vsel %vm1597, %v1890, 0.0
      %v1927 = vsel %vm1598, %v1891, 0.0
      %v1928 = vsel %vm1599, %v1892, 0.0
      %v1929 = vsel %vm1600, %v1893, 0.0
      %v1930 = vsel %vm1601, %v1894, 0.0
      %v1931 = vsel %vm1602, %v1895, 0.0
      %v1932 = vsel %vm1603, %v1896, 0.0
      %v1933 = vsel %vm1604, %v1897, 0.0
      %v1934 = vsel %vm1605, %v1898, 0.0
      %v1935 = vsel %vm1606, %v1899, 0.0
      %v1936 = vsel %vm1607, %v1900, 0.0
      %v1937 = vsel %vm1608, %v1901, 0.0
      %v1938 = vsel %vm1609, %v1902, 0.0
      %v1939 = vsel %vm1610, %v1903, 0.0
      %1940 = vst.msk [vmem:[#allocation2 + $0x18] sm:$0xff] %vm307, %v1904
      %1941 = vst.msk [vmem:[#allocation2 + $0x20] sm:$0xff] %vm307, %v1905
      %1942 = vst.msk [vmem:[#allocation2 + $0x28] sm:$0xff] %vm307, %v1906
      %1943 = vst.msk [vmem:[#allocation2 + $0x30] sm:$0xff] %vm307, %v1907
      %1944 = vst.msk [vmem:[#allocation2 + $0x38] sm:$0xff] %vm307, %v1908
      %1945 = vst.msk [vmem:[#allocation2 + $0x40] sm:$0xff] %vm307, %v1909
      %1946 = vst.msk [vmem:[#allocation2 + $0x48] sm:$0xff] %vm307, %v1910
      %1947 = vst.msk [vmem:[#allocation2 + $0x50] sm:$0xff] %vm307, %v1911
      %1948 = vst.msk [vmem:[#allocation2 + $0x58] sm:$0xff] %vm307, %v1912
      %1949 = vst.msk [vmem:[#allocation2 + $0x60] sm:$0xff] %vm307, %v1913
      %1950 = vst.msk [vmem:[#allocation2 + $0x68] sm:$0xff] %vm307, %v1914
      %1951 = vst.msk [vmem:[#allocation2 + $0x70] sm:$0xff] %vm307, %v1915
      %1952 = vst.msk [vmem:[#allocation2 + $0x78] sm:$0xff] %vm307, %v1916
      %1953 = vst.msk [vmem:[#allocation2 + $0x80] sm:$0xff] %vm307, %v1917
      %1954 = vst.msk [vmem:[#allocation2 + $0x88] sm:$0xff] %vm307, %v1918
      %1955 = vst.msk [vmem:[#allocation2 + $0x90] sm:$0xff] %vm307, %v1919
      %1956 = vst.msk [vmem:[#allocation2 + $0x98] sm:$0xff] %vm307, %v1920
      %1957 = vst.msk [vmem:[#allocation2 + $0xa0] sm:$0xff] %vm307, %v1921
      %1958 = vst.msk [vmem:[#allocation2 + $0xa8] sm:$0xff] %vm307, %v1922
      %1959 = vst.msk [vmem:[#allocation2 + $0xb0] sm:$0xff] %vm307, %v1923
      %1960 = vst.msk [vmem:[#allocation2 + $0xb8] sm:$0xff] %vm307, %v1924
      %1961 = vst.msk [vmem:[#allocation2 + $0xc0] sm:$0xff] %vm307, %v1925
      %1962 = vst.msk [vmem:[#allocation2 + $0xc8] sm:$0xff] %vm307, %v1926
      %1963 = vst.msk [vmem:[#allocation2 + $0xd0] sm:$0xff] %vm307, %v1927
      %1964 = vst.msk [vmem:[#allocation2 + $0xd8] sm:$0xff] %vm307, %v1928
      %1965 = vst.msk [vmem:[#allocation2 + $0xe0] sm:$0xff] %vm307, %v1929
      %1966 = vst.msk [vmem:[#allocation2 + $0xe8] sm:$0xff] %vm307, %v1930
      %1967 = vst.msk [vmem:[#allocation2 + $0xf0] sm:$0xff] %vm307, %v1931
      %1968 = vst.msk [vmem:[#allocation2 + $0xf8] sm:$0xff] %vm307, %v1932
      %1969 = vst.msk [vmem:[#allocation2 + $0x100] sm:$0xff] %vm307, %v1933
      %1970 = vst.msk [vmem:[#allocation2 + $0x108] sm:$0xff] %vm307, %v1934
      %1971 = vst.msk [vmem:[#allocation2 + $0x110] sm:$0xff] %vm307, %v1935
      %1972 = vst.msk [vmem:[#allocation2 + $0x118] sm:$0xff] %vm307, %v1936
      %1973 = vst.msk [vmem:[#allocation2 + $0x120] sm:$0xff] %vm307, %v1937
      %1974 = vst.msk [vmem:[#allocation2 + $0x128] sm:$0xff] %vm307, %v1938
      %1975 = vst.msk [vmem:[#allocation2 + $0x130] sm:$0xff] %vm307, %v1939
      %v1976 = vld [vmem:[#allocation2 + $0x5] sm:$0xff]
      %v1977 = vld [vmem:[#allocation2 + $0xd] sm:$0xff]
      %v1978 = vld [vmem:[#allocation2 + $0x15] sm:$0xff]
      %v1979 = vld [vmem:[#allocation2 + $0x1d] sm:$0xff]
      %v1980 = vld [vmem:[#allocation2 + $0x25] sm:$0xff]
      %v1981 = vld [vmem:[#allocation2 + $0x2d] sm:$0xff]
      %v1982 = vld [vmem:[#allocation2 + $0x35] sm:$0xff]
      %v1983 = vld [vmem:[#allocation2 + $0x3d] sm:$0xff]
      %v1984 = vld [vmem:[#allocation2 + $0x45] sm:$0xff]
      %v1985 = vld [vmem:[#allocation2 + $0x4d] sm:$0xff]
      %v1986 = vld [vmem:[#allocation2 + $0x55] sm:$0xff]
      %v1987 = vld [vmem:[#allocation2 + $0x5d] sm:$0xff]
      %v1988 = vld [vmem:[#allocation2 + $0x65] sm:$0xff]
      %v1989 = vld [vmem:[#allocation2 + $0x6d] sm:$0xff]
      %v1990 = vld [vmem:[#allocation2 + $0x75] sm:$0xff]
      %v1991 = vld [vmem:[#allocation2 + $0x7d] sm:$0xff]
      %v1992 = vld [vmem:[#allocation2 + $0x85] sm:$0xff]
      %v1993 = vld [vmem:[#allocation2 + $0x8d] sm:$0xff]
      %v1994 = vld [vmem:[#allocation2 + $0x95] sm:$0xff]
      %v1995 = vld [vmem:[#allocation2 + $0x9d] sm:$0xff]
      %v1996 = vld [vmem:[#allocation2 + $0xa5] sm:$0xff]
      %v1997 = vld [vmem:[#allocation2 + $0xad] sm:$0xff]
      %v1998 = vld [vmem:[#allocation2 + $0xb5] sm:$0xff]
      %v1999 = vld [vmem:[#allocation2 + $0xbd] sm:$0xff]
      %v2000 = vld [vmem:[#allocation2 + $0xc5] sm:$0xff]
      %v2001 = vld [vmem:[#allocation2 + $0xcd] sm:$0xff]
      %v2002 = vld [vmem:[#allocation2 + $0xd5] sm:$0xff]
      %v2003 = vld [vmem:[#allocation2 + $0xdd] sm:$0xff]
      %v2004 = vld [vmem:[#allocation2 + $0xe5] sm:$0xff]
      %v2005 = vld [vmem:[#allocation2 + $0xed] sm:$0xff]
      %v2006 = vld [vmem:[#allocation2 + $0xf5] sm:$0xff]
      %v2007 = vld [vmem:[#allocation2 + $0xfd] sm:$0xff]
      %v2008 = vld [vmem:[#allocation2 + $0x105] sm:$0xff]
      %v2009 = vld [vmem:[#allocation2 + $0x10d] sm:$0xff]
      %v2010 = vld [vmem:[#allocation2 + $0x115] sm:$0xff]
      %v2011 = vld [vmem:[#allocation2 + $0x11d] sm:$0xff]
      %v2012 = vld [vmem:[#allocation2 + $0x6] sm:$0xff]
      %v2013 = vld [vmem:[#allocation2 + $0xe] sm:$0xff]
      %v2014 = vld [vmem:[#allocation2 + $0x16] sm:$0xff]
      %v2015 = vld [vmem:[#allocation2 + $0x1e] sm:$0xff]
      %v2016 = vld [vmem:[#allocation2 + $0x26] sm:$0xff]
      %v2017 = vld [vmem:[#allocation2 + $0x2e] sm:$0xff]
      %v2018 = vld [vmem:[#allocation2 + $0x36] sm:$0xff]
      %v2019 = vld [vmem:[#allocation2 + $0x3e] sm:$0xff]
      %v2020 = vld [vmem:[#allocation2 + $0x46] sm:$0xff]
      %v2021 = vld [vmem:[#allocation2 + $0x4e] sm:$0xff]
      %v2022 = vld [vmem:[#allocation2 + $0x56] sm:$0xff]
      %v2023 = vld [vmem:[#allocation2 + $0x5e] sm:$0xff]
      %v2024 = vld [vmem:[#allocation2 + $0x66] sm:$0xff]
      %v2025 = vld [vmem:[#allocation2 + $0x6e] sm:$0xff]
      %v2026 = vld [vmem:[#allocation2 + $0x76] sm:$0xff]
      %v2027 = vld [vmem:[#allocation2 + $0x7e] sm:$0xff]
      %v2028 = vld [vmem:[#allocation2 + $0x86] sm:$0xff]
      %v2029 = vld [vmem:[#allocation2 + $0x8e] sm:$0xff]
      %v2030 = vld [vmem:[#allocation2 + $0x96] sm:$0xff]
      %v2031 = vld [vmem:[#allocation2 + $0x9e] sm:$0xff]
      %v2032 = vld [vmem:[#allocation2 + $0xa6] sm:$0xff]
      %v2033 = vld [vmem:[#allocation2 + $0xae] sm:$0xff]
      %v2034 = vld [vmem:[#allocation2 + $0xb6] sm:$0xff]
      %v2035 = vld [vmem:[#allocation2 + $0xbe] sm:$0xff]
      %v2036 = vld [vmem:[#allocation2 + $0xc6] sm:$0xff]
      %v2037 = vld [vmem:[#allocation2 + $0xce] sm:$0xff]
      %v2038 = vld [vmem:[#allocation2 + $0xd6] sm:$0xff]
      %v2039 = vld [vmem:[#allocation2 + $0xde] sm:$0xff]
      %v2040 = vld [vmem:[#allocation2 + $0xe6] sm:$0xff]
      %v2041 = vld [vmem:[#allocation2 + $0xee] sm:$0xff]
      %v2042 = vld [vmem:[#allocation2 + $0xf6] sm:$0xff]
      %v2043 = vld [vmem:[#allocation2 + $0xfe] sm:$0xff]
      %v2044 = vld [vmem:[#allocation2 + $0x106] sm:$0xff]
      %v2045 = vld [vmem:[#allocation2 + $0x10e] sm:$0xff]
      %v2046 = vld [vmem:[#allocation2 + $0x116] sm:$0xff]
      %v2047 = vld [vmem:[#allocation2 + $0x11e] sm:$0xff]
      %v2048 = vld [vmem:[#allocation2 + $0x7] sm:$0xff]
      %v2049 = vld [vmem:[#allocation2 + $0xf] sm:$0xff]
      %v2050 = vld [vmem:[#allocation2 + $0x17] sm:$0xff]
      %v2051 = vld [vmem:[#allocation2 + $0x1f] sm:$0xff]
      %v2052 = vld [vmem:[#allocation2 + $0x27] sm:$0xff]
      %v2053 = vld [vmem:[#allocation2 + $0x2f] sm:$0xff]
      %v2054 = vld [vmem:[#allocation2 + $0x37] sm:$0xff]
      %v2055 = vld [vmem:[#allocation2 + $0x3f] sm:$0xff]
      %v2056 = vld [vmem:[#allocation2 + $0x47] sm:$0xff]
      %v2057 = vld [vmem:[#allocation2 + $0x4f] sm:$0xff]
      %v2058 = vld [vmem:[#allocation2 + $0x57] sm:$0xff]
      %v2059 = vld [vmem:[#allocation2 + $0x5f] sm:$0xff]
      %v2060 = vld [vmem:[#allocation2 + $0x67] sm:$0xff]
      %v2061 = vld [vmem:[#allocation2 + $0x6f] sm:$0xff]
      %v2062 = vld [vmem:[#allocation2 + $0x77] sm:$0xff]
      %v2063 = vld [vmem:[#allocation2 + $0x7f] sm:$0xff]
      %v2064 = vld [vmem:[#allocation2 + $0x87] sm:$0xff]
      %v2065 = vld [vmem:[#allocation2 + $0x8f] sm:$0xff]
      %v2066 = vld [vmem:[#allocation2 + $0x97] sm:$0xff]
      %v2067 = vld [vmem:[#allocation2 + $0x9f] sm:$0xff]
      %v2068 = vld [vmem:[#allocation2 + $0xa7] sm:$0xff]
      %v2069 = vld [vmem:[#allocation2 + $0xaf] sm:$0xff]
      %v2070 = vld [vmem:[#allocation2 + $0xb7] sm:$0xff]
      %v2071 = vld [vmem:[#allocation2 + $0xbf] sm:$0xff]
      %v2072 = vld [vmem:[#allocation2 + $0xc7] sm:$0xff]
      %v2073 = vld [vmem:[#allocation2 + $0xcf] sm:$0xff]
      %v2074 = vld [vmem:[#allocation2 + $0xd7] sm:$0xff]
      %v2075 = vld [vmem:[#allocation2 + $0xdf] sm:$0xff]
      %v2076 = vld [vmem:[#allocation2 + $0xe7] sm:$0xff]
      %v2077 = vld [vmem:[#allocation2 + $0xef] sm:$0xff]
      %v2078 = vld [vmem:[#allocation2 + $0xf7] sm:$0xff]
      %v2079 = vld [vmem:[#allocation2 + $0xff] sm:$0xff]
      %v2080 = vld [vmem:[#allocation2 + $0x107] sm:$0xff]
      %v2081 = vld [vmem:[#allocation2 + $0x10f] sm:$0xff]
      %v2082 = vld [vmem:[#allocation2 + $0x117] sm:$0xff]
      %v2083 = vld [vmem:[#allocation2 + $0x11f] sm:$0xff]
      %v2084 = vld [vmem:[#allocation2 + $0x127] sm:$0xff]
      %v2085 = vld [vmem:[#allocation2 + $0x12f] sm:$0xff]
      %v2086 = vld [vmem:[#allocation2 + $0x18] sm:$0xff]
      %v2087 = vld [vmem:[#allocation2 + $0x20] sm:$0xff]
      %v2088 = vld [vmem:[#allocation2 + $0x28] sm:$0xff]
      %v2089 = vld [vmem:[#allocation2 + $0x30] sm:$0xff]
      %v2090 = vld [vmem:[#allocation2 + $0x38] sm:$0xff]
      %v2091 = vld [vmem:[#allocation2 + $0x40] sm:$0xff]
      %v2092 = vld [vmem:[#allocation2 + $0x48] sm:$0xff]
      %v2093 = vld [vmem:[#allocation2 + $0x50] sm:$0xff]
      %v2094 = vld [vmem:[#allocation2 + $0x58] sm:$0xff]
      %v2095 = vld [vmem:[#allocation2 + $0x60] sm:$0xff]
      %v2096 = vld [vmem:[#allocation2 + $0x68] sm:$0xff]
      %v2097 = vld [vmem:[#allocation2 + $0x70] sm:$0xff]
      %v2098 = vld [vmem:[#allocation2 + $0x78] sm:$0xff]
      %v2099 = vld [vmem:[#allocation2 + $0x80] sm:$0xff]
      %v2100 = vld [vmem:[#allocation2 + $0x88] sm:$0xff]
      %v2101 = vld [vmem:[#allocation2 + $0x90] sm:$0xff]
      %v2102 = vld [vmem:[#allocation2 + $0x98] sm:$0xff]
      %v2103 = vld [vmem:[#allocation2 + $0xa0] sm:$0xff]
      %v2104 = vld [vmem:[#allocation2 + $0xa8] sm:$0xff]
      %v2105 = vld [vmem:[#allocation2 + $0xb0] sm:$0xff]
      %v2106 = vld [vmem:[#allocation2 + $0xb8] sm:$0xff]
      %v2107 = vld [vmem:[#allocation2 + $0xc0] sm:$0xff]
      %v2108 = vld [vmem:[#allocation2 + $0xc8] sm:$0xff]
      %v2109 = vld [vmem:[#allocation2 + $0xd0] sm:$0xff]
      %v2110 = vld [vmem:[#allocation2 + $0xd8] sm:$0xff]
      %v2111 = vld [vmem:[#allocation2 + $0xe0] sm:$0xff]
      %v2112 = vld [vmem:[#allocation2 + $0xe8] sm:$0xff]
      %v2113 = vld [vmem:[#allocation2 + $0xf0] sm:$0xff]
      %v2114 = vld [vmem:[#allocation2 + $0xf8] sm:$0xff]
      %v2115 = vld [vmem:[#allocation2 + $0x100] sm:$0xff]
      %v2116 = vld [vmem:[#allocation2 + $0x108] sm:$0xff]
      %v2117 = vld [vmem:[#allocation2 + $0x110] sm:$0xff]
      %v2118 = vld [vmem:[#allocation2 + $0x118] sm:$0xff]
      %v2119 = vld [vmem:[#allocation2 + $0x120] sm:$0xff]
      %v2120 = vld [vmem:[#allocation2 + $0x128] sm:$0xff]
      %v2121 = vld [vmem:[#allocation2 + $0x130] sm:$0xff]
      %v2122 = vld [vmem:[#allocation2 + $0x19] sm:$0xff]
      %v2123 = vld [vmem:[#allocation2 + $0x21] sm:$0xff]
      %v2124 = vld [vmem:[#allocation2 + $0x29] sm:$0xff]
      %v2125 = vld [vmem:[#allocation2 + $0x31] sm:$0xff]
      %v2126 = vld [vmem:[#allocation2 + $0x39] sm:$0xff]
      %v2127 = vld [vmem:[#allocation2 + $0x41] sm:$0xff]
      %v2128 = vld [vmem:[#allocation2 + $0x49] sm:$0xff]
      %v2129 = vld [vmem:[#allocation2 + $0x51] sm:$0xff]
      %v2130 = vld [vmem:[#allocation2 + $0x59] sm:$0xff]
      %v2131 = vld [vmem:[#allocation2 + $0x61] sm:$0xff]
      %v2132 = vld [vmem:[#allocation2 + $0x69] sm:$0xff]
      %v2133 = vld [vmem:[#allocation2 + $0x71] sm:$0xff]
      %v2134 = vld [vmem:[#allocation2 + $0x79] sm:$0xff]
      %v2135 = vld [vmem:[#allocation2 + $0x81] sm:$0xff]
      %v2136 = vld [vmem:[#allocation2 + $0x89] sm:$0xff]
      %v2137 = vld [vmem:[#allocation2 + $0x91] sm:$0xff]
      %v2138 = vld [vmem:[#allocation2 + $0x99] sm:$0xff]
      %v2139 = vld [vmem:[#allocation2 + $0xa1] sm:$0xff]
      %v2140 = vld [vmem:[#allocation2 + $0xa9] sm:$0xff]
      %v2141 = vld [vmem:[#allocation2 + $0xb1] sm:$0xff]
      %v2142 = vld [vmem:[#allocation2 + $0xb9] sm:$0xff]
      %v2143 = vld [vmem:[#allocation2 + $0xc1] sm:$0xff]
      %v2144 = vld [vmem:[#allocation2 + $0xc9] sm:$0xff]
      %v2145 = vld [vmem:[#allocation2 + $0xd1] sm:$0xff]
      %v2146 = vld [vmem:[#allocation2 + $0xd9] sm:$0xff]
      %v2147 = vld [vmem:[#allocation2 + $0xe1] sm:$0xff]
      %v2148 = vld [vmem:[#allocation2 + $0xe9] sm:$0xff]
      %v2149 = vld [vmem:[#allocation2 + $0xf1] sm:$0xff]
      %v2150 = vld [vmem:[#allocation2 + $0xf9] sm:$0xff]
      %v2151 = vld [vmem:[#allocation2 + $0x101] sm:$0xff]
      %v2152 = vld [vmem:[#allocation2 + $0x109] sm:$0xff]
      %v2153 = vld [vmem:[#allocation2 + $0x111] sm:$0xff]
      %v2154 = vld [vmem:[#allocation2 + $0x119] sm:$0xff]
      %v2155 = vld [vmem:[#allocation2 + $0x121] sm:$0xff]
      %v2156 = vld [vmem:[#allocation2 + $0x129] sm:$0xff]
      %v2157 = vld [vmem:[#allocation2 + $0x131] sm:$0xff]
      %v2158 = vld [vmem:[#allocation2 + $0x139] sm:$0xff]
      %v2159 = vld [vmem:[#allocation2 + $0x141] sm:$0xff]
      %v2160 = vld [vmem:[#allocation2 + $0x2a] sm:$0xff]
      %v2161 = vld [vmem:[#allocation2 + $0x32] sm:$0xff]
      %v2162 = vld [vmem:[#allocation2 + $0x3a] sm:$0xff]
      %v2163 = vld [vmem:[#allocation2 + $0x42] sm:$0xff]
      %v2164 = vld [vmem:[#allocation2 + $0x4a] sm:$0xff]
      %v2165 = vld [vmem:[#allocation2 + $0x52] sm:$0xff]
      %v2166 = vld [vmem:[#allocation2 + $0x5a] sm:$0xff]
      %v2167 = vld [vmem:[#allocation2 + $0x62] sm:$0xff]
      %v2168 = vld [vmem:[#allocation2 + $0x6a] sm:$0xff]
      %v2169 = vld [vmem:[#allocation2 + $0x72] sm:$0xff]
      %v2170 = vld [vmem:[#allocation2 + $0x7a] sm:$0xff]
      %v2171 = vld [vmem:[#allocation2 + $0x82] sm:$0xff]
      %v2172 = vld [vmem:[#allocation2 + $0x8a] sm:$0xff]
      %v2173 = vld [vmem:[#allocation2 + $0x92] sm:$0xff]
      %v2174 = vld [vmem:[#allocation2 + $0x9a] sm:$0xff]
      %v2175 = vld [vmem:[#allocation2 + $0xa2] sm:$0xff]
      %v2176 = vld [vmem:[#allocation2 + $0xaa] sm:$0xff]
      %v2177 = vld [vmem:[#allocation2 + $0xb2] sm:$0xff]
      %v2178 = vld [vmem:[#allocation2 + $0xba] sm:$0xff]
      %v2179 = vld [vmem:[#allocation2 + $0xc2] sm:$0xff]
      %v2180 = vld [vmem:[#allocation2 + $0xca] sm:$0xff]
      %v2181 = vld [vmem:[#allocation2 + $0xd2] sm:$0xff]
      %v2182 = vld [vmem:[#allocation2 + $0xda] sm:$0xff]
      %v2183 = vld [vmem:[#allocation2 + $0xe2] sm:$0xff]
      %v2184 = vld [vmem:[#allocation2 + $0xea] sm:$0xff]
      %v2185 = vld [vmem:[#allocation2 + $0xf2] sm:$0xff]
      %v2186 = vld [vmem:[#allocation2 + $0xfa] sm:$0xff]
      %v2187 = vld [vmem:[#allocation2 + $0x102] sm:$0xff]
      %v2188 = vld [vmem:[#allocation2 + $0x10a] sm:$0xff]
      %v2189 = vld [vmem:[#allocation2 + $0x112] sm:$0xff]
      %v2190 = vld [vmem:[#allocation2 + $0x11a] sm:$0xff]
      %v2191 = vld [vmem:[#allocation2 + $0x122] sm:$0xff]
      %v2192 = vld [vmem:[#allocation2 + $0x12a] sm:$0xff]
      %v2193 = vld [vmem:[#allocation2 + $0x132] sm:$0xff]
      %v2194 = vld [vmem:[#allocation2 + $0x13a] sm:$0xff]
      %v2195 = vld [vmem:[#allocation2 + $0x142] sm:$0xff]
      %v2196 = vld [vmem:[#allocation2 + $0x2b] sm:$0xff]
      %v2197 = vld [vmem:[#allocation2 + $0x33] sm:$0xff]
      %v2198 = vld [vmem:[#allocation2 + $0x3b] sm:$0xff]
      %v2199 = vld [vmem:[#allocation2 + $0x43] sm:$0xff]
      %v2200 = vld [vmem:[#allocation2 + $0x4b] sm:$0xff]
      %v2201 = vld [vmem:[#allocation2 + $0x53] sm:$0xff]
      %v2202 = vld [vmem:[#allocation2 + $0x5b] sm:$0xff]
      %v2203 = vld [vmem:[#allocation2 + $0x63] sm:$0xff]
      %v2204 = vld [vmem:[#allocation2 + $0x6b] sm:$0xff]
      %v2205 = vld [vmem:[#allocation2 + $0x73] sm:$0xff]
      %v2206 = vld [vmem:[#allocation2 + $0x7b] sm:$0xff]
      %v2207 = vld [vmem:[#allocation2 + $0x83] sm:$0xff]
      %v2208 = vld [vmem:[#allocation2 + $0x8b] sm:$0xff]
      %v2209 = vld [vmem:[#allocation2 + $0x93] sm:$0xff]
      %v2210 = vld [vmem:[#allocation2 + $0x9b] sm:$0xff]
      %v2211 = vld [vmem:[#allocation2 + $0xa3] sm:$0xff]
      %v2212 = vld [vmem:[#allocation2 + $0xab] sm:$0xff]
      %v2213 = vld [vmem:[#allocation2 + $0xb3] sm:$0xff]
      %v2214 = vld [vmem:[#allocation2 + $0xbb] sm:$0xff]
      %v2215 = vld [vmem:[#allocation2 + $0xc3] sm:$0xff]
      %v2216 = vld [vmem:[#allocation2 + $0xcb] sm:$0xff]
      %v2217 = vld [vmem:[#allocation2 + $0xd3] sm:$0xff]
      %v2218 = vld [vmem:[#allocation2 + $0xdb] sm:$0xff]
      %v2219 = vld [vmem:[#allocation2 + $0xe3] sm:$0xff]
      %v2220 = vld [vmem:[#allocation2 + $0xeb] sm:$0xff]
      %v2221 = vld [vmem:[#allocation2 + $0xf3] sm:$0xff]
      %v2222 = vld [vmem:[#allocation2 + $0xfb] sm:$0xff]
      %v2223 = vld [vmem:[#allocation2 + $0x103] sm:$0xff]
      %v2224 = vld [vmem:[#allocation2 + $0x10b] sm:$0xff]
      %v2225 = vld [vmem:[#allocation2 + $0x113] sm:$0xff]
      %v2226 = vld [vmem:[#allocation2 + $0x11b] sm:$0xff]
      %v2227 = vld [vmem:[#allocation2 + $0x123] sm:$0xff]
      %v2228 = vld [vmem:[#allocation2 + $0x12b] sm:$0xff]
      %v2229 = vld [vmem:[#allocation2 + $0x133] sm:$0xff]
      %v2230 = vld [vmem:[#allocation2 + $0x13b] sm:$0xff]
      %v2231 = vld [vmem:[#allocation2 + $0x143] sm:$0xff]
      %2268 = vrot.lane.b32.xlu0 %v2012, 64
      %v2269 = vpop.permute.xlu0 %2268
      %2270 = vrot.lane.b32.xlu0 %v2013, 64
      %v2271 = vpop.permute.xlu0 %2270
      %2272 = vrot.lane.b32.xlu0 %v2014, 64
      %v2273 = vpop.permute.xlu0 %2272
      %2274 = vrot.lane.b32.xlu0 %v2015, 64
      %v2275 = vpop.permute.xlu0 %2274
      %2276 = vrot.lane.b32.xlu0 %v2016, 64
      %v2277 = vpop.permute.xlu0 %2276
      %2278 = vrot.lane.b32.xlu0 %v2017, 64
      %v2279 = vpop.permute.xlu0 %2278
      %2280 = vrot.lane.b32.xlu0 %v2018, 64
      %v2281 = vpop.permute.xlu0 %2280
      %2282 = vrot.lane.b32.xlu0 %v2019, 64
      %v2283 = vpop.permute.xlu0 %2282
      %2284 = vrot.lane.b32.xlu0 %v2020, 64
      %v2285 = vpop.permute.xlu0 %2284
      %2286 = vrot.lane.b32.xlu0 %v2021, 64
      %v2287 = vpop.permute.xlu0 %2286
      %2288 = vrot.lane.b32.xlu0 %v2022, 64
      %v2289 = vpop.permute.xlu0 %2288
      %2290 = vrot.lane.b32.xlu0 %v2023, 64
      %v2291 = vpop.permute.xlu0 %2290
      %2292 = vrot.lane.b32.xlu0 %v2024, 64
      %v2293 = vpop.permute.xlu0 %2292
      %2294 = vrot.lane.b32.xlu0 %v2025, 64
      %v2295 = vpop.permute.xlu0 %2294
      %2296 = vrot.lane.b32.xlu0 %v2026, 64
      %v2297 = vpop.permute.xlu0 %2296
      %2298 = vrot.lane.b32.xlu0 %v2027, 64
      %v2299 = vpop.permute.xlu0 %2298
      %2300 = vrot.lane.b32.xlu0 %v2028, 64
      %v2301 = vpop.permute.xlu0 %2300
      %2302 = vrot.lane.b32.xlu0 %v2029, 64
      %v2303 = vpop.permute.xlu0 %2302
      %2304 = vrot.lane.b32.xlu0 %v2030, 64
      %v2305 = vpop.permute.xlu0 %2304
      %2306 = vrot.lane.b32.xlu0 %v2031, 64
      %v2307 = vpop.permute.xlu0 %2306
      %2308 = vrot.lane.b32.xlu0 %v2032, 64
      %v2309 = vpop.permute.xlu0 %2308
      %2310 = vrot.lane.b32.xlu0 %v2033, 64
      %v2311 = vpop.permute.xlu0 %2310
      %2312 = vrot.lane.b32.xlu0 %v2034, 64
      %v2313 = vpop.permute.xlu0 %2312
      %2314 = vrot.lane.b32.xlu0 %v2035, 64
      %v2315 = vpop.permute.xlu0 %2314
      %2316 = vrot.lane.b32.xlu0 %v2036, 64
      %v2317 = vpop.permute.xlu0 %2316
      %2318 = vrot.lane.b32.xlu0 %v2037, 64
      %v2319 = vpop.permute.xlu0 %2318
      %2320 = vrot.lane.b32.xlu0 %v2038, 64
      %v2321 = vpop.permute.xlu0 %2320
      %2322 = vrot.lane.b32.xlu0 %v2039, 64
      %v2323 = vpop.permute.xlu0 %2322
      %2324 = vrot.lane.b32.xlu0 %v2040, 64
      %v2325 = vpop.permute.xlu0 %2324
      %2326 = vrot.lane.b32.xlu0 %v2041, 64
      %v2327 = vpop.permute.xlu0 %2326
      %2328 = vrot.lane.b32.xlu0 %v2042, 64
      %v2329 = vpop.permute.xlu0 %2328
      %2330 = vrot.lane.b32.xlu0 %v2043, 64
      %v2331 = vpop.permute.xlu0 %2330
      %2332 = vrot.lane.b32.xlu0 %v2044, 64
      %v2333 = vpop.permute.xlu0 %2332
      %2334 = vrot.lane.b32.xlu0 %v2045, 64
      %v2335 = vpop.permute.xlu0 %2334
      %2336 = vrot.lane.b32.xlu0 %v2046, 64
      %v2337 = vpop.permute.xlu0 %2336
      %2338 = vrot.lane.b32.xlu0 %v2047, 64
      %v2339 = vpop.permute.xlu0 %2338
      %2412 = vrot.lane.b32.xlu0 %v2050, 64
      %v2413 = vpop.permute.xlu0 %2412
      %2414 = vrot.lane.b32.xlu0 %v2051, 64
      %v2415 = vpop.permute.xlu0 %2414
      %2416 = vrot.lane.b32.xlu0 %v2052, 64
      %v2417 = vpop.permute.xlu0 %2416
      %2418 = vrot.lane.b32.xlu0 %v2053, 64
      %v2419 = vpop.permute.xlu0 %2418
      %2420 = vrot.lane.b32.xlu0 %v2054, 64
      %v2421 = vpop.permute.xlu0 %2420
      %2422 = vrot.lane.b32.xlu0 %v2055, 64
      %v2423 = vpop.permute.xlu0 %2422
      %2424 = vrot.lane.b32.xlu0 %v2056, 64
      %v2425 = vpop.permute.xlu0 %2424
      %2426 = vrot.lane.b32.xlu0 %v2057, 64
      %v2427 = vpop.permute.xlu0 %2426
      %2428 = vrot.lane.b32.xlu0 %v2058, 64
      %v2429 = vpop.permute.xlu0 %2428
      %2430 = vrot.lane.b32.xlu0 %v2059, 64
      %v2431 = vpop.permute.xlu0 %2430
      %2432 = vrot.lane.b32.xlu0 %v2060, 64
      %v2433 = vpop.permute.xlu0 %2432
      %2434 = vrot.lane.b32.xlu0 %v2061, 64
      %v2435 = vpop.permute.xlu0 %2434
      %2436 = vrot.lane.b32.xlu0 %v2062, 64
      %v2437 = vpop.permute.xlu0 %2436
      %2438 = vrot.lane.b32.xlu0 %v2063, 64
      %v2439 = vpop.permute.xlu0 %2438
      %2440 = vrot.lane.b32.xlu0 %v2064, 64
      %v2441 = vpop.permute.xlu0 %2440
      %2442 = vrot.lane.b32.xlu0 %v2065, 64
      %v2443 = vpop.permute.xlu0 %2442
      %2444 = vrot.lane.b32.xlu0 %v2066, 64
      %v2445 = vpop.permute.xlu0 %2444
      %2446 = vrot.lane.b32.xlu0 %v2067, 64
      %v2447 = vpop.permute.xlu0 %2446
      %2448 = vrot.lane.b32.xlu0 %v2068, 64
      %v2449 = vpop.permute.xlu0 %2448
      %2450 = vrot.lane.b32.xlu0 %v2069, 64
      %v2451 = vpop.permute.xlu0 %2450
      %2452 = vrot.lane.b32.xlu0 %v2070, 64
      %v2453 = vpop.permute.xlu0 %2452
      %2454 = vrot.lane.b32.xlu0 %v2071, 64
      %v2455 = vpop.permute.xlu0 %2454
      %2456 = vrot.lane.b32.xlu0 %v2072, 64
      %v2457 = vpop.permute.xlu0 %2456
      %2458 = vrot.lane.b32.xlu0 %v2073, 64
      %v2459 = vpop.permute.xlu0 %2458
      %2460 = vrot.lane.b32.xlu0 %v2074, 64
      %v2461 = vpop.permute.xlu0 %2460
      %2462 = vrot.lane.b32.xlu0 %v2075, 64
      %v2463 = vpop.permute.xlu0 %2462
      %2464 = vrot.lane.b32.xlu0 %v2076, 64
      %v2465 = vpop.permute.xlu0 %2464
      %2466 = vrot.lane.b32.xlu0 %v2077, 64
      %v2467 = vpop.permute.xlu0 %2466
      %2468 = vrot.lane.b32.xlu0 %v2078, 64
      %v2469 = vpop.permute.xlu0 %2468
      %2470 = vrot.lane.b32.xlu0 %v2079, 64
      %v2471 = vpop.permute.xlu0 %2470
      %2472 = vrot.lane.b32.xlu0 %v2080, 64
      %v2473 = vpop.permute.xlu0 %2472
      %2474 = vrot.lane.b32.xlu0 %v2081, 64
      %v2475 = vpop.permute.xlu0 %2474
      %2476 = vrot.lane.b32.xlu0 %v2082, 64
      %v2477 = vpop.permute.xlu0 %2476
      %2478 = vrot.lane.b32.xlu0 %v2083, 64
      %v2479 = vpop.permute.xlu0 %2478
      %2480 = vrot.lane.b32.xlu0 %v2084, 64
      %v2481 = vpop.permute.xlu0 %2480
      %2482 = vrot.lane.b32.xlu0 %v2085, 64
      %v2483 = vpop.permute.xlu0 %2482
      %2556 = vrot.lane.b32.xlu0 %v2122, 64
      %v2557 = vpop.permute.xlu0 %2556
      %2558 = vrot.lane.b32.xlu0 %v2123, 64
      %v2559 = vpop.permute.xlu0 %2558
      %2560 = vrot.lane.b32.xlu0 %v2124, 64
      %v2561 = vpop.permute.xlu0 %2560
      %2562 = vrot.lane.b32.xlu0 %v2125, 64
      %v2563 = vpop.permute.xlu0 %2562
      %2564 = vrot.lane.b32.xlu0 %v2126, 64
      %v2565 = vpop.permute.xlu0 %2564
      %2566 = vrot.lane.b32.xlu0 %v2127, 64
      %v2567 = vpop.permute.xlu0 %2566
      %2568 = vrot.lane.b32.xlu0 %v2128, 64
      %v2569 = vpop.permute.xlu0 %2568
      %2570 = vrot.lane.b32.xlu0 %v2129, 64
      %v2571 = vpop.permute.xlu0 %2570
      %2572 = vrot.lane.b32.xlu0 %v2130, 64
      %v2573 = vpop.permute.xlu0 %2572
      %2574 = vrot.lane.b32.xlu0 %v2131, 64
      %v2575 = vpop.permute.xlu0 %2574
      %2576 = vrot.lane.b32.xlu0 %v2132, 64
      %v2577 = vpop.permute.xlu0 %2576
      %2578 = vrot.lane.b32.xlu0 %v2133, 64
      %v2579 = vpop.permute.xlu0 %2578
      %2580 = vrot.lane.b32.xlu0 %v2134, 64
      %v2581 = vpop.permute.xlu0 %2580
      %2582 = vrot.lane.b32.xlu0 %v2135, 64
      %v2583 = vpop.permute.xlu0 %2582
      %2584 = vrot.lane.b32.xlu0 %v2136, 64
      %v2585 = vpop.permute.xlu0 %2584
      %2586 = vrot.lane.b32.xlu0 %v2137, 64
      %v2587 = vpop.permute.xlu0 %2586
      %2588 = vrot.lane.b32.xlu0 %v2138, 64
      %v2589 = vpop.permute.xlu0 %2588
      %2590 = vrot.lane.b32.xlu0 %v2139, 64
      %v2591 = vpop.permute.xlu0 %2590
      %2592 = vrot.lane.b32.xlu0 %v2140, 64
      %v2593 = vpop.permute.xlu0 %2592
      %2594 = vrot.lane.b32.xlu0 %v2141, 64
      %v2595 = vpop.permute.xlu0 %2594
      %2596 = vrot.lane.b32.xlu0 %v2142, 64
      %v2597 = vpop.permute.xlu0 %2596
      %2598 = vrot.lane.b32.xlu0 %v2143, 64
      %v2599 = vpop.permute.xlu0 %2598
      %2600 = vrot.lane.b32.xlu0 %v2144, 64
      %v2601 = vpop.permute.xlu0 %2600
      %2602 = vrot.lane.b32.xlu0 %v2145, 64
      %v2603 = vpop.permute.xlu0 %2602
      %2604 = vrot.lane.b32.xlu0 %v2146, 64
      %v2605 = vpop.permute.xlu0 %2604
      %2606 = vrot.lane.b32.xlu0 %v2147, 64
      %v2607 = vpop.permute.xlu0 %2606
      %2608 = vrot.lane.b32.xlu0 %v2148, 64
      %v2609 = vpop.permute.xlu0 %2608
      %2610 = vrot.lane.b32.xlu0 %v2149, 64
      %v2611 = vpop.permute.xlu0 %2610
      %2612 = vrot.lane.b32.xlu0 %v2150, 64
      %v2613 = vpop.permute.xlu0 %2612
      %2614 = vrot.lane.b32.xlu0 %v2151, 64
      %v2615 = vpop.permute.xlu0 %2614
      %2616 = vrot.lane.b32.xlu0 %v2152, 64
      %v2617 = vpop.permute.xlu0 %2616
      %2618 = vrot.lane.b32.xlu0 %v2153, 64
      %v2619 = vpop.permute.xlu0 %2618
      %2620 = vrot.lane.b32.xlu0 %v2154, 64
      %v2621 = vpop.permute.xlu0 %2620
      %2622 = vrot.lane.b32.xlu0 %v2155, 64
      %v2623 = vpop.permute.xlu0 %2622
      %2624 = vrot.lane.b32.xlu0 %v2156, 64
      %v2625 = vpop.permute.xlu0 %2624
      %2626 = vrot.lane.b32.xlu0 %v2157, 64
      %v2627 = vpop.permute.xlu0 %2626
      %2700 = vrot.lane.b32.xlu0 %v2160, 64
      %v2701 = vpop.permute.xlu0 %2700
      %2702 = vrot.lane.b32.xlu0 %v2161, 64
      %v2703 = vpop.permute.xlu0 %2702
      %2704 = vrot.lane.b32.xlu0 %v2162, 64
      %v2705 = vpop.permute.xlu0 %2704
      %2706 = vrot.lane.b32.xlu0 %v2163, 64
      %v2707 = vpop.permute.xlu0 %2706
      %2708 = vrot.lane.b32.xlu0 %v2164, 64
      %v2709 = vpop.permute.xlu0 %2708
      %2710 = vrot.lane.b32.xlu0 %v2165, 64
      %v2711 = vpop.permute.xlu0 %2710
      %2712 = vrot.lane.b32.xlu0 %v2166, 64
      %v2713 = vpop.permute.xlu0 %2712
      %2714 = vrot.lane.b32.xlu0 %v2167, 64
      %v2715 = vpop.permute.xlu0 %2714
      %2716 = vrot.lane.b32.xlu0 %v2168, 64
      %v2717 = vpop.permute.xlu0 %2716
      %2718 = vrot.lane.b32.xlu0 %v2169, 64
      %v2719 = vpop.permute.xlu0 %2718
      %2720 = vrot.lane.b32.xlu0 %v2170, 64
      %v2721 = vpop.permute.xlu0 %2720
      %2722 = vrot.lane.b32.xlu0 %v2171, 64
      %v2723 = vpop.permute.xlu0 %2722
      %2724 = vrot.lane.b32.xlu0 %v2172, 64
      %v2725 = vpop.permute.xlu0 %2724
      %2726 = vrot.lane.b32.xlu0 %v2173, 64
      %v2727 = vpop.permute.xlu0 %2726
      %2728 = vrot.lane.b32.xlu0 %v2174, 64
      %v2729 = vpop.permute.xlu0 %2728
      %2730 = vrot.lane.b32.xlu0 %v2175, 64
      %v2731 = vpop.permute.xlu0 %2730
      %2732 = vrot.lane.b32.xlu0 %v2176, 64
      %v2733 = vpop.permute.xlu0 %2732
      %2734 = vrot.lane.b32.xlu0 %v2177, 64
      %v2735 = vpop.permute.xlu0 %2734
      %2736 = vrot.lane.b32.xlu0 %v2178, 64
      %v2737 = vpop.permute.xlu0 %2736
      %2738 = vrot.lane.b32.xlu0 %v2179, 64
      %v2739 = vpop.permute.xlu0 %2738
      %2740 = vrot.lane.b32.xlu0 %v2180, 64
      %v2741 = vpop.permute.xlu0 %2740
      %2742 = vrot.lane.b32.xlu0 %v2181, 64
      %v2743 = vpop.permute.xlu0 %2742
      %2744 = vrot.lane.b32.xlu0 %v2182, 64
      %v2745 = vpop.permute.xlu0 %2744
      %2746 = vrot.lane.b32.xlu0 %v2183, 64
      %v2747 = vpop.permute.xlu0 %2746
      %2748 = vrot.lane.b32.xlu0 %v2184, 64
      %v2749 = vpop.permute.xlu0 %2748
      %2750 = vrot.lane.b32.xlu0 %v2185, 64
      %v2751 = vpop.permute.xlu0 %2750
      %2752 = vrot.lane.b32.xlu0 %v2186, 64
      %v2753 = vpop.permute.xlu0 %2752
      %2754 = vrot.lane.b32.xlu0 %v2187, 64
      %v2755 = vpop.permute.xlu0 %2754
      %2756 = vrot.lane.b32.xlu0 %v2188, 64
      %v2757 = vpop.permute.xlu0 %2756
      %2758 = vrot.lane.b32.xlu0 %v2189, 64
      %v2759 = vpop.permute.xlu0 %2758
      %2760 = vrot.lane.b32.xlu0 %v2190, 64
      %v2761 = vpop.permute.xlu0 %2760
      %2762 = vrot.lane.b32.xlu0 %v2191, 64
      %v2763 = vpop.permute.xlu0 %2762
      %2764 = vrot.lane.b32.xlu0 %v2192, 64
      %v2765 = vpop.permute.xlu0 %2764
      %2766 = vrot.lane.b32.xlu0 %v2193, 64
      %v2767 = vpop.permute.xlu0 %2766
      %2768 = vrot.lane.b32.xlu0 %v2194, 64
      %v2769 = vpop.permute.xlu0 %2768
      %2770 = vrot.lane.b32.xlu0 %v2195, 64
      %v2771 = vpop.permute.xlu0 %2770
      %v2808 = vsel %vm307, %v1976, %v2269
      %v2809 = vsel %vm307, %v1977, %v2271
      %v2810 = vsel %vm307, %v1978, %v2273
      %v2811 = vsel %vm307, %v1979, %v2275
      %v2812 = vsel %vm307, %v1980, %v2277
      %v2813 = vsel %vm307, %v1981, %v2279
      %v2814 = vsel %vm307, %v1982, %v2281
      %v2815 = vsel %vm307, %v1983, %v2283
      %v2816 = vsel %vm307, %v1984, %v2285
      %v2817 = vsel %vm307, %v1985, %v2287
      %v2818 = vsel %vm307, %v1986, %v2289
      %v2819 = vsel %vm307, %v1987, %v2291
      %v2820 = vsel %vm307, %v1988, %v2293
      %v2821 = vsel %vm307, %v1989, %v2295
      %v2822 = vsel %vm307, %v1990, %v2297
      %v2823 = vsel %vm307, %v1991, %v2299
      %v2824 = vsel %vm307, %v1992, %v2301
      %v2825 = vsel %vm307, %v1993, %v2303
      %v2826 = vsel %vm307, %v1994, %v2305
      %v2827 = vsel %vm307, %v1995, %v2307
      %v2828 = vsel %vm307, %v1996, %v2309
      %v2829 = vsel %vm307, %v1997, %v2311
      %v2830 = vsel %vm307, %v1998, %v2313
      %v2831 = vsel %vm307, %v1999, %v2315
      %v2832 = vsel %vm307, %v2000, %v2317
      %v2833 = vsel %vm307, %v2001, %v2319
      %v2834 = vsel %vm307, %v2002, %v2321
      %v2835 = vsel %vm307, %v2003, %v2323
      %v2836 = vsel %vm307, %v2004, %v2325
      %v2837 = vsel %vm307, %v2005, %v2327
      %v2838 = vsel %vm307, %v2006, %v2329
      %v2839 = vsel %vm307, %v2007, %v2331
      %v2840 = vsel %vm307, %v2008, %v2333
      %v2841 = vsel %vm307, %v2009, %v2335
      %v2842 = vsel %vm307, %v2010, %v2337
      %v2843 = vsel %vm307, %v2011, %v2339
      %v2844 = vsel %vm307, %v2048, %v2413
      %v2845 = vsel %vm307, %v2049, %v2415
      %v2846 = vsel %vm307, %v2050, %v2417
      %v2847 = vsel %vm307, %v2051, %v2419
      %v2848 = vsel %vm307, %v2052, %v2421
      %v2849 = vsel %vm307, %v2053, %v2423
      %v2850 = vsel %vm307, %v2054, %v2425
      %v2851 = vsel %vm307, %v2055, %v2427
      %v2852 = vsel %vm307, %v2056, %v2429
      %v2853 = vsel %vm307, %v2057, %v2431
      %v2854 = vsel %vm307, %v2058, %v2433
      %v2855 = vsel %vm307, %v2059, %v2435
      %v2856 = vsel %vm307, %v2060, %v2437
      %v2857 = vsel %vm307, %v2061, %v2439
      %v2858 = vsel %vm307, %v2062, %v2441
      %v2859 = vsel %vm307, %v2063, %v2443
      %v2860 = vsel %vm307, %v2064, %v2445
      %v2861 = vsel %vm307, %v2065, %v2447
      %v2862 = vsel %vm307, %v2066, %v2449
      %v2863 = vsel %vm307, %v2067, %v2451
      %v2864 = vsel %vm307, %v2068, %v2453
      %v2865 = vsel %vm307, %v2069, %v2455
      %v2866 = vsel %vm307, %v2070, %v2457
      %v2867 = vsel %vm307, %v2071, %v2459
      %v2868 = vsel %vm307, %v2072, %v2461
      %v2869 = vsel %vm307, %v2073, %v2463
      %v2870 = vsel %vm307, %v2074, %v2465
      %v2871 = vsel %vm307, %v2075, %v2467
      %v2872 = vsel %vm307, %v2076, %v2469
      %v2873 = vsel %vm307, %v2077, %v2471
      %v2874 = vsel %vm307, %v2078, %v2473
      %v2875 = vsel %vm307, %v2079, %v2475
      %v2876 = vsel %vm307, %v2080, %v2477
      %v2877 = vsel %vm307, %v2081, %v2479
      %v2878 = vsel %vm307, %v2082, %v2481
      %v2879 = vsel %vm307, %v2083, %v2483
      %v2880 = vsel %vm307, %v2086, %v2557
      %v2881 = vsel %vm307, %v2087, %v2559
      %v2882 = vsel %vm307, %v2088, %v2561
      %v2883 = vsel %vm307, %v2089, %v2563
      %v2884 = vsel %vm307, %v2090, %v2565
      %v2885 = vsel %vm307, %v2091, %v2567
      %v2886 = vsel %vm307, %v2092, %v2569
      %v2887 = vsel %vm307, %v2093, %v2571
      %v2888 = vsel %vm307, %v2094, %v2573
      %v2889 = vsel %vm307, %v2095, %v2575
      %v2890 = vsel %vm307, %v2096, %v2577
      %v2891 = vsel %vm307, %v2097, %v2579
      %v2892 = vsel %vm307, %v2098, %v2581
      %v2893 = vsel %vm307, %v2099, %v2583
      %v2894 = vsel %vm307, %v2100, %v2585
      %v2895 = vsel %vm307, %v2101, %v2587
      %v2896 = vsel %vm307, %v2102, %v2589
      %v2897 = vsel %vm307, %v2103, %v2591
      %v2898 = vsel %vm307, %v2104, %v2593
      %v2899 = vsel %vm307, %v2105, %v2595
      %v2900 = vsel %vm307, %v2106, %v2597
      %v2901 = vsel %vm307, %v2107, %v2599
      %v2902 = vsel %vm307, %v2108, %v2601
      %v2903 = vsel %vm307, %v2109, %v2603
      %v2904 = vsel %vm307, %v2110, %v2605
      %v2905 = vsel %vm307, %v2111, %v2607
      %v2906 = vsel %vm307, %v2112, %v2609
      %v2907 = vsel %vm307, %v2113, %v2611
      %v2908 = vsel %vm307, %v2114, %v2613
      %v2909 = vsel %vm307, %v2115, %v2615
      %v2910 = vsel %vm307, %v2116, %v2617
      %v2911 = vsel %vm307, %v2117, %v2619
      %v2912 = vsel %vm307, %v2118, %v2621
      %v2913 = vsel %vm307, %v2119, %v2623
      %v2914 = vsel %vm307, %v2120, %v2625
      %v2915 = vsel %vm307, %v2121, %v2627
      %v2916 = vsel %vm307, %v2124, %v2701
      %v2917 = vsel %vm307, %v2125, %v2703
      %v2918 = vsel %vm307, %v2126, %v2705
      %v2919 = vsel %vm307, %v2127, %v2707
      %v2920 = vsel %vm307, %v2128, %v2709
      %v2921 = vsel %vm307, %v2129, %v2711
      %v2922 = vsel %vm307, %v2130, %v2713
      %v2923 = vsel %vm307, %v2131, %v2715
      %v2924 = vsel %vm307, %v2132, %v2717
      %v2925 = vsel %vm307, %v2133, %v2719
      %v2926 = vsel %vm307, %v2134, %v2721
      %v2927 = vsel %vm307, %v2135, %v2723
      %v2928 = vsel %vm307, %v2136, %v2725
      %v2929 = vsel %vm307, %v2137, %v2727
      %v2930 = vsel %vm307, %v2138, %v2729
      %v2931 = vsel %vm307, %v2139, %v2731
      %v2932 = vsel %vm307, %v2140, %v2733
      %v2933 = vsel %vm307, %v2141, %v2735
      %v2934 = vsel %vm307, %v2142, %v2737
      %v2935 = vsel %vm307, %v2143, %v2739
      %v2936 = vsel %vm307, %v2144, %v2741
      %v2937 = vsel %vm307, %v2145, %v2743
      %v2938 = vsel %vm307, %v2146, %v2745
      %v2939 = vsel %vm307, %v2147, %v2747
      %v2940 = vsel %vm307, %v2148, %v2749
      %v2941 = vsel %vm307, %v2149, %v2751
      %v2942 = vsel %vm307, %v2150, %v2753
      %v2943 = vsel %vm307, %v2151, %v2755
      %v2944 = vsel %vm307, %v2152, %v2757
      %v2945 = vsel %vm307, %v2153, %v2759
      %v2946 = vsel %vm307, %v2154, %v2761
      %v2947 = vsel %vm307, %v2155, %v2763
      %v2948 = vsel %vm307, %v2156, %v2765
      %v2949 = vsel %vm307, %v2157, %v2767
      %v2950 = vsel %vm307, %v2158, %v2769
      %v2951 = vsel %vm307, %v2159, %v2771
      %v2952 = vpack.c.bf16 %v2809, %v2808
      %v2953 = vpack.c.bf16 %v2845, %v2844
      %v2954 = vpack.c.bf16 %v2881, %v2880
      %v2955 = vpack.c.bf16 %v2917, %v2916
      %v2956 = vpack.c.bf16 %v2197, %v2196
      %v2957 = vpack.c.bf16 %v2811, %v2810
      %v2958 = vpack.c.bf16 %v2847, %v2846
      %v2959 = vpack.c.bf16 %v2883, %v2882
      %v2960 = vpack.c.bf16 %v2919, %v2918
      %v2961 = vpack.c.bf16 %v2199, %v2198
      %v2962 = vpack.c.bf16 %v2813, %v2812
      %v2963 = vpack.c.bf16 %v2849, %v2848
      %v2964 = vpack.c.bf16 %v2885, %v2884
      %v2965 = vpack.c.bf16 %v2921, %v2920
      %v2966 = vpack.c.bf16 %v2201, %v2200
      %v2967 = vpack.c.bf16 %v2815, %v2814
      %v2968 = vpack.c.bf16 %v2851, %v2850
      %v2969 = vpack.c.bf16 %v2887, %v2886
      %v2970 = vpack.c.bf16 %v2923, %v2922
      %v2971 = vpack.c.bf16 %v2203, %v2202
      %v2972 = vpack.c.bf16 %v2817, %v2816
      %v2973 = vpack.c.bf16 %v2853, %v2852
      %v2974 = vpack.c.bf16 %v2889, %v2888
      %v2975 = vpack.c.bf16 %v2925, %v2924
      %v2976 = vpack.c.bf16 %v2205, %v2204
      %v2977 = vpack.c.bf16 %v2819, %v2818
      %v2978 = vpack.c.bf16 %v2855, %v2854
      %v2979 = vpack.c.bf16 %v2891, %v2890
      %v2980 = vpack.c.bf16 %v2927, %v2926
      %v2981 = vpack.c.bf16 %v2207, %v2206
      %v2982 = vpack.c.bf16 %v2821, %v2820
      %v2983 = vpack.c.bf16 %v2857, %v2856
      %v2984 = vpack.c.bf16 %v2893, %v2892
      %v2985 = vpack.c.bf16 %v2929, %v2928
      %v2986 = vpack.c.bf16 %v2209, %v2208
      %v2987 = vpack.c.bf16 %v2823, %v2822
      %v2988 = vpack.c.bf16 %v2859, %v2858
      %v2989 = vpack.c.bf16 %v2895, %v2894
      %v2990 = vpack.c.bf16 %v2931, %v2930
      %v2991 = vpack.c.bf16 %v2211, %v2210
      %v2992 = vpack.c.bf16 %v2825, %v2824
      %v2993 = vpack.c.bf16 %v2861, %v2860
      %v2994 = vpack.c.bf16 %v2897, %v2896
      %v2995 = vpack.c.bf16 %v2933, %v2932
      %v2996 = vpack.c.bf16 %v2213, %v2212
      %v2997 = vpack.c.bf16 %v2827, %v2826
      %v2998 = vpack.c.bf16 %v2863, %v2862
      %v2999 = vpack.c.bf16 %v2899, %v2898
      %v3000 = vpack.c.bf16 %v2935, %v2934
      %v3001 = vpack.c.bf16 %v2215, %v2214
      %v3002 = vpack.c.bf16 %v2829, %v2828
      %v3003 = vpack.c.bf16 %v2865, %v2864
      %v3004 = vpack.c.bf16 %v2901, %v2900
      %v3005 = vpack.c.bf16 %v2937, %v2936
      %v3006 = vpack.c.bf16 %v2217, %v2216
      %v3007 = vpack.c.bf16 %v2831, %v2830
      %v3008 = vpack.c.bf16 %v2867, %v2866
      %v3009 = vpack.c.bf16 %v2903, %v2902
      %v3010 = vpack.c.bf16 %v2939, %v2938
      %v3011 = vpack.c.bf16 %v2219, %v2218
      %v3012 = vpack.c.bf16 %v2833, %v2832
      %v3013 = vpack.c.bf16 %v2869, %v2868
      %v3014 = vpack.c.bf16 %v2905, %v2904
      %v3015 = vpack.c.bf16 %v2941, %v2940
      %v3016 = vpack.c.bf16 %v2221, %v2220
      %v3017 = vpack.c.bf16 %v2835, %v2834
      %v3018 = vpack.c.bf16 %v2871, %v2870
      %v3019 = vpack.c.bf16 %v2907, %v2906
      %v3020 = vpack.c.bf16 %v2943, %v2942
      %v3021 = vpack.c.bf16 %v2223, %v2222
      %v3022 = vpack.c.bf16 %v2837, %v2836
      %v3023 = vpack.c.bf16 %v2873, %v2872
      %v3024 = vpack.c.bf16 %v2909, %v2908
      %v3025 = vpack.c.bf16 %v2945, %v2944
      %v3026 = vpack.c.bf16 %v2225, %v2224
      %v3027 = vpack.c.bf16 %v2839, %v2838
      %v3028 = vpack.c.bf16 %v2875, %v2874
      %v3029 = vpack.c.bf16 %v2911, %v2910
      %v3030 = vpack.c.bf16 %v2947, %v2946
      %v3031 = vpack.c.bf16 %v2227, %v2226
      %v3032 = vpack.c.bf16 %v2841, %v2840
      %v3033 = vpack.c.bf16 %v2877, %v2876
      %v3034 = vpack.c.bf16 %v2913, %v2912
      %v3035 = vpack.c.bf16 %v2949, %v2948
      %v3036 = vpack.c.bf16 %v2229, %v2228
      %v3037 = vpack.c.bf16 %v2843, %v2842
      %v3038 = vpack.c.bf16 %v2879, %v2878
      %v3039 = vpack.c.bf16 %v2915, %v2914
      %v3040 = vpack.c.bf16 %v2951, %v2950
      %v3041 = vpack.c.bf16 %v2231, %v2230
      %v3042 = vld [vmem:[%s2] sm:$0xf]
      %v3043 = vld [vmem:[%s2 + $0x4] sm:$0xf]
      %v3044 = vld [vmem:[%s2 + $0x8] sm:$0xf]
      %v3045 = vld [vmem:[%s2 + $0xc] sm:$0xf]
      %v3046 = vld [vmem:[%s2 + $0x10] sm:$0xf]
      %v3047 = vld [vmem:[%s2 + $0x14] sm:$0xf]
      %v3048 = vld [vmem:[%s2 + $0x18] sm:$0xf]
      %v3049 = vld [vmem:[%s2 + $0x1c] sm:$0xf]
      %v3050 = vld [vmem:[%s2 + $0x20] sm:$0xf]
      %v3051 = vld [vmem:[%s2 + $0x24] sm:$0xf]
      %v3052 = vld [vmem:[%s2 + $0x28] sm:$0xf]
      %v3053 = vld [vmem:[%s2 + $0x2c] sm:$0xf]
      %v3054 = vld [vmem:[%s2 + $0x30] sm:$0xf]
      %v3055 = vld [vmem:[%s2 + $0x34] sm:$0xf]
      %v3056 = vld [vmem:[%s2 + $0x38] sm:$0xf]
      %v3057 = vld [vmem:[%s2 + $0x3c] sm:$0xf]
      %v3058 = vld [vmem:[%s2 + $0x40] sm:$0xf]
      %v3059 = vld [vmem:[%s2 + $0x44] sm:$0xf]
      %v3060 = vld [vmem:[%s2 + $0x48] sm:$0xf]
      %v3061 = vld [vmem:[%s2 + $0x4c] sm:$0xf]
      %v3062 = vld [vmem:[%s2 + $0x50] sm:$0xf]
      %v3063 = vld [vmem:[%s2 + $0x54] sm:$0xf]
      %v3064 = vld [vmem:[%s2 + $0x58] sm:$0xf]
      %v3065 = vld [vmem:[%s2 + $0x5c] sm:$0xf]
      %v3066 = vld [vmem:[%s2 + $0x60] sm:$0xf]
      %v3067 = vld [vmem:[%s2 + $0x64] sm:$0xf]
      %v3068 = vld [vmem:[%s2 + $0x68] sm:$0xf]
      %v3069 = vld [vmem:[%s2 + $0x6c] sm:$0xf]
      %v3070 = vld [vmem:[%s2 + $0x70] sm:$0xf]
      %v3071 = vld [vmem:[%s2 + $0x74] sm:$0xf]
      %v3072 = vld [vmem:[%s2 + $0x78] sm:$0xf]
      %v3073 = vld [vmem:[%s2 + $0x7c] sm:$0xf]
      %v3074 = vld [vmem:[%s2 + $0x80] sm:$0xf]
      %v3075 = vld [vmem:[%s2 + $0x84] sm:$0xf]
      %v3076 = vld [vmem:[%s2 + $0x88] sm:$0xf]
      %v3077 = vld [vmem:[%s2 + $0x8c] sm:$0xf]
      %v3078 = vld [vmem:[%s2 + $0x90] sm:$0xf]
      %v3079 = vld [vmem:[%s2 + $0x94] sm:$0xf]
      %v3080 = vld [vmem:[%s2 + $0x98] sm:$0xf]
      %v3081 = vld [vmem:[%s2 + $0x9c] sm:$0xf]
      %v3082 = vld [vmem:[%s2 + $0xa0] sm:$0xf]
      %v3083 = vld [vmem:[%s2 + $0xa4] sm:$0xf]
      %v3084 = vld [vmem:[%s2 + $0xa8] sm:$0xf]
      %v3085 = vld [vmem:[%s2 + $0xac] sm:$0xf]
      %v3086 = vld [vmem:[%s2 + $0xb0] sm:$0xf]
      %v3087 = vld [vmem:[%s2 + $0xb4] sm:$0xf]
      %v3088 = vld [vmem:[%s2 + $0xb8] sm:$0xf]
      %v3089 = vld [vmem:[%s2 + $0xbc] sm:$0xf]
      %v3090 = vld [vmem:[%s2 + $0xc0] sm:$0xf]
      %v3091 = vld [vmem:[%s2 + $0xc4] sm:$0xf]
      %v3092 = vld [vmem:[%s2 + $0xc8] sm:$0xf]
      %v3093 = vld [vmem:[%s2 + $0xcc] sm:$0xf]
      %v3094 = vld [vmem:[%s2 + $0xd0] sm:$0xf]
      %v3095 = vld [vmem:[%s2 + $0xd4] sm:$0xf]
      %v3096 = vld [vmem:[%s2 + $0xd8] sm:$0xf]
      %v3097 = vld [vmem:[%s2 + $0xdc] sm:$0xf]
      %v3098 = vld [vmem:[%s2 + $0xe0] sm:$0xf]
      %v3099 = vld [vmem:[%s2 + $0xe4] sm:$0xf]
      %v3100 = vld [vmem:[%s2 + $0xe8] sm:$0xf]
      %v3101 = vld [vmem:[%s2 + $0xec] sm:$0xf]
      %v3102 = vld [vmem:[%s2 + $0xf0] sm:$0xf]
      %v3103 = vld [vmem:[%s2 + $0xf4] sm:$0xf]
      %v3104 = vld [vmem:[%s2 + $0xf8] sm:$0xf]
      %v3105 = vld [vmem:[%s2 + $0xfc] sm:$0xf]
      %v3106 = vld [vmem:[%s2 + $0x100] sm:$0xf]
      %v3107 = vld [vmem:[%s2 + $0x104] sm:$0xf]
      %v3108 = vld [vmem:[%s2 + $0x108] sm:$0xf]
      %v3109 = vld [vmem:[%s2 + $0x10c] sm:$0xf]
      %v3110 = vld [vmem:[%s2 + $0x110] sm:$0xf]
      %v3111 = vld [vmem:[%s2 + $0x114] sm:$0xf]
      %v3112 = vld [vmem:[%s2 + $0x118] sm:$0xf]
      %v3113 = vld [vmem:[%s2 + $0x11c] sm:$0xf]
      %v3186 = vunpack.c.l.b16 %v3042
      %v3187 = vunpack.c.l.b16 %v3043
      %v3188 = vunpack.c.l.b16 %v3044
      %v3189 = vunpack.c.l.b16 %v3045
      %v3190 = vunpack.c.l.b16 %v3046
      %v3191 = vunpack.c.l.b16 %v3047
      %v3192 = vunpack.c.l.b16 %v3048
      %v3193 = vunpack.c.l.b16 %v3049
      %v3194 = vunpack.c.l.b16 %v3050
      %v3195 = vunpack.c.l.b16 %v3051
      %v3196 = vunpack.c.l.b16 %v3052
      %v3197 = vunpack.c.l.b16 %v3053
      %v3198 = vunpack.c.l.b16 %v3054
      %v3199 = vunpack.c.l.b16 %v3055
      %v3200 = vunpack.c.l.b16 %v3056
      %v3201 = vunpack.c.l.b16 %v3057
      %v3202 = vunpack.c.l.b16 %v3058
      %v3203 = vunpack.c.l.b16 %v3059
      %v3204 = vunpack.c.l.b16 %v3060
      %v3205 = vunpack.c.l.b16 %v3061
      %v3206 = vunpack.c.l.b16 %v3062
      %v3207 = vunpack.c.l.b16 %v3063
      %v3208 = vunpack.c.l.b16 %v3064
      %v3209 = vunpack.c.l.b16 %v3065
      %v3210 = vunpack.c.l.b16 %v3066
      %v3211 = vunpack.c.l.b16 %v3067
      %v3212 = vunpack.c.l.b16 %v3068
      %v3213 = vunpack.c.l.b16 %v3069
      %v3214 = vunpack.c.l.b16 %v3070
      %v3215 = vunpack.c.l.b16 %v3071
      %v3216 = vunpack.c.l.b16 %v3072
      %v3217 = vunpack.c.l.b16 %v3073
      %v3218 = vunpack.c.l.b16 %v3074
      %v3219 = vunpack.c.l.b16 %v3075
      %v3220 = vunpack.c.l.b16 %v3076
      %v3221 = vunpack.c.l.b16 %v3077
      %v3222 = vunpack.c.l.b16 %v3078
      %v3223 = vunpack.c.l.b16 %v3079
      %v3224 = vunpack.c.l.b16 %v3080
      %v3225 = vunpack.c.l.b16 %v3081
      %v3226 = vunpack.c.l.b16 %v3082
      %v3227 = vunpack.c.l.b16 %v3083
      %v3228 = vunpack.c.l.b16 %v3084
      %v3229 = vunpack.c.l.b16 %v3085
      %v3230 = vunpack.c.l.b16 %v3086
      %v3231 = vunpack.c.l.b16 %v3087
      %v3232 = vunpack.c.l.b16 %v3088
      %v3233 = vunpack.c.l.b16 %v3089
      %v3234 = vunpack.c.l.b16 %v3090
      %v3235 = vunpack.c.l.b16 %v3091
      %v3236 = vunpack.c.l.b16 %v3092
      %v3237 = vunpack.c.l.b16 %v3093
      %v3238 = vunpack.c.l.b16 %v3094
      %v3239 = vunpack.c.l.b16 %v3095
      %v3240 = vunpack.c.l.b16 %v3096
      %v3241 = vunpack.c.l.b16 %v3097
      %v3242 = vunpack.c.l.b16 %v3098
      %v3243 = vunpack.c.l.b16 %v3099
      %v3244 = vunpack.c.l.b16 %v3100
      %v3245 = vunpack.c.l.b16 %v3101
      %v3246 = vunpack.c.l.b16 %v3102
      %v3247 = vunpack.c.l.b16 %v3103
      %v3248 = vunpack.c.l.b16 %v3104
      %v3249 = vunpack.c.l.b16 %v3105
      %v3250 = vunpack.c.l.b16 %v3106
      %v3251 = vunpack.c.l.b16 %v3107
      %v3252 = vunpack.c.l.b16 %v3108
      %v3253 = vunpack.c.l.b16 %v3109
      %v3254 = vunpack.c.l.b16 %v3110
      %v3255 = vunpack.c.l.b16 %v3111
      %v3256 = vunpack.c.l.b16 %v3112
      %v3257 = vunpack.c.l.b16 %v3113
      %v3258 = vpack.c.b16 %v3187, %v3186
      %v3259 = vpack.c.b16 %v3189, %v3188
      %v3260 = vpack.c.b16 %v3191, %v3190
      %v3261 = vpack.c.b16 %v3193, %v3192
      %v3262 = vpack.c.b16 %v3195, %v3194
      %v3263 = vpack.c.b16 %v3197, %v3196
      %v3264 = vpack.c.b16 %v3199, %v3198
      %v3265 = vpack.c.b16 %v3201, %v3200
      %v3266 = vpack.c.b16 %v3203, %v3202
      %v3267 = vpack.c.b16 %v3205, %v3204
      %v3268 = vpack.c.b16 %v3207, %v3206
      %v3269 = vpack.c.b16 %v3209, %v3208
      %v3270 = vpack.c.b16 %v3211, %v3210
      %v3271 = vpack.c.b16 %v3213, %v3212
      %v3272 = vpack.c.b16 %v3215, %v3214
      %v3273 = vpack.c.b16 %v3217, %v3216
      %v3274 = vpack.c.b16 %v3219, %v3218
      %v3275 = vpack.c.b16 %v3221, %v3220
      %v3276 = vpack.c.b16 %v3223, %v3222
      %v3277 = vpack.c.b16 %v3225, %v3224
      %v3278 = vpack.c.b16 %v3227, %v3226
      %v3279 = vpack.c.b16 %v3229, %v3228
      %v3280 = vpack.c.b16 %v3231, %v3230
      %v3281 = vpack.c.b16 %v3233, %v3232
      %v3282 = vpack.c.b16 %v3235, %v3234
      %v3283 = vpack.c.b16 %v3237, %v3236
      %v3284 = vpack.c.b16 %v3239, %v3238
      %v3285 = vpack.c.b16 %v3241, %v3240
      %v3286 = vpack.c.b16 %v3243, %v3242
      %v3287 = vpack.c.b16 %v3245, %v3244
      %v3288 = vpack.c.b16 %v3247, %v3246
      %v3289 = vpack.c.b16 %v3249, %v3248
      %v3290 = vpack.c.b16 %v3251, %v3250
      %v3291 = vpack.c.b16 %v3253, %v3252
      %v3292 = vpack.c.b16 %v3255, %v3254
      %v3293 = vpack.c.b16 %v3257, %v3256
      %v3331 = vsel %vm307, %v2956, 0
      %v3334 = vsel %vm307, %v2961, 0
      %v3337 = vsel %vm307, %v2966, 0
      %v3340 = vsel %vm307, %v2971, 0
      %v3343 = vsel %vm307, %v2976, 0
      %v3346 = vsel %vm307, %v2981, 0
      %v3349 = vsel %vm307, %v2986, 0
      %v3352 = vsel %vm307, %v2991, 0
      %v3355 = vsel %vm307, %v2996, 0
      %v3358 = vsel %vm307, %v3001, 0
      %v3361 = vsel %vm307, %v3006, 0
      %v3364 = vsel %vm307, %v3011, 0
      %v3367 = vsel %vm307, %v3016, 0
      %v3370 = vsel %vm307, %v3021, 0
      %v3373 = vsel %vm307, %v3026, 0
      %v3376 = vsel %vm307, %v3031, 0
      %v3379 = vsel %vm307, %v3036, 0
      %v3382 = vsel %vm307, %v3041, 0
      %3384 = vmatpush.bf16.msra.mxu0 %v3265
      %3385 = vmatpush.bf16.msra.mxu0 %v3264
      %3386 = vmatpush.bf16.msra.mxu0 %v3263
      %3387 = vmatpush.bf16.msra.mxu0 %v3262
      %3388 = vmatpush.bf16.msra.mxu0 %v3261
      %3389 = vmatpush.bf16.msra.mxu0 %v3260
      %3390 = vmatpush.bf16.msra.mxu0 %v3259
      %3391 = vmatpush.bf16.msra.mxu0 %v3258
      %3392 = vmatmul.bf16.gmra.mxu0 %v2952
      %v3393 = vpop.f32.mrf.mxu0
      %v3394 = vadd.f32 0.0, %v3393
      %v3395 = vpop.f32.mrf.mxu0
      %v3396 = vadd.f32 0.0, %v3395
      %3397 = vmatmul.bf16.gmra.mxu0 %v2957
      %v3398 = vpop.f32.mrf.mxu0
      %v3399 = vadd.f32 0.0, %v3398
      %v3400 = vpop.f32.mrf.mxu0
      %v3401 = vadd.f32 0.0, %v3400
      %3402 = vmatmul.bf16.gmra.mxu0 %v2962
      %v3403 = vpop.f32.mrf.mxu0
      %v3404 = vadd.f32 0.0, %v3403
      %v3405 = vpop.f32.mrf.mxu0
      %v3406 = vadd.f32 0.0, %v3405
      %3407 = vmatmul.bf16.gmra.mxu0 %v2967
      %v3408 = vpop.f32.mrf.mxu0
      %v3409 = vadd.f32 0.0, %v3408
      %v3410 = vpop.f32.mrf.mxu0
      %v3411 = vadd.f32 0.0, %v3410
      %3412 = vmatmul.bf16.gmra.mxu0 %v2972
      %v3413 = vpop.f32.mrf.mxu0
      %v3414 = vadd.f32 0.0, %v3413
      %v3415 = vpop.f32.mrf.mxu0
      %v3416 = vadd.f32 0.0, %v3415
      %3417 = vmatmul.bf16.gmra.mxu0 %v2977
      %v3418 = vpop.f32.mrf.mxu0
      %v3419 = vadd.f32 0.0, %v3418
      %v3420 = vpop.f32.mrf.mxu0
      %v3421 = vadd.f32 0.0, %v3420
      %3422 = vmatmul.bf16.gmra.mxu0 %v2982
      %v3423 = vpop.f32.mrf.mxu0
      %v3424 = vadd.f32 0.0, %v3423
      %v3425 = vpop.f32.mrf.mxu0
      %v3426 = vadd.f32 0.0, %v3425
      %3427 = vmatmul.bf16.gmra.mxu0 %v2987
      %v3428 = vpop.f32.mrf.mxu0
      %v3429 = vadd.f32 0.0, %v3428
      %v3430 = vpop.f32.mrf.mxu0
      %v3431 = vadd.f32 0.0, %v3430
      %3432 = vmatmul.bf16.gmra.mxu0 %v2992
      %v3433 = vpop.f32.mrf.mxu0
      %v3434 = vadd.f32 0.0, %v3433
      %v3435 = vpop.f32.mrf.mxu0
      %v3436 = vadd.f32 0.0, %v3435
      %3437 = vmatmul.bf16.gmra.mxu0 %v2997
      %v3438 = vpop.f32.mrf.mxu0
      %v3439 = vadd.f32 0.0, %v3438
      %v3440 = vpop.f32.mrf.mxu0
      %v3441 = vadd.f32 0.0, %v3440
      %3442 = vmatmul.bf16.gmra.mxu0 %v3002
      %v3443 = vpop.f32.mrf.mxu0
      %v3444 = vadd.f32 0.0, %v3443
      %v3445 = vpop.f32.mrf.mxu0
      %v3446 = vadd.f32 0.0, %v3445
      %3447 = vmatmul.bf16.gmra.mxu0 %v3007
      %v3448 = vpop.f32.mrf.mxu0
      %v3449 = vadd.f32 0.0, %v3448
      %v3450 = vpop.f32.mrf.mxu0
      %v3451 = vadd.f32 0.0, %v3450
      %3452 = vmatmul.bf16.gmra.mxu0 %v3012
      %v3453 = vpop.f32.mrf.mxu0
      %v3454 = vadd.f32 0.0, %v3453
      %v3455 = vpop.f32.mrf.mxu0
      %v3456 = vadd.f32 0.0, %v3455
      %3457 = vmatmul.bf16.gmra.mxu0 %v3017
      %v3458 = vpop.f32.mrf.mxu0
      %v3459 = vadd.f32 0.0, %v3458
      %v3460 = vpop.f32.mrf.mxu0
      %v3461 = vadd.f32 0.0, %v3460
      %3462 = vmatmul.bf16.gmra.mxu0 %v3022
      %v3463 = vpop.f32.mrf.mxu0
      %v3464 = vadd.f32 0.0, %v3463
      %v3465 = vpop.f32.mrf.mxu0
      %v3466 = vadd.f32 0.0, %v3465
      %3467 = vmatmul.bf16.gmra.mxu0 %v3027
      %v3468 = vpop.f32.mrf.mxu0
      %v3469 = vadd.f32 0.0, %v3468
      %v3470 = vpop.f32.mrf.mxu0
      %v3471 = vadd.f32 0.0, %v3470
      %3472 = vmatmul.bf16.gmra.mxu0 %v3032
      %v3473 = vpop.f32.mrf.mxu0
      %v3474 = vadd.f32 0.0, %v3473
      %v3475 = vpop.f32.mrf.mxu0
      %v3476 = vadd.f32 0.0, %v3475
      %3477 = vmatmul.bf16.gmra.mxu0 %v3037
      %v3478 = vpop.f32.mrf.mxu0
      %v3479 = vadd.f32 0.0, %v3478
      %v3480 = vpop.f32.mrf.mxu0
      %v3481 = vadd.f32 0.0, %v3480
      %3482 = vdwg.mxu0
      %3483 = vmatpush.bf16.msra.mxu0 %v3273
      %3484 = vmatpush.bf16.msra.mxu0 %v3272
      %3485 = vmatpush.bf16.msra.mxu0 %v3271
      %3486 = vmatpush.bf16.msra.mxu0 %v3270
      %3487 = vmatpush.bf16.msra.mxu0 %v3269
      %3488 = vmatpush.bf16.msra.mxu0 %v3268
      %3489 = vmatpush.bf16.msra.mxu0 %v3267
      %3490 = vmatpush.bf16.msra.mxu0 %v3266
      %3491 = vmatmul.bf16.gmra.mxu0 %v2953
      %v3492 = vpop.f32.mrf.mxu0
      %v3493 = vadd.f32 %v3394, %v3492
      %v3494 = vpop.f32.mrf.mxu0
      %v3495 = vadd.f32 %v3396, %v3494
      %3496 = vmatmul.bf16.gmra.mxu0 %v2958
      %v3497 = vpop.f32.mrf.mxu0
      %v3498 = vadd.f32 %v3399, %v3497
      %v3499 = vpop.f32.mrf.mxu0
      %v3500 = vadd.f32 %v3401, %v3499
      %3501 = vmatmul.bf16.gmra.mxu0 %v2963
      %v3502 = vpop.f32.mrf.mxu0
      %v3503 = vadd.f32 %v3404, %v3502
      %v3504 = vpop.f32.mrf.mxu0
      %v3505 = vadd.f32 %v3406, %v3504
      %3506 = vmatmul.bf16.gmra.mxu0 %v2968
      %v3507 = vpop.f32.mrf.mxu0
      %v3508 = vadd.f32 %v3409, %v3507
      %v3509 = vpop.f32.mrf.mxu0
      %v3510 = vadd.f32 %v3411, %v3509
      %3511 = vmatmul.bf16.gmra.mxu0 %v2973
      %v3512 = vpop.f32.mrf.mxu0
      %v3513 = vadd.f32 %v3414, %v3512
      %v3514 = vpop.f32.mrf.mxu0
      %v3515 = vadd.f32 %v3416, %v3514
      %3516 = vmatmul.bf16.gmra.mxu0 %v2978
      %v3517 = vpop.f32.mrf.mxu0
      %v3518 = vadd.f32 %v3419, %v3517
      %v3519 = vpop.f32.mrf.mxu0
      %v3520 = vadd.f32 %v3421, %v3519
      %3521 = vmatmul.bf16.gmra.mxu0 %v2983
      %v3522 = vpop.f32.mrf.mxu0
      %v3523 = vadd.f32 %v3424, %v3522
      %v3524 = vpop.f32.mrf.mxu0
      %v3525 = vadd.f32 %v3426, %v3524
      %3526 = vmatmul.bf16.gmra.mxu0 %v2988
      %v3527 = vpop.f32.mrf.mxu0
      %v3528 = vadd.f32 %v3429, %v3527
      %v3529 = vpop.f32.mrf.mxu0
      %v3530 = vadd.f32 %v3431, %v3529
      %3531 = vmatmul.bf16.gmra.mxu0 %v2993
      %v3532 = vpop.f32.mrf.mxu0
      %v3533 = vadd.f32 %v3434, %v3532
      %v3534 = vpop.f32.mrf.mxu0
      %v3535 = vadd.f32 %v3436, %v3534
      %3536 = vmatmul.bf16.gmra.mxu0 %v2998
      %v3537 = vpop.f32.mrf.mxu0
      %v3538 = vadd.f32 %v3439, %v3537
      %v3539 = vpop.f32.mrf.mxu0
      %v3540 = vadd.f32 %v3441, %v3539
      %3541 = vmatmul.bf16.gmra.mxu0 %v3003
      %v3542 = vpop.f32.mrf.mxu0
      %v3543 = vadd.f32 %v3444, %v3542
      %v3544 = vpop.f32.mrf.mxu0
      %v3545 = vadd.f32 %v3446, %v3544
      %3546 = vmatmul.bf16.gmra.mxu0 %v3008
      %v3547 = vpop.f32.mrf.mxu0
      %v3548 = vadd.f32 %v3449, %v3547
      %v3549 = vpop.f32.mrf.mxu0
      %v3550 = vadd.f32 %v3451, %v3549
      %3551 = vmatmul.bf16.gmra.mxu0 %v3013
      %v3552 = vpop.f32.mrf.mxu0
      %v3553 = vadd.f32 %v3454, %v3552
      %v3554 = vpop.f32.mrf.mxu0
      %v3555 = vadd.f32 %v3456, %v3554
      %3556 = vmatmul.bf16.gmra.mxu0 %v3018
      %v3557 = vpop.f32.mrf.mxu0
      %v3558 = vadd.f32 %v3459, %v3557
      %v3559 = vpop.f32.mrf.mxu0
      %v3560 = vadd.f32 %v3461, %v3559
      %3561 = vmatmul.bf16.gmra.mxu0 %v3023
      %v3562 = vpop.f32.mrf.mxu0
      %v3563 = vadd.f32 %v3464, %v3562
      %v3564 = vpop.f32.mrf.mxu0
      %v3565 = vadd.f32 %v3466, %v3564
      %3566 = vmatmul.bf16.gmra.mxu0 %v3028
      %v3567 = vpop.f32.mrf.mxu0
      %v3568 = vadd.f32 %v3469, %v3567
      %v3569 = vpop.f32.mrf.mxu0
      %v3570 = vadd.f32 %v3471, %v3569
      %3571 = vmatmul.bf16.gmra.mxu0 %v3033
      %v3572 = vpop.f32.mrf.mxu0
      %v3573 = vadd.f32 %v3474, %v3572
      %v3574 = vpop.f32.mrf.mxu0
      %v3575 = vadd.f32 %v3476, %v3574
      %3576 = vmatmul.bf16.gmra.mxu0 %v3038
      %v3577 = vpop.f32.mrf.mxu0
      %v3578 = vadd.f32 %v3479, %v3577
      %v3579 = vpop.f32.mrf.mxu0
      %v3580 = vadd.f32 %v3481, %v3579
      %3581 = vdwg.mxu0
      %3582 = vmatpush.bf16.msra.mxu0 %v3281
      %3583 = vmatpush.bf16.msra.mxu0 %v3280
      %3584 = vmatpush.bf16.msra.mxu0 %v3279
      %3585 = vmatpush.bf16.msra.mxu0 %v3278
      %3586 = vmatpush.bf16.msra.mxu0 %v3277
      %3587 = vmatpush.bf16.msra.mxu0 %v3276
      %3588 = vmatpush.bf16.msra.mxu0 %v3275
      %3589 = vmatpush.bf16.msra.mxu0 %v3274
      %3590 = vmatmul.bf16.gmra.mxu0 %v2954
      %v3591 = vpop.f32.mrf.mxu0
      %v3592 = vadd.f32 %v3493, %v3591
      %v3593 = vpop.f32.mrf.mxu0
      %v3594 = vadd.f32 %v3495, %v3593
      %3595 = vmatmul.bf16.gmra.mxu0 %v2959
      %v3596 = vpop.f32.mrf.mxu0
      %v3597 = vadd.f32 %v3498, %v3596
      %v3598 = vpop.f32.mrf.mxu0
      %v3599 = vadd.f32 %v3500, %v3598
      %3600 = vmatmul.bf16.gmra.mxu0 %v2964
      %v3601 = vpop.f32.mrf.mxu0
      %v3602 = vadd.f32 %v3503, %v3601
      %v3603 = vpop.f32.mrf.mxu0
      %v3604 = vadd.f32 %v3505, %v3603
      %3605 = vmatmul.bf16.gmra.mxu0 %v2969
      %v3606 = vpop.f32.mrf.mxu0
      %v3607 = vadd.f32 %v3508, %v3606
      %v3608 = vpop.f32.mrf.mxu0
      %v3609 = vadd.f32 %v3510, %v3608
      %3610 = vmatmul.bf16.gmra.mxu0 %v2974
      %v3611 = vpop.f32.mrf.mxu0
      %v3612 = vadd.f32 %v3513, %v3611
      %v3613 = vpop.f32.mrf.mxu0
      %v3614 = vadd.f32 %v3515, %v3613
      %3615 = vmatmul.bf16.gmra.mxu0 %v2979
      %v3616 = vpop.f32.mrf.mxu0
      %v3617 = vadd.f32 %v3518, %v3616
      %v3618 = vpop.f32.mrf.mxu0
      %v3619 = vadd.f32 %v3520, %v3618
      %3620 = vmatmul.bf16.gmra.mxu0 %v2984
      %v3621 = vpop.f32.mrf.mxu0
      %v3622 = vadd.f32 %v3523, %v3621
      %v3623 = vpop.f32.mrf.mxu0
      %v3624 = vadd.f32 %v3525, %v3623
      %3625 = vmatmul.bf16.gmra.mxu0 %v2989
      %v3626 = vpop.f32.mrf.mxu0
      %v3627 = vadd.f32 %v3528, %v3626
      %v3628 = vpop.f32.mrf.mxu0
      %v3629 = vadd.f32 %v3530, %v3628
      %3630 = vmatmul.bf16.gmra.mxu0 %v2994
      %v3631 = vpop.f32.mrf.mxu0
      %v3632 = vadd.f32 %v3533, %v3631
      %v3633 = vpop.f32.mrf.mxu0
      %v3634 = vadd.f32 %v3535, %v3633
      %3635 = vmatmul.bf16.gmra.mxu0 %v2999
      %v3636 = vpop.f32.mrf.mxu0
      %v3637 = vadd.f32 %v3538, %v3636
      %v3638 = vpop.f32.mrf.mxu0
      %v3639 = vadd.f32 %v3540, %v3638
      %3640 = vmatmul.bf16.gmra.mxu0 %v3004
      %v3641 = vpop.f32.mrf.mxu0
      %v3642 = vadd.f32 %v3543, %v3641
      %v3643 = vpop.f32.mrf.mxu0
      %v3644 = vadd.f32 %v3545, %v3643
      %3645 = vmatmul.bf16.gmra.mxu0 %v3009
      %v3646 = vpop.f32.mrf.mxu0
      %v3647 = vadd.f32 %v3548, %v3646
      %v3648 = vpop.f32.mrf.mxu0
      %v3649 = vadd.f32 %v3550, %v3648
      %3650 = vmatmul.bf16.gmra.mxu0 %v3014
      %v3651 = vpop.f32.mrf.mxu0
      %v3652 = vadd.f32 %v3553, %v3651
      %v3653 = vpop.f32.mrf.mxu0
      %v3654 = vadd.f32 %v3555, %v3653
      %3655 = vmatmul.bf16.gmra.mxu0 %v3019
      %v3656 = vpop.f32.mrf.mxu0
      %v3657 = vadd.f32 %v3558, %v3656
      %v3658 = vpop.f32.mrf.mxu0
      %v3659 = vadd.f32 %v3560, %v3658
      %3660 = vmatmul.bf16.gmra.mxu0 %v3024
      %v3661 = vpop.f32.mrf.mxu0
      %v3662 = vadd.f32 %v3563, %v3661
      %v3663 = vpop.f32.mrf.mxu0
      %v3664 = vadd.f32 %v3565, %v3663
      %3665 = vmatmul.bf16.gmra.mxu0 %v3029
      %v3666 = vpop.f32.mrf.mxu0
      %v3667 = vadd.f32 %v3568, %v3666
      %v3668 = vpop.f32.mrf.mxu0
      %v3669 = vadd.f32 %v3570, %v3668
      %3670 = vmatmul.bf16.gmra.mxu0 %v3034
      %v3671 = vpop.f32.mrf.mxu0
      %v3672 = vadd.f32 %v3573, %v3671
      %v3673 = vpop.f32.mrf.mxu0
      %v3674 = vadd.f32 %v3575, %v3673
      %3675 = vmatmul.bf16.gmra.mxu0 %v3039
      %v3676 = vpop.f32.mrf.mxu0
      %v3677 = vadd.f32 %v3578, %v3676
      %v3678 = vpop.f32.mrf.mxu0
      %v3679 = vadd.f32 %v3580, %v3678
      %3680 = vdwg.mxu0
      %3681 = vmatpush.bf16.msra.mxu0 %v3289
      %3682 = vmatpush.bf16.msra.mxu0 %v3288
      %3683 = vmatpush.bf16.msra.mxu0 %v3287
      %3684 = vmatpush.bf16.msra.mxu0 %v3286
      %3685 = vmatpush.bf16.msra.mxu0 %v3285
      %3686 = vmatpush.bf16.msra.mxu0 %v3284
      %3687 = vmatpush.bf16.msra.mxu0 %v3283
      %3688 = vmatpush.bf16.msra.mxu0 %v3282
      %3689 = vmatmul.bf16.gmra.mxu0 %v2955
      %v3690 = vpop.f32.mrf.mxu0
      %v3691 = vadd.f32 %v3592, %v3690
      %v3692 = vpop.f32.mrf.mxu0
      %v3693 = vadd.f32 %v3594, %v3692
      %3694 = vmatmul.bf16.gmra.mxu0 %v2960
      %v3695 = vpop.f32.mrf.mxu0
      %v3696 = vadd.f32 %v3597, %v3695
      %v3697 = vpop.f32.mrf.mxu0
      %v3698 = vadd.f32 %v3599, %v3697
      %3699 = vmatmul.bf16.gmra.mxu0 %v2965
      %v3700 = vpop.f32.mrf.mxu0
      %v3701 = vadd.f32 %v3602, %v3700
      %v3702 = vpop.f32.mrf.mxu0
      %v3703 = vadd.f32 %v3604, %v3702
      %3704 = vmatmul.bf16.gmra.mxu0 %v2970
      %v3705 = vpop.f32.mrf.mxu0
      %v3706 = vadd.f32 %v3607, %v3705
      %v3707 = vpop.f32.mrf.mxu0
      %v3708 = vadd.f32 %v3609, %v3707
      %3709 = vmatmul.bf16.gmra.mxu0 %v2975
      %v3710 = vpop.f32.mrf.mxu0
      %v3711 = vadd.f32 %v3612, %v3710
      %v3712 = vpop.f32.mrf.mxu0
      %v3713 = vadd.f32 %v3614, %v3712
      %3714 = vmatmul.bf16.gmra.mxu0 %v2980
      %v3715 = vpop.f32.mrf.mxu0
      %v3716 = vadd.f32 %v3617, %v3715
      %v3717 = vpop.f32.mrf.mxu0
      %v3718 = vadd.f32 %v3619, %v3717
      %3719 = vmatmul.bf16.gmra.mxu0 %v2985
      %v3720 = vpop.f32.mrf.mxu0
      %v3721 = vadd.f32 %v3622, %v3720
      %v3722 = vpop.f32.mrf.mxu0
      %v3723 = vadd.f32 %v3624, %v3722
      %3724 = vmatmul.bf16.gmra.mxu0 %v2990
      %v3725 = vpop.f32.mrf.mxu0
      %v3726 = vadd.f32 %v3627, %v3725
      %v3727 = vpop.f32.mrf.mxu0
      %v3728 = vadd.f32 %v3629, %v3727
      %3729 = vmatmul.bf16.gmra.mxu0 %v2995
      %v3730 = vpop.f32.mrf.mxu0
      %v3731 = vadd.f32 %v3632, %v3730
      %v3732 = vpop.f32.mrf.mxu0
      %v3733 = vadd.f32 %v3634, %v3732
      %3734 = vmatmul.bf16.gmra.mxu0 %v3000
      %v3735 = vpop.f32.mrf.mxu0
      %v3736 = vadd.f32 %v3637, %v3735
      %v3737 = vpop.f32.mrf.mxu0
      %v3738 = vadd.f32 %v3639, %v3737
      %3739 = vmatmul.bf16.gmra.mxu0 %v3005
      %v3740 = vpop.f32.mrf.mxu0
      %v3741 = vadd.f32 %v3642, %v3740
      %v3742 = vpop.f32.mrf.mxu0
      %v3743 = vadd.f32 %v3644, %v3742
      %3744 = vmatmul.bf16.gmra.mxu0 %v3010
      %v3745 = vpop.f32.mrf.mxu0
      %v3746 = vadd.f32 %v3647, %v3745
      %v3747 = vpop.f32.mrf.mxu0
      %v3748 = vadd.f32 %v3649, %v3747
      %3749 = vmatmul.bf16.gmra.mxu0 %v3015
      %v3750 = vpop.f32.mrf.mxu0
      %v3751 = vadd.f32 %v3652, %v3750
      %v3752 = vpop.f32.mrf.mxu0
      %v3753 = vadd.f32 %v3654, %v3752
      %3754 = vmatmul.bf16.gmra.mxu0 %v3020
      %v3755 = vpop.f32.mrf.mxu0
      %v3756 = vadd.f32 %v3657, %v3755
      %v3757 = vpop.f32.mrf.mxu0
      %v3758 = vadd.f32 %v3659, %v3757
      %3759 = vmatmul.bf16.gmra.mxu0 %v3025
      %v3760 = vpop.f32.mrf.mxu0
      %v3761 = vadd.f32 %v3662, %v3760
      %v3762 = vpop.f32.mrf.mxu0
      %v3763 = vadd.f32 %v3664, %v3762
      %3764 = vmatmul.bf16.gmra.mxu0 %v3030
      %v3765 = vpop.f32.mrf.mxu0
      %v3766 = vadd.f32 %v3667, %v3765
      %v3767 = vpop.f32.mrf.mxu0
      %v3768 = vadd.f32 %v3669, %v3767
      %3769 = vmatmul.bf16.gmra.mxu0 %v3035
      %v3770 = vpop.f32.mrf.mxu0
      %v3771 = vadd.f32 %v3672, %v3770
      %v3772 = vpop.f32.mrf.mxu0
      %v3773 = vadd.f32 %v3674, %v3772
      %3774 = vmatmul.bf16.gmra.mxu0 %v3040
      %v3775 = vpop.f32.mrf.mxu0
      %v3776 = vadd.f32 %v3677, %v3775
      %v3777 = vpop.f32.mrf.mxu0
      %v3778 = vadd.f32 %v3679, %v3777
      %3779 = vdwg.mxu0
      %3780 = vmatpush.bf16.msra.mxu0 0
      %3781 = vmatpush.bf16.msra.mxu0 0
      %3782 = vmatpush.bf16.msra.mxu0 0
      %3783 = vmatpush.bf16.msra.mxu0 0
      %3784 = vmatpush.bf16.msra.mxu0 %v3293
      %3785 = vmatpush.bf16.msra.mxu0 %v3292
      %3786 = vmatpush.bf16.msra.mxu0 %v3291
      %3787 = vmatpush.bf16.msra.mxu0 %v3290
      %3788 = vmatmul.bf16.gmra.mxu0 %v3331
      %v3789 = vpop.f32.mrf.mxu0
      %v3790 = vadd.f32 %v3691, %v3789
      %v3791 = vpop.f32.mrf.mxu0
      %v3792 = vadd.f32 %v3693, %v3791
      %3793 = vmatmul.bf16.gmra.mxu0 %v3334
      %v3794 = vpop.f32.mrf.mxu0
      %v3795 = vadd.f32 %v3696, %v3794
      %v3796 = vpop.f32.mrf.mxu0
      %v3797 = vadd.f32 %v3698, %v3796
      %3798 = vmatmul.bf16.gmra.mxu0 %v3337
      %v3799 = vpop.f32.mrf.mxu0
      %v3800 = vadd.f32 %v3701, %v3799
      %v3801 = vpop.f32.mrf.mxu0
      %v3802 = vadd.f32 %v3703, %v3801
      %3803 = vmatmul.bf16.gmra.mxu0 %v3340
      %v3804 = vpop.f32.mrf.mxu0
      %v3805 = vadd.f32 %v3706, %v3804
      %v3806 = vpop.f32.mrf.mxu0
      %v3807 = vadd.f32 %v3708, %v3806
      %3808 = vmatmul.bf16.gmra.mxu0 %v3343
      %v3809 = vpop.f32.mrf.mxu0
      %v3810 = vadd.f32 %v3711, %v3809
      %v3811 = vpop.f32.mrf.mxu0
      %v3812 = vadd.f32 %v3713, %v3811
      %3813 = vmatmul.bf16.gmra.mxu0 %v3346
      %v3814 = vpop.f32.mrf.mxu0
      %v3815 = vadd.f32 %v3716, %v3814
      %v3816 = vpop.f32.mrf.mxu0
      %v3817 = vadd.f32 %v3718, %v3816
      %3818 = vmatmul.bf16.gmra.mxu0 %v3349
      %v3819 = vpop.f32.mrf.mxu0
      %v3820 = vadd.f32 %v3721, %v3819
      %v3821 = vpop.f32.mrf.mxu0
      %v3822 = vadd.f32 %v3723, %v3821
      %3823 = vmatmul.bf16.gmra.mxu0 %v3352
      %v3824 = vpop.f32.mrf.mxu0
      %v3825 = vadd.f32 %v3726, %v3824
      %v3826 = vpop.f32.mrf.mxu0
      %v3827 = vadd.f32 %v3728, %v3826
      %3828 = vmatmul.bf16.gmra.mxu0 %v3355
      %v3829 = vpop.f32.mrf.mxu0
      %v3830 = vadd.f32 %v3731, %v3829
      %v3831 = vpop.f32.mrf.mxu0
      %v3832 = vadd.f32 %v3733, %v3831
      %3833 = vmatmul.bf16.gmra.mxu0 %v3358
      %v3834 = vpop.f32.mrf.mxu0
      %v3835 = vadd.f32 %v3736, %v3834
      %v3836 = vpop.f32.mrf.mxu0
      %v3837 = vadd.f32 %v3738, %v3836
      %3838 = vmatmul.bf16.gmra.mxu0 %v3361
      %v3839 = vpop.f32.mrf.mxu0
      %v3840 = vadd.f32 %v3741, %v3839
      %v3841 = vpop.f32.mrf.mxu0
      %v3842 = vadd.f32 %v3743, %v3841
      %3843 = vmatmul.bf16.gmra.mxu0 %v3364
      %v3844 = vpop.f32.mrf.mxu0
      %v3845 = vadd.f32 %v3746, %v3844
      %v3846 = vpop.f32.mrf.mxu0
      %v3847 = vadd.f32 %v3748, %v3846
      %3848 = vmatmul.bf16.gmra.mxu0 %v3367
      %v3849 = vpop.f32.mrf.mxu0
      %v3850 = vadd.f32 %v3751, %v3849
      %v3851 = vpop.f32.mrf.mxu0
      %v3852 = vadd.f32 %v3753, %v3851
      %3853 = vmatmul.bf16.gmra.mxu0 %v3370
      %v3854 = vpop.f32.mrf.mxu0
      %v3855 = vadd.f32 %v3756, %v3854
      %v3856 = vpop.f32.mrf.mxu0
      %v3857 = vadd.f32 %v3758, %v3856
      %3858 = vmatmul.bf16.gmra.mxu0 %v3373
      %v3859 = vpop.f32.mrf.mxu0
      %v3860 = vadd.f32 %v3761, %v3859
      %v3861 = vpop.f32.mrf.mxu0
      %v3862 = vadd.f32 %v3763, %v3861
      %3863 = vmatmul.bf16.gmra.mxu0 %v3376
      %v3864 = vpop.f32.mrf.mxu0
      %v3865 = vadd.f32 %v3766, %v3864
      %v3866 = vpop.f32.mrf.mxu0
      %v3867 = vadd.f32 %v3768, %v3866
      %3868 = vmatmul.bf16.gmra.mxu0 %v3379
      %v3869 = vpop.f32.mrf.mxu0
      %v3870 = vadd.f32 %v3771, %v3869
      %v3871 = vpop.f32.mrf.mxu0
      %v3872 = vadd.f32 %v3773, %v3871
      %3873 = vmatmul.bf16.gmra.mxu0 %v3382
      %v3874 = vpop.f32.mrf.mxu0
      %v3875 = vadd.f32 %v3776, %v3874
      %v3876 = vpop.f32.mrf.mxu0
      %v3877 = vadd.f32 %v3778, %v3876
      %3878 = vdwg.mxu0
      %s3879 = scalar_lea.vmem %s5, 1
      %v3880 = vld [vmem:[%s3879] sm:$0x1]
      %v3882 = vperm.slane %v3880, 0
      %v3884 = vmul.f32 %v3790, %v3882
      %v3885 = vmul.f32 %v3792, %v3882
      %v3886 = vmul.f32 %v3795, %v3882
      %v3887 = vmul.f32 %v3797, %v3882
      %v3888 = vmul.f32 %v3800, %v3882
      %v3889 = vmul.f32 %v3802, %v3882
      %v3890 = vmul.f32 %v3805, %v3882
      %v3891 = vmul.f32 %v3807, %v3882
      %v3892 = vmul.f32 %v3810, %v3882
      %v3893 = vmul.f32 %v3812, %v3882
      %v3894 = vmul.f32 %v3815, %v3882
      %v3895 = vmul.f32 %v3817, %v3882
      %v3896 = vmul.f32 %v3820, %v3882
      %v3897 = vmul.f32 %v3822, %v3882
      %v3898 = vmul.f32 %v3825, %v3882
      %v3899 = vmul.f32 %v3827, %v3882
      %v3900 = vmul.f32 %v3830, %v3882
      %v3901 = vmul.f32 %v3832, %v3882
      %v3902 = vmul.f32 %v3835, %v3882
      %v3903 = vmul.f32 %v3837, %v3882
      %v3904 = vmul.f32 %v3840, %v3882
      %v3905 = vmul.f32 %v3842, %v3882
      %v3906 = vmul.f32 %v3845, %v3882
      %v3907 = vmul.f32 %v3847, %v3882
      %v3908 = vmul.f32 %v3850, %v3882
      %v3909 = vmul.f32 %v3852, %v3882
      %v3910 = vmul.f32 %v3855, %v3882
      %v3911 = vmul.f32 %v3857, %v3882
      %v3912 = vmul.f32 %v3860, %v3882
      %v3913 = vmul.f32 %v3862, %v3882
      %v3914 = vmul.f32 %v3865, %v3882
      %v3915 = vmul.f32 %v3867, %v3882
      %v3916 = vmul.f32 %v3870, %v3882
      %v3917 = vmul.f32 %v3872, %v3882
      %v3918 = vmul.f32 %v3875, %v3882
      %v3919 = vmul.f32 %v3877, %v3882
      %s3920 = scalar_lea.vmem %s6, 1
      %v3921 = vld [vmem:[%s3920] sm:$0x1]
      %v3923 = vperm.slane %v3921, 0
      %v3925 = vadd.f32 %v3884, %v3923
      %v3926 = vadd.f32 %v3885, %v3923
      %v3927 = vadd.f32 %v3886, %v3923
      %v3928 = vadd.f32 %v3887, %v3923
      %v3929 = vadd.f32 %v3888, %v3923
      %v3930 = vadd.f32 %v3889, %v3923
      %v3931 = vadd.f32 %v3890, %v3923
      %v3932 = vadd.f32 %v3891, %v3923
      %v3933 = vadd.f32 %v3892, %v3923
      %v3934 = vadd.f32 %v3893, %v3923
      %v3935 = vadd.f32 %v3894, %v3923
      %v3936 = vadd.f32 %v3895, %v3923
      %v3937 = vadd.f32 %v3896, %v3923
      %v3938 = vadd.f32 %v3897, %v3923
      %v3939 = vadd.f32 %v3898, %v3923
      %v3940 = vadd.f32 %v3899, %v3923
      %v3941 = vadd.f32 %v3900, %v3923
      %v3942 = vadd.f32 %v3901, %v3923
      %v3943 = vadd.f32 %v3902, %v3923
      %v3944 = vadd.f32 %v3903, %v3923
      %v3945 = vadd.f32 %v3904, %v3923
      %v3946 = vadd.f32 %v3905, %v3923
      %v3947 = vadd.f32 %v3906, %v3923
      %v3948 = vadd.f32 %v3907, %v3923
      %v3949 = vadd.f32 %v3908, %v3923
      %v3950 = vadd.f32 %v3909, %v3923
      %v3951 = vadd.f32 %v3910, %v3923
      %v3952 = vadd.f32 %v3911, %v3923
      %v3953 = vadd.f32 %v3912, %v3923
      %v3954 = vadd.f32 %v3913, %v3923
      %v3955 = vadd.f32 %v3914, %v3923
      %v3956 = vadd.f32 %v3915, %v3923
      %v3957 = vadd.f32 %v3916, %v3923
      %v3958 = vadd.f32 %v3917, %v3923
      %v3959 = vadd.f32 %v3918, %v3923
      %v3960 = vadd.f32 %v3919, %v3923
      %v3961 = vmax.f32 %v3925, 0.0
      %v3962 = vmax.f32 %v3926, 0.0
      %v3963 = vmax.f32 %v3927, 0.0
      %v3964 = vmax.f32 %v3928, 0.0
      %v3965 = vmax.f32 %v3929, 0.0
      %v3966 = vmax.f32 %v3930, 0.0
      %v3967 = vmax.f32 %v3931, 0.0
      %v3968 = vmax.f32 %v3932, 0.0
      %v3969 = vmax.f32 %v3933, 0.0
      %v3970 = vmax.f32 %v3934, 0.0
      %v3971 = vmax.f32 %v3935, 0.0
      %v3972 = vmax.f32 %v3936, 0.0
      %v3973 = vmax.f32 %v3937, 0.0
      %v3974 = vmax.f32 %v3938, 0.0
      %v3975 = vmax.f32 %v3939, 0.0
      %v3976 = vmax.f32 %v3940, 0.0
      %v3977 = vmax.f32 %v3941, 0.0
      %v3978 = vmax.f32 %v3942, 0.0
      %v3979 = vmax.f32 %v3943, 0.0
      %v3980 = vmax.f32 %v3944, 0.0
      %v3981 = vmax.f32 %v3945, 0.0
      %v3982 = vmax.f32 %v3946, 0.0
      %v3983 = vmax.f32 %v3947, 0.0
      %v3984 = vmax.f32 %v3948, 0.0
      %v3985 = vmax.f32 %v3949, 0.0
      %v3986 = vmax.f32 %v3950, 0.0
      %v3987 = vmax.f32 %v3951, 0.0
      %v3988 = vmax.f32 %v3952, 0.0
      %v3989 = vmax.f32 %v3953, 0.0
      %v3990 = vmax.f32 %v3954, 0.0
      %v3991 = vmax.f32 %v3955, 0.0
      %v3992 = vmax.f32 %v3956, 0.0
      %v3993 = vmax.f32 %v3957, 0.0
      %v3994 = vmax.f32 %v3958, 0.0
      %v3995 = vmax.f32 %v3959, 0.0
      %v3996 = vmax.f32 %v3960, 0.0
      %v3997 = vsel %vm1575, %v3961, 0.0
      %v3998 = vsel %vm1576, %v3962, 0.0
      %v3999 = vsel %vm1577, %v3963, 0.0
      %v4000 = vsel %vm1578, %v3964, 0.0
      %v4001 = vsel %vm1579, %v3965, 0.0
      %v4002 = vsel %vm1580, %v3966, 0.0
      %v4003 = vsel %vm1581, %v3967, 0.0
      %v4004 = vsel %vm1582, %v3968, 0.0
      %v4005 = vsel %vm1583, %v3969, 0.0
      %v4006 = vsel %vm1584, %v3970, 0.0
      %v4007 = vsel %vm1585, %v3971, 0.0
      %v4008 = vsel %vm1586, %v3972, 0.0
      %v4009 = vsel %vm1587, %v3973, 0.0
      %v4010 = vsel %vm1588, %v3974, 0.0
      %v4011 = vsel %vm1589, %v3975, 0.0
      %v4012 = vsel %vm1590, %v3976, 0.0
      %v4013 = vsel %vm1591, %v3977, 0.0
      %v4014 = vsel %vm1592, %v3978, 0.0
      %v4015 = vsel %vm1593, %v3979, 0.0
      %v4016 = vsel %vm1594, %v3980, 0.0
      %v4017 = vsel %vm1595, %v3981, 0.0
      %v4018 = vsel %vm1596, %v3982, 0.0
      %v4019 = vsel %vm1597, %v3983, 0.0
      %v4020 = vsel %vm1598, %v3984, 0.0
      %v4021 = vsel %vm1599, %v3985, 0.0
      %v4022 = vsel %vm1600, %v3986, 0.0
      %v4023 = vsel %vm1601, %v3987, 0.0
      %v4024 = vsel %vm1602, %v3988, 0.0
      %v4025 = vsel %vm1603, %v3989, 0.0
      %v4026 = vsel %vm1604, %v3990, 0.0
      %v4027 = vsel %vm1605, %v3991, 0.0
      %v4028 = vsel %vm1606, %v3992, 0.0
      %v4029 = vsel %vm1607, %v3993, 0.0
      %v4030 = vsel %vm1608, %v3994, 0.0
      %v4031 = vsel %vm1609, %v3995, 0.0
      %v4032 = vsel %vm1610, %v3996, 0.0
      %4033 = vst.msk [vmem:[#allocation2 + $0x18] sm:$0xff] %vm307, %v3997
      %4034 = vst.msk [vmem:[#allocation2 + $0x20] sm:$0xff] %vm307, %v3998
      %4035 = vst.msk [vmem:[#allocation2 + $0x28] sm:$0xff] %vm307, %v3999
      %4036 = vst.msk [vmem:[#allocation2 + $0x30] sm:$0xff] %vm307, %v4000
      %4037 = vst.msk [vmem:[#allocation2 + $0x38] sm:$0xff] %vm307, %v4001
      %4038 = vst.msk [vmem:[#allocation2 + $0x40] sm:$0xff] %vm307, %v4002
      %4039 = vst.msk [vmem:[#allocation2 + $0x48] sm:$0xff] %vm307, %v4003
      %4040 = vst.msk [vmem:[#allocation2 + $0x50] sm:$0xff] %vm307, %v4004
      %4041 = vst.msk [vmem:[#allocation2 + $0x58] sm:$0xff] %vm307, %v4005
      %4042 = vst.msk [vmem:[#allocation2 + $0x60] sm:$0xff] %vm307, %v4006
      %4043 = vst.msk [vmem:[#allocation2 + $0x68] sm:$0xff] %vm307, %v4007
      %4044 = vst.msk [vmem:[#allocation2 + $0x70] sm:$0xff] %vm307, %v4008
      %4045 = vst.msk [vmem:[#allocation2 + $0x78] sm:$0xff] %vm307, %v4009
      %4046 = vst.msk [vmem:[#allocation2 + $0x80] sm:$0xff] %vm307, %v4010
      %4047 = vst.msk [vmem:[#allocation2 + $0x88] sm:$0xff] %vm307, %v4011
      %4048 = vst.msk [vmem:[#allocation2 + $0x90] sm:$0xff] %vm307, %v4012
      %4049 = vst.msk [vmem:[#allocation2 + $0x98] sm:$0xff] %vm307, %v4013
      %4050 = vst.msk [vmem:[#allocation2 + $0xa0] sm:$0xff] %vm307, %v4014
      %4051 = vst.msk [vmem:[#allocation2 + $0xa8] sm:$0xff] %vm307, %v4015
      %4052 = vst.msk [vmem:[#allocation2 + $0xb0] sm:$0xff] %vm307, %v4016
      %4053 = vst.msk [vmem:[#allocation2 + $0xb8] sm:$0xff] %vm307, %v4017
      %4054 = vst.msk [vmem:[#allocation2 + $0xc0] sm:$0xff] %vm307, %v4018
      %4055 = vst.msk [vmem:[#allocation2 + $0xc8] sm:$0xff] %vm307, %v4019
      %4056 = vst.msk [vmem:[#allocation2 + $0xd0] sm:$0xff] %vm307, %v4020
      %4057 = vst.msk [vmem:[#allocation2 + $0xd8] sm:$0xff] %vm307, %v4021
      %4058 = vst.msk [vmem:[#allocation2 + $0xe0] sm:$0xff] %vm307, %v4022
      %4059 = vst.msk [vmem:[#allocation2 + $0xe8] sm:$0xff] %vm307, %v4023
      %4060 = vst.msk [vmem:[#allocation2 + $0xf0] sm:$0xff] %vm307, %v4024
      %4061 = vst.msk [vmem:[#allocation2 + $0xf8] sm:$0xff] %vm307, %v4025
      %4062 = vst.msk [vmem:[#allocation2 + $0x100] sm:$0xff] %vm307, %v4026
      %4063 = vst.msk [vmem:[#allocation2 + $0x108] sm:$0xff] %vm307, %v4027
      %4064 = vst.msk [vmem:[#allocation2 + $0x110] sm:$0xff] %vm307, %v4028
      %4065 = vst.msk [vmem:[#allocation2 + $0x118] sm:$0xff] %vm307, %v4029
      %4066 = vst.msk [vmem:[#allocation2 + $0x120] sm:$0xff] %vm307, %v4030
      %4067 = vst.msk [vmem:[#allocation2 + $0x128] sm:$0xff] %vm307, %v4031
      %4068 = vst.msk [vmem:[#allocation2 + $0x130] sm:$0xff] %vm307, %v4032
      %v4069 = vld [vmem:[#allocation2 + $0x5] sm:$0xff]
      %v4070 = vld [vmem:[#allocation2 + $0xd] sm:$0xff]
      %v4071 = vld [vmem:[#allocation2 + $0x15] sm:$0xff]
      %v4072 = vld [vmem:[#allocation2 + $0x1d] sm:$0xff]
      %v4073 = vld [vmem:[#allocation2 + $0x25] sm:$0xff]
      %v4074 = vld [vmem:[#allocation2 + $0x2d] sm:$0xff]
      %v4075 = vld [vmem:[#allocation2 + $0x35] sm:$0xff]
      %v4076 = vld [vmem:[#allocation2 + $0x3d] sm:$0xff]
      %v4077 = vld [vmem:[#allocation2 + $0x45] sm:$0xff]
      %v4078 = vld [vmem:[#allocation2 + $0x4d] sm:$0xff]
      %v4079 = vld [vmem:[#allocation2 + $0x55] sm:$0xff]
      %v4080 = vld [vmem:[#allocation2 + $0x5d] sm:$0xff]
      %v4081 = vld [vmem:[#allocation2 + $0x65] sm:$0xff]
      %v4082 = vld [vmem:[#allocation2 + $0x6d] sm:$0xff]
      %v4083 = vld [vmem:[#allocation2 + $0x75] sm:$0xff]
      %v4084 = vld [vmem:[#allocation2 + $0x7d] sm:$0xff]
      %v4085 = vld [vmem:[#allocation2 + $0x85] sm:$0xff]
      %v4086 = vld [vmem:[#allocation2 + $0x8d] sm:$0xff]
      %v4087 = vld [vmem:[#allocation2 + $0x95] sm:$0xff]
      %v4088 = vld [vmem:[#allocation2 + $0x9d] sm:$0xff]
      %v4089 = vld [vmem:[#allocation2 + $0xa5] sm:$0xff]
      %v4090 = vld [vmem:[#allocation2 + $0xad] sm:$0xff]
      %v4091 = vld [vmem:[#allocation2 + $0xb5] sm:$0xff]
      %v4092 = vld [vmem:[#allocation2 + $0xbd] sm:$0xff]
      %v4093 = vld [vmem:[#allocation2 + $0xc5] sm:$0xff]
      %v4094 = vld [vmem:[#allocation2 + $0xcd] sm:$0xff]
      %v4095 = vld [vmem:[#allocation2 + $0xd5] sm:$0xff]
      %v4096 = vld [vmem:[#allocation2 + $0xdd] sm:$0xff]
      %v4097 = vld [vmem:[#allocation2 + $0xe5] sm:$0xff]
      %v4098 = vld [vmem:[#allocation2 + $0xed] sm:$0xff]
      %v4099 = vld [vmem:[#allocation2 + $0xf5] sm:$0xff]
      %v4100 = vld [vmem:[#allocation2 + $0xfd] sm:$0xff]
      %v4101 = vld [vmem:[#allocation2 + $0x105] sm:$0xff]
      %v4102 = vld [vmem:[#allocation2 + $0x10d] sm:$0xff]
      %v4103 = vld [vmem:[#allocation2 + $0x115] sm:$0xff]
      %v4104 = vld [vmem:[#allocation2 + $0x11d] sm:$0xff]
      %v4105 = vld [vmem:[#allocation2 + $0x6] sm:$0xff]
      %v4106 = vld [vmem:[#allocation2 + $0xe] sm:$0xff]
      %v4107 = vld [vmem:[#allocation2 + $0x16] sm:$0xff]
      %v4108 = vld [vmem:[#allocation2 + $0x1e] sm:$0xff]
      %v4109 = vld [vmem:[#allocation2 + $0x26] sm:$0xff]
      %v4110 = vld [vmem:[#allocation2 + $0x2e] sm:$0xff]
      %v4111 = vld [vmem:[#allocation2 + $0x36] sm:$0xff]
      %v4112 = vld [vmem:[#allocation2 + $0x3e] sm:$0xff]
      %v4113 = vld [vmem:[#allocation2 + $0x46] sm:$0xff]
      %v4114 = vld [vmem:[#allocation2 + $0x4e] sm:$0xff]
      %v4115 = vld [vmem:[#allocation2 + $0x56] sm:$0xff]
      %v4116 = vld [vmem:[#allocation2 + $0x5e] sm:$0xff]
      %v4117 = vld [vmem:[#allocation2 + $0x66] sm:$0xff]
      %v4118 = vld [vmem:[#allocation2 + $0x6e] sm:$0xff]
      %v4119 = vld [vmem:[#allocation2 + $0x76] sm:$0xff]
      %v4120 = vld [vmem:[#allocation2 + $0x7e] sm:$0xff]
      %v4121 = vld [vmem:[#allocation2 + $0x86] sm:$0xff]
      %v4122 = vld [vmem:[#allocation2 + $0x8e] sm:$0xff]
      %v4123 = vld [vmem:[#allocation2 + $0x96] sm:$0xff]
      %v4124 = vld [vmem:[#allocation2 + $0x9e] sm:$0xff]
      %v4125 = vld [vmem:[#allocation2 + $0xa6] sm:$0xff]
      %v4126 = vld [vmem:[#allocation2 + $0xae] sm:$0xff]
      %v4127 = vld [vmem:[#allocation2 + $0xb6] sm:$0xff]
      %v4128 = vld [vmem:[#allocation2 + $0xbe] sm:$0xff]
      %v4129 = vld [vmem:[#allocation2 + $0xc6] sm:$0xff]
      %v4130 = vld [vmem:[#allocation2 + $0xce] sm:$0xff]
      %v4131 = vld [vmem:[#allocation2 + $0xd6] sm:$0xff]
      %v4132 = vld [vmem:[#allocation2 + $0xde] sm:$0xff]
      %v4133 = vld [vmem:[#allocation2 + $0xe6] sm:$0xff]
      %v4134 = vld [vmem:[#allocation2 + $0xee] sm:$0xff]
      %v4135 = vld [vmem:[#allocation2 + $0xf6] sm:$0xff]
      %v4136 = vld [vmem:[#allocation2 + $0xfe] sm:$0xff]
      %v4137 = vld [vmem:[#allocation2 + $0x106] sm:$0xff]
      %v4138 = vld [vmem:[#allocation2 + $0x10e] sm:$0xff]
      %v4139 = vld [vmem:[#allocation2 + $0x116] sm:$0xff]
      %v4140 = vld [vmem:[#allocation2 + $0x11e] sm:$0xff]
      %v4141 = vld [vmem:[#allocation2 + $0x7] sm:$0xff]
      %v4142 = vld [vmem:[#allocation2 + $0xf] sm:$0xff]
      %v4143 = vld [vmem:[#allocation2 + $0x17] sm:$0xff]
      %v4144 = vld [vmem:[#allocation2 + $0x1f] sm:$0xff]
      %v4145 = vld [vmem:[#allocation2 + $0x27] sm:$0xff]
      %v4146 = vld [vmem:[#allocation2 + $0x2f] sm:$0xff]
      %v4147 = vld [vmem:[#allocation2 + $0x37] sm:$0xff]
      %v4148 = vld [vmem:[#allocation2 + $0x3f] sm:$0xff]
      %v4149 = vld [vmem:[#allocation2 + $0x47] sm:$0xff]
      %v4150 = vld [vmem:[#allocation2 + $0x4f] sm:$0xff]
      %v4151 = vld [vmem:[#allocation2 + $0x57] sm:$0xff]
      %v4152 = vld [vmem:[#allocation2 + $0x5f] sm:$0xff]
      %v4153 = vld [vmem:[#allocation2 + $0x67] sm:$0xff]
      %v4154 = vld [vmem:[#allocation2 + $0x6f] sm:$0xff]
      %v4155 = vld [vmem:[#allocation2 + $0x77] sm:$0xff]
      %v4156 = vld [vmem:[#allocation2 + $0x7f] sm:$0xff]
      %v4157 = vld [vmem:[#allocation2 + $0x87] sm:$0xff]
      %v4158 = vld [vmem:[#allocation2 + $0x8f] sm:$0xff]
      %v4159 = vld [vmem:[#allocation2 + $0x97] sm:$0xff]
      %v4160 = vld [vmem:[#allocation2 + $0x9f] sm:$0xff]
      %v4161 = vld [vmem:[#allocation2 + $0xa7] sm:$0xff]
      %v4162 = vld [vmem:[#allocation2 + $0xaf] sm:$0xff]
      %v4163 = vld [vmem:[#allocation2 + $0xb7] sm:$0xff]
      %v4164 = vld [vmem:[#allocation2 + $0xbf] sm:$0xff]
      %v4165 = vld [vmem:[#allocation2 + $0xc7] sm:$0xff]
      %v4166 = vld [vmem:[#allocation2 + $0xcf] sm:$0xff]
      %v4167 = vld [vmem:[#allocation2 + $0xd7] sm:$0xff]
      %v4168 = vld [vmem:[#allocation2 + $0xdf] sm:$0xff]
      %v4169 = vld [vmem:[#allocation2 + $0xe7] sm:$0xff]
      %v4170 = vld [vmem:[#allocation2 + $0xef] sm:$0xff]
      %v4171 = vld [vmem:[#allocation2 + $0xf7] sm:$0xff]
      %v4172 = vld [vmem:[#allocation2 + $0xff] sm:$0xff]
      %v4173 = vld [vmem:[#allocation2 + $0x107] sm:$0xff]
      %v4174 = vld [vmem:[#allocation2 + $0x10f] sm:$0xff]
      %v4175 = vld [vmem:[#allocation2 + $0x117] sm:$0xff]
      %v4176 = vld [vmem:[#allocation2 + $0x11f] sm:$0xff]
      %v4177 = vld [vmem:[#allocation2 + $0x127] sm:$0xff]
      %v4178 = vld [vmem:[#allocation2 + $0x12f] sm:$0xff]
      %v4179 = vld [vmem:[#allocation2 + $0x18] sm:$0xff]
      %v4180 = vld [vmem:[#allocation2 + $0x20] sm:$0xff]
      %v4181 = vld [vmem:[#allocation2 + $0x28] sm:$0xff]
      %v4182 = vld [vmem:[#allocation2 + $0x30] sm:$0xff]
      %v4183 = vld [vmem:[#allocation2 + $0x38] sm:$0xff]
      %v4184 = vld [vmem:[#allocation2 + $0x40] sm:$0xff]
      %v4185 = vld [vmem:[#allocation2 + $0x48] sm:$0xff]
      %v4186 = vld [vmem:[#allocation2 + $0x50] sm:$0xff]
      %v4187 = vld [vmem:[#allocation2 + $0x58] sm:$0xff]
      %v4188 = vld [vmem:[#allocation2 + $0x60] sm:$0xff]
      %v4189 = vld [vmem:[#allocation2 + $0x68] sm:$0xff]
      %v4190 = vld [vmem:[#allocation2 + $0x70] sm:$0xff]
      %v4191 = vld [vmem:[#allocation2 + $0x78] sm:$0xff]
      %v4192 = vld [vmem:[#allocation2 + $0x80] sm:$0xff]
      %v4193 = vld [vmem:[#allocation2 + $0x88] sm:$0xff]
      %v4194 = vld [vmem:[#allocation2 + $0x90] sm:$0xff]
      %v4195 = vld [vmem:[#allocation2 + $0x98] sm:$0xff]
      %v4196 = vld [vmem:[#allocation2 + $0xa0] sm:$0xff]
      %v4197 = vld [vmem:[#allocation2 + $0xa8] sm:$0xff]
      %v4198 = vld [vmem:[#allocation2 + $0xb0] sm:$0xff]
      %v4199 = vld [vmem:[#allocation2 + $0xb8] sm:$0xff]
      %v4200 = vld [vmem:[#allocation2 + $0xc0] sm:$0xff]
      %v4201 = vld [vmem:[#allocation2 + $0xc8] sm:$0xff]
      %v4202 = vld [vmem:[#allocation2 + $0xd0] sm:$0xff]
      %v4203 = vld [vmem:[#allocation2 + $0xd8] sm:$0xff]
      %v4204 = vld [vmem:[#allocation2 + $0xe0] sm:$0xff]
      %v4205 = vld [vmem:[#allocation2 + $0xe8] sm:$0xff]
      %v4206 = vld [vmem:[#allocation2 + $0xf0] sm:$0xff]
      %v4207 = vld [vmem:[#allocation2 + $0xf8] sm:$0xff]
      %v4208 = vld [vmem:[#allocation2 + $0x100] sm:$0xff]
      %v4209 = vld [vmem:[#allocation2 + $0x108] sm:$0xff]
      %v4210 = vld [vmem:[#allocation2 + $0x110] sm:$0xff]
      %v4211 = vld [vmem:[#allocation2 + $0x118] sm:$0xff]
      %v4212 = vld [vmem:[#allocation2 + $0x120] sm:$0xff]
      %v4213 = vld [vmem:[#allocation2 + $0x128] sm:$0xff]
      %v4214 = vld [vmem:[#allocation2 + $0x130] sm:$0xff]
      %v4215 = vld [vmem:[#allocation2 + $0x19] sm:$0xff]
      %v4216 = vld [vmem:[#allocation2 + $0x21] sm:$0xff]
      %v4217 = vld [vmem:[#allocation2 + $0x29] sm:$0xff]
      %v4218 = vld [vmem:[#allocation2 + $0x31] sm:$0xff]
      %v4219 = vld [vmem:[#allocation2 + $0x39] sm:$0xff]
      %v4220 = vld [vmem:[#allocation2 + $0x41] sm:$0xff]
      %v4221 = vld [vmem:[#allocation2 + $0x49] sm:$0xff]
      %v4222 = vld [vmem:[#allocation2 + $0x51] sm:$0xff]
      %v4223 = vld [vmem:[#allocation2 + $0x59] sm:$0xff]
      %v4224 = vld [vmem:[#allocation2 + $0x61] sm:$0xff]
      %v4225 = vld [vmem:[#allocation2 + $0x69] sm:$0xff]
      %v4226 = vld [vmem:[#allocation2 + $0x71] sm:$0xff]
      %v4227 = vld [vmem:[#allocation2 + $0x79] sm:$0xff]
      %v4228 = vld [vmem:[#allocation2 + $0x81] sm:$0xff]
      %v4229 = vld [vmem:[#allocation2 + $0x89] sm:$0xff]
      %v4230 = vld [vmem:[#allocation2 + $0x91] sm:$0xff]
      %v4231 = vld [vmem:[#allocation2 + $0x99] sm:$0xff]
      %v4232 = vld [vmem:[#allocation2 + $0xa1] sm:$0xff]
      %v4233 = vld [vmem:[#allocation2 + $0xa9] sm:$0xff]
      %v4234 = vld [vmem:[#allocation2 + $0xb1] sm:$0xff]
      %v4235 = vld [vmem:[#allocation2 + $0xb9] sm:$0xff]
      %v4236 = vld [vmem:[#allocation2 + $0xc1] sm:$0xff]
      %v4237 = vld [vmem:[#allocation2 + $0xc9] sm:$0xff]
      %v4238 = vld [vmem:[#allocation2 + $0xd1] sm:$0xff]
      %v4239 = vld [vmem:[#allocation2 + $0xd9] sm:$0xff]
      %v4240 = vld [vmem:[#allocation2 + $0xe1] sm:$0xff]
      %v4241 = vld [vmem:[#allocation2 + $0xe9] sm:$0xff]
      %v4242 = vld [vmem:[#allocation2 + $0xf1] sm:$0xff]
      %v4243 = vld [vmem:[#allocation2 + $0xf9] sm:$0xff]
      %v4244 = vld [vmem:[#allocation2 + $0x101] sm:$0xff]
      %v4245 = vld [vmem:[#allocation2 + $0x109] sm:$0xff]
      %v4246 = vld [vmem:[#allocation2 + $0x111] sm:$0xff]
      %v4247 = vld [vmem:[#allocation2 + $0x119] sm:$0xff]
      %v4248 = vld [vmem:[#allocation2 + $0x121] sm:$0xff]
      %v4249 = vld [vmem:[#allocation2 + $0x129] sm:$0xff]
      %v4250 = vld [vmem:[#allocation2 + $0x131] sm:$0xff]
      %v4251 = vld [vmem:[#allocation2 + $0x139] sm:$0xff]
      %v4252 = vld [vmem:[#allocation2 + $0x141] sm:$0xff]
      %v4253 = vld [vmem:[#allocation2 + $0x2a] sm:$0xff]
      %v4254 = vld [vmem:[#allocation2 + $0x32] sm:$0xff]
      %v4255 = vld [vmem:[#allocation2 + $0x3a] sm:$0xff]
      %v4256 = vld [vmem:[#allocation2 + $0x42] sm:$0xff]
      %v4257 = vld [vmem:[#allocation2 + $0x4a] sm:$0xff]
      %v4258 = vld [vmem:[#allocation2 + $0x52] sm:$0xff]
      %v4259 = vld [vmem:[#allocation2 + $0x5a] sm:$0xff]
      %v4260 = vld [vmem:[#allocation2 + $0x62] sm:$0xff]
      %v4261 = vld [vmem:[#allocation2 + $0x6a] sm:$0xff]
      %v4262 = vld [vmem:[#allocation2 + $0x72] sm:$0xff]
      %v4263 = vld [vmem:[#allocation2 + $0x7a] sm:$0xff]
      %v4264 = vld [vmem:[#allocation2 + $0x82] sm:$0xff]
      %v4265 = vld [vmem:[#allocation2 + $0x8a] sm:$0xff]
      %v4266 = vld [vmem:[#allocation2 + $0x92] sm:$0xff]
      %v4267 = vld [vmem:[#allocation2 + $0x9a] sm:$0xff]
      %v4268 = vld [vmem:[#allocation2 + $0xa2] sm:$0xff]
      %v4269 = vld [vmem:[#allocation2 + $0xaa] sm:$0xff]
      %v4270 = vld [vmem:[#allocation2 + $0xb2] sm:$0xff]
      %v4271 = vld [vmem:[#allocation2 + $0xba] sm:$0xff]
      %v4272 = vld [vmem:[#allocation2 + $0xc2] sm:$0xff]
      %v4273 = vld [vmem:[#allocation2 + $0xca] sm:$0xff]
      %v4274 = vld [vmem:[#allocation2 + $0xd2] sm:$0xff]
      %v4275 = vld [vmem:[#allocation2 + $0xda] sm:$0xff]
      %v4276 = vld [vmem:[#allocation2 + $0xe2] sm:$0xff]
      %v4277 = vld [vmem:[#allocation2 + $0xea] sm:$0xff]
      %v4278 = vld [vmem:[#allocation2 + $0xf2] sm:$0xff]
      %v4279 = vld [vmem:[#allocation2 + $0xfa] sm:$0xff]
      %v4280 = vld [vmem:[#allocation2 + $0x102] sm:$0xff]
      %v4281 = vld [vmem:[#allocation2 + $0x10a] sm:$0xff]
      %v4282 = vld [vmem:[#allocation2 + $0x112] sm:$0xff]
      %v4283 = vld [vmem:[#allocation2 + $0x11a] sm:$0xff]
      %v4284 = vld [vmem:[#allocation2 + $0x122] sm:$0xff]
      %v4285 = vld [vmem:[#allocation2 + $0x12a] sm:$0xff]
      %v4286 = vld [vmem:[#allocation2 + $0x132] sm:$0xff]
      %v4287 = vld [vmem:[#allocation2 + $0x13a] sm:$0xff]
      %v4288 = vld [vmem:[#allocation2 + $0x142] sm:$0xff]
      %v4289 = vld [vmem:[#allocation2 + $0x2b] sm:$0xff]
      %v4290 = vld [vmem:[#allocation2 + $0x33] sm:$0xff]
      %v4291 = vld [vmem:[#allocation2 + $0x3b] sm:$0xff]
      %v4292 = vld [vmem:[#allocation2 + $0x43] sm:$0xff]
      %v4293 = vld [vmem:[#allocation2 + $0x4b] sm:$0xff]
      %v4294 = vld [vmem:[#allocation2 + $0x53] sm:$0xff]
      %v4295 = vld [vmem:[#allocation2 + $0x5b] sm:$0xff]
      %v4296 = vld [vmem:[#allocation2 + $0x63] sm:$0xff]
      %v4297 = vld [vmem:[#allocation2 + $0x6b] sm:$0xff]
      %v4298 = vld [vmem:[#allocation2 + $0x73] sm:$0xff]
      %v4299 = vld [vmem:[#allocation2 + $0x7b] sm:$0xff]
      %v4300 = vld [vmem:[#allocation2 + $0x83] sm:$0xff]
      %v4301 = vld [vmem:[#allocation2 + $0x8b] sm:$0xff]
      %v4302 = vld [vmem:[#allocation2 + $0x93] sm:$0xff]
      %v4303 = vld [vmem:[#allocation2 + $0x9b] sm:$0xff]
      %v4304 = vld [vmem:[#allocation2 + $0xa3] sm:$0xff]
      %v4305 = vld [vmem:[#allocation2 + $0xab] sm:$0xff]
      %v4306 = vld [vmem:[#allocation2 + $0xb3] sm:$0xff]
      %v4307 = vld [vmem:[#allocation2 + $0xbb] sm:$0xff]
      %v4308 = vld [vmem:[#allocation2 + $0xc3] sm:$0xff]
      %v4309 = vld [vmem:[#allocation2 + $0xcb] sm:$0xff]
      %v4310 = vld [vmem:[#allocation2 + $0xd3] sm:$0xff]
      %v4311 = vld [vmem:[#allocation2 + $0xdb] sm:$0xff]
      %v4312 = vld [vmem:[#allocation2 + $0xe3] sm:$0xff]
      %v4313 = vld [vmem:[#allocation2 + $0xeb] sm:$0xff]
      %v4314 = vld [vmem:[#allocation2 + $0xf3] sm:$0xff]
      %v4315 = vld [vmem:[#allocation2 + $0xfb] sm:$0xff]
      %v4316 = vld [vmem:[#allocation2 + $0x103] sm:$0xff]
      %v4317 = vld [vmem:[#allocation2 + $0x10b] sm:$0xff]
      %v4318 = vld [vmem:[#allocation2 + $0x113] sm:$0xff]
      %v4319 = vld [vmem:[#allocation2 + $0x11b] sm:$0xff]
      %v4320 = vld [vmem:[#allocation2 + $0x123] sm:$0xff]
      %v4321 = vld [vmem:[#allocation2 + $0x12b] sm:$0xff]
      %v4322 = vld [vmem:[#allocation2 + $0x133] sm:$0xff]
      %v4323 = vld [vmem:[#allocation2 + $0x13b] sm:$0xff]
      %v4324 = vld [vmem:[#allocation2 + $0x143] sm:$0xff]
      %4361 = vrot.lane.b32.xlu0 %v4105, 64
      %v4362 = vpop.permute.xlu0 %4361
      %4363 = vrot.lane.b32.xlu0 %v4106, 64
      %v4364 = vpop.permute.xlu0 %4363
      %4365 = vrot.lane.b32.xlu0 %v4107, 64
      %v4366 = vpop.permute.xlu0 %4365
      %4367 = vrot.lane.b32.xlu0 %v4108, 64
      %v4368 = vpop.permute.xlu0 %4367
      %4369 = vrot.lane.b32.xlu0 %v4109, 64
      %v4370 = vpop.permute.xlu0 %4369
      %4371 = vrot.lane.b32.xlu0 %v4110, 64
      %v4372 = vpop.permute.xlu0 %4371
      %4373 = vrot.lane.b32.xlu0 %v4111, 64
      %v4374 = vpop.permute.xlu0 %4373
      %4375 = vrot.lane.b32.xlu0 %v4112, 64
      %v4376 = vpop.permute.xlu0 %4375
      %4377 = vrot.lane.b32.xlu0 %v4113, 64
      %v4378 = vpop.permute.xlu0 %4377
      %4379 = vrot.lane.b32.xlu0 %v4114, 64
      %v4380 = vpop.permute.xlu0 %4379
      %4381 = vrot.lane.b32.xlu0 %v4115, 64
      %v4382 = vpop.permute.xlu0 %4381
      %4383 = vrot.lane.b32.xlu0 %v4116, 64
      %v4384 = vpop.permute.xlu0 %4383
      %4385 = vrot.lane.b32.xlu0 %v4117, 64
      %v4386 = vpop.permute.xlu0 %4385
      %4387 = vrot.lane.b32.xlu0 %v4118, 64
      %v4388 = vpop.permute.xlu0 %4387
      %4389 = vrot.lane.b32.xlu0 %v4119, 64
      %v4390 = vpop.permute.xlu0 %4389
      %4391 = vrot.lane.b32.xlu0 %v4120, 64
      %v4392 = vpop.permute.xlu0 %4391
      %4393 = vrot.lane.b32.xlu0 %v4121, 64
      %v4394 = vpop.permute.xlu0 %4393
      %4395 = vrot.lane.b32.xlu0 %v4122, 64
      %v4396 = vpop.permute.xlu0 %4395
      %4397 = vrot.lane.b32.xlu0 %v4123, 64
      %v4398 = vpop.permute.xlu0 %4397
      %4399 = vrot.lane.b32.xlu0 %v4124, 64
      %v4400 = vpop.permute.xlu0 %4399
      %4401 = vrot.lane.b32.xlu0 %v4125, 64
      %v4402 = vpop.permute.xlu0 %4401
      %4403 = vrot.lane.b32.xlu0 %v4126, 64
      %v4404 = vpop.permute.xlu0 %4403
      %4405 = vrot.lane.b32.xlu0 %v4127, 64
      %v4406 = vpop.permute.xlu0 %4405
      %4407 = vrot.lane.b32.xlu0 %v4128, 64
      %v4408 = vpop.permute.xlu0 %4407
      %4409 = vrot.lane.b32.xlu0 %v4129, 64
      %v4410 = vpop.permute.xlu0 %4409
      %4411 = vrot.lane.b32.xlu0 %v4130, 64
      %v4412 = vpop.permute.xlu0 %4411
      %4413 = vrot.lane.b32.xlu0 %v4131, 64
      %v4414 = vpop.permute.xlu0 %4413
      %4415 = vrot.lane.b32.xlu0 %v4132, 64
      %v4416 = vpop.permute.xlu0 %4415
      %4417 = vrot.lane.b32.xlu0 %v4133, 64
      %v4418 = vpop.permute.xlu0 %4417
      %4419 = vrot.lane.b32.xlu0 %v4134, 64
      %v4420 = vpop.permute.xlu0 %4419
      %4421 = vrot.lane.b32.xlu0 %v4135, 64
      %v4422 = vpop.permute.xlu0 %4421
      %4423 = vrot.lane.b32.xlu0 %v4136, 64
      %v4424 = vpop.permute.xlu0 %4423
      %4425 = vrot.lane.b32.xlu0 %v4137, 64
      %v4426 = vpop.permute.xlu0 %4425
      %4427 = vrot.lane.b32.xlu0 %v4138, 64
      %v4428 = vpop.permute.xlu0 %4427
      %4429 = vrot.lane.b32.xlu0 %v4139, 64
      %v4430 = vpop.permute.xlu0 %4429
      %4431 = vrot.lane.b32.xlu0 %v4140, 64
      %v4432 = vpop.permute.xlu0 %4431
      %4505 = vrot.lane.b32.xlu0 %v4143, 64
      %v4506 = vpop.permute.xlu0 %4505
      %4507 = vrot.lane.b32.xlu0 %v4144, 64
      %v4508 = vpop.permute.xlu0 %4507
      %4509 = vrot.lane.b32.xlu0 %v4145, 64
      %v4510 = vpop.permute.xlu0 %4509
      %4511 = vrot.lane.b32.xlu0 %v4146, 64
      %v4512 = vpop.permute.xlu0 %4511
      %4513 = vrot.lane.b32.xlu0 %v4147, 64
      %v4514 = vpop.permute.xlu0 %4513
      %4515 = vrot.lane.b32.xlu0 %v4148, 64
      %v4516 = vpop.permute.xlu0 %4515
      %4517 = vrot.lane.b32.xlu0 %v4149, 64
      %v4518 = vpop.permute.xlu0 %4517
      %4519 = vrot.lane.b32.xlu0 %v4150, 64
      %v4520 = vpop.permute.xlu0 %4519
      %4521 = vrot.lane.b32.xlu0 %v4151, 64
      %v4522 = vpop.permute.xlu0 %4521
      %4523 = vrot.lane.b32.xlu0 %v4152, 64
      %v4524 = vpop.permute.xlu0 %4523
      %4525 = vrot.lane.b32.xlu0 %v4153, 64
      %v4526 = vpop.permute.xlu0 %4525
      %4527 = vrot.lane.b32.xlu0 %v4154, 64
      %v4528 = vpop.permute.xlu0 %4527
      %4529 = vrot.lane.b32.xlu0 %v4155, 64
      %v4530 = vpop.permute.xlu0 %4529
      %4531 = vrot.lane.b32.xlu0 %v4156, 64
      %v4532 = vpop.permute.xlu0 %4531
      %4533 = vrot.lane.b32.xlu0 %v4157, 64
      %v4534 = vpop.permute.xlu0 %4533
      %4535 = vrot.lane.b32.xlu0 %v4158, 64
      %v4536 = vpop.permute.xlu0 %4535
      %4537 = vrot.lane.b32.xlu0 %v4159, 64
      %v4538 = vpop.permute.xlu0 %4537
      %4539 = vrot.lane.b32.xlu0 %v4160, 64
      %v4540 = vpop.permute.xlu0 %4539
      %4541 = vrot.lane.b32.xlu0 %v4161, 64
      %v4542 = vpop.permute.xlu0 %4541
      %4543 = vrot.lane.b32.xlu0 %v4162, 64
      %v4544 = vpop.permute.xlu0 %4543
      %4545 = vrot.lane.b32.xlu0 %v4163, 64
      %v4546 = vpop.permute.xlu0 %4545
      %4547 = vrot.lane.b32.xlu0 %v4164, 64
      %v4548 = vpop.permute.xlu0 %4547
      %4549 = vrot.lane.b32.xlu0 %v4165, 64
      %v4550 = vpop.permute.xlu0 %4549
      %4551 = vrot.lane.b32.xlu0 %v4166, 64
      %v4552 = vpop.permute.xlu0 %4551
      %4553 = vrot.lane.b32.xlu0 %v4167, 64
      %v4554 = vpop.permute.xlu0 %4553
      %4555 = vrot.lane.b32.xlu0 %v4168, 64
      %v4556 = vpop.permute.xlu0 %4555
      %4557 = vrot.lane.b32.xlu0 %v4169, 64
      %v4558 = vpop.permute.xlu0 %4557
      %4559 = vrot.lane.b32.xlu0 %v4170, 64
      %v4560 = vpop.permute.xlu0 %4559
      %4561 = vrot.lane.b32.xlu0 %v4171, 64
      %v4562 = vpop.permute.xlu0 %4561
      %4563 = vrot.lane.b32.xlu0 %v4172, 64
      %v4564 = vpop.permute.xlu0 %4563
      %4565 = vrot.lane.b32.xlu0 %v4173, 64
      %v4566 = vpop.permute.xlu0 %4565
      %4567 = vrot.lane.b32.xlu0 %v4174, 64
      %v4568 = vpop.permute.xlu0 %4567
      %4569 = vrot.lane.b32.xlu0 %v4175, 64
      %v4570 = vpop.permute.xlu0 %4569
      %4571 = vrot.lane.b32.xlu0 %v4176, 64
      %v4572 = vpop.permute.xlu0 %4571
      %4573 = vrot.lane.b32.xlu0 %v4177, 64
      %v4574 = vpop.permute.xlu0 %4573
      %4575 = vrot.lane.b32.xlu0 %v4178, 64
      %v4576 = vpop.permute.xlu0 %4575
      %4649 = vrot.lane.b32.xlu0 %v4215, 64
      %v4650 = vpop.permute.xlu0 %4649
      %4651 = vrot.lane.b32.xlu0 %v4216, 64
      %v4652 = vpop.permute.xlu0 %4651
      %4653 = vrot.lane.b32.xlu0 %v4217, 64
      %v4654 = vpop.permute.xlu0 %4653
      %4655 = vrot.lane.b32.xlu0 %v4218, 64
      %v4656 = vpop.permute.xlu0 %4655
      %4657 = vrot.lane.b32.xlu0 %v4219, 64
      %v4658 = vpop.permute.xlu0 %4657
      %4659 = vrot.lane.b32.xlu0 %v4220, 64
      %v4660 = vpop.permute.xlu0 %4659
      %4661 = vrot.lane.b32.xlu0 %v4221, 64
      %v4662 = vpop.permute.xlu0 %4661
      %4663 = vrot.lane.b32.xlu0 %v4222, 64
      %v4664 = vpop.permute.xlu0 %4663
      %4665 = vrot.lane.b32.xlu0 %v4223, 64
      %v4666 = vpop.permute.xlu0 %4665
      %4667 = vrot.lane.b32.xlu0 %v4224, 64
      %v4668 = vpop.permute.xlu0 %4667
      %4669 = vrot.lane.b32.xlu0 %v4225, 64
      %v4670 = vpop.permute.xlu0 %4669
      %4671 = vrot.lane.b32.xlu0 %v4226, 64
      %v4672 = vpop.permute.xlu0 %4671
      %4673 = vrot.lane.b32.xlu0 %v4227, 64
      %v4674 = vpop.permute.xlu0 %4673
      %4675 = vrot.lane.b32.xlu0 %v4228, 64
      %v4676 = vpop.permute.xlu0 %4675
      %4677 = vrot.lane.b32.xlu0 %v4229, 64
      %v4678 = vpop.permute.xlu0 %4677
      %4679 = vrot.lane.b32.xlu0 %v4230, 64
      %v4680 = vpop.permute.xlu0 %4679
      %4681 = vrot.lane.b32.xlu0 %v4231, 64
      %v4682 = vpop.permute.xlu0 %4681
      %4683 = vrot.lane.b32.xlu0 %v4232, 64
      %v4684 = vpop.permute.xlu0 %4683
      %4685 = vrot.lane.b32.xlu0 %v4233, 64
      %v4686 = vpop.permute.xlu0 %4685
      %4687 = vrot.lane.b32.xlu0 %v4234, 64
      %v4688 = vpop.permute.xlu0 %4687
      %4689 = vrot.lane.b32.xlu0 %v4235, 64
      %v4690 = vpop.permute.xlu0 %4689
      %4691 = vrot.lane.b32.xlu0 %v4236, 64
      %v4692 = vpop.permute.xlu0 %4691
      %4693 = vrot.lane.b32.xlu0 %v4237, 64
      %v4694 = vpop.permute.xlu0 %4693
      %4695 = vrot.lane.b32.xlu0 %v4238, 64
      %v4696 = vpop.permute.xlu0 %4695
      %4697 = vrot.lane.b32.xlu0 %v4239, 64
      %v4698 = vpop.permute.xlu0 %4697
      %4699 = vrot.lane.b32.xlu0 %v4240, 64
      %v4700 = vpop.permute.xlu0 %4699
      %4701 = vrot.lane.b32.xlu0 %v4241, 64
      %v4702 = vpop.permute.xlu0 %4701
      %4703 = vrot.lane.b32.xlu0 %v4242, 64
      %v4704 = vpop.permute.xlu0 %4703
      %4705 = vrot.lane.b32.xlu0 %v4243, 64
      %v4706 = vpop.permute.xlu0 %4705
      %4707 = vrot.lane.b32.xlu0 %v4244, 64
      %v4708 = vpop.permute.xlu0 %4707
      %4709 = vrot.lane.b32.xlu0 %v4245, 64
      %v4710 = vpop.permute.xlu0 %4709
      %4711 = vrot.lane.b32.xlu0 %v4246, 64
      %v4712 = vpop.permute.xlu0 %4711
      %4713 = vrot.lane.b32.xlu0 %v4247, 64
      %v4714 = vpop.permute.xlu0 %4713
      %4715 = vrot.lane.b32.xlu0 %v4248, 64
      %v4716 = vpop.permute.xlu0 %4715
      %4717 = vrot.lane.b32.xlu0 %v4249, 64
      %v4718 = vpop.permute.xlu0 %4717
      %4719 = vrot.lane.b32.xlu0 %v4250, 64
      %v4720 = vpop.permute.xlu0 %4719
      %4793 = vrot.lane.b32.xlu0 %v4253, 64
      %v4794 = vpop.permute.xlu0 %4793
      %4795 = vrot.lane.b32.xlu0 %v4254, 64
      %v4796 = vpop.permute.xlu0 %4795
      %4797 = vrot.lane.b32.xlu0 %v4255, 64
      %v4798 = vpop.permute.xlu0 %4797
      %4799 = vrot.lane.b32.xlu0 %v4256, 64
      %v4800 = vpop.permute.xlu0 %4799
      %4801 = vrot.lane.b32.xlu0 %v4257, 64
      %v4802 = vpop.permute.xlu0 %4801
      %4803 = vrot.lane.b32.xlu0 %v4258, 64
      %v4804 = vpop.permute.xlu0 %4803
      %4805 = vrot.lane.b32.xlu0 %v4259, 64
      %v4806 = vpop.permute.xlu0 %4805
      %4807 = vrot.lane.b32.xlu0 %v4260, 64
      %v4808 = vpop.permute.xlu0 %4807
      %4809 = vrot.lane.b32.xlu0 %v4261, 64
      %v4810 = vpop.permute.xlu0 %4809
      %4811 = vrot.lane.b32.xlu0 %v4262, 64
      %v4812 = vpop.permute.xlu0 %4811
      %4813 = vrot.lane.b32.xlu0 %v4263, 64
      %v4814 = vpop.permute.xlu0 %4813
      %4815 = vrot.lane.b32.xlu0 %v4264, 64
      %v4816 = vpop.permute.xlu0 %4815
      %4817 = vrot.lane.b32.xlu0 %v4265, 64
      %v4818 = vpop.permute.xlu0 %4817
      %4819 = vrot.lane.b32.xlu0 %v4266, 64
      %v4820 = vpop.permute.xlu0 %4819
      %4821 = vrot.lane.b32.xlu0 %v4267, 64
      %v4822 = vpop.permute.xlu0 %4821
      %4823 = vrot.lane.b32.xlu0 %v4268, 64
      %v4824 = vpop.permute.xlu0 %4823
      %4825 = vrot.lane.b32.xlu0 %v4269, 64
      %v4826 = vpop.permute.xlu0 %4825
      %4827 = vrot.lane.b32.xlu0 %v4270, 64
      %v4828 = vpop.permute.xlu0 %4827
      %4829 = vrot.lane.b32.xlu0 %v4271, 64
      %v4830 = vpop.permute.xlu0 %4829
      %4831 = vrot.lane.b32.xlu0 %v4272, 64
      %v4832 = vpop.permute.xlu0 %4831
      %4833 = vrot.lane.b32.xlu0 %v4273, 64
      %v4834 = vpop.permute.xlu0 %4833
      %4835 = vrot.lane.b32.xlu0 %v4274, 64
      %v4836 = vpop.permute.xlu0 %4835
      %4837 = vrot.lane.b32.xlu0 %v4275, 64
      %v4838 = vpop.permute.xlu0 %4837
      %4839 = vrot.lane.b32.xlu0 %v4276, 64
      %v4840 = vpop.permute.xlu0 %4839
      %4841 = vrot.lane.b32.xlu0 %v4277, 64
      %v4842 = vpop.permute.xlu0 %4841
      %4843 = vrot.lane.b32.xlu0 %v4278, 64
      %v4844 = vpop.permute.xlu0 %4843
      %4845 = vrot.lane.b32.xlu0 %v4279, 64
      %v4846 = vpop.permute.xlu0 %4845
      %4847 = vrot.lane.b32.xlu0 %v4280, 64
      %v4848 = vpop.permute.xlu0 %4847
      %4849 = vrot.lane.b32.xlu0 %v4281, 64
      %v4850 = vpop.permute.xlu0 %4849
      %4851 = vrot.lane.b32.xlu0 %v4282, 64
      %v4852 = vpop.permute.xlu0 %4851
      %4853 = vrot.lane.b32.xlu0 %v4283, 64
      %v4854 = vpop.permute.xlu0 %4853
      %4855 = vrot.lane.b32.xlu0 %v4284, 64
      %v4856 = vpop.permute.xlu0 %4855
      %4857 = vrot.lane.b32.xlu0 %v4285, 64
      %v4858 = vpop.permute.xlu0 %4857
      %4859 = vrot.lane.b32.xlu0 %v4286, 64
      %v4860 = vpop.permute.xlu0 %4859
      %4861 = vrot.lane.b32.xlu0 %v4287, 64
      %v4862 = vpop.permute.xlu0 %4861
      %4863 = vrot.lane.b32.xlu0 %v4288, 64
      %v4864 = vpop.permute.xlu0 %4863
      %v4901 = vsel %vm307, %v4069, %v4362
      %v4902 = vsel %vm307, %v4070, %v4364
      %v4903 = vsel %vm307, %v4071, %v4366
      %v4904 = vsel %vm307, %v4072, %v4368
      %v4905 = vsel %vm307, %v4073, %v4370
      %v4906 = vsel %vm307, %v4074, %v4372
      %v4907 = vsel %vm307, %v4075, %v4374
      %v4908 = vsel %vm307, %v4076, %v4376
      %v4909 = vsel %vm307, %v4077, %v4378
      %v4910 = vsel %vm307, %v4078, %v4380
      %v4911 = vsel %vm307, %v4079, %v4382
      %v4912 = vsel %vm307, %v4080, %v4384
      %v4913 = vsel %vm307, %v4081, %v4386
      %v4914 = vsel %vm307, %v4082, %v4388
      %v4915 = vsel %vm307, %v4083, %v4390
      %v4916 = vsel %vm307, %v4084, %v4392
      %v4917 = vsel %vm307, %v4085, %v4394
      %v4918 = vsel %vm307, %v4086, %v4396
      %v4919 = vsel %vm307, %v4087, %v4398
      %v4920 = vsel %vm307, %v4088, %v4400
      %v4921 = vsel %vm307, %v4089, %v4402
      %v4922 = vsel %vm307, %v4090, %v4404
      %v4923 = vsel %vm307, %v4091, %v4406
      %v4924 = vsel %vm307, %v4092, %v4408
      %v4925 = vsel %vm307, %v4093, %v4410
      %v4926 = vsel %vm307, %v4094, %v4412
      %v4927 = vsel %vm307, %v4095, %v4414
      %v4928 = vsel %vm307, %v4096, %v4416
      %v4929 = vsel %vm307, %v4097, %v4418
      %v4930 = vsel %vm307, %v4098, %v4420
      %v4931 = vsel %vm307, %v4099, %v4422
      %v4932 = vsel %vm307, %v4100, %v4424
      %v4933 = vsel %vm307, %v4101, %v4426
      %v4934 = vsel %vm307, %v4102, %v4428
      %v4935 = vsel %vm307, %v4103, %v4430
      %v4936 = vsel %vm307, %v4104, %v4432
      %v4937 = vsel %vm307, %v4141, %v4506
      %v4938 = vsel %vm307, %v4142, %v4508
      %v4939 = vsel %vm307, %v4143, %v4510
      %v4940 = vsel %vm307, %v4144, %v4512
      %v4941 = vsel %vm307, %v4145, %v4514
      %v4942 = vsel %vm307, %v4146, %v4516
      %v4943 = vsel %vm307, %v4147, %v4518
      %v4944 = vsel %vm307, %v4148, %v4520
      %v4945 = vsel %vm307, %v4149, %v4522
      %v4946 = vsel %vm307, %v4150, %v4524
      %v4947 = vsel %vm307, %v4151, %v4526
      %v4948 = vsel %vm307, %v4152, %v4528
      %v4949 = vsel %vm307, %v4153, %v4530
      %v4950 = vsel %vm307, %v4154, %v4532
      %v4951 = vsel %vm307, %v4155, %v4534
      %v4952 = vsel %vm307, %v4156, %v4536
      %v4953 = vsel %vm307, %v4157, %v4538
      %v4954 = vsel %vm307, %v4158, %v4540
      %v4955 = vsel %vm307, %v4159, %v4542
      %v4956 = vsel %vm307, %v4160, %v4544
      %v4957 = vsel %vm307, %v4161, %v4546
      %v4958 = vsel %vm307, %v4162, %v4548
      %v4959 = vsel %vm307, %v4163, %v4550
      %v4960 = vsel %vm307, %v4164, %v4552
      %v4961 = vsel %vm307, %v4165, %v4554
      %v4962 = vsel %vm307, %v4166, %v4556
      %v4963 = vsel %vm307, %v4167, %v4558
      %v4964 = vsel %vm307, %v4168, %v4560
      %v4965 = vsel %vm307, %v4169, %v4562
      %v4966 = vsel %vm307, %v4170, %v4564
      %v4967 = vsel %vm307, %v4171, %v4566
      %v4968 = vsel %vm307, %v4172, %v4568
      %v4969 = vsel %vm307, %v4173, %v4570
      %v4970 = vsel %vm307, %v4174, %v4572
      %v4971 = vsel %vm307, %v4175, %v4574
      %v4972 = vsel %vm307, %v4176, %v4576
      %v4973 = vsel %vm307, %v4179, %v4650
      %v4974 = vsel %vm307, %v4180, %v4652
      %v4975 = vsel %vm307, %v4181, %v4654
      %v4976 = vsel %vm307, %v4182, %v4656
      %v4977 = vsel %vm307, %v4183, %v4658
      %v4978 = vsel %vm307, %v4184, %v4660
      %v4979 = vsel %vm307, %v4185, %v4662
      %v4980 = vsel %vm307, %v4186, %v4664
      %v4981 = vsel %vm307, %v4187, %v4666
      %v4982 = vsel %vm307, %v4188, %v4668
      %v4983 = vsel %vm307, %v4189, %v4670
      %v4984 = vsel %vm307, %v4190, %v4672
      %v4985 = vsel %vm307, %v4191, %v4674
      %v4986 = vsel %vm307, %v4192, %v4676
      %v4987 = vsel %vm307, %v4193, %v4678
      %v4988 = vsel %vm307, %v4194, %v4680
      %v4989 = vsel %vm307, %v4195, %v4682
      %v4990 = vsel %vm307, %v4196, %v4684
      %v4991 = vsel %vm307, %v4197, %v4686
      %v4992 = vsel %vm307, %v4198, %v4688
      %v4993 = vsel %vm307, %v4199, %v4690
      %v4994 = vsel %vm307, %v4200, %v4692
      %v4995 = vsel %vm307, %v4201, %v4694
      %v4996 = vsel %vm307, %v4202, %v4696
      %v4997 = vsel %vm307, %v4203, %v4698
      %v4998 = vsel %vm307, %v4204, %v4700
      %v4999 = vsel %vm307, %v4205, %v4702
      %v5000 = vsel %vm307, %v4206, %v4704
      %v5001 = vsel %vm307, %v4207, %v4706
      %v5002 = vsel %vm307, %v4208, %v4708
      %v5003 = vsel %vm307, %v4209, %v4710
      %v5004 = vsel %vm307, %v4210, %v4712
      %v5005 = vsel %vm307, %v4211, %v4714
      %v5006 = vsel %vm307, %v4212, %v4716
      %v5007 = vsel %vm307, %v4213, %v4718
      %v5008 = vsel %vm307, %v4214, %v4720
      %v5009 = vsel %vm307, %v4217, %v4794
      %v5010 = vsel %vm307, %v4218, %v4796
      %v5011 = vsel %vm307, %v4219, %v4798
      %v5012 = vsel %vm307, %v4220, %v4800
      %v5013 = vsel %vm307, %v4221, %v4802
      %v5014 = vsel %vm307, %v4222, %v4804
      %v5015 = vsel %vm307, %v4223, %v4806
      %v5016 = vsel %vm307, %v4224, %v4808
      %v5017 = vsel %vm307, %v4225, %v4810
      %v5018 = vsel %vm307, %v4226, %v4812
      %v5019 = vsel %vm307, %v4227, %v4814
      %v5020 = vsel %vm307, %v4228, %v4816
      %v5021 = vsel %vm307, %v4229, %v4818
      %v5022 = vsel %vm307, %v4230, %v4820
      %v5023 = vsel %vm307, %v4231, %v4822
      %v5024 = vsel %vm307, %v4232, %v4824
      %v5025 = vsel %vm307, %v4233, %v4826
      %v5026 = vsel %vm307, %v4234, %v4828
      %v5027 = vsel %vm307, %v4235, %v4830
      %v5028 = vsel %vm307, %v4236, %v4832
      %v5029 = vsel %vm307, %v4237, %v4834
      %v5030 = vsel %vm307, %v4238, %v4836
      %v5031 = vsel %vm307, %v4239, %v4838
      %v5032 = vsel %vm307, %v4240, %v4840
      %v5033 = vsel %vm307, %v4241, %v4842
      %v5034 = vsel %vm307, %v4242, %v4844
      %v5035 = vsel %vm307, %v4243, %v4846
      %v5036 = vsel %vm307, %v4244, %v4848
      %v5037 = vsel %vm307, %v4245, %v4850
      %v5038 = vsel %vm307, %v4246, %v4852
      %v5039 = vsel %vm307, %v4247, %v4854
      %v5040 = vsel %vm307, %v4248, %v4856
      %v5041 = vsel %vm307, %v4249, %v4858
      %v5042 = vsel %vm307, %v4250, %v4860
      %v5043 = vsel %vm307, %v4251, %v4862
      %v5044 = vsel %vm307, %v4252, %v4864
      %v5045 = vpack.c.bf16 %v4902, %v4901
      %v5046 = vpack.c.bf16 %v4938, %v4937
      %v5047 = vpack.c.bf16 %v4974, %v4973
      %v5048 = vpack.c.bf16 %v5010, %v5009
      %v5049 = vpack.c.bf16 %v4290, %v4289
      %v5050 = vpack.c.bf16 %v4904, %v4903
      %v5051 = vpack.c.bf16 %v4940, %v4939
      %v5052 = vpack.c.bf16 %v4976, %v4975
      %v5053 = vpack.c.bf16 %v5012, %v5011
      %v5054 = vpack.c.bf16 %v4292, %v4291
      %v5055 = vpack.c.bf16 %v4906, %v4905
      %v5056 = vpack.c.bf16 %v4942, %v4941
      %v5057 = vpack.c.bf16 %v4978, %v4977
      %v5058 = vpack.c.bf16 %v5014, %v5013
      %v5059 = vpack.c.bf16 %v4294, %v4293
      %v5060 = vpack.c.bf16 %v4908, %v4907
      %v5061 = vpack.c.bf16 %v4944, %v4943
      %v5062 = vpack.c.bf16 %v4980, %v4979
      %v5063 = vpack.c.bf16 %v5016, %v5015
      %v5064 = vpack.c.bf16 %v4296, %v4295
      %v5065 = vpack.c.bf16 %v4910, %v4909
      %v5066 = vpack.c.bf16 %v4946, %v4945
      %v5067 = vpack.c.bf16 %v4982, %v4981
      %v5068 = vpack.c.bf16 %v5018, %v5017
      %v5069 = vpack.c.bf16 %v4298, %v4297
      %v5070 = vpack.c.bf16 %v4912, %v4911
      %v5071 = vpack.c.bf16 %v4948, %v4947
      %v5072 = vpack.c.bf16 %v4984, %v4983
      %v5073 = vpack.c.bf16 %v5020, %v5019
      %v5074 = vpack.c.bf16 %v4300, %v4299
      %v5075 = vpack.c.bf16 %v4914, %v4913
      %v5076 = vpack.c.bf16 %v4950, %v4949
      %v5077 = vpack.c.bf16 %v4986, %v4985
      %v5078 = vpack.c.bf16 %v5022, %v5021
      %v5079 = vpack.c.bf16 %v4302, %v4301
      %v5080 = vpack.c.bf16 %v4916, %v4915
      %v5081 = vpack.c.bf16 %v4952, %v4951
      %v5082 = vpack.c.bf16 %v4988, %v4987
      %v5083 = vpack.c.bf16 %v5024, %v5023
      %v5084 = vpack.c.bf16 %v4304, %v4303
      %v5085 = vpack.c.bf16 %v4918, %v4917
      %v5086 = vpack.c.bf16 %v4954, %v4953
      %v5087 = vpack.c.bf16 %v4990, %v4989
      %v5088 = vpack.c.bf16 %v5026, %v5025
      %v5089 = vpack.c.bf16 %v4306, %v4305
      %v5090 = vpack.c.bf16 %v4920, %v4919
      %v5091 = vpack.c.bf16 %v4956, %v4955
      %v5092 = vpack.c.bf16 %v4992, %v4991
      %v5093 = vpack.c.bf16 %v5028, %v5027
      %v5094 = vpack.c.bf16 %v4308, %v4307
      %v5095 = vpack.c.bf16 %v4922, %v4921
      %v5096 = vpack.c.bf16 %v4958, %v4957
      %v5097 = vpack.c.bf16 %v4994, %v4993
      %v5098 = vpack.c.bf16 %v5030, %v5029
      %v5099 = vpack.c.bf16 %v4310, %v4309
      %v5100 = vpack.c.bf16 %v4924, %v4923
      %v5101 = vpack.c.bf16 %v4960, %v4959
      %v5102 = vpack.c.bf16 %v4996, %v4995
      %v5103 = vpack.c.bf16 %v5032, %v5031
      %v5104 = vpack.c.bf16 %v4312, %v4311
      %v5105 = vpack.c.bf16 %v4926, %v4925
      %v5106 = vpack.c.bf16 %v4962, %v4961
      %v5107 = vpack.c.bf16 %v4998, %v4997
      %v5108 = vpack.c.bf16 %v5034, %v5033
      %v5109 = vpack.c.bf16 %v4314, %v4313
      %v5110 = vpack.c.bf16 %v4928, %v4927
      %v5111 = vpack.c.bf16 %v4964, %v4963
      %v5112 = vpack.c.bf16 %v5000, %v4999
      %v5113 = vpack.c.bf16 %v5036, %v5035
      %v5114 = vpack.c.bf16 %v4316, %v4315
      %v5115 = vpack.c.bf16 %v4930, %v4929
      %v5116 = vpack.c.bf16 %v4966, %v4965
      %v5117 = vpack.c.bf16 %v5002, %v5001
      %v5118 = vpack.c.bf16 %v5038, %v5037
      %v5119 = vpack.c.bf16 %v4318, %v4317
      %v5120 = vpack.c.bf16 %v4932, %v4931
      %v5121 = vpack.c.bf16 %v4968, %v4967
      %v5122 = vpack.c.bf16 %v5004, %v5003
      %v5123 = vpack.c.bf16 %v5040, %v5039
      %v5124 = vpack.c.bf16 %v4320, %v4319
      %v5125 = vpack.c.bf16 %v4934, %v4933
      %v5126 = vpack.c.bf16 %v4970, %v4969
      %v5127 = vpack.c.bf16 %v5006, %v5005
      %v5128 = vpack.c.bf16 %v5042, %v5041
      %v5129 = vpack.c.bf16 %v4322, %v4321
      %v5130 = vpack.c.bf16 %v4936, %v4935
      %v5131 = vpack.c.bf16 %v4972, %v4971
      %v5132 = vpack.c.bf16 %v5008, %v5007
      %v5133 = vpack.c.bf16 %v5044, %v5043
      %v5134 = vpack.c.bf16 %v4324, %v4323
      %v5135 = vld [vmem:[%s3] sm:$0xf]
      %v5136 = vld [vmem:[%s3 + $0x4] sm:$0xf]
      %v5137 = vld [vmem:[%s3 + $0x8] sm:$0xf]
      %v5138 = vld [vmem:[%s3 + $0xc] sm:$0xf]
      %v5139 = vld [vmem:[%s3 + $0x10] sm:$0xf]
      %v5140 = vld [vmem:[%s3 + $0x14] sm:$0xf]
      %v5141 = vld [vmem:[%s3 + $0x18] sm:$0xf]
      %v5142 = vld [vmem:[%s3 + $0x1c] sm:$0xf]
      %v5143 = vld [vmem:[%s3 + $0x20] sm:$0xf]
      %v5144 = vld [vmem:[%s3 + $0x24] sm:$0xf]
      %v5145 = vld [vmem:[%s3 + $0x28] sm:$0xf]
      %v5146 = vld [vmem:[%s3 + $0x2c] sm:$0xf]
      %v5147 = vld [vmem:[%s3 + $0x30] sm:$0xf]
      %v5148 = vld [vmem:[%s3 + $0x34] sm:$0xf]
      %v5149 = vld [vmem:[%s3 + $0x38] sm:$0xf]
      %v5150 = vld [vmem:[%s3 + $0x3c] sm:$0xf]
      %v5151 = vld [vmem:[%s3 + $0x40] sm:$0xf]
      %v5152 = vld [vmem:[%s3 + $0x44] sm:$0xf]
      %v5153 = vld [vmem:[%s3 + $0x48] sm:$0xf]
      %v5154 = vld [vmem:[%s3 + $0x4c] sm:$0xf]
      %v5155 = vld [vmem:[%s3 + $0x50] sm:$0xf]
      %v5156 = vld [vmem:[%s3 + $0x54] sm:$0xf]
      %v5157 = vld [vmem:[%s3 + $0x58] sm:$0xf]
      %v5158 = vld [vmem:[%s3 + $0x5c] sm:$0xf]
      %v5159 = vld [vmem:[%s3 + $0x60] sm:$0xf]
      %v5160 = vld [vmem:[%s3 + $0x64] sm:$0xf]
      %v5161 = vld [vmem:[%s3 + $0x68] sm:$0xf]
      %v5162 = vld [vmem:[%s3 + $0x6c] sm:$0xf]
      %v5163 = vld [vmem:[%s3 + $0x70] sm:$0xf]
      %v5164 = vld [vmem:[%s3 + $0x74] sm:$0xf]
      %v5165 = vld [vmem:[%s3 + $0x78] sm:$0xf]
      %v5166 = vld [vmem:[%s3 + $0x7c] sm:$0xf]
      %v5167 = vld [vmem:[%s3 + $0x80] sm:$0xf]
      %v5168 = vld [vmem:[%s3 + $0x84] sm:$0xf]
      %v5169 = vld [vmem:[%s3 + $0x88] sm:$0xf]
      %v5170 = vld [vmem:[%s3 + $0x8c] sm:$0xf]
      %v5171 = vld [vmem:[%s3 + $0x90] sm:$0xf]
      %v5172 = vld [vmem:[%s3 + $0x94] sm:$0xf]
      %v5173 = vld [vmem:[%s3 + $0x98] sm:$0xf]
      %v5174 = vld [vmem:[%s3 + $0x9c] sm:$0xf]
      %v5175 = vld [vmem:[%s3 + $0xa0] sm:$0xf]
      %v5176 = vld [vmem:[%s3 + $0xa4] sm:$0xf]
      %v5177 = vld [vmem:[%s3 + $0xa8] sm:$0xf]
      %v5178 = vld [vmem:[%s3 + $0xac] sm:$0xf]
      %v5179 = vld [vmem:[%s3 + $0xb0] sm:$0xf]
      %v5180 = vld [vmem:[%s3 + $0xb4] sm:$0xf]
      %v5181 = vld [vmem:[%s3 + $0xb8] sm:$0xf]
      %v5182 = vld [vmem:[%s3 + $0xbc] sm:$0xf]
      %v5183 = vld [vmem:[%s3 + $0xc0] sm:$0xf]
      %v5184 = vld [vmem:[%s3 + $0xc4] sm:$0xf]
      %v5185 = vld [vmem:[%s3 + $0xc8] sm:$0xf]
      %v5186 = vld [vmem:[%s3 + $0xcc] sm:$0xf]
      %v5187 = vld [vmem:[%s3 + $0xd0] sm:$0xf]
      %v5188 = vld [vmem:[%s3 + $0xd4] sm:$0xf]
      %v5189 = vld [vmem:[%s3 + $0xd8] sm:$0xf]
      %v5190 = vld [vmem:[%s3 + $0xdc] sm:$0xf]
      %v5191 = vld [vmem:[%s3 + $0xe0] sm:$0xf]
      %v5192 = vld [vmem:[%s3 + $0xe4] sm:$0xf]
      %v5193 = vld [vmem:[%s3 + $0xe8] sm:$0xf]
      %v5194 = vld [vmem:[%s3 + $0xec] sm:$0xf]
      %v5195 = vld [vmem:[%s3 + $0xf0] sm:$0xf]
      %v5196 = vld [vmem:[%s3 + $0xf4] sm:$0xf]
      %v5197 = vld [vmem:[%s3 + $0xf8] sm:$0xf]
      %v5198 = vld [vmem:[%s3 + $0xfc] sm:$0xf]
      %v5199 = vld [vmem:[%s3 + $0x100] sm:$0xf]
      %v5200 = vld [vmem:[%s3 + $0x104] sm:$0xf]
      %v5201 = vld [vmem:[%s3 + $0x108] sm:$0xf]
      %v5202 = vld [vmem:[%s3 + $0x10c] sm:$0xf]
      %v5203 = vld [vmem:[%s3 + $0x110] sm:$0xf]
      %v5204 = vld [vmem:[%s3 + $0x114] sm:$0xf]
      %v5205 = vld [vmem:[%s3 + $0x118] sm:$0xf]
      %v5206 = vld [vmem:[%s3 + $0x11c] sm:$0xf]
      %v5279 = vunpack.c.l.b16 %v5135
      %v5280 = vunpack.c.l.b16 %v5136
      %v5281 = vunpack.c.l.b16 %v5137
      %v5282 = vunpack.c.l.b16 %v5138
      %v5283 = vunpack.c.l.b16 %v5139
      %v5284 = vunpack.c.l.b16 %v5140
      %v5285 = vunpack.c.l.b16 %v5141
      %v5286 = vunpack.c.l.b16 %v5142
      %v5287 = vunpack.c.l.b16 %v5143
      %v5288 = vunpack.c.l.b16 %v5144
      %v5289 = vunpack.c.l.b16 %v5145
      %v5290 = vunpack.c.l.b16 %v5146
      %v5291 = vunpack.c.l.b16 %v5147
      %v5292 = vunpack.c.l.b16 %v5148
      %v5293 = vunpack.c.l.b16 %v5149
      %v5294 = vunpack.c.l.b16 %v5150
      %v5295 = vunpack.c.l.b16 %v5151
      %v5296 = vunpack.c.l.b16 %v5152
      %v5297 = vunpack.c.l.b16 %v5153
      %v5298 = vunpack.c.l.b16 %v5154
      %v5299 = vunpack.c.l.b16 %v5155
      %v5300 = vunpack.c.l.b16 %v5156
      %v5301 = vunpack.c.l.b16 %v5157
      %v5302 = vunpack.c.l.b16 %v5158
      %v5303 = vunpack.c.l.b16 %v5159
      %v5304 = vunpack.c.l.b16 %v5160
      %v5305 = vunpack.c.l.b16 %v5161
      %v5306 = vunpack.c.l.b16 %v5162
      %v5307 = vunpack.c.l.b16 %v5163
      %v5308 = vunpack.c.l.b16 %v5164
      %v5309 = vunpack.c.l.b16 %v5165
      %v5310 = vunpack.c.l.b16 %v5166
      %v5311 = vunpack.c.l.b16 %v5167
      %v5312 = vunpack.c.l.b16 %v5168
      %v5313 = vunpack.c.l.b16 %v5169
      %v5314 = vunpack.c.l.b16 %v5170
      %v5315 = vunpack.c.l.b16 %v5171
      %v5316 = vunpack.c.l.b16 %v5172
      %v5317 = vunpack.c.l.b16 %v5173
      %v5318 = vunpack.c.l.b16 %v5174
      %v5319 = vunpack.c.l.b16 %v5175
      %v5320 = vunpack.c.l.b16 %v5176
      %v5321 = vunpack.c.l.b16 %v5177
      %v5322 = vunpack.c.l.b16 %v5178
      %v5323 = vunpack.c.l.b16 %v5179
      %v5324 = vunpack.c.l.b16 %v5180
      %v5325 = vunpack.c.l.b16 %v5181
      %v5326 = vunpack.c.l.b16 %v5182
      %v5327 = vunpack.c.l.b16 %v5183
      %v5328 = vunpack.c.l.b16 %v5184
      %v5329 = vunpack.c.l.b16 %v5185
      %v5330 = vunpack.c.l.b16 %v5186
      %v5331 = vunpack.c.l.b16 %v5187
      %v5332 = vunpack.c.l.b16 %v5188
      %v5333 = vunpack.c.l.b16 %v5189
      %v5334 = vunpack.c.l.b16 %v5190
      %v5335 = vunpack.c.l.b16 %v5191
      %v5336 = vunpack.c.l.b16 %v5192
      %v5337 = vunpack.c.l.b16 %v5193
      %v5338 = vunpack.c.l.b16 %v5194
      %v5339 = vunpack.c.l.b16 %v5195
      %v5340 = vunpack.c.l.b16 %v5196
      %v5341 = vunpack.c.l.b16 %v5197
      %v5342 = vunpack.c.l.b16 %v5198
      %v5343 = vunpack.c.l.b16 %v5199
      %v5344 = vunpack.c.l.b16 %v5200
      %v5345 = vunpack.c.l.b16 %v5201
      %v5346 = vunpack.c.l.b16 %v5202
      %v5347 = vunpack.c.l.b16 %v5203
      %v5348 = vunpack.c.l.b16 %v5204
      %v5349 = vunpack.c.l.b16 %v5205
      %v5350 = vunpack.c.l.b16 %v5206
      %v5351 = vpack.c.b16 %v5280, %v5279
      %v5352 = vpack.c.b16 %v5282, %v5281
      %v5353 = vpack.c.b16 %v5284, %v5283
      %v5354 = vpack.c.b16 %v5286, %v5285
      %v5355 = vpack.c.b16 %v5288, %v5287
      %v5356 = vpack.c.b16 %v5290, %v5289
      %v5357 = vpack.c.b16 %v5292, %v5291
      %v5358 = vpack.c.b16 %v5294, %v5293
      %v5359 = vpack.c.b16 %v5296, %v5295
      %v5360 = vpack.c.b16 %v5298, %v5297
      %v5361 = vpack.c.b16 %v5300, %v5299
      %v5362 = vpack.c.b16 %v5302, %v5301
      %v5363 = vpack.c.b16 %v5304, %v5303
      %v5364 = vpack.c.b16 %v5306, %v5305
      %v5365 = vpack.c.b16 %v5308, %v5307
      %v5366 = vpack.c.b16 %v5310, %v5309
      %v5367 = vpack.c.b16 %v5312, %v5311
      %v5368 = vpack.c.b16 %v5314, %v5313
      %v5369 = vpack.c.b16 %v5316, %v5315
      %v5370 = vpack.c.b16 %v5318, %v5317
      %v5371 = vpack.c.b16 %v5320, %v5319
      %v5372 = vpack.c.b16 %v5322, %v5321
      %v5373 = vpack.c.b16 %v5324, %v5323
      %v5374 = vpack.c.b16 %v5326, %v5325
      %v5375 = vpack.c.b16 %v5328, %v5327
      %v5376 = vpack.c.b16 %v5330, %v5329
      %v5377 = vpack.c.b16 %v5332, %v5331
      %v5378 = vpack.c.b16 %v5334, %v5333
      %v5379 = vpack.c.b16 %v5336, %v5335
      %v5380 = vpack.c.b16 %v5338, %v5337
      %v5381 = vpack.c.b16 %v5340, %v5339
      %v5382 = vpack.c.b16 %v5342, %v5341
      %v5383 = vpack.c.b16 %v5344, %v5343
      %v5384 = vpack.c.b16 %v5346, %v5345
      %v5385 = vpack.c.b16 %v5348, %v5347
      %v5386 = vpack.c.b16 %v5350, %v5349
      %v5424 = vsel %vm307, %v5049, 0
      %v5427 = vsel %vm307, %v5054, 0
      %v5430 = vsel %vm307, %v5059, 0
      %v5433 = vsel %vm307, %v5064, 0
      %v5436 = vsel %vm307, %v5069, 0
      %v5439 = vsel %vm307, %v5074, 0
      %v5442 = vsel %vm307, %v5079, 0
      %v5445 = vsel %vm307, %v5084, 0
      %v5448 = vsel %vm307, %v5089, 0
      %v5451 = vsel %vm307, %v5094, 0
      %v5454 = vsel %vm307, %v5099, 0
      %v5457 = vsel %vm307, %v5104, 0
      %v5460 = vsel %vm307, %v5109, 0
      %v5463 = vsel %vm307, %v5114, 0
      %v5466 = vsel %vm307, %v5119, 0
      %v5469 = vsel %vm307, %v5124, 0
      %v5472 = vsel %vm307, %v5129, 0
      %v5475 = vsel %vm307, %v5134, 0
      %5477 = vmatpush.bf16.msra.mxu0 %v5358
      %5478 = vmatpush.bf16.msra.mxu0 %v5357
      %5479 = vmatpush.bf16.msra.mxu0 %v5356
      %5480 = vmatpush.bf16.msra.mxu0 %v5355
      %5481 = vmatpush.bf16.msra.mxu0 %v5354
      %5482 = vmatpush.bf16.msra.mxu0 %v5353
      %5483 = vmatpush.bf16.msra.mxu0 %v5352
      %5484 = vmatpush.bf16.msra.mxu0 %v5351
      %5485 = vmatmul.bf16.gmra.mxu0 %v5045
      %v5486 = vpop.f32.mrf.mxu0
      %v5487 = vadd.f32 0.0, %v5486
      %v5488 = vpop.f32.mrf.mxu0
      %v5489 = vadd.f32 0.0, %v5488
      %5490 = vmatmul.bf16.gmra.mxu0 %v5050
      %v5491 = vpop.f32.mrf.mxu0
      %v5492 = vadd.f32 0.0, %v5491
      %v5493 = vpop.f32.mrf.mxu0
      %v5494 = vadd.f32 0.0, %v5493
      %5495 = vmatmul.bf16.gmra.mxu0 %v5055
      %v5496 = vpop.f32.mrf.mxu0
      %v5497 = vadd.f32 0.0, %v5496
      %v5498 = vpop.f32.mrf.mxu0
      %v5499 = vadd.f32 0.0, %v5498
      %5500 = vmatmul.bf16.gmra.mxu0 %v5060
      %v5501 = vpop.f32.mrf.mxu0
      %v5502 = vadd.f32 0.0, %v5501
      %v5503 = vpop.f32.mrf.mxu0
      %v5504 = vadd.f32 0.0, %v5503
      %5505 = vmatmul.bf16.gmra.mxu0 %v5065
      %v5506 = vpop.f32.mrf.mxu0
      %v5507 = vadd.f32 0.0, %v5506
      %v5508 = vpop.f32.mrf.mxu0
      %v5509 = vadd.f32 0.0, %v5508
      %5510 = vmatmul.bf16.gmra.mxu0 %v5070
      %v5511 = vpop.f32.mrf.mxu0
      %v5512 = vadd.f32 0.0, %v5511
      %v5513 = vpop.f32.mrf.mxu0
      %v5514 = vadd.f32 0.0, %v5513
      %5515 = vmatmul.bf16.gmra.mxu0 %v5075
      %v5516 = vpop.f32.mrf.mxu0
      %v5517 = vadd.f32 0.0, %v5516
      %v5518 = vpop.f32.mrf.mxu0
      %v5519 = vadd.f32 0.0, %v5518
      %5520 = vmatmul.bf16.gmra.mxu0 %v5080
      %v5521 = vpop.f32.mrf.mxu0
      %v5522 = vadd.f32 0.0, %v5521
      %v5523 = vpop.f32.mrf.mxu0
      %v5524 = vadd.f32 0.0, %v5523
      %5525 = vmatmul.bf16.gmra.mxu0 %v5085
      %v5526 = vpop.f32.mrf.mxu0
      %v5527 = vadd.f32 0.0, %v5526
      %v5528 = vpop.f32.mrf.mxu0
      %v5529 = vadd.f32 0.0, %v5528
      %5530 = vmatmul.bf16.gmra.mxu0 %v5090
      %v5531 = vpop.f32.mrf.mxu0
      %v5532 = vadd.f32 0.0, %v5531
      %v5533 = vpop.f32.mrf.mxu0
      %v5534 = vadd.f32 0.0, %v5533
      %5535 = vmatmul.bf16.gmra.mxu0 %v5095
      %v5536 = vpop.f32.mrf.mxu0
      %v5537 = vadd.f32 0.0, %v5536
      %v5538 = vpop.f32.mrf.mxu0
      %v5539 = vadd.f32 0.0, %v5538
      %5540 = vmatmul.bf16.gmra.mxu0 %v5100
      %v5541 = vpop.f32.mrf.mxu0
      %v5542 = vadd.f32 0.0, %v5541
      %v5543 = vpop.f32.mrf.mxu0
      %v5544 = vadd.f32 0.0, %v5543
      %5545 = vmatmul.bf16.gmra.mxu0 %v5105
      %v5546 = vpop.f32.mrf.mxu0
      %v5547 = vadd.f32 0.0, %v5546
      %v5548 = vpop.f32.mrf.mxu0
      %v5549 = vadd.f32 0.0, %v5548
      %5550 = vmatmul.bf16.gmra.mxu0 %v5110
      %v5551 = vpop.f32.mrf.mxu0
      %v5552 = vadd.f32 0.0, %v5551
      %v5553 = vpop.f32.mrf.mxu0
      %v5554 = vadd.f32 0.0, %v5553
      %5555 = vmatmul.bf16.gmra.mxu0 %v5115
      %v5556 = vpop.f32.mrf.mxu0
      %v5557 = vadd.f32 0.0, %v5556
      %v5558 = vpop.f32.mrf.mxu0
      %v5559 = vadd.f32 0.0, %v5558
      %5560 = vmatmul.bf16.gmra.mxu0 %v5120
      %v5561 = vpop.f32.mrf.mxu0
      %v5562 = vadd.f32 0.0, %v5561
      %v5563 = vpop.f32.mrf.mxu0
      %v5564 = vadd.f32 0.0, %v5563
      %5565 = vmatmul.bf16.gmra.mxu0 %v5125
      %v5566 = vpop.f32.mrf.mxu0
      %v5567 = vadd.f32 0.0, %v5566
      %v5568 = vpop.f32.mrf.mxu0
      %v5569 = vadd.f32 0.0, %v5568
      %5570 = vmatmul.bf16.gmra.mxu0 %v5130
      %v5571 = vpop.f32.mrf.mxu0
      %v5572 = vadd.f32 0.0, %v5571
      %v5573 = vpop.f32.mrf.mxu0
      %v5574 = vadd.f32 0.0, %v5573
      %5575 = vdwg.mxu0
      %5576 = vmatpush.bf16.msra.mxu0 %v5366
      %5577 = vmatpush.bf16.msra.mxu0 %v5365
      %5578 = vmatpush.bf16.msra.mxu0 %v5364
      %5579 = vmatpush.bf16.msra.mxu0 %v5363
      %5580 = vmatpush.bf16.msra.mxu0 %v5362
      %5581 = vmatpush.bf16.msra.mxu0 %v5361
      %5582 = vmatpush.bf16.msra.mxu0 %v5360
      %5583 = vmatpush.bf16.msra.mxu0 %v5359
      %5584 = vmatmul.bf16.gmra.mxu0 %v5046
      %v5585 = vpop.f32.mrf.mxu0
      %v5586 = vadd.f32 %v5487, %v5585
      %v5587 = vpop.f32.mrf.mxu0
      %v5588 = vadd.f32 %v5489, %v5587
      %5589 = vmatmul.bf16.gmra.mxu0 %v5051
      %v5590 = vpop.f32.mrf.mxu0
      %v5591 = vadd.f32 %v5492, %v5590
      %v5592 = vpop.f32.mrf.mxu0
      %v5593 = vadd.f32 %v5494, %v5592
      %5594 = vmatmul.bf16.gmra.mxu0 %v5056
      %v5595 = vpop.f32.mrf.mxu0
      %v5596 = vadd.f32 %v5497, %v5595
      %v5597 = vpop.f32.mrf.mxu0
      %v5598 = vadd.f32 %v5499, %v5597
      %5599 = vmatmul.bf16.gmra.mxu0 %v5061
      %v5600 = vpop.f32.mrf.mxu0
      %v5601 = vadd.f32 %v5502, %v5600
      %v5602 = vpop.f32.mrf.mxu0
      %v5603 = vadd.f32 %v5504, %v5602
      %5604 = vmatmul.bf16.gmra.mxu0 %v5066
      %v5605 = vpop.f32.mrf.mxu0
      %v5606 = vadd.f32 %v5507, %v5605
      %v5607 = vpop.f32.mrf.mxu0
      %v5608 = vadd.f32 %v5509, %v5607
      %5609 = vmatmul.bf16.gmra.mxu0 %v5071
      %v5610 = vpop.f32.mrf.mxu0
      %v5611 = vadd.f32 %v5512, %v5610
      %v5612 = vpop.f32.mrf.mxu0
      %v5613 = vadd.f32 %v5514, %v5612
      %5614 = vmatmul.bf16.gmra.mxu0 %v5076
      %v5615 = vpop.f32.mrf.mxu0
      %v5616 = vadd.f32 %v5517, %v5615
      %v5617 = vpop.f32.mrf.mxu0
      %v5618 = vadd.f32 %v5519, %v5617
      %5619 = vmatmul.bf16.gmra.mxu0 %v5081
      %v5620 = vpop.f32.mrf.mxu0
      %v5621 = vadd.f32 %v5522, %v5620
      %v5622 = vpop.f32.mrf.mxu0
      %v5623 = vadd.f32 %v5524, %v5622
      %5624 = vmatmul.bf16.gmra.mxu0 %v5086
      %v5625 = vpop.f32.mrf.mxu0
      %v5626 = vadd.f32 %v5527, %v5625
      %v5627 = vpop.f32.mrf.mxu0
      %v5628 = vadd.f32 %v5529, %v5627
      %5629 = vmatmul.bf16.gmra.mxu0 %v5091
      %v5630 = vpop.f32.mrf.mxu0
      %v5631 = vadd.f32 %v5532, %v5630
      %v5632 = vpop.f32.mrf.mxu0
      %v5633 = vadd.f32 %v5534, %v5632
      %5634 = vmatmul.bf16.gmra.mxu0 %v5096
      %v5635 = vpop.f32.mrf.mxu0
      %v5636 = vadd.f32 %v5537, %v5635
      %v5637 = vpop.f32.mrf.mxu0
      %v5638 = vadd.f32 %v5539, %v5637
      %5639 = vmatmul.bf16.gmra.mxu0 %v5101
      %v5640 = vpop.f32.mrf.mxu0
      %v5641 = vadd.f32 %v5542, %v5640
      %v5642 = vpop.f32.mrf.mxu0
      %v5643 = vadd.f32 %v5544, %v5642
      %5644 = vmatmul.bf16.gmra.mxu0 %v5106
      %v5645 = vpop.f32.mrf.mxu0
      %v5646 = vadd.f32 %v5547, %v5645
      %v5647 = vpop.f32.mrf.mxu0
      %v5648 = vadd.f32 %v5549, %v5647
      %5649 = vmatmul.bf16.gmra.mxu0 %v5111
      %v5650 = vpop.f32.mrf.mxu0
      %v5651 = vadd.f32 %v5552, %v5650
      %v5652 = vpop.f32.mrf.mxu0
      %v5653 = vadd.f32 %v5554, %v5652
      %5654 = vmatmul.bf16.gmra.mxu0 %v5116
      %v5655 = vpop.f32.mrf.mxu0
      %v5656 = vadd.f32 %v5557, %v5655
      %v5657 = vpop.f32.mrf.mxu0
      %v5658 = vadd.f32 %v5559, %v5657
      %5659 = vmatmul.bf16.gmra.mxu0 %v5121
      %v5660 = vpop.f32.mrf.mxu0
      %v5661 = vadd.f32 %v5562, %v5660
      %v5662 = vpop.f32.mrf.mxu0
      %v5663 = vadd.f32 %v5564, %v5662
      %5664 = vmatmul.bf16.gmra.mxu0 %v5126
      %v5665 = vpop.f32.mrf.mxu0
      %v5666 = vadd.f32 %v5567, %v5665
      %v5667 = vpop.f32.mrf.mxu0
      %v5668 = vadd.f32 %v5569, %v5667
      %5669 = vmatmul.bf16.gmra.mxu0 %v5131
      %v5670 = vpop.f32.mrf.mxu0
      %v5671 = vadd.f32 %v5572, %v5670
      %v5672 = vpop.f32.mrf.mxu0
      %v5673 = vadd.f32 %v5574, %v5672
      %5674 = vdwg.mxu0
      %5675 = vmatpush.bf16.msra.mxu0 %v5374
      %5676 = vmatpush.bf16.msra.mxu0 %v5373
      %5677 = vmatpush.bf16.msra.mxu0 %v5372
      %5678 = vmatpush.bf16.msra.mxu0 %v5371
      %5679 = vmatpush.bf16.msra.mxu0 %v5370
      %5680 = vmatpush.bf16.msra.mxu0 %v5369
      %5681 = vmatpush.bf16.msra.mxu0 %v5368
      %5682 = vmatpush.bf16.msra.mxu0 %v5367
      %5683 = vmatmul.bf16.gmra.mxu0 %v5047
      %v5684 = vpop.f32.mrf.mxu0
      %v5685 = vadd.f32 %v5586, %v5684
      %v5686 = vpop.f32.mrf.mxu0
      %v5687 = vadd.f32 %v5588, %v5686
      %5688 = vmatmul.bf16.gmra.mxu0 %v5052
      %v5689 = vpop.f32.mrf.mxu0
      %v5690 = vadd.f32 %v5591, %v5689
      %v5691 = vpop.f32.mrf.mxu0
      %v5692 = vadd.f32 %v5593, %v5691
      %5693 = vmatmul.bf16.gmra.mxu0 %v5057
      %v5694 = vpop.f32.mrf.mxu0
      %v5695 = vadd.f32 %v5596, %v5694
      %v5696 = vpop.f32.mrf.mxu0
      %v5697 = vadd.f32 %v5598, %v5696
      %5698 = vmatmul.bf16.gmra.mxu0 %v5062
      %v5699 = vpop.f32.mrf.mxu0
      %v5700 = vadd.f32 %v5601, %v5699
      %v5701 = vpop.f32.mrf.mxu0
      %v5702 = vadd.f32 %v5603, %v5701
      %5703 = vmatmul.bf16.gmra.mxu0 %v5067
      %v5704 = vpop.f32.mrf.mxu0
      %v5705 = vadd.f32 %v5606, %v5704
      %v5706 = vpop.f32.mrf.mxu0
      %v5707 = vadd.f32 %v5608, %v5706
      %5708 = vmatmul.bf16.gmra.mxu0 %v5072
      %v5709 = vpop.f32.mrf.mxu0
      %v5710 = vadd.f32 %v5611, %v5709
      %v5711 = vpop.f32.mrf.mxu0
      %v5712 = vadd.f32 %v5613, %v5711
      %5713 = vmatmul.bf16.gmra.mxu0 %v5077
      %v5714 = vpop.f32.mrf.mxu0
      %v5715 = vadd.f32 %v5616, %v5714
      %v5716 = vpop.f32.mrf.mxu0
      %v5717 = vadd.f32 %v5618, %v5716
      %5718 = vmatmul.bf16.gmra.mxu0 %v5082
      %v5719 = vpop.f32.mrf.mxu0
      %v5720 = vadd.f32 %v5621, %v5719
      %v5721 = vpop.f32.mrf.mxu0
      %v5722 = vadd.f32 %v5623, %v5721
      %5723 = vmatmul.bf16.gmra.mxu0 %v5087
      %v5724 = vpop.f32.mrf.mxu0
      %v5725 = vadd.f32 %v5626, %v5724
      %v5726 = vpop.f32.mrf.mxu0
      %v5727 = vadd.f32 %v5628, %v5726
      %5728 = vmatmul.bf16.gmra.mxu0 %v5092
      %v5729 = vpop.f32.mrf.mxu0
      %v5730 = vadd.f32 %v5631, %v5729
      %v5731 = vpop.f32.mrf.mxu0
      %v5732 = vadd.f32 %v5633, %v5731
      %5733 = vmatmul.bf16.gmra.mxu0 %v5097
      %v5734 = vpop.f32.mrf.mxu0
      %v5735 = vadd.f32 %v5636, %v5734
      %v5736 = vpop.f32.mrf.mxu0
      %v5737 = vadd.f32 %v5638, %v5736
      %5738 = vmatmul.bf16.gmra.mxu0 %v5102
      %v5739 = vpop.f32.mrf.mxu0
      %v5740 = vadd.f32 %v5641, %v5739
      %v5741 = vpop.f32.mrf.mxu0
      %v5742 = vadd.f32 %v5643, %v5741
      %5743 = vmatmul.bf16.gmra.mxu0 %v5107
      %v5744 = vpop.f32.mrf.mxu0
      %v5745 = vadd.f32 %v5646, %v5744
      %v5746 = vpop.f32.mrf.mxu0
      %v5747 = vadd.f32 %v5648, %v5746
      %5748 = vmatmul.bf16.gmra.mxu0 %v5112
      %v5749 = vpop.f32.mrf.mxu0
      %v5750 = vadd.f32 %v5651, %v5749
      %v5751 = vpop.f32.mrf.mxu0
      %v5752 = vadd.f32 %v5653, %v5751
      %5753 = vmatmul.bf16.gmra.mxu0 %v5117
      %v5754 = vpop.f32.mrf.mxu0
      %v5755 = vadd.f32 %v5656, %v5754
      %v5756 = vpop.f32.mrf.mxu0
      %v5757 = vadd.f32 %v5658, %v5756
      %5758 = vmatmul.bf16.gmra.mxu0 %v5122
      %v5759 = vpop.f32.mrf.mxu0
      %v5760 = vadd.f32 %v5661, %v5759
      %v5761 = vpop.f32.mrf.mxu0
      %v5762 = vadd.f32 %v5663, %v5761
      %5763 = vmatmul.bf16.gmra.mxu0 %v5127
      %v5764 = vpop.f32.mrf.mxu0
      %v5765 = vadd.f32 %v5666, %v5764
      %v5766 = vpop.f32.mrf.mxu0
      %v5767 = vadd.f32 %v5668, %v5766
      %5768 = vmatmul.bf16.gmra.mxu0 %v5132
      %v5769 = vpop.f32.mrf.mxu0
      %v5770 = vadd.f32 %v5671, %v5769
      %v5771 = vpop.f32.mrf.mxu0
      %v5772 = vadd.f32 %v5673, %v5771
      %5773 = vdwg.mxu0
      %5774 = vmatpush.bf16.msra.mxu0 %v5382
      %5775 = vmatpush.bf16.msra.mxu0 %v5381
      %5776 = vmatpush.bf16.msra.mxu0 %v5380
      %5777 = vmatpush.bf16.msra.mxu0 %v5379
      %5778 = vmatpush.bf16.msra.mxu0 %v5378
      %5779 = vmatpush.bf16.msra.mxu0 %v5377
      %5780 = vmatpush.bf16.msra.mxu0 %v5376
      %5781 = vmatpush.bf16.msra.mxu0 %v5375
      %5782 = vmatmul.bf16.gmra.mxu0 %v5048
      %v5783 = vpop.f32.mrf.mxu0
      %v5784 = vadd.f32 %v5685, %v5783
      %v5785 = vpop.f32.mrf.mxu0
      %v5786 = vadd.f32 %v5687, %v5785
      %5787 = vmatmul.bf16.gmra.mxu0 %v5053
      %v5788 = vpop.f32.mrf.mxu0
      %v5789 = vadd.f32 %v5690, %v5788
      %v5790 = vpop.f32.mrf.mxu0
      %v5791 = vadd.f32 %v5692, %v5790
      %5792 = vmatmul.bf16.gmra.mxu0 %v5058
      %v5793 = vpop.f32.mrf.mxu0
      %v5794 = vadd.f32 %v5695, %v5793
      %v5795 = vpop.f32.mrf.mxu0
      %v5796 = vadd.f32 %v5697, %v5795
      %5797 = vmatmul.bf16.gmra.mxu0 %v5063
      %v5798 = vpop.f32.mrf.mxu0
      %v5799 = vadd.f32 %v5700, %v5798
      %v5800 = vpop.f32.mrf.mxu0
      %v5801 = vadd.f32 %v5702, %v5800
      %5802 = vmatmul.bf16.gmra.mxu0 %v5068
      %v5803 = vpop.f32.mrf.mxu0
      %v5804 = vadd.f32 %v5705, %v5803
      %v5805 = vpop.f32.mrf.mxu0
      %v5806 = vadd.f32 %v5707, %v5805
      %5807 = vmatmul.bf16.gmra.mxu0 %v5073
      %v5808 = vpop.f32.mrf.mxu0
      %v5809 = vadd.f32 %v5710, %v5808
      %v5810 = vpop.f32.mrf.mxu0
      %v5811 = vadd.f32 %v5712, %v5810
      %5812 = vmatmul.bf16.gmra.mxu0 %v5078
      %v5813 = vpop.f32.mrf.mxu0
      %v5814 = vadd.f32 %v5715, %v5813
      %v5815 = vpop.f32.mrf.mxu0
      %v5816 = vadd.f32 %v5717, %v5815
      %5817 = vmatmul.bf16.gmra.mxu0 %v5083
      %v5818 = vpop.f32.mrf.mxu0
      %v5819 = vadd.f32 %v5720, %v5818
      %v5820 = vpop.f32.mrf.mxu0
      %v5821 = vadd.f32 %v5722, %v5820
      %5822 = vmatmul.bf16.gmra.mxu0 %v5088
      %v5823 = vpop.f32.mrf.mxu0
      %v5824 = vadd.f32 %v5725, %v5823
      %v5825 = vpop.f32.mrf.mxu0
      %v5826 = vadd.f32 %v5727, %v5825
      %5827 = vmatmul.bf16.gmra.mxu0 %v5093
      %v5828 = vpop.f32.mrf.mxu0
      %v5829 = vadd.f32 %v5730, %v5828
      %v5830 = vpop.f32.mrf.mxu0
      %v5831 = vadd.f32 %v5732, %v5830
      %5832 = vmatmul.bf16.gmra.mxu0 %v5098
      %v5833 = vpop.f32.mrf.mxu0
      %v5834 = vadd.f32 %v5735, %v5833
      %v5835 = vpop.f32.mrf.mxu0
      %v5836 = vadd.f32 %v5737, %v5835
      %5837 = vmatmul.bf16.gmra.mxu0 %v5103
      %v5838 = vpop.f32.mrf.mxu0
      %v5839 = vadd.f32 %v5740, %v5838
      %v5840 = vpop.f32.mrf.mxu0
      %v5841 = vadd.f32 %v5742, %v5840
      %5842 = vmatmul.bf16.gmra.mxu0 %v5108
      %v5843 = vpop.f32.mrf.mxu0
      %v5844 = vadd.f32 %v5745, %v5843
      %v5845 = vpop.f32.mrf.mxu0
      %v5846 = vadd.f32 %v5747, %v5845
      %5847 = vmatmul.bf16.gmra.mxu0 %v5113
      %v5848 = vpop.f32.mrf.mxu0
      %v5849 = vadd.f32 %v5750, %v5848
      %v5850 = vpop.f32.mrf.mxu0
      %v5851 = vadd.f32 %v5752, %v5850
      %5852 = vmatmul.bf16.gmra.mxu0 %v5118
      %v5853 = vpop.f32.mrf.mxu0
      %v5854 = vadd.f32 %v5755, %v5853
      %v5855 = vpop.f32.mrf.mxu0
      %v5856 = vadd.f32 %v5757, %v5855
      %5857 = vmatmul.bf16.gmra.mxu0 %v5123
      %v5858 = vpop.f32.mrf.mxu0
      %v5859 = vadd.f32 %v5760, %v5858
      %v5860 = vpop.f32.mrf.mxu0
      %v5861 = vadd.f32 %v5762, %v5860
      %5862 = vmatmul.bf16.gmra.mxu0 %v5128
      %v5863 = vpop.f32.mrf.mxu0
      %v5864 = vadd.f32 %v5765, %v5863
      %v5865 = vpop.f32.mrf.mxu0
      %v5866 = vadd.f32 %v5767, %v5865
      %5867 = vmatmul.bf16.gmra.mxu0 %v5133
      %v5868 = vpop.f32.mrf.mxu0
      %v5869 = vadd.f32 %v5770, %v5868
      %v5870 = vpop.f32.mrf.mxu0
      %v5871 = vadd.f32 %v5772, %v5870
      %5872 = vdwg.mxu0
      %5873 = vmatpush.bf16.msra.mxu0 0
      %5874 = vmatpush.bf16.msra.mxu0 0
      %5875 = vmatpush.bf16.msra.mxu0 0
      %5876 = vmatpush.bf16.msra.mxu0 0
      %5877 = vmatpush.bf16.msra.mxu0 %v5386
      %5878 = vmatpush.bf16.msra.mxu0 %v5385
      %5879 = vmatpush.bf16.msra.mxu0 %v5384
      %5880 = vmatpush.bf16.msra.mxu0 %v5383
      %5881 = vmatmul.bf16.gmra.mxu0 %v5424
      %v5882 = vpop.f32.mrf.mxu0
      %v5883 = vadd.f32 %v5784, %v5882
      %v5884 = vpop.f32.mrf.mxu0
      %v5885 = vadd.f32 %v5786, %v5884
      %5886 = vmatmul.bf16.gmra.mxu0 %v5427
      %v5887 = vpop.f32.mrf.mxu0
      %v5888 = vadd.f32 %v5789, %v5887
      %v5889 = vpop.f32.mrf.mxu0
      %v5890 = vadd.f32 %v5791, %v5889
      %5891 = vmatmul.bf16.gmra.mxu0 %v5430
      %v5892 = vpop.f32.mrf.mxu0
      %v5893 = vadd.f32 %v5794, %v5892
      %v5894 = vpop.f32.mrf.mxu0
      %v5895 = vadd.f32 %v5796, %v5894
      %5896 = vmatmul.bf16.gmra.mxu0 %v5433
      %v5897 = vpop.f32.mrf.mxu0
      %v5898 = vadd.f32 %v5799, %v5897
      %v5899 = vpop.f32.mrf.mxu0
      %v5900 = vadd.f32 %v5801, %v5899
      %5901 = vmatmul.bf16.gmra.mxu0 %v5436
      %v5902 = vpop.f32.mrf.mxu0
      %v5903 = vadd.f32 %v5804, %v5902
      %v5904 = vpop.f32.mrf.mxu0
      %v5905 = vadd.f32 %v5806, %v5904
      %5906 = vmatmul.bf16.gmra.mxu0 %v5439
      %v5907 = vpop.f32.mrf.mxu0
      %v5908 = vadd.f32 %v5809, %v5907
      %v5909 = vpop.f32.mrf.mxu0
      %v5910 = vadd.f32 %v5811, %v5909
      %5911 = vmatmul.bf16.gmra.mxu0 %v5442
      %v5912 = vpop.f32.mrf.mxu0
      %v5913 = vadd.f32 %v5814, %v5912
      %v5914 = vpop.f32.mrf.mxu0
      %v5915 = vadd.f32 %v5816, %v5914
      %5916 = vmatmul.bf16.gmra.mxu0 %v5445
      %v5917 = vpop.f32.mrf.mxu0
      %v5918 = vadd.f32 %v5819, %v5917
      %v5919 = vpop.f32.mrf.mxu0
      %v5920 = vadd.f32 %v5821, %v5919
      %5921 = vmatmul.bf16.gmra.mxu0 %v5448
      %v5922 = vpop.f32.mrf.mxu0
      %v5923 = vadd.f32 %v5824, %v5922
      %v5924 = vpop.f32.mrf.mxu0
      %v5925 = vadd.f32 %v5826, %v5924
      %5926 = vmatmul.bf16.gmra.mxu0 %v5451
      %v5927 = vpop.f32.mrf.mxu0
      %v5928 = vadd.f32 %v5829, %v5927
      %v5929 = vpop.f32.mrf.mxu0
      %v5930 = vadd.f32 %v5831, %v5929
      %5931 = vmatmul.bf16.gmra.mxu0 %v5454
      %v5932 = vpop.f32.mrf.mxu0
      %v5933 = vadd.f32 %v5834, %v5932
      %v5934 = vpop.f32.mrf.mxu0
      %v5935 = vadd.f32 %v5836, %v5934
      %5936 = vmatmul.bf16.gmra.mxu0 %v5457
      %v5937 = vpop.f32.mrf.mxu0
      %v5938 = vadd.f32 %v5839, %v5937
      %v5939 = vpop.f32.mrf.mxu0
      %v5940 = vadd.f32 %v5841, %v5939
      %5941 = vmatmul.bf16.gmra.mxu0 %v5460
      %v5942 = vpop.f32.mrf.mxu0
      %v5943 = vadd.f32 %v5844, %v5942
      %v5944 = vpop.f32.mrf.mxu0
      %v5945 = vadd.f32 %v5846, %v5944
      %5946 = vmatmul.bf16.gmra.mxu0 %v5463
      %v5947 = vpop.f32.mrf.mxu0
      %v5948 = vadd.f32 %v5849, %v5947
      %v5949 = vpop.f32.mrf.mxu0
      %v5950 = vadd.f32 %v5851, %v5949
      %5951 = vmatmul.bf16.gmra.mxu0 %v5466
      %v5952 = vpop.f32.mrf.mxu0
      %v5953 = vadd.f32 %v5854, %v5952
      %v5954 = vpop.f32.mrf.mxu0
      %v5955 = vadd.f32 %v5856, %v5954
      %5956 = vmatmul.bf16.gmra.mxu0 %v5469
      %v5957 = vpop.f32.mrf.mxu0
      %v5958 = vadd.f32 %v5859, %v5957
      %v5959 = vpop.f32.mrf.mxu0
      %v5960 = vadd.f32 %v5861, %v5959
      %5961 = vmatmul.bf16.gmra.mxu0 %v5472
      %v5962 = vpop.f32.mrf.mxu0
      %v5963 = vadd.f32 %v5864, %v5962
      %v5964 = vpop.f32.mrf.mxu0
      %v5965 = vadd.f32 %v5866, %v5964
      %5966 = vmatmul.bf16.gmra.mxu0 %v5475
      %v5967 = vpop.f32.mrf.mxu0
      %v5968 = vadd.f32 %v5869, %v5967
      %v5969 = vpop.f32.mrf.mxu0
      %v5970 = vadd.f32 %v5871, %v5969
      %5971 = vdwg.mxu0
      %s5972 = scalar_lea.vmem %s5, 2
      %v5973 = vld [vmem:[%s5972] sm:$0x1]
      %v5975 = vperm.slane %v5973, 0
      %v5977 = vmul.f32 %v5883, %v5975
      %v5978 = vmul.f32 %v5885, %v5975
      %v5979 = vmul.f32 %v5888, %v5975
      %v5980 = vmul.f32 %v5890, %v5975
      %v5981 = vmul.f32 %v5893, %v5975
      %v5982 = vmul.f32 %v5895, %v5975
      %v5983 = vmul.f32 %v5898, %v5975
      %v5984 = vmul.f32 %v5900, %v5975
      %v5985 = vmul.f32 %v5903, %v5975
      %v5986 = vmul.f32 %v5905, %v5975
      %v5987 = vmul.f32 %v5908, %v5975
      %v5988 = vmul.f32 %v5910, %v5975
      %v5989 = vmul.f32 %v5913, %v5975
      %v5990 = vmul.f32 %v5915, %v5975
      %v5991 = vmul.f32 %v5918, %v5975
      %v5992 = vmul.f32 %v5920, %v5975
      %v5993 = vmul.f32 %v5923, %v5975
      %v5994 = vmul.f32 %v5925, %v5975
      %v5995 = vmul.f32 %v5928, %v5975
      %v5996 = vmul.f32 %v5930, %v5975
      %v5997 = vmul.f32 %v5933, %v5975
      %v5998 = vmul.f32 %v5935, %v5975
      %v5999 = vmul.f32 %v5938, %v5975
      %v6000 = vmul.f32 %v5940, %v5975
      %v6001 = vmul.f32 %v5943, %v5975
      %v6002 = vmul.f32 %v5945, %v5975
      %v6003 = vmul.f32 %v5948, %v5975
      %v6004 = vmul.f32 %v5950, %v5975
      %v6005 = vmul.f32 %v5953, %v5975
      %v6006 = vmul.f32 %v5955, %v5975
      %v6007 = vmul.f32 %v5958, %v5975
      %v6008 = vmul.f32 %v5960, %v5975
      %v6009 = vmul.f32 %v5963, %v5975
      %v6010 = vmul.f32 %v5965, %v5975
      %v6011 = vmul.f32 %v5968, %v5975
      %v6012 = vmul.f32 %v5970, %v5975
      %s6013 = scalar_lea.vmem %s6, 2
      %v6014 = vld [vmem:[%s6013] sm:$0x1]
      %v6016 = vperm.slane %v6014, 0
      %v6018 = vadd.f32 %v5977, %v6016
      %v6019 = vadd.f32 %v5978, %v6016
      %v6020 = vadd.f32 %v5979, %v6016
      %v6021 = vadd.f32 %v5980, %v6016
      %v6022 = vadd.f32 %v5981, %v6016
      %v6023 = vadd.f32 %v5982, %v6016
      %v6024 = vadd.f32 %v5983, %v6016
      %v6025 = vadd.f32 %v5984, %v6016
      %v6026 = vadd.f32 %v5985, %v6016
      %v6027 = vadd.f32 %v5986, %v6016
      %v6028 = vadd.f32 %v5987, %v6016
      %v6029 = vadd.f32 %v5988, %v6016
      %v6030 = vadd.f32 %v5989, %v6016
      %v6031 = vadd.f32 %v5990, %v6016
      %v6032 = vadd.f32 %v5991, %v6016
      %v6033 = vadd.f32 %v5992, %v6016
      %v6034 = vadd.f32 %v5993, %v6016
      %v6035 = vadd.f32 %v5994, %v6016
      %v6036 = vadd.f32 %v5995, %v6016
      %v6037 = vadd.f32 %v5996, %v6016
      %v6038 = vadd.f32 %v5997, %v6016
      %v6039 = vadd.f32 %v5998, %v6016
      %v6040 = vadd.f32 %v5999, %v6016
      %v6041 = vadd.f32 %v6000, %v6016
      %v6042 = vadd.f32 %v6001, %v6016
      %v6043 = vadd.f32 %v6002, %v6016
      %v6044 = vadd.f32 %v6003, %v6016
      %v6045 = vadd.f32 %v6004, %v6016
      %v6046 = vadd.f32 %v6005, %v6016
      %v6047 = vadd.f32 %v6006, %v6016
      %v6048 = vadd.f32 %v6007, %v6016
      %v6049 = vadd.f32 %v6008, %v6016
      %v6050 = vadd.f32 %v6009, %v6016
      %v6051 = vadd.f32 %v6010, %v6016
      %v6052 = vadd.f32 %v6011, %v6016
      %v6053 = vadd.f32 %v6012, %v6016
      %v6054 = vmax.f32 %v6018, 0.0
      %v6055 = vmax.f32 %v6019, 0.0
      %v6056 = vmax.f32 %v6020, 0.0
      %v6057 = vmax.f32 %v6021, 0.0
      %v6058 = vmax.f32 %v6022, 0.0
      %v6059 = vmax.f32 %v6023, 0.0
      %v6060 = vmax.f32 %v6024, 0.0
      %v6061 = vmax.f32 %v6025, 0.0
      %v6062 = vmax.f32 %v6026, 0.0
      %v6063 = vmax.f32 %v6027, 0.0
      %v6064 = vmax.f32 %v6028, 0.0
      %v6065 = vmax.f32 %v6029, 0.0
      %v6066 = vmax.f32 %v6030, 0.0
      %v6067 = vmax.f32 %v6031, 0.0
      %v6068 = vmax.f32 %v6032, 0.0
      %v6069 = vmax.f32 %v6033, 0.0
      %v6070 = vmax.f32 %v6034, 0.0
      %v6071 = vmax.f32 %v6035, 0.0
      %v6072 = vmax.f32 %v6036, 0.0
      %v6073 = vmax.f32 %v6037, 0.0
      %v6074 = vmax.f32 %v6038, 0.0
      %v6075 = vmax.f32 %v6039, 0.0
      %v6076 = vmax.f32 %v6040, 0.0
      %v6077 = vmax.f32 %v6041, 0.0
      %v6078 = vmax.f32 %v6042, 0.0
      %v6079 = vmax.f32 %v6043, 0.0
      %v6080 = vmax.f32 %v6044, 0.0
      %v6081 = vmax.f32 %v6045, 0.0
      %v6082 = vmax.f32 %v6046, 0.0
      %v6083 = vmax.f32 %v6047, 0.0
      %v6084 = vmax.f32 %v6048, 0.0
      %v6085 = vmax.f32 %v6049, 0.0
      %v6086 = vmax.f32 %v6050, 0.0
      %v6087 = vmax.f32 %v6051, 0.0
      %v6088 = vmax.f32 %v6052, 0.0
      %v6089 = vmax.f32 %v6053, 0.0
      %v6090 = vsel %vm1575, %v6054, 0.0
      %v6091 = vsel %vm1576, %v6055, 0.0
      %v6092 = vsel %vm1577, %v6056, 0.0
      %v6093 = vsel %vm1578, %v6057, 0.0
      %v6094 = vsel %vm1579, %v6058, 0.0
      %v6095 = vsel %vm1580, %v6059, 0.0
      %v6096 = vsel %vm1581, %v6060, 0.0
      %v6097 = vsel %vm1582, %v6061, 0.0
      %v6098 = vsel %vm1583, %v6062, 0.0
      %v6099 = vsel %vm1584, %v6063, 0.0
      %v6100 = vsel %vm1585, %v6064, 0.0
      %v6101 = vsel %vm1586, %v6065, 0.0
      %v6102 = vsel %vm1587, %v6066, 0.0
      %v6103 = vsel %vm1588, %v6067, 0.0
      %v6104 = vsel %vm1589, %v6068, 0.0
      %v6105 = vsel %vm1590, %v6069, 0.0
      %v6106 = vsel %vm1591, %v6070, 0.0
      %v6107 = vsel %vm1592, %v6071, 0.0
      %v6108 = vsel %vm1593, %v6072, 0.0
      %v6109 = vsel %vm1594, %v6073, 0.0
      %v6110 = vsel %vm1595, %v6074, 0.0
      %v6111 = vsel %vm1596, %v6075, 0.0
      %v6112 = vsel %vm1597, %v6076, 0.0
      %v6113 = vsel %vm1598, %v6077, 0.0
      %v6114 = vsel %vm1599, %v6078, 0.0
      %v6115 = vsel %vm1600, %v6079, 0.0
      %v6116 = vsel %vm1601, %v6080, 0.0
      %v6117 = vsel %vm1602, %v6081, 0.0
      %v6118 = vsel %vm1603, %v6082, 0.0
      %v6119 = vsel %vm1604, %v6083, 0.0
      %v6120 = vsel %vm1605, %v6084, 0.0
      %v6121 = vsel %vm1606, %v6085, 0.0
      %v6122 = vsel %vm1607, %v6086, 0.0
      %v6123 = vsel %vm1608, %v6087, 0.0
      %v6124 = vsel %vm1609, %v6088, 0.0
      %v6125 = vsel %vm1610, %v6089, 0.0
      %6126 = vst.msk [vmem:[#allocation2 + $0x18] sm:$0xff] %vm307, %v6090
      %6127 = vst.msk [vmem:[#allocation2 + $0x20] sm:$0xff] %vm307, %v6091
      %6128 = vst.msk [vmem:[#allocation2 + $0x28] sm:$0xff] %vm307, %v6092
      %6129 = vst.msk [vmem:[#allocation2 + $0x30] sm:$0xff] %vm307, %v6093
      %6130 = vst.msk [vmem:[#allocation2 + $0x38] sm:$0xff] %vm307, %v6094
      %6131 = vst.msk [vmem:[#allocation2 + $0x40] sm:$0xff] %vm307, %v6095
      %6132 = vst.msk [vmem:[#allocation2 + $0x48] sm:$0xff] %vm307, %v6096
      %6133 = vst.msk [vmem:[#allocation2 + $0x50] sm:$0xff] %vm307, %v6097
      %6134 = vst.msk [vmem:[#allocation2 + $0x58] sm:$0xff] %vm307, %v6098
      %6135 = vst.msk [vmem:[#allocation2 + $0x60] sm:$0xff] %vm307, %v6099
      %6136 = vst.msk [vmem:[#allocation2 + $0x68] sm:$0xff] %vm307, %v6100
      %6137 = vst.msk [vmem:[#allocation2 + $0x70] sm:$0xff] %vm307, %v6101
      %6138 = vst.msk [vmem:[#allocation2 + $0x78] sm:$0xff] %vm307, %v6102
      %6139 = vst.msk [vmem:[#allocation2 + $0x80] sm:$0xff] %vm307, %v6103
      %6140 = vst.msk [vmem:[#allocation2 + $0x88] sm:$0xff] %vm307, %v6104
      %6141 = vst.msk [vmem:[#allocation2 + $0x90] sm:$0xff] %vm307, %v6105
      %6142 = vst.msk [vmem:[#allocation2 + $0x98] sm:$0xff] %vm307, %v6106
      %6143 = vst.msk [vmem:[#allocation2 + $0xa0] sm:$0xff] %vm307, %v6107
      %6144 = vst.msk [vmem:[#allocation2 + $0xa8] sm:$0xff] %vm307, %v6108
      %6145 = vst.msk [vmem:[#allocation2 + $0xb0] sm:$0xff] %vm307, %v6109
      %6146 = vst.msk [vmem:[#allocation2 + $0xb8] sm:$0xff] %vm307, %v6110
      %6147 = vst.msk [vmem:[#allocation2 + $0xc0] sm:$0xff] %vm307, %v6111
      %6148 = vst.msk [vmem:[#allocation2 + $0xc8] sm:$0xff] %vm307, %v6112
      %6149 = vst.msk [vmem:[#allocation2 + $0xd0] sm:$0xff] %vm307, %v6113
      %6150 = vst.msk [vmem:[#allocation2 + $0xd8] sm:$0xff] %vm307, %v6114
      %6151 = vst.msk [vmem:[#allocation2 + $0xe0] sm:$0xff] %vm307, %v6115
      %6152 = vst.msk [vmem:[#allocation2 + $0xe8] sm:$0xff] %vm307, %v6116
      %6153 = vst.msk [vmem:[#allocation2 + $0xf0] sm:$0xff] %vm307, %v6117
      %6154 = vst.msk [vmem:[#allocation2 + $0xf8] sm:$0xff] %vm307, %v6118
      %6155 = vst.msk [vmem:[#allocation2 + $0x100] sm:$0xff] %vm307, %v6119
      %6156 = vst.msk [vmem:[#allocation2 + $0x108] sm:$0xff] %vm307, %v6120
      %6157 = vst.msk [vmem:[#allocation2 + $0x110] sm:$0xff] %vm307, %v6121
      %6158 = vst.msk [vmem:[#allocation2 + $0x118] sm:$0xff] %vm307, %v6122
      %6159 = vst.msk [vmem:[#allocation2 + $0x120] sm:$0xff] %vm307, %v6123
      %6160 = vst.msk [vmem:[#allocation2 + $0x128] sm:$0xff] %vm307, %v6124
      %6161 = vst.msk [vmem:[#allocation2 + $0x130] sm:$0xff] %vm307, %v6125
      %v6162 = vld [vmem:[#allocation2 + $0x5] sm:$0xff]
      %v6163 = vld [vmem:[#allocation2 + $0xd] sm:$0xff]
      %v6164 = vld [vmem:[#allocation2 + $0x15] sm:$0xff]
      %v6165 = vld [vmem:[#allocation2 + $0x1d] sm:$0xff]
      %v6166 = vld [vmem:[#allocation2 + $0x25] sm:$0xff]
      %v6167 = vld [vmem:[#allocation2 + $0x2d] sm:$0xff]
      %v6168 = vld [vmem:[#allocation2 + $0x35] sm:$0xff]
      %v6169 = vld [vmem:[#allocation2 + $0x3d] sm:$0xff]
      %v6170 = vld [vmem:[#allocation2 + $0x45] sm:$0xff]
      %v6171 = vld [vmem:[#allocation2 + $0x4d] sm:$0xff]
      %v6172 = vld [vmem:[#allocation2 + $0x55] sm:$0xff]
      %v6173 = vld [vmem:[#allocation2 + $0x5d] sm:$0xff]
      %v6174 = vld [vmem:[#allocation2 + $0x65] sm:$0xff]
      %v6175 = vld [vmem:[#allocation2 + $0x6d] sm:$0xff]
      %v6176 = vld [vmem:[#allocation2 + $0x75] sm:$0xff]
      %v6177 = vld [vmem:[#allocation2 + $0x7d] sm:$0xff]
      %v6178 = vld [vmem:[#allocation2 + $0x85] sm:$0xff]
      %v6179 = vld [vmem:[#allocation2 + $0x8d] sm:$0xff]
      %v6180 = vld [vmem:[#allocation2 + $0x95] sm:$0xff]
      %v6181 = vld [vmem:[#allocation2 + $0x9d] sm:$0xff]
      %v6182 = vld [vmem:[#allocation2 + $0xa5] sm:$0xff]
      %v6183 = vld [vmem:[#allocation2 + $0xad] sm:$0xff]
      %v6184 = vld [vmem:[#allocation2 + $0xb5] sm:$0xff]
      %v6185 = vld [vmem:[#allocation2 + $0xbd] sm:$0xff]
      %v6186 = vld [vmem:[#allocation2 + $0xc5] sm:$0xff]
      %v6187 = vld [vmem:[#allocation2 + $0xcd] sm:$0xff]
      %v6188 = vld [vmem:[#allocation2 + $0xd5] sm:$0xff]
      %v6189 = vld [vmem:[#allocation2 + $0xdd] sm:$0xff]
      %v6190 = vld [vmem:[#allocation2 + $0xe5] sm:$0xff]
      %v6191 = vld [vmem:[#allocation2 + $0xed] sm:$0xff]
      %v6192 = vld [vmem:[#allocation2 + $0xf5] sm:$0xff]
      %v6193 = vld [vmem:[#allocation2 + $0xfd] sm:$0xff]
      %v6194 = vld [vmem:[#allocation2 + $0x105] sm:$0xff]
      %v6195 = vld [vmem:[#allocation2 + $0x10d] sm:$0xff]
      %v6196 = vld [vmem:[#allocation2 + $0x115] sm:$0xff]
      %v6197 = vld [vmem:[#allocation2 + $0x11d] sm:$0xff]
      %v6198 = vld [vmem:[#allocation2 + $0x6] sm:$0xff]
      %v6199 = vld [vmem:[#allocation2 + $0xe] sm:$0xff]
      %v6200 = vld [vmem:[#allocation2 + $0x16] sm:$0xff]
      %v6201 = vld [vmem:[#allocation2 + $0x1e] sm:$0xff]
      %v6202 = vld [vmem:[#allocation2 + $0x26] sm:$0xff]
      %v6203 = vld [vmem:[#allocation2 + $0x2e] sm:$0xff]
      %v6204 = vld [vmem:[#allocation2 + $0x36] sm:$0xff]
      %v6205 = vld [vmem:[#allocation2 + $0x3e] sm:$0xff]
      %v6206 = vld [vmem:[#allocation2 + $0x46] sm:$0xff]
      %v6207 = vld [vmem:[#allocation2 + $0x4e] sm:$0xff]
      %v6208 = vld [vmem:[#allocation2 + $0x56] sm:$0xff]
      %v6209 = vld [vmem:[#allocation2 + $0x5e] sm:$0xff]
      %v6210 = vld [vmem:[#allocation2 + $0x66] sm:$0xff]
      %v6211 = vld [vmem:[#allocation2 + $0x6e] sm:$0xff]
      %v6212 = vld [vmem:[#allocation2 + $0x76] sm:$0xff]
      %v6213 = vld [vmem:[#allocation2 + $0x7e] sm:$0xff]
      %v6214 = vld [vmem:[#allocation2 + $0x86] sm:$0xff]
      %v6215 = vld [vmem:[#allocation2 + $0x8e] sm:$0xff]
      %v6216 = vld [vmem:[#allocation2 + $0x96] sm:$0xff]
      %v6217 = vld [vmem:[#allocation2 + $0x9e] sm:$0xff]
      %v6218 = vld [vmem:[#allocation2 + $0xa6] sm:$0xff]
      %v6219 = vld [vmem:[#allocation2 + $0xae] sm:$0xff]
      %v6220 = vld [vmem:[#allocation2 + $0xb6] sm:$0xff]
      %v6221 = vld [vmem:[#allocation2 + $0xbe] sm:$0xff]
      %v6222 = vld [vmem:[#allocation2 + $0xc6] sm:$0xff]
      %v6223 = vld [vmem:[#allocation2 + $0xce] sm:$0xff]
      %v6224 = vld [vmem:[#allocation2 + $0xd6] sm:$0xff]
      %v6225 = vld [vmem:[#allocation2 + $0xde] sm:$0xff]
      %v6226 = vld [vmem:[#allocation2 + $0xe6] sm:$0xff]
      %v6227 = vld [vmem:[#allocation2 + $0xee] sm:$0xff]
      %v6228 = vld [vmem:[#allocation2 + $0xf6] sm:$0xff]
      %v6229 = vld [vmem:[#allocation2 + $0xfe] sm:$0xff]
      %v6230 = vld [vmem:[#allocation2 + $0x106] sm:$0xff]
      %v6231 = vld [vmem:[#allocation2 + $0x10e] sm:$0xff]
      %v6232 = vld [vmem:[#allocation2 + $0x116] sm:$0xff]
      %v6233 = vld [vmem:[#allocation2 + $0x11e] sm:$0xff]
      %v6234 = vld [vmem:[#allocation2 + $0x7] sm:$0xff]
      %v6235 = vld [vmem:[#allocation2 + $0xf] sm:$0xff]
      %v6236 = vld [vmem:[#allocation2 + $0x17] sm:$0xff]
      %v6237 = vld [vmem:[#allocation2 + $0x1f] sm:$0xff]
      %v6238 = vld [vmem:[#allocation2 + $0x27] sm:$0xff]
      %v6239 = vld [vmem:[#allocation2 + $0x2f] sm:$0xff]
      %v6240 = vld [vmem:[#allocation2 + $0x37] sm:$0xff]
      %v6241 = vld [vmem:[#allocation2 + $0x3f] sm:$0xff]
      %v6242 = vld [vmem:[#allocation2 + $0x47] sm:$0xff]
      %v6243 = vld [vmem:[#allocation2 + $0x4f] sm:$0xff]
      %v6244 = vld [vmem:[#allocation2 + $0x57] sm:$0xff]
      %v6245 = vld [vmem:[#allocation2 + $0x5f] sm:$0xff]
      %v6246 = vld [vmem:[#allocation2 + $0x67] sm:$0xff]
      %v6247 = vld [vmem:[#allocation2 + $0x6f] sm:$0xff]
      %v6248 = vld [vmem:[#allocation2 + $0x77] sm:$0xff]
      %v6249 = vld [vmem:[#allocation2 + $0x7f] sm:$0xff]
      %v6250 = vld [vmem:[#allocation2 + $0x87] sm:$0xff]
      %v6251 = vld [vmem:[#allocation2 + $0x8f] sm:$0xff]
      %v6252 = vld [vmem:[#allocation2 + $0x97] sm:$0xff]
      %v6253 = vld [vmem:[#allocation2 + $0x9f] sm:$0xff]
      %v6254 = vld [vmem:[#allocation2 + $0xa7] sm:$0xff]
      %v6255 = vld [vmem:[#allocation2 + $0xaf] sm:$0xff]
      %v6256 = vld [vmem:[#allocation2 + $0xb7] sm:$0xff]
      %v6257 = vld [vmem:[#allocation2 + $0xbf] sm:$0xff]
      %v6258 = vld [vmem:[#allocation2 + $0xc7] sm:$0xff]
      %v6259 = vld [vmem:[#allocation2 + $0xcf] sm:$0xff]
      %v6260 = vld [vmem:[#allocation2 + $0xd7] sm:$0xff]
      %v6261 = vld [vmem:[#allocation2 + $0xdf] sm:$0xff]
      %v6262 = vld [vmem:[#allocation2 + $0xe7] sm:$0xff]
      %v6263 = vld [vmem:[#allocation2 + $0xef] sm:$0xff]
      %v6264 = vld [vmem:[#allocation2 + $0xf7] sm:$0xff]
      %v6265 = vld [vmem:[#allocation2 + $0xff] sm:$0xff]
      %v6266 = vld [vmem:[#allocation2 + $0x107] sm:$0xff]
      %v6267 = vld [vmem:[#allocation2 + $0x10f] sm:$0xff]
      %v6268 = vld [vmem:[#allocation2 + $0x117] sm:$0xff]
      %v6269 = vld [vmem:[#allocation2 + $0x11f] sm:$0xff]
      %v6270 = vld [vmem:[#allocation2 + $0x127] sm:$0xff]
      %v6271 = vld [vmem:[#allocation2 + $0x12f] sm:$0xff]
      %v6272 = vld [vmem:[#allocation2 + $0x18] sm:$0xff]
      %v6273 = vld [vmem:[#allocation2 + $0x20] sm:$0xff]
      %v6274 = vld [vmem:[#allocation2 + $0x28] sm:$0xff]
      %v6275 = vld [vmem:[#allocation2 + $0x30] sm:$0xff]
      %v6276 = vld [vmem:[#allocation2 + $0x38] sm:$0xff]
      %v6277 = vld [vmem:[#allocation2 + $0x40] sm:$0xff]
      %v6278 = vld [vmem:[#allocation2 + $0x48] sm:$0xff]
      %v6279 = vld [vmem:[#allocation2 + $0x50] sm:$0xff]
      %v6280 = vld [vmem:[#allocation2 + $0x58] sm:$0xff]
      %v6281 = vld [vmem:[#allocation2 + $0x60] sm:$0xff]
      %v6282 = vld [vmem:[#allocation2 + $0x68] sm:$0xff]
      %v6283 = vld [vmem:[#allocation2 + $0x70] sm:$0xff]
      %v6284 = vld [vmem:[#allocation2 + $0x78] sm:$0xff]
      %v6285 = vld [vmem:[#allocation2 + $0x80] sm:$0xff]
      %v6286 = vld [vmem:[#allocation2 + $0x88] sm:$0xff]
      %v6287 = vld [vmem:[#allocation2 + $0x90] sm:$0xff]
      %v6288 = vld [vmem:[#allocation2 + $0x98] sm:$0xff]
      %v6289 = vld [vmem:[#allocation2 + $0xa0] sm:$0xff]
      %v6290 = vld [vmem:[#allocation2 + $0xa8] sm:$0xff]
      %v6291 = vld [vmem:[#allocation2 + $0xb0] sm:$0xff]
      %v6292 = vld [vmem:[#allocation2 + $0xb8] sm:$0xff]
      %v6293 = vld [vmem:[#allocation2 + $0xc0] sm:$0xff]
      %v6294 = vld [vmem:[#allocation2 + $0xc8] sm:$0xff]
      %v6295 = vld [vmem:[#allocation2 + $0xd0] sm:$0xff]
      %v6296 = vld [vmem:[#allocation2 + $0xd8] sm:$0xff]
      %v6297 = vld [vmem:[#allocation2 + $0xe0] sm:$0xff]
      %v6298 = vld [vmem:[#allocation2 + $0xe8] sm:$0xff]
      %v6299 = vld [vmem:[#allocation2 + $0xf0] sm:$0xff]
      %v6300 = vld [vmem:[#allocation2 + $0xf8] sm:$0xff]
      %v6301 = vld [vmem:[#allocation2 + $0x100] sm:$0xff]
      %v6302 = vld [vmem:[#allocation2 + $0x108] sm:$0xff]
      %v6303 = vld [vmem:[#allocation2 + $0x110] sm:$0xff]
      %v6304 = vld [vmem:[#allocation2 + $0x118] sm:$0xff]
      %v6305 = vld [vmem:[#allocation2 + $0x120] sm:$0xff]
      %v6306 = vld [vmem:[#allocation2 + $0x128] sm:$0xff]
      %v6307 = vld [vmem:[#allocation2 + $0x130] sm:$0xff]
      %v6308 = vld [vmem:[#allocation2 + $0x19] sm:$0xff]
      %v6309 = vld [vmem:[#allocation2 + $0x21] sm:$0xff]
      %v6310 = vld [vmem:[#allocation2 + $0x29] sm:$0xff]
      %v6311 = vld [vmem:[#allocation2 + $0x31] sm:$0xff]
      %v6312 = vld [vmem:[#allocation2 + $0x39] sm:$0xff]
      %v6313 = vld [vmem:[#allocation2 + $0x41] sm:$0xff]
      %v6314 = vld [vmem:[#allocation2 + $0x49] sm:$0xff]
      %v6315 = vld [vmem:[#allocation2 + $0x51] sm:$0xff]
      %v6316 = vld [vmem:[#allocation2 + $0x59] sm:$0xff]
      %v6317 = vld [vmem:[#allocation2 + $0x61] sm:$0xff]
      %v6318 = vld [vmem:[#allocation2 + $0x69] sm:$0xff]
      %v6319 = vld [vmem:[#allocation2 + $0x71] sm:$0xff]
      %v6320 = vld [vmem:[#allocation2 + $0x79] sm:$0xff]
      %v6321 = vld [vmem:[#allocation2 + $0x81] sm:$0xff]
      %v6322 = vld [vmem:[#allocation2 + $0x89] sm:$0xff]
      %v6323 = vld [vmem:[#allocation2 + $0x91] sm:$0xff]
      %v6324 = vld [vmem:[#allocation2 + $0x99] sm:$0xff]
      %v6325 = vld [vmem:[#allocation2 + $0xa1] sm:$0xff]
      %v6326 = vld [vmem:[#allocation2 + $0xa9] sm:$0xff]
      %v6327 = vld [vmem:[#allocation2 + $0xb1] sm:$0xff]
      %v6328 = vld [vmem:[#allocation2 + $0xb9] sm:$0xff]
      %v6329 = vld [vmem:[#allocation2 + $0xc1] sm:$0xff]
      %v6330 = vld [vmem:[#allocation2 + $0xc9] sm:$0xff]
      %v6331 = vld [vmem:[#allocation2 + $0xd1] sm:$0xff]
      %v6332 = vld [vmem:[#allocation2 + $0xd9] sm:$0xff]
      %v6333 = vld [vmem:[#allocation2 + $0xe1] sm:$0xff]
      %v6334 = vld [vmem:[#allocation2 + $0xe9] sm:$0xff]
      %v6335 = vld [vmem:[#allocation2 + $0xf1] sm:$0xff]
      %v6336 = vld [vmem:[#allocation2 + $0xf9] sm:$0xff]
      %v6337 = vld [vmem:[#allocation2 + $0x101] sm:$0xff]
      %v6338 = vld [vmem:[#allocation2 + $0x109] sm:$0xff]
      %v6339 = vld [vmem:[#allocation2 + $0x111] sm:$0xff]
      %v6340 = vld [vmem:[#allocation2 + $0x119] sm:$0xff]
      %v6341 = vld [vmem:[#allocation2 + $0x121] sm:$0xff]
      %v6342 = vld [vmem:[#allocation2 + $0x129] sm:$0xff]
      %v6343 = vld [vmem:[#allocation2 + $0x131] sm:$0xff]
      %v6344 = vld [vmem:[#allocation2 + $0x139] sm:$0xff]
      %v6345 = vld [vmem:[#allocation2 + $0x141] sm:$0xff]
      %v6346 = vld [vmem:[#allocation2 + $0x2a] sm:$0xff]
      %v6347 = vld [vmem:[#allocation2 + $0x32] sm:$0xff]
      %v6348 = vld [vmem:[#allocation2 + $0x3a] sm:$0xff]
      %v6349 = vld [vmem:[#allocation2 + $0x42] sm:$0xff]
      %v6350 = vld [vmem:[#allocation2 + $0x4a] sm:$0xff]
      %v6351 = vld [vmem:[#allocation2 + $0x52] sm:$0xff]
      %v6352 = vld [vmem:[#allocation2 + $0x5a] sm:$0xff]
      %v6353 = vld [vmem:[#allocation2 + $0x62] sm:$0xff]
      %v6354 = vld [vmem:[#allocation2 + $0x6a] sm:$0xff]
      %v6355 = vld [vmem:[#allocation2 + $0x72] sm:$0xff]
      %v6356 = vld [vmem:[#allocation2 + $0x7a] sm:$0xff]
      %v6357 = vld [vmem:[#allocation2 + $0x82] sm:$0xff]
      %v6358 = vld [vmem:[#allocation2 + $0x8a] sm:$0xff]
      %v6359 = vld [vmem:[#allocation2 + $0x92] sm:$0xff]
      %v6360 = vld [vmem:[#allocation2 + $0x9a] sm:$0xff]
      %v6361 = vld [vmem:[#allocation2 + $0xa2] sm:$0xff]
      %v6362 = vld [vmem:[#allocation2 + $0xaa] sm:$0xff]
      %v6363 = vld [vmem:[#allocation2 + $0xb2] sm:$0xff]
      %v6364 = vld [vmem:[#allocation2 + $0xba] sm:$0xff]
      %v6365 = vld [vmem:[#allocation2 + $0xc2] sm:$0xff]
      %v6366 = vld [vmem:[#allocation2 + $0xca] sm:$0xff]
      %v6367 = vld [vmem:[#allocation2 + $0xd2] sm:$0xff]
      %v6368 = vld [vmem:[#allocation2 + $0xda] sm:$0xff]
      %v6369 = vld [vmem:[#allocation2 + $0xe2] sm:$0xff]
      %v6370 = vld [vmem:[#allocation2 + $0xea] sm:$0xff]
      %v6371 = vld [vmem:[#allocation2 + $0xf2] sm:$0xff]
      %v6372 = vld [vmem:[#allocation2 + $0xfa] sm:$0xff]
      %v6373 = vld [vmem:[#allocation2 + $0x102] sm:$0xff]
      %v6374 = vld [vmem:[#allocation2 + $0x10a] sm:$0xff]
      %v6375 = vld [vmem:[#allocation2 + $0x112] sm:$0xff]
      %v6376 = vld [vmem:[#allocation2 + $0x11a] sm:$0xff]
      %v6377 = vld [vmem:[#allocation2 + $0x122] sm:$0xff]
      %v6378 = vld [vmem:[#allocation2 + $0x12a] sm:$0xff]
      %v6379 = vld [vmem:[#allocation2 + $0x132] sm:$0xff]
      %v6380 = vld [vmem:[#allocation2 + $0x13a] sm:$0xff]
      %v6381 = vld [vmem:[#allocation2 + $0x142] sm:$0xff]
      %v6382 = vld [vmem:[#allocation2 + $0x2b] sm:$0xff]
      %v6383 = vld [vmem:[#allocation2 + $0x33] sm:$0xff]
      %v6384 = vld [vmem:[#allocation2 + $0x3b] sm:$0xff]
      %v6385 = vld [vmem:[#allocation2 + $0x43] sm:$0xff]
      %v6386 = vld [vmem:[#allocation2 + $0x4b] sm:$0xff]
      %v6387 = vld [vmem:[#allocation2 + $0x53] sm:$0xff]
      %v6388 = vld [vmem:[#allocation2 + $0x5b] sm:$0xff]
      %v6389 = vld [vmem:[#allocation2 + $0x63] sm:$0xff]
      %v6390 = vld [vmem:[#allocation2 + $0x6b] sm:$0xff]
      %v6391 = vld [vmem:[#allocation2 + $0x73] sm:$0xff]
      %v6392 = vld [vmem:[#allocation2 + $0x7b] sm:$0xff]
      %v6393 = vld [vmem:[#allocation2 + $0x83] sm:$0xff]
      %v6394 = vld [vmem:[#allocation2 + $0x8b] sm:$0xff]
      %v6395 = vld [vmem:[#allocation2 + $0x93] sm:$0xff]
      %v6396 = vld [vmem:[#allocation2 + $0x9b] sm:$0xff]
      %v6397 = vld [vmem:[#allocation2 + $0xa3] sm:$0xff]
      %v6398 = vld [vmem:[#allocation2 + $0xab] sm:$0xff]
      %v6399 = vld [vmem:[#allocation2 + $0xb3] sm:$0xff]
      %v6400 = vld [vmem:[#allocation2 + $0xbb] sm:$0xff]
      %v6401 = vld [vmem:[#allocation2 + $0xc3] sm:$0xff]
      %v6402 = vld [vmem:[#allocation2 + $0xcb] sm:$0xff]
      %v6403 = vld [vmem:[#allocation2 + $0xd3] sm:$0xff]
      %v6404 = vld [vmem:[#allocation2 + $0xdb] sm:$0xff]
      %v6405 = vld [vmem:[#allocation2 + $0xe3] sm:$0xff]
      %v6406 = vld [vmem:[#allocation2 + $0xeb] sm:$0xff]
      %v6407 = vld [vmem:[#allocation2 + $0xf3] sm:$0xff]
      %v6408 = vld [vmem:[#allocation2 + $0xfb] sm:$0xff]
      %v6409 = vld [vmem:[#allocation2 + $0x103] sm:$0xff]
      %v6410 = vld [vmem:[#allocation2 + $0x10b] sm:$0xff]
      %v6411 = vld [vmem:[#allocation2 + $0x113] sm:$0xff]
      %v6412 = vld [vmem:[#allocation2 + $0x11b] sm:$0xff]
      %v6413 = vld [vmem:[#allocation2 + $0x123] sm:$0xff]
      %v6414 = vld [vmem:[#allocation2 + $0x12b] sm:$0xff]
      %v6415 = vld [vmem:[#allocation2 + $0x133] sm:$0xff]
      %v6416 = vld [vmem:[#allocation2 + $0x13b] sm:$0xff]
      %v6417 = vld [vmem:[#allocation2 + $0x143] sm:$0xff]
      %6454 = vrot.lane.b32.xlu0 %v6198, 64
      %v6455 = vpop.permute.xlu0 %6454
      %6456 = vrot.lane.b32.xlu0 %v6199, 64
      %v6457 = vpop.permute.xlu0 %6456
      %6458 = vrot.lane.b32.xlu0 %v6200, 64
      %v6459 = vpop.permute.xlu0 %6458
      %6460 = vrot.lane.b32.xlu0 %v6201, 64
      %v6461 = vpop.permute.xlu0 %6460
      %6462 = vrot.lane.b32.xlu0 %v6202, 64
      %v6463 = vpop.permute.xlu0 %6462
      %6464 = vrot.lane.b32.xlu0 %v6203, 64
      %v6465 = vpop.permute.xlu0 %6464
      %6466 = vrot.lane.b32.xlu0 %v6204, 64
      %v6467 = vpop.permute.xlu0 %6466
      %6468 = vrot.lane.b32.xlu0 %v6205, 64
      %v6469 = vpop.permute.xlu0 %6468
      %6470 = vrot.lane.b32.xlu0 %v6206, 64
      %v6471 = vpop.permute.xlu0 %6470
      %6472 = vrot.lane.b32.xlu0 %v6207, 64
      %v6473 = vpop.permute.xlu0 %6472
      %6474 = vrot.lane.b32.xlu0 %v6208, 64
      %v6475 = vpop.permute.xlu0 %6474
      %6476 = vrot.lane.b32.xlu0 %v6209, 64
      %v6477 = vpop.permute.xlu0 %6476
      %6478 = vrot.lane.b32.xlu0 %v6210, 64
      %v6479 = vpop.permute.xlu0 %6478
      %6480 = vrot.lane.b32.xlu0 %v6211, 64
      %v6481 = vpop.permute.xlu0 %6480
      %6482 = vrot.lane.b32.xlu0 %v6212, 64
      %v6483 = vpop.permute.xlu0 %6482
      %6484 = vrot.lane.b32.xlu0 %v6213, 64
      %v6485 = vpop.permute.xlu0 %6484
      %6486 = vrot.lane.b32.xlu0 %v6214, 64
      %v6487 = vpop.permute.xlu0 %6486
      %6488 = vrot.lane.b32.xlu0 %v6215, 64
      %v6489 = vpop.permute.xlu0 %6488
      %6490 = vrot.lane.b32.xlu0 %v6216, 64
      %v6491 = vpop.permute.xlu0 %6490
      %6492 = vrot.lane.b32.xlu0 %v6217, 64
      %v6493 = vpop.permute.xlu0 %6492
      %6494 = vrot.lane.b32.xlu0 %v6218, 64
      %v6495 = vpop.permute.xlu0 %6494
      %6496 = vrot.lane.b32.xlu0 %v6219, 64
      %v6497 = vpop.permute.xlu0 %6496
      %6498 = vrot.lane.b32.xlu0 %v6220, 64
      %v6499 = vpop.permute.xlu0 %6498
      %6500 = vrot.lane.b32.xlu0 %v6221, 64
      %v6501 = vpop.permute.xlu0 %6500
      %6502 = vrot.lane.b32.xlu0 %v6222, 64
      %v6503 = vpop.permute.xlu0 %6502
      %6504 = vrot.lane.b32.xlu0 %v6223, 64
      %v6505 = vpop.permute.xlu0 %6504
      %6506 = vrot.lane.b32.xlu0 %v6224, 64
      %v6507 = vpop.permute.xlu0 %6506
      %6508 = vrot.lane.b32.xlu0 %v6225, 64
      %v6509 = vpop.permute.xlu0 %6508
      %6510 = vrot.lane.b32.xlu0 %v6226, 64
      %v6511 = vpop.permute.xlu0 %6510
      %6512 = vrot.lane.b32.xlu0 %v6227, 64
      %v6513 = vpop.permute.xlu0 %6512
      %6514 = vrot.lane.b32.xlu0 %v6228, 64
      %v6515 = vpop.permute.xlu0 %6514
      %6516 = vrot.lane.b32.xlu0 %v6229, 64
      %v6517 = vpop.permute.xlu0 %6516
      %6518 = vrot.lane.b32.xlu0 %v6230, 64
      %v6519 = vpop.permute.xlu0 %6518
      %6520 = vrot.lane.b32.xlu0 %v6231, 64
      %v6521 = vpop.permute.xlu0 %6520
      %6522 = vrot.lane.b32.xlu0 %v6232, 64
      %v6523 = vpop.permute.xlu0 %6522
      %6524 = vrot.lane.b32.xlu0 %v6233, 64
      %v6525 = vpop.permute.xlu0 %6524
      %6598 = vrot.lane.b32.xlu0 %v6236, 64
      %v6599 = vpop.permute.xlu0 %6598
      %6600 = vrot.lane.b32.xlu0 %v6237, 64
      %v6601 = vpop.permute.xlu0 %6600
      %6602 = vrot.lane.b32.xlu0 %v6238, 64
      %v6603 = vpop.permute.xlu0 %6602
      %6604 = vrot.lane.b32.xlu0 %v6239, 64
      %v6605 = vpop.permute.xlu0 %6604
      %6606 = vrot.lane.b32.xlu0 %v6240, 64
      %v6607 = vpop.permute.xlu0 %6606
      %6608 = vrot.lane.b32.xlu0 %v6241, 64
      %v6609 = vpop.permute.xlu0 %6608
      %6610 = vrot.lane.b32.xlu0 %v6242, 64
      %v6611 = vpop.permute.xlu0 %6610
      %6612 = vrot.lane.b32.xlu0 %v6243, 64
      %v6613 = vpop.permute.xlu0 %6612
      %6614 = vrot.lane.b32.xlu0 %v6244, 64
      %v6615 = vpop.permute.xlu0 %6614
      %6616 = vrot.lane.b32.xlu0 %v6245, 64
      %v6617 = vpop.permute.xlu0 %6616
      %6618 = vrot.lane.b32.xlu0 %v6246, 64
      %v6619 = vpop.permute.xlu0 %6618
      %6620 = vrot.lane.b32.xlu0 %v6247, 64
      %v6621 = vpop.permute.xlu0 %6620
      %6622 = vrot.lane.b32.xlu0 %v6248, 64
      %v6623 = vpop.permute.xlu0 %6622
      %6624 = vrot.lane.b32.xlu0 %v6249, 64
      %v6625 = vpop.permute.xlu0 %6624
      %6626 = vrot.lane.b32.xlu0 %v6250, 64
      %v6627 = vpop.permute.xlu0 %6626
      %6628 = vrot.lane.b32.xlu0 %v6251, 64
      %v6629 = vpop.permute.xlu0 %6628
      %6630 = vrot.lane.b32.xlu0 %v6252, 64
      %v6631 = vpop.permute.xlu0 %6630
      %6632 = vrot.lane.b32.xlu0 %v6253, 64
      %v6633 = vpop.permute.xlu0 %6632
      %6634 = vrot.lane.b32.xlu0 %v6254, 64
      %v6635 = vpop.permute.xlu0 %6634
      %6636 = vrot.lane.b32.xlu0 %v6255, 64
      %v6637 = vpop.permute.xlu0 %6636
      %6638 = vrot.lane.b32.xlu0 %v6256, 64
      %v6639 = vpop.permute.xlu0 %6638
      %6640 = vrot.lane.b32.xlu0 %v6257, 64
      %v6641 = vpop.permute.xlu0 %6640
      %6642 = vrot.lane.b32.xlu0 %v6258, 64
      %v6643 = vpop.permute.xlu0 %6642
      %6644 = vrot.lane.b32.xlu0 %v6259, 64
      %v6645 = vpop.permute.xlu0 %6644
      %6646 = vrot.lane.b32.xlu0 %v6260, 64
      %v6647 = vpop.permute.xlu0 %6646
      %6648 = vrot.lane.b32.xlu0 %v6261, 64
      %v6649 = vpop.permute.xlu0 %6648
      %6650 = vrot.lane.b32.xlu0 %v6262, 64
      %v6651 = vpop.permute.xlu0 %6650
      %6652 = vrot.lane.b32.xlu0 %v6263, 64
      %v6653 = vpop.permute.xlu0 %6652
      %6654 = vrot.lane.b32.xlu0 %v6264, 64
      %v6655 = vpop.permute.xlu0 %6654
      %6656 = vrot.lane.b32.xlu0 %v6265, 64
      %v6657 = vpop.permute.xlu0 %6656
      %6658 = vrot.lane.b32.xlu0 %v6266, 64
      %v6659 = vpop.permute.xlu0 %6658
      %6660 = vrot.lane.b32.xlu0 %v6267, 64
      %v6661 = vpop.permute.xlu0 %6660
      %6662 = vrot.lane.b32.xlu0 %v6268, 64
      %v6663 = vpop.permute.xlu0 %6662
      %6664 = vrot.lane.b32.xlu0 %v6269, 64
      %v6665 = vpop.permute.xlu0 %6664
      %6666 = vrot.lane.b32.xlu0 %v6270, 64
      %v6667 = vpop.permute.xlu0 %6666
      %6668 = vrot.lane.b32.xlu0 %v6271, 64
      %v6669 = vpop.permute.xlu0 %6668
      %6742 = vrot.lane.b32.xlu0 %v6308, 64
      %v6743 = vpop.permute.xlu0 %6742
      %6744 = vrot.lane.b32.xlu0 %v6309, 64
      %v6745 = vpop.permute.xlu0 %6744
      %6746 = vrot.lane.b32.xlu0 %v6310, 64
      %v6747 = vpop.permute.xlu0 %6746
      %6748 = vrot.lane.b32.xlu0 %v6311, 64
      %v6749 = vpop.permute.xlu0 %6748
      %6750 = vrot.lane.b32.xlu0 %v6312, 64
      %v6751 = vpop.permute.xlu0 %6750
      %6752 = vrot.lane.b32.xlu0 %v6313, 64
      %v6753 = vpop.permute.xlu0 %6752
      %6754 = vrot.lane.b32.xlu0 %v6314, 64
      %v6755 = vpop.permute.xlu0 %6754
      %6756 = vrot.lane.b32.xlu0 %v6315, 64
      %v6757 = vpop.permute.xlu0 %6756
      %6758 = vrot.lane.b32.xlu0 %v6316, 64
      %v6759 = vpop.permute.xlu0 %6758
      %6760 = vrot.lane.b32.xlu0 %v6317, 64
      %v6761 = vpop.permute.xlu0 %6760
      %6762 = vrot.lane.b32.xlu0 %v6318, 64
      %v6763 = vpop.permute.xlu0 %6762
      %6764 = vrot.lane.b32.xlu0 %v6319, 64
      %v6765 = vpop.permute.xlu0 %6764
      %6766 = vrot.lane.b32.xlu0 %v6320, 64
      %v6767 = vpop.permute.xlu0 %6766
      %6768 = vrot.lane.b32.xlu0 %v6321, 64
      %v6769 = vpop.permute.xlu0 %6768
      %6770 = vrot.lane.b32.xlu0 %v6322, 64
      %v6771 = vpop.permute.xlu0 %6770
      %6772 = vrot.lane.b32.xlu0 %v6323, 64
      %v6773 = vpop.permute.xlu0 %6772
      %6774 = vrot.lane.b32.xlu0 %v6324, 64
      %v6775 = vpop.permute.xlu0 %6774
      %6776 = vrot.lane.b32.xlu0 %v6325, 64
      %v6777 = vpop.permute.xlu0 %6776
      %6778 = vrot.lane.b32.xlu0 %v6326, 64
      %v6779 = vpop.permute.xlu0 %6778
      %6780 = vrot.lane.b32.xlu0 %v6327, 64
      %v6781 = vpop.permute.xlu0 %6780
      %6782 = vrot.lane.b32.xlu0 %v6328, 64
      %v6783 = vpop.permute.xlu0 %6782
      %6784 = vrot.lane.b32.xlu0 %v6329, 64
      %v6785 = vpop.permute.xlu0 %6784
      %6786 = vrot.lane.b32.xlu0 %v6330, 64
      %v6787 = vpop.permute.xlu0 %6786
      %6788 = vrot.lane.b32.xlu0 %v6331, 64
      %v6789 = vpop.permute.xlu0 %6788
      %6790 = vrot.lane.b32.xlu0 %v6332, 64
      %v6791 = vpop.permute.xlu0 %6790
      %6792 = vrot.lane.b32.xlu0 %v6333, 64
      %v6793 = vpop.permute.xlu0 %6792
      %6794 = vrot.lane.b32.xlu0 %v6334, 64
      %v6795 = vpop.permute.xlu0 %6794
      %6796 = vrot.lane.b32.xlu0 %v6335, 64
      %v6797 = vpop.permute.xlu0 %6796
      %6798 = vrot.lane.b32.xlu0 %v6336, 64
      %v6799 = vpop.permute.xlu0 %6798
      %6800 = vrot.lane.b32.xlu0 %v6337, 64
      %v6801 = vpop.permute.xlu0 %6800
      %6802 = vrot.lane.b32.xlu0 %v6338, 64
      %v6803 = vpop.permute.xlu0 %6802
      %6804 = vrot.lane.b32.xlu0 %v6339, 64
      %v6805 = vpop.permute.xlu0 %6804
      %6806 = vrot.lane.b32.xlu0 %v6340, 64
      %v6807 = vpop.permute.xlu0 %6806
      %6808 = vrot.lane.b32.xlu0 %v6341, 64
      %v6809 = vpop.permute.xlu0 %6808
      %6810 = vrot.lane.b32.xlu0 %v6342, 64
      %v6811 = vpop.permute.xlu0 %6810
      %6812 = vrot.lane.b32.xlu0 %v6343, 64
      %v6813 = vpop.permute.xlu0 %6812
      %6886 = vrot.lane.b32.xlu0 %v6346, 64
      %v6887 = vpop.permute.xlu0 %6886
      %6888 = vrot.lane.b32.xlu0 %v6347, 64
      %v6889 = vpop.permute.xlu0 %6888
      %6890 = vrot.lane.b32.xlu0 %v6348, 64
      %v6891 = vpop.permute.xlu0 %6890
      %6892 = vrot.lane.b32.xlu0 %v6349, 64
      %v6893 = vpop.permute.xlu0 %6892
      %6894 = vrot.lane.b32.xlu0 %v6350, 64
      %v6895 = vpop.permute.xlu0 %6894
      %6896 = vrot.lane.b32.xlu0 %v6351, 64
      %v6897 = vpop.permute.xlu0 %6896
      %6898 = vrot.lane.b32.xlu0 %v6352, 64
      %v6899 = vpop.permute.xlu0 %6898
      %6900 = vrot.lane.b32.xlu0 %v6353, 64
      %v6901 = vpop.permute.xlu0 %6900
      %6902 = vrot.lane.b32.xlu0 %v6354, 64
      %v6903 = vpop.permute.xlu0 %6902
      %6904 = vrot.lane.b32.xlu0 %v6355, 64
      %v6905 = vpop.permute.xlu0 %6904
      %6906 = vrot.lane.b32.xlu0 %v6356, 64
      %v6907 = vpop.permute.xlu0 %6906
      %6908 = vrot.lane.b32.xlu0 %v6357, 64
      %v6909 = vpop.permute.xlu0 %6908
      %6910 = vrot.lane.b32.xlu0 %v6358, 64
      %v6911 = vpop.permute.xlu0 %6910
      %6912 = vrot.lane.b32.xlu0 %v6359, 64
      %v6913 = vpop.permute.xlu0 %6912
      %6914 = vrot.lane.b32.xlu0 %v6360, 64
      %v6915 = vpop.permute.xlu0 %6914
      %6916 = vrot.lane.b32.xlu0 %v6361, 64
      %v6917 = vpop.permute.xlu0 %6916
      %6918 = vrot.lane.b32.xlu0 %v6362, 64
      %v6919 = vpop.permute.xlu0 %6918
      %6920 = vrot.lane.b32.xlu0 %v6363, 64
      %v6921 = vpop.permute.xlu0 %6920
      %6922 = vrot.lane.b32.xlu0 %v6364, 64
      %v6923 = vpop.permute.xlu0 %6922
      %6924 = vrot.lane.b32.xlu0 %v6365, 64
      %v6925 = vpop.permute.xlu0 %6924
      %6926 = vrot.lane.b32.xlu0 %v6366, 64
      %v6927 = vpop.permute.xlu0 %6926
      %6928 = vrot.lane.b32.xlu0 %v6367, 64
      %v6929 = vpop.permute.xlu0 %6928
      %6930 = vrot.lane.b32.xlu0 %v6368, 64
      %v6931 = vpop.permute.xlu0 %6930
      %6932 = vrot.lane.b32.xlu0 %v6369, 64
      %v6933 = vpop.permute.xlu0 %6932
      %6934 = vrot.lane.b32.xlu0 %v6370, 64
      %v6935 = vpop.permute.xlu0 %6934
      %6936 = vrot.lane.b32.xlu0 %v6371, 64
      %v6937 = vpop.permute.xlu0 %6936
      %6938 = vrot.lane.b32.xlu0 %v6372, 64
      %v6939 = vpop.permute.xlu0 %6938
      %6940 = vrot.lane.b32.xlu0 %v6373, 64
      %v6941 = vpop.permute.xlu0 %6940
      %6942 = vrot.lane.b32.xlu0 %v6374, 64
      %v6943 = vpop.permute.xlu0 %6942
      %6944 = vrot.lane.b32.xlu0 %v6375, 64
      %v6945 = vpop.permute.xlu0 %6944
      %6946 = vrot.lane.b32.xlu0 %v6376, 64
      %v6947 = vpop.permute.xlu0 %6946
      %6948 = vrot.lane.b32.xlu0 %v6377, 64
      %v6949 = vpop.permute.xlu0 %6948
      %6950 = vrot.lane.b32.xlu0 %v6378, 64
      %v6951 = vpop.permute.xlu0 %6950
      %6952 = vrot.lane.b32.xlu0 %v6379, 64
      %v6953 = vpop.permute.xlu0 %6952
      %6954 = vrot.lane.b32.xlu0 %v6380, 64
      %v6955 = vpop.permute.xlu0 %6954
      %6956 = vrot.lane.b32.xlu0 %v6381, 64
      %v6957 = vpop.permute.xlu0 %6956
      %v6994 = vsel %vm307, %v6162, %v6455
      %v6995 = vsel %vm307, %v6163, %v6457
      %v6996 = vsel %vm307, %v6164, %v6459
      %v6997 = vsel %vm307, %v6165, %v6461
      %v6998 = vsel %vm307, %v6166, %v6463
      %v6999 = vsel %vm307, %v6167, %v6465
      %v7000 = vsel %vm307, %v6168, %v6467
      %v7001 = vsel %vm307, %v6169, %v6469
      %v7002 = vsel %vm307, %v6170, %v6471
      %v7003 = vsel %vm307, %v6171, %v6473
      %v7004 = vsel %vm307, %v6172, %v6475
      %v7005 = vsel %vm307, %v6173, %v6477
      %v7006 = vsel %vm307, %v6174, %v6479
      %v7007 = vsel %vm307, %v6175, %v6481
      %v7008 = vsel %vm307, %v6176, %v6483
      %v7009 = vsel %vm307, %v6177, %v6485
      %v7010 = vsel %vm307, %v6178, %v6487
      %v7011 = vsel %vm307, %v6179, %v6489
      %v7012 = vsel %vm307, %v6180, %v6491
      %v7013 = vsel %vm307, %v6181, %v6493
      %v7014 = vsel %vm307, %v6182, %v6495
      %v7015 = vsel %vm307, %v6183, %v6497
      %v7016 = vsel %vm307, %v6184, %v6499
      %v7017 = vsel %vm307, %v6185, %v6501
      %v7018 = vsel %vm307, %v6186, %v6503
      %v7019 = vsel %vm307, %v6187, %v6505
      %v7020 = vsel %vm307, %v6188, %v6507
      %v7021 = vsel %vm307, %v6189, %v6509
      %v7022 = vsel %vm307, %v6190, %v6511
      %v7023 = vsel %vm307, %v6191, %v6513
      %v7024 = vsel %vm307, %v6192, %v6515
      %v7025 = vsel %vm307, %v6193, %v6517
      %v7026 = vsel %vm307, %v6194, %v6519
      %v7027 = vsel %vm307, %v6195, %v6521
      %v7028 = vsel %vm307, %v6196, %v6523
      %v7029 = vsel %vm307, %v6197, %v6525
      %v7030 = vsel %vm307, %v6234, %v6599
      %v7031 = vsel %vm307, %v6235, %v6601
      %v7032 = vsel %vm307, %v6236, %v6603
      %v7033 = vsel %vm307, %v6237, %v6605
      %v7034 = vsel %vm307, %v6238, %v6607
      %v7035 = vsel %vm307, %v6239, %v6609
      %v7036 = vsel %vm307, %v6240, %v6611
      %v7037 = vsel %vm307, %v6241, %v6613
      %v7038 = vsel %vm307, %v6242, %v6615
      %v7039 = vsel %vm307, %v6243, %v6617
      %v7040 = vsel %vm307, %v6244, %v6619
      %v7041 = vsel %vm307, %v6245, %v6621
      %v7042 = vsel %vm307, %v6246, %v6623
      %v7043 = vsel %vm307, %v6247, %v6625
      %v7044 = vsel %vm307, %v6248, %v6627
      %v7045 = vsel %vm307, %v6249, %v6629
      %v7046 = vsel %vm307, %v6250, %v6631
      %v7047 = vsel %vm307, %v6251, %v6633
      %v7048 = vsel %vm307, %v6252, %v6635
      %v7049 = vsel %vm307, %v6253, %v6637
      %v7050 = vsel %vm307, %v6254, %v6639
      %v7051 = vsel %vm307, %v6255, %v6641
      %v7052 = vsel %vm307, %v6256, %v6643
      %v7053 = vsel %vm307, %v6257, %v6645
      %v7054 = vsel %vm307, %v6258, %v6647
      %v7055 = vsel %vm307, %v6259, %v6649
      %v7056 = vsel %vm307, %v6260, %v6651
      %v7057 = vsel %vm307, %v6261, %v6653
      %v7058 = vsel %vm307, %v6262, %v6655
      %v7059 = vsel %vm307, %v6263, %v6657
      %v7060 = vsel %vm307, %v6264, %v6659
      %v7061 = vsel %vm307, %v6265, %v6661
      %v7062 = vsel %vm307, %v6266, %v6663
      %v7063 = vsel %vm307, %v6267, %v6665
      %v7064 = vsel %vm307, %v6268, %v6667
      %v7065 = vsel %vm307, %v6269, %v6669
      %v7066 = vsel %vm307, %v6272, %v6743
      %v7067 = vsel %vm307, %v6273, %v6745
      %v7068 = vsel %vm307, %v6274, %v6747
      %v7069 = vsel %vm307, %v6275, %v6749
      %v7070 = vsel %vm307, %v6276, %v6751
      %v7071 = vsel %vm307, %v6277, %v6753
      %v7072 = vsel %vm307, %v6278, %v6755
      %v7073 = vsel %vm307, %v6279, %v6757
      %v7074 = vsel %vm307, %v6280, %v6759
      %v7075 = vsel %vm307, %v6281, %v6761
      %v7076 = vsel %vm307, %v6282, %v6763
      %v7077 = vsel %vm307, %v6283, %v6765
      %v7078 = vsel %vm307, %v6284, %v6767
      %v7079 = vsel %vm307, %v6285, %v6769
      %v7080 = vsel %vm307, %v6286, %v6771
      %v7081 = vsel %vm307, %v6287, %v6773
      %v7082 = vsel %vm307, %v6288, %v6775
      %v7083 = vsel %vm307, %v6289, %v6777
      %v7084 = vsel %vm307, %v6290, %v6779
      %v7085 = vsel %vm307, %v6291, %v6781
      %v7086 = vsel %vm307, %v6292, %v6783
      %v7087 = vsel %vm307, %v6293, %v6785
      %v7088 = vsel %vm307, %v6294, %v6787
      %v7089 = vsel %vm307, %v6295, %v6789
      %v7090 = vsel %vm307, %v6296, %v6791
      %v7091 = vsel %vm307, %v6297, %v6793
      %v7092 = vsel %vm307, %v6298, %v6795
      %v7093 = vsel %vm307, %v6299, %v6797
      %v7094 = vsel %vm307, %v6300, %v6799
      %v7095 = vsel %vm307, %v6301, %v6801
      %v7096 = vsel %vm307, %v6302, %v6803
      %v7097 = vsel %vm307, %v6303, %v6805
      %v7098 = vsel %vm307, %v6304, %v6807
      %v7099 = vsel %vm307, %v6305, %v6809
      %v7100 = vsel %vm307, %v6306, %v6811
      %v7101 = vsel %vm307, %v6307, %v6813
      %v7102 = vsel %vm307, %v6310, %v6887
      %v7103 = vsel %vm307, %v6311, %v6889
      %v7104 = vsel %vm307, %v6312, %v6891
      %v7105 = vsel %vm307, %v6313, %v6893
      %v7106 = vsel %vm307, %v6314, %v6895
      %v7107 = vsel %vm307, %v6315, %v6897
      %v7108 = vsel %vm307, %v6316, %v6899
      %v7109 = vsel %vm307, %v6317, %v6901
      %v7110 = vsel %vm307, %v6318, %v6903
      %v7111 = vsel %vm307, %v6319, %v6905
      %v7112 = vsel %vm307, %v6320, %v6907
      %v7113 = vsel %vm307, %v6321, %v6909
      %v7114 = vsel %vm307, %v6322, %v6911
      %v7115 = vsel %vm307, %v6323, %v6913
      %v7116 = vsel %vm307, %v6324, %v6915
      %v7117 = vsel %vm307, %v6325, %v6917
      %v7118 = vsel %vm307, %v6326, %v6919
      %v7119 = vsel %vm307, %v6327, %v6921
      %v7120 = vsel %vm307, %v6328, %v6923
      %v7121 = vsel %vm307, %v6329, %v6925
      %v7122 = vsel %vm307, %v6330, %v6927
      %v7123 = vsel %vm307, %v6331, %v6929
      %v7124 = vsel %vm307, %v6332, %v6931
      %v7125 = vsel %vm307, %v6333, %v6933
      %v7126 = vsel %vm307, %v6334, %v6935
      %v7127 = vsel %vm307, %v6335, %v6937
      %v7128 = vsel %vm307, %v6336, %v6939
      %v7129 = vsel %vm307, %v6337, %v6941
      %v7130 = vsel %vm307, %v6338, %v6943
      %v7131 = vsel %vm307, %v6339, %v6945
      %v7132 = vsel %vm307, %v6340, %v6947
      %v7133 = vsel %vm307, %v6341, %v6949
      %v7134 = vsel %vm307, %v6342, %v6951
      %v7135 = vsel %vm307, %v6343, %v6953
      %v7136 = vsel %vm307, %v6344, %v6955
      %v7137 = vsel %vm307, %v6345, %v6957
      %v7138 = vld [vmem:[%s4] sm:$0x1f]
      %v7140 = vperm.slane %v7138, 0
      %v7141 = vperm.slane %v7138, 1
      %v7142 = vperm.slane %v7138, 2
      %v7143 = vperm.slane %v7138, 3
      %v7144 = vperm.slane %v7138, 4
      %v7150 = vmul.f32 %v6994, %v7140
      %v7151 = vmul.f32 %v7030, %v7141
      %v7152 = vmul.f32 %v7066, %v7142
      %v7153 = vmul.f32 %v7102, %v7143
      %v7154 = vmul.f32 %v6382, %v7144
      %v7155 = vmul.f32 %v6995, %v7140
      %v7156 = vmul.f32 %v7031, %v7141
      %v7157 = vmul.f32 %v7067, %v7142
      %v7158 = vmul.f32 %v7103, %v7143
      %v7159 = vmul.f32 %v6383, %v7144
      %v7160 = vmul.f32 %v6996, %v7140
      %v7161 = vmul.f32 %v7032, %v7141
      %v7162 = vmul.f32 %v7068, %v7142
      %v7163 = vmul.f32 %v7104, %v7143
      %v7164 = vmul.f32 %v6384, %v7144
      %v7165 = vmul.f32 %v6997, %v7140
      %v7166 = vmul.f32 %v7033, %v7141
      %v7167 = vmul.f32 %v7069, %v7142
      %v7168 = vmul.f32 %v7105, %v7143
      %v7169 = vmul.f32 %v6385, %v7144
      %v7170 = vmul.f32 %v6998, %v7140
      %v7171 = vmul.f32 %v7034, %v7141
      %v7172 = vmul.f32 %v7070, %v7142
      %v7173 = vmul.f32 %v7106, %v7143
      %v7174 = vmul.f32 %v6386, %v7144
      %v7175 = vmul.f32 %v6999, %v7140
      %v7176 = vmul.f32 %v7035, %v7141
      %v7177 = vmul.f32 %v7071, %v7142
      %v7178 = vmul.f32 %v7107, %v7143
      %v7179 = vmul.f32 %v6387, %v7144
      %v7180 = vmul.f32 %v7000, %v7140
      %v7181 = vmul.f32 %v7036, %v7141
      %v7182 = vmul.f32 %v7072, %v7142
      %v7183 = vmul.f32 %v7108, %v7143
      %v7184 = vmul.f32 %v6388, %v7144
      %v7185 = vmul.f32 %v7001, %v7140
      %v7186 = vmul.f32 %v7037, %v7141
      %v7187 = vmul.f32 %v7073, %v7142
      %v7188 = vmul.f32 %v7109, %v7143
      %v7189 = vmul.f32 %v6389, %v7144
      %v7190 = vmul.f32 %v7002, %v7140
      %v7191 = vmul.f32 %v7038, %v7141
      %v7192 = vmul.f32 %v7074, %v7142
      %v7193 = vmul.f32 %v7110, %v7143
      %v7194 = vmul.f32 %v6390, %v7144
      %v7195 = vmul.f32 %v7003, %v7140
      %v7196 = vmul.f32 %v7039, %v7141
      %v7197 = vmul.f32 %v7075, %v7142
      %v7198 = vmul.f32 %v7111, %v7143
      %v7199 = vmul.f32 %v6391, %v7144
      %v7200 = vmul.f32 %v7004, %v7140
      %v7201 = vmul.f32 %v7040, %v7141
      %v7202 = vmul.f32 %v7076, %v7142
      %v7203 = vmul.f32 %v7112, %v7143
      %v7204 = vmul.f32 %v6392, %v7144
      %v7205 = vmul.f32 %v7005, %v7140
      %v7206 = vmul.f32 %v7041, %v7141
      %v7207 = vmul.f32 %v7077, %v7142
      %v7208 = vmul.f32 %v7113, %v7143
      %v7209 = vmul.f32 %v6393, %v7144
      %v7210 = vmul.f32 %v7006, %v7140
      %v7211 = vmul.f32 %v7042, %v7141
      %v7212 = vmul.f32 %v7078, %v7142
      %v7213 = vmul.f32 %v7114, %v7143
      %v7214 = vmul.f32 %v6394, %v7144
      %v7215 = vmul.f32 %v7007, %v7140
      %v7216 = vmul.f32 %v7043, %v7141
      %v7217 = vmul.f32 %v7079, %v7142
      %v7218 = vmul.f32 %v7115, %v7143
      %v7219 = vmul.f32 %v6395, %v7144
      %v7220 = vmul.f32 %v7008, %v7140
      %v7221 = vmul.f32 %v7044, %v7141
      %v7222 = vmul.f32 %v7080, %v7142
      %v7223 = vmul.f32 %v7116, %v7143
      %v7224 = vmul.f32 %v6396, %v7144
      %v7225 = vmul.f32 %v7009, %v7140
      %v7226 = vmul.f32 %v7045, %v7141
      %v7227 = vmul.f32 %v7081, %v7142
      %v7228 = vmul.f32 %v7117, %v7143
      %v7229 = vmul.f32 %v6397, %v7144
      %v7230 = vmul.f32 %v7010, %v7140
      %v7231 = vmul.f32 %v7046, %v7141
      %v7232 = vmul.f32 %v7082, %v7142
      %v7233 = vmul.f32 %v7118, %v7143
      %v7234 = vmul.f32 %v6398, %v7144
      %v7235 = vmul.f32 %v7011, %v7140
      %v7236 = vmul.f32 %v7047, %v7141
      %v7237 = vmul.f32 %v7083, %v7142
      %v7238 = vmul.f32 %v7119, %v7143
      %v7239 = vmul.f32 %v6399, %v7144
      %v7240 = vmul.f32 %v7012, %v7140
      %v7241 = vmul.f32 %v7048, %v7141
      %v7242 = vmul.f32 %v7084, %v7142
      %v7243 = vmul.f32 %v7120, %v7143
      %v7244 = vmul.f32 %v6400, %v7144
      %v7245 = vmul.f32 %v7013, %v7140
      %v7246 = vmul.f32 %v7049, %v7141
      %v7247 = vmul.f32 %v7085, %v7142
      %v7248 = vmul.f32 %v7121, %v7143
      %v7249 = vmul.f32 %v6401, %v7144
      %v7250 = vmul.f32 %v7014, %v7140
      %v7251 = vmul.f32 %v7050, %v7141
      %v7252 = vmul.f32 %v7086, %v7142
      %v7253 = vmul.f32 %v7122, %v7143
      %v7254 = vmul.f32 %v6402, %v7144
      %v7255 = vmul.f32 %v7015, %v7140
      %v7256 = vmul.f32 %v7051, %v7141
      %v7257 = vmul.f32 %v7087, %v7142
      %v7258 = vmul.f32 %v7123, %v7143
      %v7259 = vmul.f32 %v6403, %v7144
      %v7260 = vmul.f32 %v7016, %v7140
      %v7261 = vmul.f32 %v7052, %v7141
      %v7262 = vmul.f32 %v7088, %v7142
      %v7263 = vmul.f32 %v7124, %v7143
      %v7264 = vmul.f32 %v6404, %v7144
      %v7265 = vmul.f32 %v7017, %v7140
      %v7266 = vmul.f32 %v7053, %v7141
      %v7267 = vmul.f32 %v7089, %v7142
      %v7268 = vmul.f32 %v7125, %v7143
      %v7269 = vmul.f32 %v6405, %v7144
      %v7270 = vmul.f32 %v7018, %v7140
      %v7271 = vmul.f32 %v7054, %v7141
      %v7272 = vmul.f32 %v7090, %v7142
      %v7273 = vmul.f32 %v7126, %v7143
      %v7274 = vmul.f32 %v6406, %v7144
      %v7275 = vmul.f32 %v7019, %v7140
      %v7276 = vmul.f32 %v7055, %v7141
      %v7277 = vmul.f32 %v7091, %v7142
      %v7278 = vmul.f32 %v7127, %v7143
      %v7279 = vmul.f32 %v6407, %v7144
      %v7280 = vmul.f32 %v7020, %v7140
      %v7281 = vmul.f32 %v7056, %v7141
      %v7282 = vmul.f32 %v7092, %v7142
      %v7283 = vmul.f32 %v7128, %v7143
      %v7284 = vmul.f32 %v6408, %v7144
      %v7285 = vmul.f32 %v7021, %v7140
      %v7286 = vmul.f32 %v7057, %v7141
      %v7287 = vmul.f32 %v7093, %v7142
      %v7288 = vmul.f32 %v7129, %v7143
      %v7289 = vmul.f32 %v6409, %v7144
      %v7290 = vmul.f32 %v7022, %v7140
      %v7291 = vmul.f32 %v7058, %v7141
      %v7292 = vmul.f32 %v7094, %v7142
      %v7293 = vmul.f32 %v7130, %v7143
      %v7294 = vmul.f32 %v6410, %v7144
      %v7295 = vmul.f32 %v7023, %v7140
      %v7296 = vmul.f32 %v7059, %v7141
      %v7297 = vmul.f32 %v7095, %v7142
      %v7298 = vmul.f32 %v7131, %v7143
      %v7299 = vmul.f32 %v6411, %v7144
      %v7300 = vmul.f32 %v7024, %v7140
      %v7301 = vmul.f32 %v7060, %v7141
      %v7302 = vmul.f32 %v7096, %v7142
      %v7303 = vmul.f32 %v7132, %v7143
      %v7304 = vmul.f32 %v6412, %v7144
      %v7305 = vmul.f32 %v7025, %v7140
      %v7306 = vmul.f32 %v7061, %v7141
      %v7307 = vmul.f32 %v7097, %v7142
      %v7308 = vmul.f32 %v7133, %v7143
      %v7309 = vmul.f32 %v6413, %v7144
      %v7310 = vmul.f32 %v7026, %v7140
      %v7311 = vmul.f32 %v7062, %v7141
      %v7312 = vmul.f32 %v7098, %v7142
      %v7313 = vmul.f32 %v7134, %v7143
      %v7314 = vmul.f32 %v6414, %v7144
      %v7315 = vmul.f32 %v7027, %v7140
      %v7316 = vmul.f32 %v7063, %v7141
      %v7317 = vmul.f32 %v7099, %v7142
      %v7318 = vmul.f32 %v7135, %v7143
      %v7319 = vmul.f32 %v6415, %v7144
      %v7320 = vmul.f32 %v7028, %v7140
      %v7321 = vmul.f32 %v7064, %v7141
      %v7322 = vmul.f32 %v7100, %v7142
      %v7323 = vmul.f32 %v7136, %v7143
      %v7324 = vmul.f32 %v6416, %v7144
      %v7325 = vmul.f32 %v7029, %v7140
      %v7326 = vmul.f32 %v7065, %v7141
      %v7327 = vmul.f32 %v7101, %v7142
      %v7328 = vmul.f32 %v7137, %v7143
      %v7329 = vmul.f32 %v6417, %v7144
      %v7330 = vadd.f32 %v7150, %v7151
      %v7331 = vadd.f32 %v7330, %v7152
      %v7332 = vadd.f32 %v7331, %v7153
      %v7333 = vsel %vm307, %v7154, 0.0
      %v7334 = vadd.f32 %v7332, %v7333
      %7335 = vadd.xlane.f32.xlu0 %v7334
      %v7336 = vpop.xlane.xlu0 %7335
      %v7337 = vadd.f32 %v7155, %v7156
      %v7338 = vadd.f32 %v7337, %v7157
      %v7339 = vadd.f32 %v7338, %v7158
      %v7340 = vsel %vm307, %v7159, 0.0
      %v7341 = vadd.f32 %v7339, %v7340
      %7342 = vadd.xlane.f32.xlu0 %v7341
      %v7343 = vpop.xlane.xlu0 %7342
      %v7344 = vadd.f32 %v7160, %v7161
      %v7345 = vadd.f32 %v7344, %v7162
      %v7346 = vadd.f32 %v7345, %v7163
      %v7347 = vsel %vm307, %v7164, 0.0
      %v7348 = vadd.f32 %v7346, %v7347
      %7349 = vadd.xlane.f32.xlu0 %v7348
      %v7350 = vpop.xlane.xlu0 %7349
      %v7351 = vadd.f32 %v7165, %v7166
      %v7352 = vadd.f32 %v7351, %v7167
      %v7353 = vadd.f32 %v7352, %v7168
      %v7354 = vsel %vm307, %v7169, 0.0
      %v7355 = vadd.f32 %v7353, %v7354
      %7356 = vadd.xlane.f32.xlu0 %v7355
      %v7357 = vpop.xlane.xlu0 %7356
      %v7358 = vadd.f32 %v7170, %v7171
      %v7359 = vadd.f32 %v7358, %v7172
      %v7360 = vadd.f32 %v7359, %v7173
      %v7361 = vsel %vm307, %v7174, 0.0
      %v7362 = vadd.f32 %v7360, %v7361
      %7363 = vadd.xlane.f32.xlu0 %v7362
      %v7364 = vpop.xlane.xlu0 %7363
      %v7365 = vadd.f32 %v7175, %v7176
      %v7366 = vadd.f32 %v7365, %v7177
      %v7367 = vadd.f32 %v7366, %v7178
      %v7368 = vsel %vm307, %v7179, 0.0
      %v7369 = vadd.f32 %v7367, %v7368
      %7370 = vadd.xlane.f32.xlu0 %v7369
      %v7371 = vpop.xlane.xlu0 %7370
      %v7372 = vadd.f32 %v7180, %v7181
      %v7373 = vadd.f32 %v7372, %v7182
      %v7374 = vadd.f32 %v7373, %v7183
      %v7375 = vsel %vm307, %v7184, 0.0
      %v7376 = vadd.f32 %v7374, %v7375
      %7377 = vadd.xlane.f32.xlu0 %v7376
      %v7378 = vpop.xlane.xlu0 %7377
      %v7379 = vadd.f32 %v7185, %v7186
      %v7380 = vadd.f32 %v7379, %v7187
      %v7381 = vadd.f32 %v7380, %v7188
      %v7382 = vsel %vm307, %v7189, 0.0
      %v7383 = vadd.f32 %v7381, %v7382
      %7384 = vadd.xlane.f32.xlu0 %v7383
      %v7385 = vpop.xlane.xlu0 %7384
      %v7386 = vadd.f32 %v7190, %v7191
      %v7387 = vadd.f32 %v7386, %v7192
      %v7388 = vadd.f32 %v7387, %v7193
      %v7389 = vsel %vm307, %v7194, 0.0
      %v7390 = vadd.f32 %v7388, %v7389
      %7391 = vadd.xlane.f32.xlu0 %v7390
      %v7392 = vpop.xlane.xlu0 %7391
      %v7393 = vadd.f32 %v7195, %v7196
      %v7394 = vadd.f32 %v7393, %v7197
      %v7395 = vadd.f32 %v7394, %v7198
      %v7396 = vsel %vm307, %v7199, 0.0
      %v7397 = vadd.f32 %v7395, %v7396
      %7398 = vadd.xlane.f32.xlu0 %v7397
      %v7399 = vpop.xlane.xlu0 %7398
      %v7400 = vadd.f32 %v7200, %v7201
      %v7401 = vadd.f32 %v7400, %v7202
      %v7402 = vadd.f32 %v7401, %v7203
      %v7403 = vsel %vm307, %v7204, 0.0
      %v7404 = vadd.f32 %v7402, %v7403
      %7405 = vadd.xlane.f32.xlu0 %v7404
      %v7406 = vpop.xlane.xlu0 %7405
      %v7407 = vadd.f32 %v7205, %v7206
      %v7408 = vadd.f32 %v7407, %v7207
      %v7409 = vadd.f32 %v7408, %v7208
      %v7410 = vsel %vm307, %v7209, 0.0
      %v7411 = vadd.f32 %v7409, %v7410
      %7412 = vadd.xlane.f32.xlu0 %v7411
      %v7413 = vpop.xlane.xlu0 %7412
      %v7414 = vadd.f32 %v7210, %v7211
      %v7415 = vadd.f32 %v7414, %v7212
      %v7416 = vadd.f32 %v7415, %v7213
      %v7417 = vsel %vm307, %v7214, 0.0
      %v7418 = vadd.f32 %v7416, %v7417
      %7419 = vadd.xlane.f32.xlu0 %v7418
      %v7420 = vpop.xlane.xlu0 %7419
      %v7421 = vadd.f32 %v7215, %v7216
      %v7422 = vadd.f32 %v7421, %v7217
      %v7423 = vadd.f32 %v7422, %v7218
      %v7424 = vsel %vm307, %v7219, 0.0
      %v7425 = vadd.f32 %v7423, %v7424
      %7426 = vadd.xlane.f32.xlu0 %v7425
      %v7427 = vpop.xlane.xlu0 %7426
      %v7428 = vadd.f32 %v7220, %v7221
      %v7429 = vadd.f32 %v7428, %v7222
      %v7430 = vadd.f32 %v7429, %v7223
      %v7431 = vsel %vm307, %v7224, 0.0
      %v7432 = vadd.f32 %v7430, %v7431
      %7433 = vadd.xlane.f32.xlu0 %v7432
      %v7434 = vpop.xlane.xlu0 %7433
      %v7435 = vadd.f32 %v7225, %v7226
      %v7436 = vadd.f32 %v7435, %v7227
      %v7437 = vadd.f32 %v7436, %v7228
      %v7438 = vsel %vm307, %v7229, 0.0
      %v7439 = vadd.f32 %v7437, %v7438
      %7440 = vadd.xlane.f32.xlu0 %v7439
      %v7441 = vpop.xlane.xlu0 %7440
      %v7442 = vadd.f32 %v7230, %v7231
      %v7443 = vadd.f32 %v7442, %v7232
      %v7444 = vadd.f32 %v7443, %v7233
      %v7445 = vsel %vm307, %v7234, 0.0
      %v7446 = vadd.f32 %v7444, %v7445
      %7447 = vadd.xlane.f32.xlu0 %v7446
      %v7448 = vpop.xlane.xlu0 %7447
      %v7449 = vadd.f32 %v7235, %v7236
      %v7450 = vadd.f32 %v7449, %v7237
      %v7451 = vadd.f32 %v7450, %v7238
      %v7452 = vsel %vm307, %v7239, 0.0
      %v7453 = vadd.f32 %v7451, %v7452
      %7454 = vadd.xlane.f32.xlu0 %v7453
      %v7455 = vpop.xlane.xlu0 %7454
      %v7456 = vadd.f32 %v7240, %v7241
      %v7457 = vadd.f32 %v7456, %v7242
      %v7458 = vadd.f32 %v7457, %v7243
      %v7459 = vsel %vm307, %v7244, 0.0
      %v7460 = vadd.f32 %v7458, %v7459
      %7461 = vadd.xlane.f32.xlu0 %v7460
      %v7462 = vpop.xlane.xlu0 %7461
      %v7463 = vadd.f32 %v7245, %v7246
      %v7464 = vadd.f32 %v7463, %v7247
      %v7465 = vadd.f32 %v7464, %v7248
      %v7466 = vsel %vm307, %v7249, 0.0
      %v7467 = vadd.f32 %v7465, %v7466
      %7468 = vadd.xlane.f32.xlu0 %v7467
      %v7469 = vpop.xlane.xlu0 %7468
      %v7470 = vadd.f32 %v7250, %v7251
      %v7471 = vadd.f32 %v7470, %v7252
      %v7472 = vadd.f32 %v7471, %v7253
      %v7473 = vsel %vm307, %v7254, 0.0
      %v7474 = vadd.f32 %v7472, %v7473
      %7475 = vadd.xlane.f32.xlu0 %v7474
      %v7476 = vpop.xlane.xlu0 %7475
      %v7477 = vadd.f32 %v7255, %v7256
      %v7478 = vadd.f32 %v7477, %v7257
      %v7479 = vadd.f32 %v7478, %v7258
      %v7480 = vsel %vm307, %v7259, 0.0
      %v7481 = vadd.f32 %v7479, %v7480
      %7482 = vadd.xlane.f32.xlu0 %v7481
      %v7483 = vpop.xlane.xlu0 %7482
      %v7484 = vadd.f32 %v7260, %v7261
      %v7485 = vadd.f32 %v7484, %v7262
      %v7486 = vadd.f32 %v7485, %v7263
      %v7487 = vsel %vm307, %v7264, 0.0
      %v7488 = vadd.f32 %v7486, %v7487
      %7489 = vadd.xlane.f32.xlu0 %v7488
      %v7490 = vpop.xlane.xlu0 %7489
      %v7491 = vadd.f32 %v7265, %v7266
      %v7492 = vadd.f32 %v7491, %v7267
      %v7493 = vadd.f32 %v7492, %v7268
      %v7494 = vsel %vm307, %v7269, 0.0
      %v7495 = vadd.f32 %v7493, %v7494
      %7496 = vadd.xlane.f32.xlu0 %v7495
      %v7497 = vpop.xlane.xlu0 %7496
      %v7498 = vadd.f32 %v7270, %v7271
      %v7499 = vadd.f32 %v7498, %v7272
      %v7500 = vadd.f32 %v7499, %v7273
      %v7501 = vsel %vm307, %v7274, 0.0
      %v7502 = vadd.f32 %v7500, %v7501
      %7503 = vadd.xlane.f32.xlu0 %v7502
      %v7504 = vpop.xlane.xlu0 %7503
      %v7505 = vadd.f32 %v7275, %v7276
      %v7506 = vadd.f32 %v7505, %v7277
      %v7507 = vadd.f32 %v7506, %v7278
      %v7508 = vsel %vm307, %v7279, 0.0
      %v7509 = vadd.f32 %v7507, %v7508
      %7510 = vadd.xlane.f32.xlu0 %v7509
      %v7511 = vpop.xlane.xlu0 %7510
      %v7512 = vadd.f32 %v7280, %v7281
      %v7513 = vadd.f32 %v7512, %v7282
      %v7514 = vadd.f32 %v7513, %v7283
      %v7515 = vsel %vm307, %v7284, 0.0
      %v7516 = vadd.f32 %v7514, %v7515
      %7517 = vadd.xlane.f32.xlu0 %v7516
      %v7518 = vpop.xlane.xlu0 %7517
      %v7519 = vadd.f32 %v7285, %v7286
      %v7520 = vadd.f32 %v7519, %v7287
      %v7521 = vadd.f32 %v7520, %v7288
      %v7522 = vsel %vm307, %v7289, 0.0
      %v7523 = vadd.f32 %v7521, %v7522
      %7524 = vadd.xlane.f32.xlu0 %v7523
      %v7525 = vpop.xlane.xlu0 %7524
      %v7526 = vadd.f32 %v7290, %v7291
      %v7527 = vadd.f32 %v7526, %v7292
      %v7528 = vadd.f32 %v7527, %v7293
      %v7529 = vsel %vm307, %v7294, 0.0
      %v7530 = vadd.f32 %v7528, %v7529
      %7531 = vadd.xlane.f32.xlu0 %v7530
      %v7532 = vpop.xlane.xlu0 %7531
      %v7533 = vadd.f32 %v7295, %v7296
      %v7534 = vadd.f32 %v7533, %v7297
      %v7535 = vadd.f32 %v7534, %v7298
      %v7536 = vsel %vm307, %v7299, 0.0
      %v7537 = vadd.f32 %v7535, %v7536
      %7538 = vadd.xlane.f32.xlu0 %v7537
      %v7539 = vpop.xlane.xlu0 %7538
      %v7540 = vadd.f32 %v7300, %v7301
      %v7541 = vadd.f32 %v7540, %v7302
      %v7542 = vadd.f32 %v7541, %v7303
      %v7543 = vsel %vm307, %v7304, 0.0
      %v7544 = vadd.f32 %v7542, %v7543
      %7545 = vadd.xlane.f32.xlu0 %v7544
      %v7546 = vpop.xlane.xlu0 %7545
      %v7547 = vadd.f32 %v7305, %v7306
      %v7548 = vadd.f32 %v7547, %v7307
      %v7549 = vadd.f32 %v7548, %v7308
      %v7550 = vsel %vm307, %v7309, 0.0
      %v7551 = vadd.f32 %v7549, %v7550
      %7552 = vadd.xlane.f32.xlu0 %v7551
      %v7553 = vpop.xlane.xlu0 %7552
      %v7554 = vadd.f32 %v7310, %v7311
      %v7555 = vadd.f32 %v7554, %v7312
      %v7556 = vadd.f32 %v7555, %v7313
      %v7557 = vsel %vm307, %v7314, 0.0
      %v7558 = vadd.f32 %v7556, %v7557
      %7559 = vadd.xlane.f32.xlu0 %v7558
      %v7560 = vpop.xlane.xlu0 %7559
      %v7561 = vadd.f32 %v7315, %v7316
      %v7562 = vadd.f32 %v7561, %v7317
      %v7563 = vadd.f32 %v7562, %v7318
      %v7564 = vsel %vm307, %v7319, 0.0
      %v7565 = vadd.f32 %v7563, %v7564
      %7566 = vadd.xlane.f32.xlu0 %v7565
      %v7567 = vpop.xlane.xlu0 %7566
      %v7568 = vadd.f32 %v7320, %v7321
      %v7569 = vadd.f32 %v7568, %v7322
      %v7570 = vadd.f32 %v7569, %v7323
      %v7571 = vsel %vm307, %v7324, 0.0
      %v7572 = vadd.f32 %v7570, %v7571
      %7573 = vadd.xlane.f32.xlu0 %v7572
      %v7574 = vpop.xlane.xlu0 %7573
      %v7575 = vadd.f32 %v7325, %v7326
      %v7576 = vadd.f32 %v7575, %v7327
      %v7577 = vadd.f32 %v7576, %v7328
      %v7578 = vsel %vm307, %v7329, 0.0
      %v7579 = vadd.f32 %v7577, %v7578
      %7580 = vadd.xlane.f32.xlu0 %v7579
      %v7581 = vpop.xlane.xlu0 %7580
      %v7582 = vld [vmem:[#allocation3] sm:$0x1]
      %7584 = vset.pattern.permute.xlu0 0
      %7585 = vperm.xlu0 %7584, %v7582
      %v7586 = vpop.permute.xlu0 %7585
      %v7588 = vperm.slane %v7586, 0
      %v7589 = vadd.f32 %v7336, %v7588
      %v7590 = vadd.f32 %v7343, %v7588
      %v7591 = vadd.f32 %v7350, %v7588
      %v7592 = vadd.f32 %v7357, %v7588
      %v7593 = vadd.f32 %v7364, %v7588
      %v7594 = vadd.f32 %v7371, %v7588
      %v7595 = vadd.f32 %v7378, %v7588
      %v7596 = vadd.f32 %v7385, %v7588
      %v7597 = vadd.f32 %v7392, %v7588
      %v7598 = vadd.f32 %v7399, %v7588
      %v7599 = vadd.f32 %v7406, %v7588
      %v7600 = vadd.f32 %v7413, %v7588
      %v7601 = vadd.f32 %v7420, %v7588
      %v7602 = vadd.f32 %v7427, %v7588
      %v7603 = vadd.f32 %v7434, %v7588
      %v7604 = vadd.f32 %v7441, %v7588
      %v7605 = vadd.f32 %v7448, %v7588
      %v7606 = vadd.f32 %v7455, %v7588
      %v7607 = vadd.f32 %v7462, %v7588
      %v7608 = vadd.f32 %v7469, %v7588
      %v7609 = vadd.f32 %v7476, %v7588
      %v7610 = vadd.f32 %v7483, %v7588
      %v7611 = vadd.f32 %v7490, %v7588
      %v7612 = vadd.f32 %v7497, %v7588
      %v7613 = vadd.f32 %v7504, %v7588
      %v7614 = vadd.f32 %v7511, %v7588
      %v7615 = vadd.f32 %v7518, %v7588
      %v7616 = vadd.f32 %v7525, %v7588
      %v7617 = vadd.f32 %v7532, %v7588
      %v7618 = vadd.f32 %v7539, %v7588
      %v7619 = vadd.f32 %v7546, %v7588
      %v7620 = vadd.f32 %v7553, %v7588
      %v7621 = vadd.f32 %v7560, %v7588
      %v7622 = vadd.f32 %v7567, %v7588
      %v7623 = vadd.f32 %v7574, %v7588
      %v7624 = vadd.f32 %v7581, %v7588
      %v7661 = vperm.slane %v7589, 0
      %v7662 = vperm.slane %v7589, 1
      %v7663 = vperm.slane %v7589, 2
      %v7664 = vperm.slane %v7589, 3
      %v7665 = vperm.slane %v7589, 4
      %v7666 = vperm.slane %v7589, 5
      %v7667 = vperm.slane %v7589, 6
      %v7668 = vperm.slane %v7589, 7
      %v7669 = vperm.slane %v7590, 0
      %v7670 = vperm.slane %v7590, 1
      %v7671 = vperm.slane %v7590, 2
      %v7672 = vperm.slane %v7590, 3
      %v7673 = vperm.slane %v7590, 4
      %v7674 = vperm.slane %v7590, 5
      %v7675 = vperm.slane %v7590, 6
      %v7676 = vperm.slane %v7590, 7
      %v7677 = vperm.slane %v7591, 0
      %v7678 = vperm.slane %v7591, 1
      %v7679 = vperm.slane %v7591, 2
      %v7680 = vperm.slane %v7591, 3
      %v7681 = vperm.slane %v7591, 4
      %v7682 = vperm.slane %v7591, 5
      %v7683 = vperm.slane %v7591, 6
      %v7684 = vperm.slane %v7591, 7
      %v7685 = vperm.slane %v7592, 0
      %v7686 = vperm.slane %v7592, 1
      %v7687 = vperm.slane %v7592, 2
      %v7688 = vperm.slane %v7592, 3
      %v7689 = vperm.slane %v7592, 4
      %v7690 = vperm.slane %v7592, 5
      %v7691 = vperm.slane %v7592, 6
      %v7692 = vperm.slane %v7592, 7
      %v7693 = vperm.slane %v7593, 0
      %v7694 = vperm.slane %v7593, 1
      %v7695 = vperm.slane %v7593, 2
      %v7696 = vperm.slane %v7593, 3
      %v7697 = vperm.slane %v7593, 4
      %v7698 = vperm.slane %v7593, 5
      %v7699 = vperm.slane %v7593, 6
      %v7700 = vperm.slane %v7593, 7
      %v7701 = vperm.slane %v7594, 0
      %v7702 = vperm.slane %v7594, 1
      %v7703 = vperm.slane %v7594, 2
      %v7704 = vperm.slane %v7594, 3
      %v7705 = vperm.slane %v7594, 4
      %v7706 = vperm.slane %v7594, 5
      %v7707 = vperm.slane %v7594, 6
      %v7708 = vperm.slane %v7594, 7
      %v7709 = vperm.slane %v7595, 0
      %v7710 = vperm.slane %v7595, 1
      %v7711 = vperm.slane %v7595, 2
      %v7712 = vperm.slane %v7595, 3
      %v7713 = vperm.slane %v7595, 4
      %v7714 = vperm.slane %v7595, 5
      %v7715 = vperm.slane %v7595, 6
      %v7716 = vperm.slane %v7595, 7
      %v7717 = vperm.slane %v7596, 0
      %v7718 = vperm.slane %v7596, 1
      %v7719 = vperm.slane %v7596, 2
      %v7720 = vperm.slane %v7596, 3
      %v7721 = vperm.slane %v7596, 4
      %v7722 = vperm.slane %v7596, 5
      %v7723 = vperm.slane %v7596, 6
      %v7724 = vperm.slane %v7596, 7
      %v7725 = vperm.slane %v7597, 0
      %v7726 = vperm.slane %v7597, 1
      %v7727 = vperm.slane %v7597, 2
      %v7728 = vperm.slane %v7597, 3
      %v7729 = vperm.slane %v7597, 4
      %v7730 = vperm.slane %v7597, 5
      %v7731 = vperm.slane %v7597, 6
      %v7732 = vperm.slane %v7597, 7
      %v7733 = vperm.slane %v7598, 0
      %v7734 = vperm.slane %v7598, 1
      %v7735 = vperm.slane %v7598, 2
      %v7736 = vperm.slane %v7598, 3
      %v7737 = vperm.slane %v7598, 4
      %v7738 = vperm.slane %v7598, 5
      %v7739 = vperm.slane %v7598, 6
      %v7740 = vperm.slane %v7598, 7
      %v7741 = vperm.slane %v7599, 0
      %v7742 = vperm.slane %v7599, 1
      %v7743 = vperm.slane %v7599, 2
      %v7744 = vperm.slane %v7599, 3
      %v7745 = vperm.slane %v7599, 4
      %v7746 = vperm.slane %v7599, 5
      %v7747 = vperm.slane %v7599, 6
      %v7748 = vperm.slane %v7599, 7
      %v7749 = vperm.slane %v7600, 0
      %v7750 = vperm.slane %v7600, 1
      %v7751 = vperm.slane %v7600, 2
      %v7752 = vperm.slane %v7600, 3
      %v7753 = vperm.slane %v7600, 4
      %v7754 = vperm.slane %v7600, 5
      %v7755 = vperm.slane %v7600, 6
      %v7756 = vperm.slane %v7600, 7
      %v7757 = vperm.slane %v7601, 0
      %v7758 = vperm.slane %v7601, 1
      %v7759 = vperm.slane %v7601, 2
      %v7760 = vperm.slane %v7601, 3
      %v7761 = vperm.slane %v7601, 4
      %v7762 = vperm.slane %v7601, 5
      %v7763 = vperm.slane %v7601, 6
      %v7764 = vperm.slane %v7601, 7
      %v7765 = vperm.slane %v7602, 0
      %v7766 = vperm.slane %v7602, 1
      %v7767 = vperm.slane %v7602, 2
      %v7768 = vperm.slane %v7602, 3
      %v7769 = vperm.slane %v7602, 4
      %v7770 = vperm.slane %v7602, 5
      %v7771 = vperm.slane %v7602, 6
      %v7772 = vperm.slane %v7602, 7
      %v7773 = vperm.slane %v7603, 0
      %v7774 = vperm.slane %v7603, 1
      %v7775 = vperm.slane %v7603, 2
      %v7776 = vperm.slane %v7603, 3
      %v7777 = vperm.slane %v7603, 4
      %v7778 = vperm.slane %v7603, 5
      %v7779 = vperm.slane %v7603, 6
      %v7780 = vperm.slane %v7603, 7
      %v7781 = vperm.slane %v7604, 0
      %v7782 = vperm.slane %v7604, 1
      %v7783 = vperm.slane %v7604, 2
      %v7784 = vperm.slane %v7604, 3
      %v7785 = vperm.slane %v7604, 4
      %v7786 = vperm.slane %v7604, 5
      %v7787 = vperm.slane %v7604, 6
      %v7788 = vperm.slane %v7604, 7
      %v7789 = vperm.slane %v7605, 0
      %v7790 = vperm.slane %v7605, 1
      %v7791 = vperm.slane %v7605, 2
      %v7792 = vperm.slane %v7605, 3
      %v7793 = vperm.slane %v7605, 4
      %v7794 = vperm.slane %v7605, 5
      %v7795 = vperm.slane %v7605, 6
      %v7796 = vperm.slane %v7605, 7
      %v7797 = vperm.slane %v7606, 0
      %v7798 = vperm.slane %v7606, 1
      %v7799 = vperm.slane %v7606, 2
      %v7800 = vperm.slane %v7606, 3
      %v7801 = vperm.slane %v7606, 4
      %v7802 = vperm.slane %v7606, 5
      %v7803 = vperm.slane %v7606, 6
      %v7804 = vperm.slane %v7606, 7
      %v7805 = vperm.slane %v7607, 0
      %v7806 = vperm.slane %v7607, 1
      %v7807 = vperm.slane %v7607, 2
      %v7808 = vperm.slane %v7607, 3
      %v7809 = vperm.slane %v7607, 4
      %v7810 = vperm.slane %v7607, 5
      %v7811 = vperm.slane %v7607, 6
      %v7812 = vperm.slane %v7607, 7
      %v7813 = vperm.slane %v7608, 0
      %v7814 = vperm.slane %v7608, 1
      %v7815 = vperm.slane %v7608, 2
      %v7816 = vperm.slane %v7608, 3
      %v7817 = vperm.slane %v7608, 4
      %v7818 = vperm.slane %v7608, 5
      %v7819 = vperm.slane %v7608, 6
      %v7820 = vperm.slane %v7608, 7
      %v7821 = vperm.slane %v7609, 0
      %v7822 = vperm.slane %v7609, 1
      %v7823 = vperm.slane %v7609, 2
      %v7824 = vperm.slane %v7609, 3
      %v7825 = vperm.slane %v7609, 4
      %v7826 = vperm.slane %v7609, 5
      %v7827 = vperm.slane %v7609, 6
      %v7828 = vperm.slane %v7609, 7
      %v7829 = vperm.slane %v7610, 0
      %v7830 = vperm.slane %v7610, 1
      %v7831 = vperm.slane %v7610, 2
      %v7832 = vperm.slane %v7610, 3
      %v7833 = vperm.slane %v7610, 4
      %v7834 = vperm.slane %v7610, 5
      %v7835 = vperm.slane %v7610, 6
      %v7836 = vperm.slane %v7610, 7
      %v7837 = vperm.slane %v7611, 0
      %v7838 = vperm.slane %v7611, 1
      %v7839 = vperm.slane %v7611, 2
      %v7840 = vperm.slane %v7611, 3
      %v7841 = vperm.slane %v7611, 4
      %v7842 = vperm.slane %v7611, 5
      %v7843 = vperm.slane %v7611, 6
      %v7844 = vperm.slane %v7611, 7
      %v7845 = vperm.slane %v7612, 0
      %v7846 = vperm.slane %v7612, 1
      %v7847 = vperm.slane %v7612, 2
      %v7848 = vperm.slane %v7612, 3
      %v7849 = vperm.slane %v7612, 4
      %v7850 = vperm.slane %v7612, 5
      %v7851 = vperm.slane %v7612, 6
      %v7852 = vperm.slane %v7612, 7
      %v7853 = vperm.slane %v7613, 0
      %v7854 = vperm.slane %v7613, 1
      %v7855 = vperm.slane %v7613, 2
      %v7856 = vperm.slane %v7613, 3
      %v7857 = vperm.slane %v7613, 4
      %v7858 = vperm.slane %v7613, 5
      %v7859 = vperm.slane %v7613, 6
      %v7860 = vperm.slane %v7613, 7
      %v7861 = vperm.slane %v7614, 0
      %v7862 = vperm.slane %v7614, 1
      %v7863 = vperm.slane %v7614, 2
      %v7864 = vperm.slane %v7614, 3
      %v7865 = vperm.slane %v7614, 4
      %v7866 = vperm.slane %v7614, 5
      %v7867 = vperm.slane %v7614, 6
      %v7868 = vperm.slane %v7614, 7
      %v7869 = vperm.slane %v7615, 0
      %v7870 = vperm.slane %v7615, 1
      %v7871 = vperm.slane %v7615, 2
      %v7872 = vperm.slane %v7615, 3
      %v7873 = vperm.slane %v7615, 4
      %v7874 = vperm.slane %v7615, 5
      %v7875 = vperm.slane %v7615, 6
      %v7876 = vperm.slane %v7615, 7
      %v7877 = vperm.slane %v7616, 0
      %v7878 = vperm.slane %v7616, 1
      %v7879 = vperm.slane %v7616, 2
      %v7880 = vperm.slane %v7616, 3
      %v7881 = vperm.slane %v7616, 4
      %v7882 = vperm.slane %v7616, 5
      %v7883 = vperm.slane %v7616, 6
      %v7884 = vperm.slane %v7616, 7
      %v7885 = vperm.slane %v7617, 0
      %v7886 = vperm.slane %v7617, 1
      %v7887 = vperm.slane %v7617, 2
      %v7888 = vperm.slane %v7617, 3
      %v7889 = vperm.slane %v7617, 4
      %v7890 = vperm.slane %v7617, 5
      %v7891 = vperm.slane %v7617, 6
      %v7892 = vperm.slane %v7617, 7
      %v7893 = vperm.slane %v7618, 0
      %v7894 = vperm.slane %v7618, 1
      %v7895 = vperm.slane %v7618, 2
      %v7896 = vperm.slane %v7618, 3
      %v7897 = vperm.slane %v7618, 4
      %v7898 = vperm.slane %v7618, 5
      %v7899 = vperm.slane %v7618, 6
      %v7900 = vperm.slane %v7618, 7
      %v7901 = vperm.slane %v7619, 0
      %v7902 = vperm.slane %v7619, 1
      %v7903 = vperm.slane %v7619, 2
      %v7904 = vperm.slane %v7619, 3
      %v7905 = vperm.slane %v7619, 4
      %v7906 = vperm.slane %v7619, 5
      %v7907 = vperm.slane %v7619, 6
      %v7908 = vperm.slane %v7619, 7
      %v7909 = vperm.slane %v7620, 0
      %v7910 = vperm.slane %v7620, 1
      %v7911 = vperm.slane %v7620, 2
      %v7912 = vperm.slane %v7620, 3
      %v7913 = vperm.slane %v7620, 4
      %v7914 = vperm.slane %v7620, 5
      %v7915 = vperm.slane %v7620, 6
      %v7916 = vperm.slane %v7620, 7
      %v7917 = vperm.slane %v7621, 0
      %v7918 = vperm.slane %v7621, 1
      %v7919 = vperm.slane %v7621, 2
      %v7920 = vperm.slane %v7621, 3
      %v7921 = vperm.slane %v7621, 4
      %v7922 = vperm.slane %v7621, 5
      %v7923 = vperm.slane %v7621, 6
      %v7924 = vperm.slane %v7621, 7
      %v7925 = vperm.slane %v7622, 0
      %v7926 = vperm.slane %v7622, 1
      %v7927 = vperm.slane %v7622, 2
      %v7928 = vperm.slane %v7622, 3
      %v7929 = vperm.slane %v7622, 4
      %v7930 = vperm.slane %v7622, 5
      %v7931 = vperm.slane %v7622, 6
      %v7932 = vperm.slane %v7622, 7
      %v7933 = vperm.slane %v7623, 0
      %v7934 = vperm.slane %v7623, 1
      %v7935 = vperm.slane %v7623, 2
      %v7936 = vperm.slane %v7623, 3
      %v7937 = vperm.slane %v7623, 4
      %v7938 = vperm.slane %v7623, 5
      %v7939 = vperm.slane %v7623, 6
      %v7940 = vperm.slane %v7623, 7
      %v7941 = vperm.slane %v7624, 0
      %v7942 = vperm.slane %v7624, 1
      %v7943 = vperm.slane %v7624, 2
      %v7944 = vperm.slane %v7624, 3
      %v7945 = vperm.slane %v7624, 4
      %v7946 = vperm.slane %v7624, 5
      %v7947 = vperm.slane %v7624, 6
      %v7948 = vperm.slane %v7624, 7
      %7949 = vst [vmem:[#allocation1] ss:$9 sm:$0xff] %v7661
      %s7950 = scalar_lea.vmem [#allocation1], 1
      %7951 = vst [vmem:[%s7950] ss:$9 sm:$0xff] %v7662
      %s7952 = scalar_lea.vmem [#allocation1], 2
      %7953 = vst [vmem:[%s7952] ss:$9 sm:$0xff] %v7663
      %s7954 = scalar_lea.vmem [#allocation1], 3
      %7955 = vst [vmem:[%s7954] ss:$9 sm:$0xff] %v7664
      %s7956 = scalar_lea.vmem [#allocation1], 4
      %7957 = vst [vmem:[%s7956] ss:$9 sm:$0xff] %v7665
      %s7958 = scalar_lea.vmem [#allocation1], 5
      %7959 = vst [vmem:[%s7958] ss:$9 sm:$0xff] %v7666
      %s7960 = scalar_lea.vmem [#allocation1], 6
      %7961 = vst [vmem:[%s7960] ss:$9 sm:$0xff] %v7667
      %s7962 = scalar_lea.vmem [#allocation1], 7
      %7963 = vst [vmem:[%s7962] ss:$9 sm:$0xff] %v7668
      %v7964 = vld [vmem:[#allocation1] sm:$0xff]
      %7965 = vst [vmem:[#allocation1] ss:$9 sm:$0xff] %v7669
      %7966 = vst [vmem:[%s7950] ss:$9 sm:$0xff] %v7670
      %7967 = vst [vmem:[%s7952] ss:$9 sm:$0xff] %v7671
      %7968 = vst [vmem:[%s7954] ss:$9 sm:$0xff] %v7672
      %7969 = vst [vmem:[%s7956] ss:$9 sm:$0xff] %v7673
      %7970 = vst [vmem:[%s7958] ss:$9 sm:$0xff] %v7674
      %7971 = vst [vmem:[%s7960] ss:$9 sm:$0xff] %v7675
      %7972 = vst [vmem:[%s7962] ss:$9 sm:$0xff] %v7676
      %v7973 = vld [vmem:[#allocation1] sm:$0xff]
      %7974 = vst [vmem:[#allocation1] ss:$9 sm:$0xff] %v7677
      %7975 = vst [vmem:[%s7950] ss:$9 sm:$0xff] %v7678
      %7976 = vst [vmem:[%s7952] ss:$9 sm:$0xff] %v7679
      %7977 = vst [vmem:[%s7954] ss:$9 sm:$0xff] %v7680
      %7978 = vst [vmem:[%s7956] ss:$9 sm:$0xff] %v7681
      %7979 = vst [vmem:[%s7958] ss:$9 sm:$0xff] %v7682
      %7980 = vst [vmem:[%s7960] ss:$9 sm:$0xff] %v7683
      %7981 = vst [vmem:[%s7962] ss:$9 sm:$0xff] %v7684
      %v7982 = vld [vmem:[#allocation1] sm:$0xff]
      %7983 = vst [vmem:[#allocation1] ss:$9 sm:$0xff] %v7685
      %7984 = vst [vmem:[%s7950] ss:$9 sm:$0xff] %v7686
      %7985 = vst [vmem:[%s7952] ss:$9 sm:$0xff] %v7687
      %7986 = vst [vmem:[%s7954] ss:$9 sm:$0xff] %v7688
      %7987 = vst [vmem:[%s7956] ss:$9 sm:$0xff] %v7689
      %7988 = vst [vmem:[%s7958] ss:$9 sm:$0xff] %v7690
      %7989 = vst [vmem:[%s7960] ss:$9 sm:$0xff] %v7691
      %7990 = vst [vmem:[%s7962] ss:$9 sm:$0xff] %v7692
      %v7991 = vld [vmem:[#allocation1] sm:$0xff]
      %7992 = vst [vmem:[#allocation1] ss:$9 sm:$0xff] %v7693
      %7993 = vst [vmem:[%s7950] ss:$9 sm:$0xff] %v7694
      %7994 = vst [vmem:[%s7952] ss:$9 sm:$0xff] %v7695
      %7995 = vst [vmem:[%s7954] ss:$9 sm:$0xff] %v7696
      %7996 = vst [vmem:[%s7956] ss:$9 sm:$0xff] %v7697
      %7997 = vst [vmem:[%s7958] ss:$9 sm:$0xff] %v7698
      %7998 = vst [vmem:[%s7960] ss:$9 sm:$0xff] %v7699
      %7999 = vst [vmem:[%s7962] ss:$9 sm:$0xff] %v7700
      %v8000 = vld [vmem:[#allocation1] sm:$0xff]
      %8001 = vst [vmem:[#allocation1] ss:$9 sm:$0xff] %v7701
      %8002 = vst [vmem:[%s7950] ss:$9 sm:$0xff] %v7702
      %8003 = vst [vmem:[%s7952] ss:$9 sm:$0xff] %v7703
      %8004 = vst [vmem:[%s7954] ss:$9 sm:$0xff] %v7704
      %8005 = vst [vmem:[%s7956] ss:$9 sm:$0xff] %v7705
      %8006 = vst [vmem:[%s7958] ss:$9 sm:$0xff] %v7706
      %8007 = vst [vmem:[%s7960] ss:$9 sm:$0xff] %v7707
      %8008 = vst [vmem:[%s7962] ss:$9 sm:$0xff] %v7708
      %v8009 = vld [vmem:[#allocation1] sm:$0xff]
      %8010 = vst [vmem:[#allocation1] ss:$9 sm:$0xff] %v7709
      %8011 = vst [vmem:[%s7950] ss:$9 sm:$0xff] %v7710
      %8012 = vst [vmem:[%s7952] ss:$9 sm:$0xff] %v7711
      %8013 = vst [vmem:[%s7954] ss:$9 sm:$0xff] %v7712
      %8014 = vst [vmem:[%s7956] ss:$9 sm:$0xff] %v7713
      %8015 = vst [vmem:[%s7958] ss:$9 sm:$0xff] %v7714
      %8016 = vst [vmem:[%s7960] ss:$9 sm:$0xff] %v7715
      %8017 = vst [vmem:[%s7962] ss:$9 sm:$0xff] %v7716
      %v8018 = vld [vmem:[#allocation1] sm:$0xff]
      %8019 = vst [vmem:[#allocation1] ss:$9 sm:$0xff] %v7717
      %8020 = vst [vmem:[%s7950] ss:$9 sm:$0xff] %v7718
      %8021 = vst [vmem:[%s7952] ss:$9 sm:$0xff] %v7719
      %8022 = vst [vmem:[%s7954] ss:$9 sm:$0xff] %v7720
      %8023 = vst [vmem:[%s7956] ss:$9 sm:$0xff] %v7721
      %8024 = vst [vmem:[%s7958] ss:$9 sm:$0xff] %v7722
      %8025 = vst [vmem:[%s7960] ss:$9 sm:$0xff] %v7723
      %8026 = vst [vmem:[%s7962] ss:$9 sm:$0xff] %v7724
      %v8027 = vld [vmem:[#allocation1] sm:$0xff]
      %8028 = vst [vmem:[#allocation1] ss:$9 sm:$0xff] %v7725
      %8029 = vst [vmem:[%s7950] ss:$9 sm:$0xff] %v7726
      %8030 = vst [vmem:[%s7952] ss:$9 sm:$0xff] %v7727
      %8031 = vst [vmem:[%s7954] ss:$9 sm:$0xff] %v7728
      %8032 = vst [vmem:[%s7956] ss:$9 sm:$0xff] %v7729
      %8033 = vst [vmem:[%s7958] ss:$9 sm:$0xff] %v7730
      %8034 = vst [vmem:[%s7960] ss:$9 sm:$0xff] %v7731
      %8035 = vst [vmem:[%s7962] ss:$9 sm:$0xff] %v7732
      %v8036 = vld [vmem:[#allocation1] sm:$0xff]
      %8037 = vst [vmem:[#allocation1] ss:$9 sm:$0xff] %v7733
      %8038 = vst [vmem:[%s7950] ss:$9 sm:$0xff] %v7734
      %8039 = vst [vmem:[%s7952] ss:$9 sm:$0xff] %v7735
      %8040 = vst [vmem:[%s7954] ss:$9 sm:$0xff] %v7736
      %8041 = vst [vmem:[%s7956] ss:$9 sm:$0xff] %v7737
      %8042 = vst [vmem:[%s7958] ss:$9 sm:$0xff] %v7738
      %8043 = vst [vmem:[%s7960] ss:$9 sm:$0xff] %v7739
      %8044 = vst [vmem:[%s7962] ss:$9 sm:$0xff] %v7740
      %v8045 = vld [vmem:[#allocation1] sm:$0xff]
      %8046 = vst [vmem:[#allocation1] ss:$9 sm:$0xff] %v7741
      %8047 = vst [vmem:[%s7950] ss:$9 sm:$0xff] %v7742
      %8048 = vst [vmem:[%s7952] ss:$9 sm:$0xff] %v7743
      %8049 = vst [vmem:[%s7954] ss:$9 sm:$0xff] %v7744
      %8050 = vst [vmem:[%s7956] ss:$9 sm:$0xff] %v7745
      %8051 = vst [vmem:[%s7958] ss:$9 sm:$0xff] %v7746
      %8052 = vst [vmem:[%s7960] ss:$9 sm:$0xff] %v7747
      %8053 = vst [vmem:[%s7962] ss:$9 sm:$0xff] %v7748
      %v8054 = vld [vmem:[#allocation1] sm:$0xff]
      %8055 = vst [vmem:[#allocation1] ss:$9 sm:$0xff] %v7749
      %8056 = vst [vmem:[%s7950] ss:$9 sm:$0xff] %v7750
      %8057 = vst [vmem:[%s7952] ss:$9 sm:$0xff] %v7751
      %8058 = vst [vmem:[%s7954] ss:$9 sm:$0xff] %v7752
      %8059 = vst [vmem:[%s7956] ss:$9 sm:$0xff] %v7753
      %8060 = vst [vmem:[%s7958] ss:$9 sm:$0xff] %v7754
      %8061 = vst [vmem:[%s7960] ss:$9 sm:$0xff] %v7755
      %8062 = vst [vmem:[%s7962] ss:$9 sm:$0xff] %v7756
      %v8063 = vld [vmem:[#allocation1] sm:$0xff]
      %8064 = vst [vmem:[#allocation1] ss:$9 sm:$0xff] %v7757
      %8065 = vst [vmem:[%s7950] ss:$9 sm:$0xff] %v7758
      %8066 = vst [vmem:[%s7952] ss:$9 sm:$0xff] %v7759
      %8067 = vst [vmem:[%s7954] ss:$9 sm:$0xff] %v7760
      %8068 = vst [vmem:[%s7956] ss:$9 sm:$0xff] %v7761
      %8069 = vst [vmem:[%s7958] ss:$9 sm:$0xff] %v7762
      %8070 = vst [vmem:[%s7960] ss:$9 sm:$0xff] %v7763
      %8071 = vst [vmem:[%s7962] ss:$9 sm:$0xff] %v7764
      %v8072 = vld [vmem:[#allocation1] sm:$0xff]
      %8073 = vst [vmem:[#allocation1] ss:$9 sm:$0xff] %v7765
      %8074 = vst [vmem:[%s7950] ss:$9 sm:$0xff] %v7766
      %8075 = vst [vmem:[%s7952] ss:$9 sm:$0xff] %v7767
      %8076 = vst [vmem:[%s7954] ss:$9 sm:$0xff] %v7768
      %8077 = vst [vmem:[%s7956] ss:$9 sm:$0xff] %v7769
      %8078 = vst [vmem:[%s7958] ss:$9 sm:$0xff] %v7770
      %8079 = vst [vmem:[%s7960] ss:$9 sm:$0xff] %v7771
      %8080 = vst [vmem:[%s7962] ss:$9 sm:$0xff] %v7772
      %v8081 = vld [vmem:[#allocation1] sm:$0xff]
      %8082 = vst [vmem:[#allocation1] ss:$9 sm:$0xff] %v7773
      %8083 = vst [vmem:[%s7950] ss:$9 sm:$0xff] %v7774
      %8084 = vst [vmem:[%s7952] ss:$9 sm:$0xff] %v7775
      %8085 = vst [vmem:[%s7954] ss:$9 sm:$0xff] %v7776
      %8086 = vst [vmem:[%s7956] ss:$9 sm:$0xff] %v7777
      %8087 = vst [vmem:[%s7958] ss:$9 sm:$0xff] %v7778
      %8088 = vst [vmem:[%s7960] ss:$9 sm:$0xff] %v7779
      %8089 = vst [vmem:[%s7962] ss:$9 sm:$0xff] %v7780
      %v8090 = vld [vmem:[#allocation1] sm:$0xff]
      %8091 = vst [vmem:[#allocation1] ss:$9 sm:$0xff] %v7781
      %8092 = vst [vmem:[%s7950] ss:$9 sm:$0xff] %v7782
      %8093 = vst [vmem:[%s7952] ss:$9 sm:$0xff] %v7783
      %8094 = vst [vmem:[%s7954] ss:$9 sm:$0xff] %v7784
      %8095 = vst [vmem:[%s7956] ss:$9 sm:$0xff] %v7785
      %8096 = vst [vmem:[%s7958] ss:$9 sm:$0xff] %v7786
      %8097 = vst [vmem:[%s7960] ss:$9 sm:$0xff] %v7787
      %8098 = vst [vmem:[%s7962] ss:$9 sm:$0xff] %v7788
      %v8099 = vld [vmem:[#allocation1] sm:$0xff]
      %8100 = vst [vmem:[#allocation1] ss:$9 sm:$0xff] %v7789
      %8101 = vst [vmem:[%s7950] ss:$9 sm:$0xff] %v7790
      %8102 = vst [vmem:[%s7952] ss:$9 sm:$0xff] %v7791
      %8103 = vst [vmem:[%s7954] ss:$9 sm:$0xff] %v7792
      %8104 = vst [vmem:[%s7956] ss:$9 sm:$0xff] %v7793
      %8105 = vst [vmem:[%s7958] ss:$9 sm:$0xff] %v7794
      %8106 = vst [vmem:[%s7960] ss:$9 sm:$0xff] %v7795
      %8107 = vst [vmem:[%s7962] ss:$9 sm:$0xff] %v7796
      %v8108 = vld [vmem:[#allocation1] sm:$0xff]
      %8109 = vst [vmem:[#allocation1] ss:$9 sm:$0xff] %v7797
      %8110 = vst [vmem:[%s7950] ss:$9 sm:$0xff] %v7798
      %8111 = vst [vmem:[%s7952] ss:$9 sm:$0xff] %v7799
      %8112 = vst [vmem:[%s7954] ss:$9 sm:$0xff] %v7800
      %8113 = vst [vmem:[%s7956] ss:$9 sm:$0xff] %v7801
      %8114 = vst [vmem:[%s7958] ss:$9 sm:$0xff] %v7802
      %8115 = vst [vmem:[%s7960] ss:$9 sm:$0xff] %v7803
      %8116 = vst [vmem:[%s7962] ss:$9 sm:$0xff] %v7804
      %v8117 = vld [vmem:[#allocation1] sm:$0xff]
      %8118 = vst [vmem:[#allocation1] ss:$9 sm:$0xff] %v7805
      %8119 = vst [vmem:[%s7950] ss:$9 sm:$0xff] %v7806
      %8120 = vst [vmem:[%s7952] ss:$9 sm:$0xff] %v7807
      %8121 = vst [vmem:[%s7954] ss:$9 sm:$0xff] %v7808
      %8122 = vst [vmem:[%s7956] ss:$9 sm:$0xff] %v7809
      %8123 = vst [vmem:[%s7958] ss:$9 sm:$0xff] %v7810
      %8124 = vst [vmem:[%s7960] ss:$9 sm:$0xff] %v7811
      %8125 = vst [vmem:[%s7962] ss:$9 sm:$0xff] %v7812
      %v8126 = vld [vmem:[#allocation1] sm:$0xff]
      %8127 = vst [vmem:[#allocation1] ss:$9 sm:$0xff] %v7813
      %8128 = vst [vmem:[%s7950] ss:$9 sm:$0xff] %v7814
      %8129 = vst [vmem:[%s7952] ss:$9 sm:$0xff] %v7815
      %8130 = vst [vmem:[%s7954] ss:$9 sm:$0xff] %v7816
      %8131 = vst [vmem:[%s7956] ss:$9 sm:$0xff] %v7817
      %8132 = vst [vmem:[%s7958] ss:$9 sm:$0xff] %v7818
      %8133 = vst [vmem:[%s7960] ss:$9 sm:$0xff] %v7819
      %8134 = vst [vmem:[%s7962] ss:$9 sm:$0xff] %v7820
      %v8135 = vld [vmem:[#allocation1] sm:$0xff]
      %8136 = vst [vmem:[#allocation1] ss:$9 sm:$0xff] %v7821
      %8137 = vst [vmem:[%s7950] ss:$9 sm:$0xff] %v7822
      %8138 = vst [vmem:[%s7952] ss:$9 sm:$0xff] %v7823
      %8139 = vst [vmem:[%s7954] ss:$9 sm:$0xff] %v7824
      %8140 = vst [vmem:[%s7956] ss:$9 sm:$0xff] %v7825
      %8141 = vst [vmem:[%s7958] ss:$9 sm:$0xff] %v7826
      %8142 = vst [vmem:[%s7960] ss:$9 sm:$0xff] %v7827
      %8143 = vst [vmem:[%s7962] ss:$9 sm:$0xff] %v7828
      %v8144 = vld [vmem:[#allocation1] sm:$0xff]
      %8145 = vst [vmem:[#allocation1] ss:$9 sm:$0xff] %v7829
      %8146 = vst [vmem:[%s7950] ss:$9 sm:$0xff] %v7830
      %8147 = vst [vmem:[%s7952] ss:$9 sm:$0xff] %v7831
      %8148 = vst [vmem:[%s7954] ss:$9 sm:$0xff] %v7832
      %8149 = vst [vmem:[%s7956] ss:$9 sm:$0xff] %v7833
      %8150 = vst [vmem:[%s7958] ss:$9 sm:$0xff] %v7834
      %8151 = vst [vmem:[%s7960] ss:$9 sm:$0xff] %v7835
      %8152 = vst [vmem:[%s7962] ss:$9 sm:$0xff] %v7836
      %v8153 = vld [vmem:[#allocation1] sm:$0xff]
      %8154 = vst [vmem:[#allocation1] ss:$9 sm:$0xff] %v7837
      %8155 = vst [vmem:[%s7950] ss:$9 sm:$0xff] %v7838
      %8156 = vst [vmem:[%s7952] ss:$9 sm:$0xff] %v7839
      %8157 = vst [vmem:[%s7954] ss:$9 sm:$0xff] %v7840
      %8158 = vst [vmem:[%s7956] ss:$9 sm:$0xff] %v7841
      %8159 = vst [vmem:[%s7958] ss:$9 sm:$0xff] %v7842
      %8160 = vst [vmem:[%s7960] ss:$9 sm:$0xff] %v7843
      %8161 = vst [vmem:[%s7962] ss:$9 sm:$0xff] %v7844
      %v8162 = vld [vmem:[#allocation1] sm:$0xff]
      %8163 = vst [vmem:[#allocation1] ss:$9 sm:$0xff] %v7845
      %8164 = vst [vmem:[%s7950] ss:$9 sm:$0xff] %v7846
      %8165 = vst [vmem:[%s7952] ss:$9 sm:$0xff] %v7847
      %8166 = vst [vmem:[%s7954] ss:$9 sm:$0xff] %v7848
      %8167 = vst [vmem:[%s7956] ss:$9 sm:$0xff] %v7849
      %8168 = vst [vmem:[%s7958] ss:$9 sm:$0xff] %v7850
      %8169 = vst [vmem:[%s7960] ss:$9 sm:$0xff] %v7851
      %8170 = vst [vmem:[%s7962] ss:$9 sm:$0xff] %v7852
      %v8171 = vld [vmem:[#allocation1] sm:$0xff]
      %8172 = vst [vmem:[#allocation1] ss:$9 sm:$0xff] %v7853
      %8173 = vst [vmem:[%s7950] ss:$9 sm:$0xff] %v7854
      %8174 = vst [vmem:[%s7952] ss:$9 sm:$0xff] %v7855
      %8175 = vst [vmem:[%s7954] ss:$9 sm:$0xff] %v7856
      %8176 = vst [vmem:[%s7956] ss:$9 sm:$0xff] %v7857
      %8177 = vst [vmem:[%s7958] ss:$9 sm:$0xff] %v7858
      %8178 = vst [vmem:[%s7960] ss:$9 sm:$0xff] %v7859
      %8179 = vst [vmem:[%s7962] ss:$9 sm:$0xff] %v7860
      %v8180 = vld [vmem:[#allocation1] sm:$0xff]
      %8181 = vst [vmem:[#allocation1] ss:$9 sm:$0xff] %v7861
      %8182 = vst [vmem:[%s7950] ss:$9 sm:$0xff] %v7862
      %8183 = vst [vmem:[%s7952] ss:$9 sm:$0xff] %v7863
      %8184 = vst [vmem:[%s7954] ss:$9 sm:$0xff] %v7864
      %8185 = vst [vmem:[%s7956] ss:$9 sm:$0xff] %v7865
      %8186 = vst [vmem:[%s7958] ss:$9 sm:$0xff] %v7866
      %8187 = vst [vmem:[%s7960] ss:$9 sm:$0xff] %v7867
      %8188 = vst [vmem:[%s7962] ss:$9 sm:$0xff] %v7868
      %v8189 = vld [vmem:[#allocation1] sm:$0xff]
      %8190 = vst [vmem:[#allocation1] ss:$9 sm:$0xff] %v7869
      %8191 = vst [vmem:[%s7950] ss:$9 sm:$0xff] %v7870
      %8192 = vst [vmem:[%s7952] ss:$9 sm:$0xff] %v7871
      %8193 = vst [vmem:[%s7954] ss:$9 sm:$0xff] %v7872
      %8194 = vst [vmem:[%s7956] ss:$9 sm:$0xff] %v7873
      %8195 = vst [vmem:[%s7958] ss:$9 sm:$0xff] %v7874
      %8196 = vst [vmem:[%s7960] ss:$9 sm:$0xff] %v7875
      %8197 = vst [vmem:[%s7962] ss:$9 sm:$0xff] %v7876
      %v8198 = vld [vmem:[#allocation1] sm:$0xff]
      %8199 = vst [vmem:[#allocation1] ss:$9 sm:$0xff] %v7877
      %8200 = vst [vmem:[%s7950] ss:$9 sm:$0xff] %v7878
      %8201 = vst [vmem:[%s7952] ss:$9 sm:$0xff] %v7879
      %8202 = vst [vmem:[%s7954] ss:$9 sm:$0xff] %v7880
      %8203 = vst [vmem:[%s7956] ss:$9 sm:$0xff] %v7881
      %8204 = vst [vmem:[%s7958] ss:$9 sm:$0xff] %v7882
      %8205 = vst [vmem:[%s7960] ss:$9 sm:$0xff] %v7883
      %8206 = vst [vmem:[%s7962] ss:$9 sm:$0xff] %v7884
      %v8207 = vld [vmem:[#allocation1] sm:$0xff]
      %8208 = vst [vmem:[#allocation1] ss:$9 sm:$0xff] %v7885
      %8209 = vst [vmem:[%s7950] ss:$9 sm:$0xff] %v7886
      %8210 = vst [vmem:[%s7952] ss:$9 sm:$0xff] %v7887
      %8211 = vst [vmem:[%s7954] ss:$9 sm:$0xff] %v7888
      %8212 = vst [vmem:[%s7956] ss:$9 sm:$0xff] %v7889
      %8213 = vst [vmem:[%s7958] ss:$9 sm:$0xff] %v7890
      %8214 = vst [vmem:[%s7960] ss:$9 sm:$0xff] %v7891
      %8215 = vst [vmem:[%s7962] ss:$9 sm:$0xff] %v7892
      %v8216 = vld [vmem:[#allocation1] sm:$0xff]
      %8217 = vst [vmem:[#allocation1] ss:$9 sm:$0xff] %v7893
      %8218 = vst [vmem:[%s7950] ss:$9 sm:$0xff] %v7894
      %8219 = vst [vmem:[%s7952] ss:$9 sm:$0xff] %v7895
      %8220 = vst [vmem:[%s7954] ss:$9 sm:$0xff] %v7896
      %8221 = vst [vmem:[%s7956] ss:$9 sm:$0xff] %v7897
      %8222 = vst [vmem:[%s7958] ss:$9 sm:$0xff] %v7898
      %8223 = vst [vmem:[%s7960] ss:$9 sm:$0xff] %v7899
      %8224 = vst [vmem:[%s7962] ss:$9 sm:$0xff] %v7900
      %v8225 = vld [vmem:[#allocation1] sm:$0xff]
      %8226 = vst [vmem:[#allocation1] ss:$9 sm:$0xff] %v7901
      %8227 = vst [vmem:[%s7950] ss:$9 sm:$0xff] %v7902
      %8228 = vst [vmem:[%s7952] ss:$9 sm:$0xff] %v7903
      %8229 = vst [vmem:[%s7954] ss:$9 sm:$0xff] %v7904
      %8230 = vst [vmem:[%s7956] ss:$9 sm:$0xff] %v7905
      %8231 = vst [vmem:[%s7958] ss:$9 sm:$0xff] %v7906
      %8232 = vst [vmem:[%s7960] ss:$9 sm:$0xff] %v7907
      %8233 = vst [vmem:[%s7962] ss:$9 sm:$0xff] %v7908
      %v8234 = vld [vmem:[#allocation1] sm:$0xff]
      %8235 = vst [vmem:[#allocation1] ss:$9 sm:$0xff] %v7909
      %8236 = vst [vmem:[%s7950] ss:$9 sm:$0xff] %v7910
      %8237 = vst [vmem:[%s7952] ss:$9 sm:$0xff] %v7911
      %8238 = vst [vmem:[%s7954] ss:$9 sm:$0xff] %v7912
      %8239 = vst [vmem:[%s7956] ss:$9 sm:$0xff] %v7913
      %8240 = vst [vmem:[%s7958] ss:$9 sm:$0xff] %v7914
      %8241 = vst [vmem:[%s7960] ss:$9 sm:$0xff] %v7915
      %8242 = vst [vmem:[%s7962] ss:$9 sm:$0xff] %v7916
      %v8243 = vld [vmem:[#allocation1] sm:$0xff]
      %8244 = vst [vmem:[#allocation1] ss:$9 sm:$0xff] %v7917
      %8245 = vst [vmem:[%s7950] ss:$9 sm:$0xff] %v7918
      %8246 = vst [vmem:[%s7952] ss:$9 sm:$0xff] %v7919
      %8247 = vst [vmem:[%s7954] ss:$9 sm:$0xff] %v7920
      %8248 = vst [vmem:[%s7956] ss:$9 sm:$0xff] %v7921
      %8249 = vst [vmem:[%s7958] ss:$9 sm:$0xff] %v7922
      %8250 = vst [vmem:[%s7960] ss:$9 sm:$0xff] %v7923
      %8251 = vst [vmem:[%s7962] ss:$9 sm:$0xff] %v7924
      %v8252 = vld [vmem:[#allocation1] sm:$0xff]
      %8253 = vst [vmem:[#allocation1] ss:$9 sm:$0xff] %v7925
      %8254 = vst [vmem:[%s7950] ss:$9 sm:$0xff] %v7926
      %8255 = vst [vmem:[%s7952] ss:$9 sm:$0xff] %v7927
      %8256 = vst [vmem:[%s7954] ss:$9 sm:$0xff] %v7928
      %8257 = vst [vmem:[%s7956] ss:$9 sm:$0xff] %v7929
      %8258 = vst [vmem:[%s7958] ss:$9 sm:$0xff] %v7930
      %8259 = vst [vmem:[%s7960] ss:$9 sm:$0xff] %v7931
      %8260 = vst [vmem:[%s7962] ss:$9 sm:$0xff] %v7932
      %v8261 = vld [vmem:[#allocation1] sm:$0xff]
      %8262 = vst [vmem:[#allocation1] ss:$9 sm:$0xff] %v7933
      %8263 = vst [vmem:[%s7950] ss:$9 sm:$0xff] %v7934
      %8264 = vst [vmem:[%s7952] ss:$9 sm:$0xff] %v7935
      %8265 = vst [vmem:[%s7954] ss:$9 sm:$0xff] %v7936
      %8266 = vst [vmem:[%s7956] ss:$9 sm:$0xff] %v7937
      %8267 = vst [vmem:[%s7958] ss:$9 sm:$0xff] %v7938
      %8268 = vst [vmem:[%s7960] ss:$9 sm:$0xff] %v7939
      %8269 = vst [vmem:[%s7962] ss:$9 sm:$0xff] %v7940
      %v8270 = vld [vmem:[#allocation1] sm:$0xff]
      %8271 = vst [vmem:[#allocation1] ss:$9 sm:$0xff] %v7941
      %8272 = vst [vmem:[%s7950] ss:$9 sm:$0xff] %v7942
      %8273 = vst [vmem:[%s7952] ss:$9 sm:$0xff] %v7943
      %8274 = vst [vmem:[%s7954] ss:$9 sm:$0xff] %v7944
      %8275 = vst [vmem:[%s7956] ss:$9 sm:$0xff] %v7945
      %8276 = vst [vmem:[%s7958] ss:$9 sm:$0xff] %v7946
      %8277 = vst [vmem:[%s7960] ss:$9 sm:$0xff] %v7947
      %8278 = vst [vmem:[%s7962] ss:$9 sm:$0xff] %v7948
      %v8279 = vld [vmem:[#allocation1] sm:$0xff]
      %8280 = vset.pattern.permute.xlu0 0
      %8281 = vperm.xlu0 %8280, %v7964
      %v8282 = vpop.permute.xlu0 %8281
      %8283 = vset.pattern.permute.xlu0 0
      %8284 = vperm.xlu0 %8283, %v7973
      %v8285 = vpop.permute.xlu0 %8284
      %8286 = vset.pattern.permute.xlu0 0
      %8287 = vperm.xlu0 %8286, %v7982
      %v8288 = vpop.permute.xlu0 %8287
      %8289 = vset.pattern.permute.xlu0 0
      %8290 = vperm.xlu0 %8289, %v7991
      %v8291 = vpop.permute.xlu0 %8290
      %8292 = vset.pattern.permute.xlu0 0
      %8293 = vperm.xlu0 %8292, %v8000
      %v8294 = vpop.permute.xlu0 %8293
      %8295 = vset.pattern.permute.xlu0 0
      %8296 = vperm.xlu0 %8295, %v8009
      %v8297 = vpop.permute.xlu0 %8296
      %8298 = vset.pattern.permute.xlu0 0
      %8299 = vperm.xlu0 %8298, %v8018
      %v8300 = vpop.permute.xlu0 %8299
      %8301 = vset.pattern.permute.xlu0 0
      %8302 = vperm.xlu0 %8301, %v8027
      %v8303 = vpop.permute.xlu0 %8302
      %8304 = vset.pattern.permute.xlu0 0
      %8305 = vperm.xlu0 %8304, %v8036
      %v8306 = vpop.permute.xlu0 %8305
      %8307 = vset.pattern.permute.xlu0 0
      %8308 = vperm.xlu0 %8307, %v8045
      %v8309 = vpop.permute.xlu0 %8308
      %8310 = vset.pattern.permute.xlu0 0
      %8311 = vperm.xlu0 %8310, %v8054
      %v8312 = vpop.permute.xlu0 %8311
      %8313 = vset.pattern.permute.xlu0 0
      %8314 = vperm.xlu0 %8313, %v8063
      %v8315 = vpop.permute.xlu0 %8314
      %8316 = vset.pattern.permute.xlu0 0
      %8317 = vperm.xlu0 %8316, %v8072
      %v8318 = vpop.permute.xlu0 %8317
      %8319 = vset.pattern.permute.xlu0 0
      %8320 = vperm.xlu0 %8319, %v8081
      %v8321 = vpop.permute.xlu0 %8320
      %8322 = vset.pattern.permute.xlu0 0
      %8323 = vperm.xlu0 %8322, %v8090
      %v8324 = vpop.permute.xlu0 %8323
      %8325 = vset.pattern.permute.xlu0 0
      %8326 = vperm.xlu0 %8325, %v8099
      %v8327 = vpop.permute.xlu0 %8326
      %8328 = vset.pattern.permute.xlu0 0
      %8329 = vperm.xlu0 %8328, %v8108
      %v8330 = vpop.permute.xlu0 %8329
      %8331 = vset.pattern.permute.xlu0 0
      %8332 = vperm.xlu0 %8331, %v8117
      %v8333 = vpop.permute.xlu0 %8332
      %8334 = vset.pattern.permute.xlu0 0
      %8335 = vperm.xlu0 %8334, %v8126
      %v8336 = vpop.permute.xlu0 %8335
      %8337 = vset.pattern.permute.xlu0 0
      %8338 = vperm.xlu0 %8337, %v8135
      %v8339 = vpop.permute.xlu0 %8338
      %8340 = vset.pattern.permute.xlu0 0
      %8341 = vperm.xlu0 %8340, %v8144
      %v8342 = vpop.permute.xlu0 %8341
      %8343 = vset.pattern.permute.xlu0 0
      %8344 = vperm.xlu0 %8343, %v8153
      %v8345 = vpop.permute.xlu0 %8344
      %8346 = vset.pattern.permute.xlu0 0
      %8347 = vperm.xlu0 %8346, %v8162
      %v8348 = vpop.permute.xlu0 %8347
      %8349 = vset.pattern.permute.xlu0 0
      %8350 = vperm.xlu0 %8349, %v8171
      %v8351 = vpop.permute.xlu0 %8350
      %8352 = vset.pattern.permute.xlu0 0
      %8353 = vperm.xlu0 %8352, %v8180
      %v8354 = vpop.permute.xlu0 %8353
      %8355 = vset.pattern.permute.xlu0 0
      %8356 = vperm.xlu0 %8355, %v8189
      %v8357 = vpop.permute.xlu0 %8356
      %8358 = vset.pattern.permute.xlu0 0
      %8359 = vperm.xlu0 %8358, %v8198
      %v8360 = vpop.permute.xlu0 %8359
      %8361 = vset.pattern.permute.xlu0 0
      %8362 = vperm.xlu0 %8361, %v8207
      %v8363 = vpop.permute.xlu0 %8362
      %8364 = vset.pattern.permute.xlu0 0
      %8365 = vperm.xlu0 %8364, %v8216
      %v8366 = vpop.permute.xlu0 %8365
      %8367 = vset.pattern.permute.xlu0 0
      %8368 = vperm.xlu0 %8367, %v8225
      %v8369 = vpop.permute.xlu0 %8368
      %8370 = vset.pattern.permute.xlu0 0
      %8371 = vperm.xlu0 %8370, %v8234
      %v8372 = vpop.permute.xlu0 %8371
      %8373 = vset.pattern.permute.xlu0 0
      %8374 = vperm.xlu0 %8373, %v8243
      %v8375 = vpop.permute.xlu0 %8374
      %8376 = vset.pattern.permute.xlu0 0
      %8377 = vperm.xlu0 %8376, %v8252
      %v8378 = vpop.permute.xlu0 %8377
      %8379 = vset.pattern.permute.xlu0 0
      %8380 = vperm.xlu0 %8379, %v8261
      %v8381 = vpop.permute.xlu0 %8380
      %8382 = vset.pattern.permute.xlu0 0
      %8383 = vperm.xlu0 %8382, %v8270
      %v8384 = vpop.permute.xlu0 %8383
      %8385 = vset.pattern.permute.xlu0 0
      %8386 = vperm.xlu0 %8385, %v8279
      %v8387 = vpop.permute.xlu0 %8386
      %v8388 = vlaneseq
      %v8389 = vand.u32 %v8388, 127
      %v8390 = vperm.slane %v8282, %v8389
      %v8391 = vadd.s32 %v8389, 4294967288
      %v8392 = vperm.slane %v8285, %v8391
      %vm8393 = vcmask 130112
      %v8394 = vsel %vm8393, %v8392, %v8390
      %v8395 = vadd.s32 %v8389, 4294967280
      %v8396 = vperm.slane %v8288, %v8395
      %vm8397 = vcmask 195712
      %v8398 = vsel %vm8397, %v8396, %v8394
      %v8399 = vadd.s32 %v8389, 4294967272
      %v8400 = vperm.slane %v8291, %v8399
      %vm8401 = vcmask 261312
      %v8402 = vsel %vm8401, %v8400, %v8398
      %v8403 = vadd.s32 %v8389, 4294967264
      %v8404 = vperm.slane %v8294, %v8403
      %vm8405 = vcmask 326912
      %v8406 = vsel %vm8405, %v8404, %v8402
      %v8407 = vadd.s32 %v8389, 4294967256
      %v8408 = vperm.slane %v8297, %v8407
      %vm8409 = vcmask 392512
      %v8410 = vsel %vm8409, %v8408, %v8406
      %v8411 = vadd.s32 %v8389, 4294967248
      %v8412 = vperm.slane %v8300, %v8411
      %vm8413 = vcmask 458112
      %v8414 = vsel %vm8413, %v8412, %v8410
      %v8415 = vadd.s32 %v8389, 4294967240
      %v8416 = vperm.slane %v8303, %v8415
      %vm8417 = vcmask 523712
      %v8418 = vsel %vm8417, %v8416, %v8414
      %v8419 = vadd.s32 %v8389, 4294967232
      %v8420 = vperm.slane %v8306, %v8419
      %vm8421 = vcmask 589312
      %v8422 = vsel %vm8421, %v8420, %v8418
      %v8423 = vadd.s32 %v8389, 4294967224
      %v8424 = vperm.slane %v8309, %v8423
      %vm8425 = vcmask 654912
      %v8426 = vsel %vm8425, %v8424, %v8422
      %v8427 = vadd.s32 %v8389, 4294967216
      %v8428 = vperm.slane %v8312, %v8427
      %vm8429 = vcmask 720512
      %v8430 = vsel %vm8429, %v8428, %v8426
      %v8431 = vadd.s32 %v8389, 4294967208
      %v8432 = vperm.slane %v8315, %v8431
      %vm8433 = vcmask 786112
      %v8434 = vsel %vm8433, %v8432, %v8430
      %v8435 = vadd.s32 %v8389, 4294967200
      %v8436 = vperm.slane %v8318, %v8435
      %vm8437 = vcmask 851712
      %v8438 = vsel %vm8437, %v8436, %v8434
      %v8439 = vadd.s32 %v8389, 4294967192
      %v8440 = vperm.slane %v8321, %v8439
      %vm8441 = vcmask 917312
      %v8442 = vsel %vm8441, %v8440, %v8438
      %v8443 = vadd.s32 %v8389, 4294967184
      %v8444 = vperm.slane %v8324, %v8443
      %vm8445 = vcmask 982912
      %v8446 = vsel %vm8445, %v8444, %v8442
      %v8447 = vadd.s32 %v8389, 4294967176
      %v8448 = vperm.slane %v8327, %v8447
      %vm8449 = vcmask 1048512
      %v8450 = vsel %vm8449, %v8448, %v8446
      %v8451 = vperm.slane %v8330, %v8389
      %v8452 = vperm.slane %v8333, %v8391
      %v8453 = vsel %vm8393, %v8452, %v8451
      %v8454 = vperm.slane %v8336, %v8395
      %v8455 = vsel %vm8397, %v8454, %v8453
      %v8456 = vperm.slane %v8339, %v8399
      %v8457 = vsel %vm8401, %v8456, %v8455
      %v8458 = vperm.slane %v8342, %v8403
      %v8459 = vsel %vm8405, %v8458, %v8457
      %v8460 = vperm.slane %v8345, %v8407
      %v8461 = vsel %vm8409, %v8460, %v8459
      %v8462 = vperm.slane %v8348, %v8411
      %v8463 = vsel %vm8413, %v8462, %v8461
      %v8464 = vperm.slane %v8351, %v8415
      %v8465 = vsel %vm8417, %v8464, %v8463
      %v8466 = vperm.slane %v8354, %v8419
      %v8467 = vsel %vm8421, %v8466, %v8465
      %v8468 = vperm.slane %v8357, %v8423
      %v8469 = vsel %vm8425, %v8468, %v8467
      %v8470 = vperm.slane %v8360, %v8427
      %v8471 = vsel %vm8429, %v8470, %v8469
      %v8472 = vperm.slane %v8363, %v8431
      %v8473 = vsel %vm8433, %v8472, %v8471
      %v8474 = vperm.slane %v8366, %v8435
      %v8475 = vsel %vm8437, %v8474, %v8473
      %v8476 = vperm.slane %v8369, %v8439
      %v8477 = vsel %vm8441, %v8476, %v8475
      %v8478 = vperm.slane %v8372, %v8443
      %v8479 = vsel %vm8445, %v8478, %v8477
      %v8480 = vperm.slane %v8375, %v8447
      %v8481 = vsel %vm8449, %v8480, %v8479
      %v8482 = vperm.slane %v8378, %v8389
      %v8483 = vperm.slane %v8381, %v8391
      %v8484 = vsel %vm8393, %v8483, %v8482
      %v8485 = vperm.slane %v8384, %v8395
      %v8486 = vsel %vm8397, %v8485, %v8484
      %v8487 = vperm.slane %v8387, %v8399
      %v8488 = vsel %vm8401, %v8487, %v8486
      %v8489 = vrot.slane %v8481, 7
      %v8490 = vrot.slane %v8488, 6
      %vm8491 = vcmask 1040384
      %v8492 = vsel %vm8491, %v8450, %v8489
      %vm8493 = vcmask 1041408
      %v8494 = vsel %vm8493, %v8492, %v8490
      %v8496 = vlaneseq
      %vm8497 = vcmp.ge.s32.totalorder %v8496, 0
      %vm8498 = vcmp.lt.s32.totalorder %v8496, 288
      %vm8499 = vmand %vm8497, %vm8498
      %8500 = vst.msk [vmem:[%s305] sm:$0x7] %vm8499, %v8494
      %p8501 = scmp.lt.s32.totalorder %s21, 1
      %s8502 = scalar_select %p8501, %s21, 1
      %s8503 = smul.addr %s8502, 3
      %s8504 = scalar_lea.vmem %s8, %s8503
      // Predicated region
      $region53: #{thermal_enhancement_net.1} parent=51 // pred_check
        %p8505 = pneg %p212
      $region54: #{thermal_enhancement_net.1} parent=51 // pred_check_branch
        %8507 = sbr.rel (%p8505) target = $region56
      $region55: #{thermal_enhancement_net.1} parent=51 // pred_region
        _
      $region56: #{thermal_enhancement_net.1} parent=51 // pred_fallthru
        _
    $region52: #{thermal_enhancement_net.1} parent=5 // pred_fallthru
      _
    %p8508 = scmp.le.s32.totalorder 2, %s16
    // Predicated region
    $region57: #{thermal_enhancement_net.1} parent=5 // pred_check
      %p8509 = pneg %p8508
    $region58: #{thermal_enhancement_net.1} parent=5 // pred_check_branch
      %8511 = sbr.rel (%p8509) target = $region60
    $region59: #{thermal_enhancement_net.1} parent=5 // pred_region
      %s8512 = ssub.s32 %s16, 2
      // Predicated region
      $region61: #{thermal_enhancement_net.1} parent=59 // pred_check
        %p8513 = pneg %p218
      $region62: #{thermal_enhancement_net.1} parent=59 // pred_check_branch
        %8515 = sbr.rel (%p8513) target = $region64
      $region63: #{thermal_enhancement_net.1} parent=59 // pred_region
        %p8516 = scmp.lt.s32.totalorder %s22, 1
        %s8517 = scalar_select %p8516, %s22, 1
        %s8518 = smul.addr %s8517, 3
        %s8519 = scalar_lea.vmem %s8, %s8518
      $region64: #{thermal_enhancement_net.1} parent=59 // pred_fallthru
        _
    $region60: #{thermal_enhancement_net.1} parent=5 // pred_fallthru
      _
  $region6: #{thermal_enhancement_net.1} parent=0 // loop_footer
    %s20 = sadd.s32 1, %s16
  $region7: #{thermal_enhancement_net.1} parent=0 // loop_footer_branch
    %15 = sbr.rel target = $region3
  $region8: #{thermal_enhancement_net.1} parent=0 // loop_exit
    _

</llo_original>
